<compile_context>
chip_gen: v6e
topology: v6e:2x2x1
jax: 0.10.0
libtpu: 0.0.40
codegen_flags: <defaults>
</compile_context>

<pallas_src>
import functools

import numpy as np

import jax
import jax.numpy as jnp
from jax import lax
from jax.experimental import pallas as pl
from jax.experimental.pallas import tpu as pltpu

F32 = jnp.float32
BF16 = jnp.bfloat16
EPS = 1e-5
VMEM_LIMIT = 32 * 1024 * 1024


# ----------------------------------------------------------------------------
# LocalModule core (shared):
#   conv1x1 -> depthwise k=3 pad=1 -> GroupNorm -> ReLU -> residual -> LayerNorm
# Operates on a flattened (B_TILE*L, D) slab; per-batch structure handled with masks
# and tiny selection matmuls.
# ----------------------------------------------------------------------------
def _local_core(xm, c1w_ref, c1b_ref, dw_ref, dwb_ref, gmat_ref,
                gng_ref, gnb_ref, lng_ref, lnb_ref, hs_scr, *, BT, L, D, G):
    NT = BT * L

    # pointwise conv (kernel 1) == per-position linear (bf16 MXU, f32 accum)
    h = jnp.dot(xm.astype(BF16), c1w_ref[...],
                preferred_element_type=F32) + c1b_ref[...]

    # depthwise conv k=3 pad=1: one aligned scratch store + two offset reads.
    # Sequence ends / batch-tile boundaries are zeroed with iota masks (select).
    hs_scr[pl.ds(8, NT), :] = h
    h_prev = hs_scr[pl.ds(7, NT), :]
    h_next = hs_scr[pl.ds(9, NT), :]
    ridx = lax.broadcasted_iota(jnp.int32, (NT, 1), 0)
    is_first = (ridx == 0)
    is_last = (ridx == (L - 1))
    for b in range(1, BT):
        is_first = jnp.logical_or(is_first, ridx == b * L)
        is_last = jnp.logical_or(is_last, ridx == b * L + L - 1)
    hd = (jnp.where(is_first, 0.0, h_prev) * dw_ref[0:1, :]
          + h * dw_ref[1:2, :]
          + jnp.where(is_last, 0.0, h_next) * dw_ref[2:3, :]
          + dwb_ref[...])

    # GroupNorm: per batch element, per group.  Per-batch row sums via tiny selection
    # matmuls, group broadcast via the precomputed (D, D) same-group matrix.
    bi = lax.broadcasted_iota(jnp.int32, (BT, NT), 0)
    ci = lax.broadcasted_iota(jnp.int32, (BT, NT), 1)
    sel = jnp.logical_and(ci >= bi * L, ci < (bi + 1) * L).astype(F32)     # (BT, NT)
    rj = lax.broadcasted_iota(jnp.int32, (NT, BT), 0)
    bj = lax.broadcasted_iota(jnp.int32, (NT, BT), 1)
    selT = jnp.logical_and(rj >= bj * L, rj < (bj + 1) * L).astype(F32)    # (NT, BT)

    inv_cnt = 1.0 / float(L * (D // G))
    gmat = gmat_ref[...]
    sums = jnp.dot(sel, hd, preferred_element_type=F32)                    # (BT, D)
    mean_c = jnp.dot(sums, gmat, preferred_element_type=F32) * inv_cnt
    diff = hd - jnp.dot(selT, mean_c, preferred_element_type=F32)
    vsum = jnp.dot(sel, diff * diff, preferred_element_type=F32)
    var_c = jnp.dot(vsum, gmat, preferred_element_type=F32) * inv_cnt
    var_r = jnp.dot(selT, var_c, preferred_element_type=F32)
    hn = jnp.maximum(diff * lax.rsqrt(var_r + EPS) * gng_ref[...] + gnb_ref[...], 0.0)

    # residual + LayerNorm (row-wise over channels)
    r = xm + hn
    mu = jnp.mean(r, axis=1, keepdims=True)
    var = jnp.mean((r - mu) * (r - mu), axis=1, keepdims=True)
    return (r - mu) * lax.rsqrt(var + EPS) * lng_ref[...] + lnb_ref[...]


def _proj_local_kernel(x_ref, m_ref, wp_ref, bp_ref,
                       c1w_ref, c1b_ref, dw_ref, dwb_ref, gmat_ref,
                       gng_ref, gnb_ref, lng_ref, lnb_ref,
                       o_ref, hs_scr, *, BT, L, D, G):
    # fused input_proj -> mask -> LocalModule
    xp = jnp.dot(x_ref[...].astype(BF16), wp_ref[...],
                 preferred_element_type=F32) + bp_ref[...]
    xm = xp * m_ref[...]
    out = _local_core(xm, c1w_ref, c1b_ref, dw_ref, dwb_ref, gmat_ref,
                      gng_ref, gnb_ref, lng_ref, lnb_ref, hs_scr,
                      BT=BT, L=L, D=D, G=G)
    o_ref[...] = out.astype(o_ref.dtype)


def _plain_local_kernel(x_ref, m_ref,
                        c1w_ref, c1b_ref, dw_ref, dwb_ref, gmat_ref,
                        gng_ref, gnb_ref, lng_ref, lnb_ref,
                        o_ref, hs_scr, *, BT, L, D, G):
    xm = x_ref[...] * m_ref[...]
    out = _local_core(xm, c1w_ref, c1b_ref, dw_ref, dwb_ref, gmat_ref,
                      gng_ref, gnb_ref, lng_ref, lnb_ref, hs_scr,
                      BT=BT, L=L, D=D, G=G)
    o_ref[...] = out.astype(o_ref.dtype)


def local_module(xf, mf, lp, gmat, *, b_tile, L, num_groups, proj=None):
    BL = xf.shape[0]
    B = BL // L
    D = gmat.shape[0]
    NT = b_tile * L
    if proj is not None:
        args = [xf, mf, proj["wT"], proj["b"]]
        kern = functools.partial(_proj_local_kernel, BT=b_tile, L=L, D=D, G=num_groups)
    else:
        args = [xf, mf]
        kern = functools.partial(_plain_local_kernel, BT=b_tile, L=L, D=D, G=num_groups)
    args += [lp["conv1_wT"], lp["conv1_b"], lp["dw_w"], lp["dw_b"], gmat,
             lp["gn_g"], lp["gn_b"], lp["ln_g"], lp["ln_b"]]
    in_specs = ([pl.BlockSpec((NT, xf.shape[1]), lambda i: (i, 0)),
                 pl.BlockSpec((NT, 1), lambda i: (i, 0))]
                + [pl.BlockSpec(a.shape, lambda i: (0, 0)) for a in args[2:]])
    return pl.pallas_call(
        kern,
        out_shape=jax.ShapeDtypeStruct((BL, D), F32),
        grid=(B // b_tile,),
        in_specs=in_specs,
        out_specs=pl.BlockSpec((NT, D), lambda i: (i, 0)),
        scratch_shapes=[pltpu.VMEM((NT + 16, D), F32)],   # k=3 shift buffer
        compiler_params=pltpu.CompilerParams(
            dimension_semantics=("parallel",),
            vmem_limit_bytes=VMEM_LIMIT),
    )(*args)


# ----------------------------------------------------------------------------
# MixedModule (one fused kernel per batch tile):
#   y_proj -> mask -> x[:,1:] -> conv1x1+ReLU -> depthwise(k=P,stride=P)
#   -> inject_text -> mamba stand-in over cat(flip(x2), x2) (keep 2nd half, post-norm)
#   -> final_fc + patch upsample -> cat(x[:, :1], .) -> LayerNorm -> single dense store
# ----------------------------------------------------------------------------
def _mixed_kernel(x_ref, m_ref, y_ref, ym_ref,
                  ypw_ref, ypb_ref,
                  c1w_ref, c1b_ref, dww_ref, dwb_ref,
                  fwx_ref, fwy_ref, fb_ref,
                  uwx_ref, uwy_ref, ub_ref,
                  winx_ref, binx_ref, winz_ref, binz_ref,
                  wconv_ref, bconv_ref, a_ref, bvec_ref, cvec_ref, dvec_ref,
                  wout_ref, bout_ref, mng_ref, mnb_ref,
                  finx_ref, finy_ref, finb_ref,
                  tperm_ref, sup_ref,
                  lng_ref, lnb_ref,
                  o_ref,
                  h1_scr, nx1_scr, xi_scr, ys_scr,
                  *, BT, L, D, Di, P, L1, npad, Lp, T, N2):
    NT = BT * L
    pid = pl.program_id(0)

    # ---- masked inputs ----
    xm = x_ref[...] * m_ref[...]                                   # (NT, D)
    y_blk = y_ref[pl.ds(pid * BT, BT), :]                          # (BT, in_dim)
    ym_blk = ym_ref[pl.ds(pid * BT, BT), :]                        # (BT, 1)
    yp = (jnp.dot(y_blk.astype(BF16), ypw_ref[...],
                  preferred_element_type=F32) + ypb_ref[...]) * ym_blk   # (BT, D)

    # ---- local_conv part 1: conv1x1 + ReLU over the whole slab ----
    h1 = jnp.maximum(jnp.dot(xm.astype(BF16), c1w_ref[...],
                             preferred_element_type=F32) + c1b_ref[...], 0.0)
    h1_scr[pl.ds(0, NT), :] = h1
    relu_b = jnp.maximum(c1b_ref[...], 0.0)        # value of zero-padded x1 rows

    # ---- depthwise conv k=P, stride=P (patch downsample): strided reads per tap ----
    dw_rows = [dww_ref[j:j + 1, :] for j in range(P)]
    dwb = dwb_ref[...]
    lastrow = (lax.broadcasted_iota(jnp.int32, (Lp, 1), 0) == (Lp - 1))
    for b in range(BT):
        acc = jnp.zeros((Lp, D), F32) + dwb
        for j in range(P):
            tap = h1_scr[pl.ds(b * L + 1 + j, Lp, stride=P), :]    # (Lp, D)
            if npad > 0 and j >= P - npad:
                tap = jnp.where(lastrow, relu_b, tap)              # x1 pad rows
            acc = acc + dw_rows[j] * tap
        nx1_scr[pl.ds(b * Lp, Lp), :] = acc
    nx1 = nx1_scr[...]                                             # (N2, D) batch-major

    # ---- inject_text (concat folded into split weight matmuls) ----
    q_i = lax.broadcasted_iota(jnp.int32, (N2, BT), 0)
    b_i = lax.broadcasted_iota(jnp.int32, (N2, BT), 1)
    selT = jnp.logical_and(q_i >= b_i * Lp, q_i < (b_i + 1) * Lp).astype(F32)
    yp_rows = jnp.dot(selT, yp, preferred_element_type=F32)        # y repeated per row
    nx1b = nx1.astype(BF16)
    y_hat = (jnp.dot(nx1b, fwx_ref[...], preferred_element_type=F32)
             + jnp.dot(yp_rows.astype(BF16), fwy_ref[...], preferred_element_type=F32)
             + fb_ref[...])
    yh = yp_rows * jax.nn.sigmoid(y_hat)
    x2 = (jnp.dot(nx1b, uwx_ref[...], preferred_element_type=F32)
          + jnp.dot(yh.astype(BF16), uwy_ref[...], preferred_element_type=F32)
          + ub_ref[...])                                           # (N2, D)

    # ---- global_mamba stand-in over cat(flip(x2), x2), keep 2nd half.
    # TODO(synk): real Mamba selective-scan mixer has no reference here; deterministic
    # gated diagonal-SSM stand-in (causal conv4 + SiLU + linear recurrence + SiLU(z)
    # gate + out-proj), wrapped in the BaseMambaBlock post-norm residual.
    x2b16 = x2.astype(BF16)
    xi = jnp.dot(x2b16, winx_ref[...], preferred_element_type=F32) + binx_ref[...]
    z = jnp.dot(x2b16, winz_ref[...], preferred_element_type=F32) + binz_ref[...]
    xi_scr[...] = xi                                               # (N2, Di)

    wc_rows = [wconv_ref[k:k + 1, :] for k in range(4)]
    bconv = bconv_ref[...]
    a = a_ref[...]
    bv = bvec_ref[...]
    cv = cvec_ref[...]
    dv = dvec_ref[...]
    h = jnp.zeros((BT, Di), F32)
    # The flip is never materialized: conv taps index the un-flipped xi at reversed
    # positions via strided reads; recurrence is vectorized across the batch tile.
    # (For large T switch to lax.fori_loop(..., unroll=True); T is small & static here.)
    for t in range(T):
        xc = jnp.zeros((BT, Di), F32) + bconv
        for k in range(4):
            pos = t - 3 + k
            if pos < 0:
                continue                                           # causal zero pad
            row = (Lp - 1 - pos) if pos < Lp else (pos - Lp)
            xc = xc + wc_rows[k] * xi_scr[pl.ds(row, BT, stride=Lp), :]
        xc = xc * jax.nn.sigmoid(xc)                               # SiLU
        h = a * h + bv * xc
        if t >= Lp:                                                # kept (2nd) half
            ys_scr[pl.ds((t - Lp) * BT, BT), :] = cv * h + dv * xc  # time-major

    y_ssm = jnp.dot(tperm_ref[...], ys_scr[...],
                    preferred_element_type=F32)                    # -> batch-major
    gated = y_ssm * (z * jax.nn.sigmoid(z))
    mix = jnp.dot(gated.astype(BF16), wout_ref[...],
                  preferred_element_type=F32) + bout_ref[...]
    # BaseMambaBlock post-norm: LN(x + mixer(x))
    rm = x2 + mix
    mu_m = jnp.mean(rm, axis=1, keepdims=True)
    var_m = jnp.mean((rm - mu_m) * (rm - mu_m), axis=1, keepdims=True)
    x2m = (rm - mu_m) * lax.rsqrt(var_m + EPS) * mng_ref[...] + mnb_ref[...]

    # ---- final_fc (split weights), patch upsample folded AFTER its matmul ----
    g = jnp.dot(x2m.astype(BF16), finy_ref[...],
                preferred_element_type=F32) + finb_ref[...]        # (N2, D)
    gup = jnp.dot(sup_ref[...], g, preferred_element_type=F32)     # upsample + crop
    fx = jnp.dot(xm.astype(BF16), finx_ref[...], preferred_element_type=F32)

    ridx = lax.broadcasted_iota(jnp.int32, (NT, 1), 0)
    is_row0 = (ridx == 0)
    for b in range(1, BT):
        is_row0 = jnp.logical_or(is_row0, ridx == b * L)
    pre = jnp.where(is_row0, xm, fx + gup)                         # cat(x[:, :1], nx)

    # ---- LayerNorm + single dense output store ----
    mu = jnp.mean(pre, axis=1, keepdims=True)
    var = jnp.mean((pre - mu) * (pre - mu), axis=1, keepdims=True)
    o_ref[...] = ((pre - mu) * lax.rsqrt(var + EPS) * lng_ref[...]
                  + lnb_ref[...]).astype(o_ref.dtype)


def _build_scatter_mats(b_tile, L, P):
    """Constant 0/1 matrices: time-major->batch-major permutation and patch upsample."""
    L1 = L - 1
    npad = (-L1) % P
    Lp = (L1 + npad) // P
    NT = b_tile * L
    N2 = b_tile * Lp
    tperm = np.zeros((N2, N2), np.float32)
    sup = np.zeros((NT, N2), np.float32)
    for b in range(b_tile):
        for p in range(Lp):
            tperm[b * Lp + p, p * b_tile + b] = 1.0
        for l in range(L1):
            sup[b * L + 1 + l, b * Lp + l // P] = 1.0
    return jnp.asarray(tperm), jnp.asarray(sup)


def mixed_module(xf, mf, yf, ymf, yproj, mp, *, b_tile, L, patch_size):
    BL, D = xf.shape
    B = BL // L
    P = patch_size
    L1 = L - 1
    npad = (-L1) % P
    Lp = (L1 + npad) // P
    T = 2 * Lp
    N2 = b_tile * Lp
    NT = b_tile * L
    mb = mp["mamba"]
    Di = mb["winx"].shape[1]
    tperm, sup = _build_scatter_mats(b_tile, L, P)

    args = [xf, mf, yf, ymf,
            yproj["wT"], yproj["b"],
            mp["conv1_wT"], mp["conv1_b"], mp["dw_w"], mp["dw_b"],
            mp["f_wx"], mp["f_wy"], mp["f_b"],
            mp["fuse_wx"], mp["fuse_wy"], mp["fuse_b"],
            mb["winx"], mb["binx"], mb["winz"], mb["binz"],
            mb["wconv"], mb["bconv"], mb["a"], mb["b"], mb["c"], mb["d"],
            mb["wout"], mb["bout"], mb["norm_g"], mb["norm_b"],
            mp["final_wx"], mp["final_wy"], mp["final_b"],
            tperm, sup,
            mp["ln_g"], mp["ln_b"]]
    in_specs = ([pl.BlockSpec((NT, D), lambda i: (i, 0)),
                 pl.BlockSpec((NT, 1), lambda i: (i, 0))]
                + [pl.BlockSpec(a.shape, lambda i: (0, 0)) for a in args[2:]])
    kern = functools.partial(_mixed_kernel, BT=b_tile, L=L, D=D, Di=Di, P=P,
                             L1=L1, npad=npad, Lp=Lp, T=T, N2=N2)
    return pl.pallas_call(
        kern,
        out_shape=jax.ShapeDtypeStruct((BL, D), F32),
        grid=(B // b_tile,),
        in_specs=in_specs,
        out_specs=pl.BlockSpec((NT, D), lambda i: (i, 0)),
        scratch_shapes=[pltpu.VMEM((NT + 8, D), F32),   # conv1x1+ReLU slab (strided reads)
                        pltpu.VMEM((N2, D), F32),       # downsampled patches
                        pltpu.VMEM((N2, Di), F32),      # mamba input projection
                        pltpu.VMEM((N2, Di), F32)],     # kept-half SSM outputs (time-major)
        compiler_params=pltpu.CompilerParams(
            dimension_semantics=("parallel",),
            vmem_limit_bytes=VMEM_LIMIT),
    )(*args)


# ----------------------------------------------------------------------------
# StageBlock: 3 fused pallas_calls on flattened (B*L, D) tensors.
# ----------------------------------------------------------------------------
@functools.partial(jax.jit, static_argnames=("num_groups", "patch_size", "b_tile"))
def stage_block(x, x_mask, y, y_mask, pp, *, num_groups=16, patch_size=8, b_tile=1):
    B, L, Din = x.shape
    D = pp["gmat"].shape[0]
    assert B % b_tile == 0, "batch must be divisible by b_tile"
    if (b_tile * L) % 8 != 0 and b_tile != B:
        b_tile = B   # keep block second-minor dim tileable (or cover the full dim)

    xf = x.reshape(B * L, Din)
    mf = x_mask.astype(F32).reshape(B * L, 1)
    yf = y.reshape(B, Din)
    ymf = y_mask.astype(F32).reshape(B, 1)

    h = local_module(xf, mf, pp["local1"], pp["gmat"], b_tile=b_tile, L=L,
                     num_groups=num_groups, proj=pp["input_proj"])
    h = mixed_module(h, mf, yf, ymf, pp["y_proj"], pp["mixed"],
                     b_tile=b_tile, L=L, patch_size=patch_size)
    h = local_module(h, mf, pp["local2"], pp["gmat"], b_tile=b_tile, L=L,
                     num_groups=num_groups)
    return h.reshape(B, L, D), y                       # original y is returned


# ----------------------------------------------------------------------------
# One-time weight preparation (transpose / split / reshape / bf16 cast, off hot path)
# ----------------------------------------------------------------------------
def prepare_params(raw, *, dim, num_groups, patch_size):
    D, G, P = dim, num_groups, patch_size
    cpg = D // G
    ids = jnp.arange(D) // cpg
    gmat = (ids[:, None] == ids[None, :]).astype(F32)          # same-group 0/1 matrix

    def w(m):                                                  # MXU weights -> bf16
        return m.astype(BF16)

    def prep_local(lp):
        return dict(
            conv1_wT=w(lp["conv1_w"].reshape(D, D).T), conv1_b=lp["conv1_b"].reshape(1, D),
            dw_w=lp["dwconv_w"].reshape(D, 3).T, dw_b=lp["dwconv_b"].reshape(1, D),
            gn_g=lp["gn_g"].reshape(1, D), gn_b=lp["gn_b"].reshape(1, D),
            ln_g=lp["ln_g"].reshape(1, D), ln_b=lp["ln_b"].reshape(1, D),
        )

    m = raw["mixed"]
    mb = m["mamba"]
    Di = mb["winx"].shape[0]
    return dict(
        gmat=gmat,
        input_proj=dict(wT=w(raw["input_proj_w"].T), b=raw["input_proj_b"].reshape(1, D)),
        y_proj=dict(wT=w(raw["y_proj_w"].T), b=raw["y_proj_b"].reshape(1, D)),
        local1=prep_local(raw["local1"]),
        local2=prep_local(raw["local2"]),
        mixed=dict(
            conv1_wT=w(m["conv1_w"].reshape(D, D).T), conv1_b=m["conv1_b"].reshape(1, D),
            dw_w=m["dwconv_w"].reshape(D, P).T, dw_b=m["dwconv_b"].reshape(1, D),
            f_wx=w(m["f_w"][:, :D].T), f_wy=w(m["f_w"][:, D:].T),
            f_b=m["f_b"].reshape(1, D),
            fuse_wx=w(m["fuse_w"][:, :D].T), fuse_wy=w(m["fuse_w"][:, D:].T),
            fuse_b=m["fuse_b"].reshape(1, D),
            final_wx=w(m["final_w"][:, :D].T), final_wy=w(m["final_w"][:, D:].T),
            final_b=m["final_b"].reshape(1, D),
            ln_g=m["ln_g"].reshape(1, D), ln_b=m["ln_b"].reshape(1, D),
            mamba=dict(
                winx=w(mb["winx"].T), binx=mb["binx"].reshape(1, Di),
                winz=w(mb["winz"].T), binz=mb["binz"].reshape(1, Di),
                wconv=mb["wconv"].T, bconv=mb["bconv"].reshape(1, Di),
                a=mb["a"].reshape(1, Di), b=mb["b"].reshape(1, Di),
                c=mb["c"].reshape(1, Di), d=mb["dskip"].reshape(1, Di),
                wout=w(mb["wout"].T), bout=mb["bout"].reshape(1, D),
                norm_g=mb["norm_g"].reshape(1, D), norm_b=mb["norm_b"].reshape(1, D),
            ),
        ),
    )


# ----------------------------------------------------------------------------
# Deterministic parameter init (torch-like shapes from the PyTorch module __init__)
# ----------------------------------------------------------------------------
def init_params(key, in_dim, dim, patch_size):
    keys = iter(jax.random.split(key, 64))

    def nrm(shape, scale=0.1):
        return scale * jax.random.normal(next(keys), shape, dtype=F32)

    def local_params():
        return dict(
            conv1_w=nrm((dim, dim, 1)), conv1_b=nrm((dim,)),
            dwconv_w=nrm((dim, 1, 3)), dwconv_b=nrm((dim,)),
            gn_g=1.0 + nrm((dim,)), gn_b=nrm((dim,)),
            ln_g=1.0 + nrm((dim,)), ln_b=nrm((dim,)),
        )

    di = 2 * dim
    return dict(
        input_proj_w=nrm((dim, in_dim)), input_proj_b=nrm((dim,)),
        y_proj_w=nrm((dim, in_dim)), y_proj_b=nrm((dim,)),
        local1=local_params(),
        local2=local_params(),
        mixed=dict(
            conv1_w=nrm((dim, dim, 1)), conv1_b=nrm((dim,)),
            dwconv_w=nrm((dim, 1, patch_size)), dwconv_b=nrm((dim,)),
            f_w=nrm((dim, 2 * dim)), f_b=nrm((dim,)),
            fuse_w=nrm((dim, 2 * dim)), fuse_b=nrm((dim,)),
            final_w=nrm((dim, 2 * dim)), final_b=nrm((dim,)),
            ln_g=1.0 + nrm((dim,)), ln_b=nrm((dim,)),
            mamba=dict(                                          # deterministic stand-in
                winx=nrm((di, dim)), binx=nrm((di,)),
                winz=nrm((di, dim)), binz=nrm((di,)),
                wconv=nrm((di, 4)), bconv=nrm((di,)),
                a=jax.nn.sigmoid(nrm((di,), 1.0) + 2.0),
                b=nrm((di,)), c=nrm((di,)), dskip=nrm((di,)),
                wout=nrm((dim, di)), bout=nrm((dim,)),
                norm_g=1.0 + nrm((dim,)), norm_b=nrm((dim,)),
            ),
        ),
    )


if __name__ == "__main__":
    B, L, IN_DIM, DIM = 4, 16, 16, 32
    NUM_GROUPS, PATCH, B_TILE = 16, 8, 2

    key = jax.random.PRNGKey(0)
    kx, ky, kp = jax.random.split(key, 3)
    x = jax.random.normal(kx, (B, L, IN_DIM), dtype=F32)
    y = jax.random.normal(ky, (B, 1, IN_DIM), dtype=F32)
    lens = jnp.array([L, 11, 7, L])
    x_mask = jnp.arange(L)[None, :] < lens[:, None]              # (B, L) bool
    y_mask = jnp.array([[True], [True], [False], [True]])        # (B, 1) bool

    raw_params = init_params(kp, IN_DIM, DIM, PATCH)
    pp = prepare_params(raw_params, dim=DIM, num_groups=NUM_GROUPS, patch_size=PATCH)

    x_out, y_out = stage_block(x, x_mask, y, y_mask, pp,
                               num_groups=NUM_GROUPS, patch_size=PATCH, b_tile=B_TILE)
    jax.block_until_ready((x_out, y_out))
    assert x_out.shape == (B, L, DIM) and y_out.shape == (B, 1, IN_DIM)
    assert bool(jnp.all(jnp.isfinite(x_out)))
    print("KERNEL_OK")
</pallas_src>

<mosaic_0001>
module attributes {stable_mosaic.version = 11 : i64} {
  func.func @_proj_local_kernel(%arg0: i32, %arg1: memref<32x16xf32, #tpu.memory_space<vmem>>, %arg2: memref<32x1xf32, #tpu.memory_space<vmem>>, %arg3: memref<16x32xbf16, #tpu.memory_space<vmem>>, %arg4: memref<1x32xf32, #tpu.memory_space<vmem>>, %arg5: memref<32x32xbf16, #tpu.memory_space<vmem>>, %arg6: memref<1x32xf32, #tpu.memory_space<vmem>>, %arg7: memref<3x32xf32, #tpu.memory_space<vmem>>, %arg8: memref<1x32xf32, #tpu.memory_space<vmem>>, %arg9: memref<32x32xf32, #tpu.memory_space<vmem>>, %arg10: memref<1x32xf32, #tpu.memory_space<vmem>>, %arg11: memref<1x32xf32, #tpu.memory_space<vmem>>, %arg12: memref<1x32xf32, #tpu.memory_space<vmem>>, %arg13: memref<1x32xf32, #tpu.memory_space<vmem>>, %arg14: memref<32x32xf32, #tpu.memory_space<vmem>>, %arg15: memref<48x32xf32, #tpu.memory_space<vmem>>) attributes {dimension_semantics = [#tpu.dimension_semantics<parallel>], iteration_bounds = array<i64: 2>, scalar_prefetch = 0 : i64, scratch_operands = 1 : i64, tpu.core_type = #tpu.core_type<tc>, window_params = [{transform_indices = @transform_0, window_bounds = array<i64: 32, 16>}, {transform_indices = @transform_1, window_bounds = array<i64: 32, 1>}, {pipeline_mode = #tpu.pipeline_mode<synchronous>, transform_indices = @transform_2, window_bounds = array<i64: 16, 32>}, {pipeline_mode = #tpu.pipeline_mode<synchronous>, transform_indices = @transform_3, window_bounds = array<i64: 1, 32>}, {pipeline_mode = #tpu.pipeline_mode<synchronous>, transform_indices = @transform_4, window_bounds = array<i64: 32, 32>}, {pipeline_mode = #tpu.pipeline_mode<synchronous>, transform_indices = @transform_5, window_bounds = array<i64: 1, 32>}, {pipeline_mode = #tpu.pipeline_mode<synchronous>, transform_indices = @transform_6, window_bounds = array<i64: 3, 32>}, {pipeline_mode = #tpu.pipeline_mode<synchronous>, transform_indices = @transform_7, window_bounds = array<i64: 1, 32>}, {pipeline_mode = #tpu.pipeline_mode<synchronous>, transform_indices = @transform_8, window_bounds = array<i64: 32, 32>}, {pipeline_mode = #tpu.pipeline_mode<synchronous>, transform_indices = @transform_9, window_bounds = array<i64: 1, 32>}, {pipeline_mode = #tpu.pipeline_mode<synchronous>, transform_indices = @transform_10, window_bounds = array<i64: 1, 32>}, {pipeline_mode = #tpu.pipeline_mode<synchronous>, transform_indices = @transform_11, window_bounds = array<i64: 1, 32>}, {pipeline_mode = #tpu.pipeline_mode<synchronous>, transform_indices = @transform_12, window_bounds = array<i64: 1, 32>}, {transform_indices = @transform_13, window_bounds = array<i64: 32, 32>}]} {
    %c0 = arith.constant 0 : index
    %c0_0 = arith.constant 0 : index
    %0 = vector.load %arg1[%c0, %c0_0] : memref<32x16xf32, #tpu.memory_space<vmem>>, vector<32x16xf32>
    %1 = arith.truncf %0 : vector<32x16xf32> to vector<32x16xbf16>
    %c0_1 = arith.constant 0 : index
    %c0_2 = arith.constant 0 : index
    %2 = vector.load %arg3[%c0_1, %c0_2] : memref<16x32xbf16, #tpu.memory_space<vmem>>, vector<16x32xbf16>
    %cst = arith.constant dense<0.000000e+00> : vector<32x32xf32>
    %3 = tpu.matmul %1, %2, %cst {dimension_numbers = #tpu.dot_dimension_numbers<[1], [0], [0], [1], [0, 0, 1, 1], [], []>} : vector<32x16xbf16>, vector<16x32xbf16>, vector<32x32xf32> -> vector<32x32xf32>
    %c0_3 = arith.constant 0 : index
    %c0_4 = arith.constant 0 : index
    %4 = vector.load %arg4[%c0_3, %c0_4] : memref<1x32xf32, #tpu.memory_space<vmem>>, vector<1x32xf32>
    %5 = vector.broadcast %4 : vector<1x32xf32> to vector<32x32xf32>
    %6 = arith.addf %3, %5 : vector<32x32xf32>
    %c0_5 = arith.constant 0 : index
    %c0_6 = arith.constant 0 : index
    %7 = vector.load %arg2[%c0_5, %c0_6] : memref<32x1xf32, #tpu.memory_space<vmem>>, vector<32x1xf32>
    %8 = vector.broadcast %7 : vector<32x1xf32> to vector<32x32xf32>
    %9 = arith.mulf %6, %8 : vector<32x32xf32>
    %10 = arith.truncf %9 : vector<32x32xf32> to vector<32x32xbf16>
    %c0_7 = arith.constant 0 : index
    %c0_8 = arith.constant 0 : index
    %11 = vector.load %arg5[%c0_7, %c0_8] : memref<32x32xbf16, #tpu.memory_space<vmem>>, vector<32x32xbf16>
    %cst_9 = arith.constant dense<0.000000e+00> : vector<32x32xf32>
    %12 = tpu.matmul %10, %11, %cst_9 {dimension_numbers = #tpu.dot_dimension_numbers<[1], [0], [0], [1], [0, 0, 1, 1], [], []>} : vector<32x32xbf16>, vector<32x32xbf16>, vector<32x32xf32> -> vector<32x32xf32>
    %c0_10 = arith.constant 0 : index
    %c0_11 = arith.constant 0 : index
    %13 = vector.load %arg6[%c0_10, %c0_11] : memref<1x32xf32, #tpu.memory_space<vmem>>, vector<1x32xf32>
    %14 = vector.broadcast %13 : vector<1x32xf32> to vector<32x32xf32>
    %15 = arith.addf %12, %14 : vector<32x32xf32>
    %c8 = arith.constant 8 : index
    %c0_12 = arith.constant 0 : index
    %16 = vector.load %arg15[%c8, %c0_12] : memref<48x32xf32, #tpu.memory_space<vmem>>, vector<32x32xf32>
    tpu.vector_store %arg15[%c8, %c0_12], %15 {strides = array<i32>} : memref<48x32xf32, #tpu.memory_space<vmem>>, vector<32x32xf32>,
    %c7 = arith.constant 7 : index
    %c0_13 = arith.constant 0 : index
    %17 = vector.load %arg15[%c7, %c0_13] : memref<48x32xf32, #tpu.memory_space<vmem>>, vector<32x32xf32>
    %c9 = arith.constant 9 : index
    %c0_14 = arith.constant 0 : index
    %18 = vector.load %arg15[%c9, %c0_14] : memref<48x32xf32, #tpu.memory_space<vmem>>, vector<32x32xf32>
    %19 = tpu.iota {dimensions = array<i32: 0>} : vector<32x1xi32>
    %c0_i32 = arith.constant 0 : i32
    %20 = vector.broadcast %c0_i32 : i32 to vector<32x1xi32>
    %21 = arith.cmpi eq, %19, %20 : vector<32x1xi32>
    %c15_i32 = arith.constant 15 : i32
    %22 = vector.broadcast %c15_i32 : i32 to vector<32x1xi32>
    %23 = arith.cmpi eq, %19, %22 : vector<32x1xi32>
    %c16_i32 = arith.constant 16 : i32
    %24 = vector.broadcast %c16_i32 : i32 to vector<32x1xi32>
    %25 = arith.cmpi eq, %19, %24 : vector<32x1xi32>
    %26 = arith.ori %21, %25 : vector<32x1xi1>
    %c31_i32 = arith.constant 31 : i32
    %27 = vector.broadcast %c31_i32 : i32 to vector<32x1xi32>
    %28 = arith.cmpi eq, %19, %27 : vector<32x1xi32>
    %29 = arith.ori %23, %28 : vector<32x1xi1>
    %cst_15 = arith.constant 0.000000e+00 : f32
    %30 = vector.shape_cast %26 : vector<32x1xi1> to vector<32x1xi1>
    %31 = vector.broadcast %30 : vector<32x1xi1> to vector<32x32xi1>
    %32 = vector.broadcast %cst_15 : f32 to vector<32x32xf32>
    %33 = arith.select %31, %32, %17 : vector<32x32xi1>, vector<32x32xf32>
    %c0_16 = arith.constant 0 : index
    %c0_17 = arith.constant 0 : index
    %34 = vector.load %arg7[%c0_16, %c0_17] : memref<3x32xf32, #tpu.memory_space<vmem>>, vector<1x32xf32>
    %35 = vector.broadcast %34 : vector<1x32xf32> to vector<32x32xf32>
    %36 = arith.mulf %33, %35 : vector<32x32xf32>
    %c1 = arith.constant 1 : index
    %c0_18 = arith.constant 0 : index
    %37 = vector.load %arg7[%c1, %c0_18] : memref<3x32xf32, #tpu.memory_space<vmem>>, vector<1x32xf32>
    %38 = vector.broadcast %37 : vector<1x32xf32> to vector<32x32xf32>
    %39 = arith.mulf %15, %38 : vector<32x32xf32>
    %40 = arith.addf %36, %39 : vector<32x32xf32>
    %cst_19 = arith.constant 0.000000e+00 : f32
    %41 = vector.shape_cast %29 : vector<32x1xi1> to vector<32x1xi1>
    %42 = vector.broadcast %41 : vector<32x1xi1> to vector<32x32xi1>
    %43 = vector.broadcast %cst_19 : f32 to vector<32x32xf32>
    %44 = arith.select %42, %43, %18 : vector<32x32xi1>, vector<32x32xf32>
    %c2 = arith.constant 2 : index
    %c0_20 = arith.constant 0 : index
    %45 = vector.load %arg7[%c2, %c0_20] : memref<3x32xf32, #tpu.memory_space<vmem>>, vector<1x32xf32>
    %46 = vector.broadcast %45 : vector<1x32xf32> to vector<32x32xf32>
    %47 = arith.mulf %44, %46 : vector<32x32xf32>
    %48 = arith.addf %40, %47 : vector<32x32xf32>
    %c0_21 = arith.constant 0 : index
    %c0_22 = arith.constant 0 : index
    %49 = vector.load %arg8[%c0_21, %c0_22] : memref<1x32xf32, #tpu.memory_space<vmem>>, vector<1x32xf32>
    %50 = vector.broadcast %49 : vector<1x32xf32> to vector<32x32xf32>
    %51 = arith.addf %48, %50 : vector<32x32xf32>
    %52 = tpu.iota {dimensions = array<i32: 0>} : vector<2x32xi32>
    %53 = tpu.iota {dimensions = array<i32: 1>} : vector<2x32xi32>
    %c16_i32_23 = arith.constant 16 : i32
    %54 = vector.broadcast %c16_i32_23 : i32 to vector<2x32xi32>
    %55 = arith.muli %52, %54 : vector<2x32xi32>
    %56 = arith.cmpi sge, %53, %55 : vector<2x32xi32>
    %c1_i32 = arith.constant 1 : i32
    %57 = vector.broadcast %c1_i32 : i32 to vector<2x32xi32>
    %58 = arith.addi %52, %57 : vector<2x32xi32>
    %c16_i32_24 = arith.constant 16 : i32
    %59 = vector.broadcast %c16_i32_24 : i32 to vector<2x32xi32>
    %60 = arith.muli %58, %59 : vector<2x32xi32>
    %61 = arith.cmpi slt, %53, %60 : vector<2x32xi32>
    %62 = arith.andi %56, %61 : vector<2x32xi1>
    %63 = arith.extui %62 : vector<2x32xi1> to vector<2x32xi32>
    %64 = arith.sitofp %63 : vector<2x32xi32> to vector<2x32xf32>
    %65 = tpu.iota {dimensions = array<i32: 0>} : vector<32x2xi32>
    %66 = tpu.iota {dimensions = array<i32: 1>} : vector<32x2xi32>
    %c16_i32_25 = arith.constant 16 : i32
    %67 = vector.broadcast %c16_i32_25 : i32 to vector<32x2xi32>
    %68 = arith.muli %66, %67 : vector<32x2xi32>
    %69 = arith.cmpi sge, %65, %68 : vector<32x2xi32>
    %c1_i32_26 = arith.constant 1 : i32
    %70 = vector.broadcast %c1_i32_26 : i32 to vector<32x2xi32>
    %71 = arith.addi %66, %70 : vector<32x2xi32>
    %c16_i32_27 = arith.constant 16 : i32
    %72 = vector.broadcast %c16_i32_27 : i32 to vector<32x2xi32>
    %73 = arith.muli %71, %72 : vector<32x2xi32>
    %74 = arith.cmpi slt, %65, %73 : vector<32x2xi32>
    %75 = arith.andi %69, %74 : vector<32x2xi1>
    %76 = arith.extui %75 : vector<32x2xi1> to vector<32x2xi32>
    %77 = arith.sitofp %76 : vector<32x2xi32> to vector<32x2xf32>
    %c0_28 = arith.constant 0 : index
    %c0_29 = arith.constant 0 : index
    %78 = vector.load %arg9[%c0_28, %c0_29] : memref<32x32xf32, #tpu.memory_space<vmem>>, vector<32x32xf32>
    %cst_30 = arith.constant dense<0.000000e+00> : vector<2x32xf32>
    %79 = tpu.matmul %64, %51, %cst_30 {dimension_numbers = #tpu.dot_dimension_numbers<[1], [0], [0], [1], [0, 0, 1, 1], [], []>} : vector<2x32xf32>, vector<32x32xf32>, vector<2x32xf32> -> vector<2x32xf32>
    %cst_31 = arith.constant dense<0.000000e+00> : vector<2x32xf32>
    %80 = tpu.matmul %79, %78, %cst_31 {dimension_numbers = #tpu.dot_dimension_numbers<[1], [0], [0], [1], [0, 0, 1, 1], [], []>} : vector<2x32xf32>, vector<32x32xf32>, vector<2x32xf32> -> vector<2x32xf32>
    %cst_32 = arith.constant 3.125000e-02 : f32
    %81 = vector.broadcast %cst_32 : f32 to vector<2x32xf32>
    %82 = arith.mulf %80, %81 : vector<2x32xf32>
    %cst_33 = arith.constant dense<0.000000e+00> : vector<32x32xf32>
    %83 = tpu.matmul %77, %82, %cst_33 {dimension_numbers = #tpu.dot_dimension_numbers<[1], [0], [0], [1], [0, 0, 1, 1], [], []>} : vector<32x2xf32>, vector<2x32xf32>, vector<32x32xf32> -> vector<32x32xf32>
    %84 = arith.subf %51, %83 : vector<32x32xf32>
    %85 = arith.mulf %84, %84 : vector<32x32xf32>
    %cst_34 = arith.constant dense<0.000000e+00> : vector<2x32xf32>
    %86 = tpu.matmul %64, %85, %cst_34 {dimension_numbers = #tpu.dot_dimension_numbers<[1], [0], [0], [1], [0, 0, 1, 1], [], []>} : vector<2x32xf32>, vector<32x32xf32>, vector<2x32xf32> -> vector<2x32xf32>
    %cst_35 = arith.constant dense<0.000000e+00> : vector<2x32xf32>
    %87 = tpu.matmul %86, %78, %cst_35 {dimension_numbers = #tpu.dot_dimension_numbers<[1], [0], [0], [1], [0, 0, 1, 1], [], []>} : vector<2x32xf32>, vector<32x32xf32>, vector<2x32xf32> -> vector<2x32xf32>
    %cst_36 = arith.constant 3.125000e-02 : f32
    %88 = vector.broadcast %cst_36 : f32 to vector<2x32xf32>
    %89 = arith.mulf %87, %88 : vector<2x32xf32>
    %cst_37 = arith.constant dense<0.000000e+00> : vector<32x32xf32>
    %90 = tpu.matmul %77, %89, %cst_37 {dimension_numbers = #tpu.dot_dimension_numbers<[1], [0], [0], [1], [0, 0, 1, 1], [], []>} : vector<32x2xf32>, vector<2x32xf32>, vector<32x32xf32> -> vector<32x32xf32>
    %cst_38 = arith.constant 9.99999974E-6 : f32
    %91 = vector.broadcast %cst_38 : f32 to vector<32x32xf32>
    %92 = arith.addf %90, %91 : vector<32x32xf32>
    %93 = math.rsqrt %92 : vector<32x32xf32>
    %94 = arith.mulf %84, %93 : vector<32x32xf32>
    %c0_39 = arith.constant 0 : index
    %c0_40 = arith.constant 0 : index
    %95 = vector.load %arg10[%c0_39, %c0_40] : memref<1x32xf32, #tpu.memory_space<vmem>>, vector<1x32xf32>
    %96 = vector.broadcast %95 : vector<1x32xf32> to vector<32x32xf32>
    %97 = arith.mulf %94, %96 : vector<32x32xf32>
    %c0_41 = arith.constant 0 : index
    %c0_42 = arith.constant 0 : index
    %98 = vector.load %arg11[%c0_41, %c0_42] : memref<1x32xf32, #tpu.memory_space<vmem>>, vector<1x32xf32>
    %99 = vector.broadcast %98 : vector<1x32xf32> to vector<32x32xf32>
    %100 = arith.addf %97, %99 : vector<32x32xf32>
    %cst_43 = arith.constant 0.000000e+00 : f32
    %101 = vector.broadcast %cst_43 : f32 to vector<32x32xf32>
    %102 = arith.maximumf %100, %101 : vector<32x32xf32>
    %103 = arith.addf %9, %102 : vector<32x32xf32>
    %cst_44 = arith.constant dense<0.000000e+00> : vector<32xf32>
    %104 = vector.multi_reduction <add>, %103, %cst_44 [1] : vector<32x32xf32> to vector<32xf32>
    %105 = vector.shape_cast %104 : vector<32xf32> to vector<32x1xf32>
    %cst_45 = arith.constant 3.200000e+01 : f32
    %106 = vector.broadcast %cst_45 : f32 to vector<32x1xf32>
    %107 = arith.divf %105, %106 : vector<32x1xf32>
    %108 = vector.broadcast %107 : vector<32x1xf32> to vector<32x32xf32>
    %109 = arith.subf %103, %108 : vector<32x32xf32>
    %110 = vector.broadcast %107 : vector<32x1xf32> to vector<32x32xf32>
    %111 = arith.subf %103, %110 : vector<32x32xf32>
    %112 = arith.mulf %109, %111 : vector<32x32xf32>
    %cst_46 = arith.constant dense<0.000000e+00> : vector<32xf32>
    %113 = vector.multi_reduction <add>, %112, %cst_46 [1] : vector<32x32xf32> to vector<32xf32>
    %114 = vector.shape_cast %113 : vector<32xf32> to vector<32x1xf32>
    %cst_47 = arith.constant 3.200000e+01 : f32
    %115 = vector.broadcast %cst_47 : f32 to vector<32x1xf32>
    %116 = arith.divf %114, %115 : vector<32x1xf32>
    %117 = vector.broadcast %107 : vector<32x1xf32> to vector<32x32xf32>
    %118 = arith.subf %103, %117 : vector<32x32xf32>
    %cst_48 = arith.constant 9.99999974E-6 : f32
    %119 = vector.broadcast %cst_48 : f32 to vector<32x1xf32>
    %120 = arith.addf %116, %119 : vector<32x1xf32>
    %121 = math.rsqrt %120 : vector<32x1xf32>
    %122 = vector.broadcast %121 : vector<32x1xf32> to vector<32x32xf32>
    %123 = arith.mulf %118, %122 : vector<32x32xf32>
    %c0_49 = arith.constant 0 : index
    %c0_50 = arith.constant 0 : index
    %124 = vector.load %arg12[%c0_49, %c0_50] : memref<1x32xf32, #tpu.memory_space<vmem>>, vector<1x32xf32>
    %125 = vector.broadcast %124 : vector<1x32xf32> to vector<32x32xf32>
    %126 = arith.mulf %123, %125 : vector<32x32xf32>
    %c0_51 = arith.constant 0 : index
    %c0_52 = arith.constant 0 : index
    %127 = vector.load %arg13[%c0_51, %c0_52] : memref<1x32xf32, #tpu.memory_space<vmem>>, vector<1x32xf32>
    %128 = vector.broadcast %127 : vector<1x32xf32> to vector<32x32xf32>
    %129 = arith.addf %126, %128 : vector<32x32xf32>
    %c0_53 = arith.constant 0 : index
    %c0_54 = arith.constant 0 : index
    %130 = vector.load %arg14[%c0_53, %c0_54] : memref<32x32xf32, #tpu.memory_space<vmem>>, vector<32x32xf32>
    tpu.vector_store %arg14[%c0_53, %c0_54], %129 {strides = array<i32>} : memref<32x32xf32, #tpu.memory_space<vmem>>, vector<32x32xf32>,
    return
  }
  func.func @transform_0(%arg0: i32) -> (i32, i32) {
    %c0_i32 = arith.constant 0 : i32
    %c0_i32_0 = arith.constant 0 : i32
    return %arg0, %c0_i32 : i32, i32
  }
  func.func @transform_1(%arg0: i32) -> (i32, i32) {
    %c0_i32 = arith.constant 0 : i32
    %c0_i32_0 = arith.constant 0 : i32
    return %arg0, %c0_i32 : i32, i32
  }
  func.func @transform_2(%arg0: i32) -> (i32, i32) {
    %c0_i32 = arith.constant 0 : i32
    %c0_i32_0 = arith.constant 0 : i32
    %c0_i32_1 = arith.constant 0 : i32
    return %c0_i32, %c0_i32_0 : i32, i32
  }
  func.func @transform_3(%arg0: i32) -> (i32, i32) {
    %c0_i32 = arith.constant 0 : i32
    %c0_i32_0 = arith.constant 0 : i32
    %c0_i32_1 = arith.constant 0 : i32
    return %c0_i32, %c0_i32_0 : i32, i32
  }
  func.func @transform_4(%arg0: i32) -> (i32, i32) {
    %c0_i32 = arith.constant 0 : i32
    %c0_i32_0 = arith.constant 0 : i32
    %c0_i32_1 = arith.constant 0 : i32
    return %c0_i32, %c0_i32_0 : i32, i32
  }
  func.func @transform_5(%arg0: i32) -> (i32, i32) {
    %c0_i32 = arith.constant 0 : i32
    %c0_i32_0 = arith.constant 0 : i32
    %c0_i32_1 = arith.constant 0 : i32
    return %c0_i32, %c0_i32_0 : i32, i32
  }
  func.func @transform_6(%arg0: i32) -> (i32, i32) {
    %c0_i32 = arith.constant 0 : i32
    %c0_i32_0 = arith.constant 0 : i32
    %c0_i32_1 = arith.constant 0 : i32
    return %c0_i32, %c0_i32_0 : i32, i32
  }
  func.func @transform_7(%arg0: i32) -> (i32, i32) {
    %c0_i32 = arith.constant 0 : i32
    %c0_i32_0 = arith.constant 0 : i32
    %c0_i32_1 = arith.constant 0 : i32
    return %c0_i32, %c0_i32_0 : i32, i32
  }
  func.func @transform_8(%arg0: i32) -> (i32, i32) {
    %c0_i32 = arith.constant 0 : i32
    %c0_i32_0 = arith.constant 0 : i32
    %c0_i32_1 = arith.constant 0 : i32
    return %c0_i32, %c0_i32_0 : i32, i32
  }
  func.func @transform_9(%arg0: i32) -> (i32, i32) {
    %c0_i32 = arith.constant 0 : i32
    %c0_i32_0 = arith.constant 0 : i32
    %c0_i32_1 = arith.constant 0 : i32
    return %c0_i32, %c0_i32_0 : i32, i32
  }
  func.func @transform_10(%arg0: i32) -> (i32, i32) {
    %c0_i32 = arith.constant 0 : i32
    %c0_i32_0 = arith.constant 0 : i32
    %c0_i32_1 = arith.constant 0 : i32
    return %c0_i32, %c0_i32_0 : i32, i32
  }
  func.func @transform_11(%arg0: i32) -> (i32, i32) {
    %c0_i32 = arith.constant 0 : i32
    %c0_i32_0 = arith.constant 0 : i32
    %c0_i32_1 = arith.constant 0 : i32
    return %c0_i32, %c0_i32_0 : i32, i32
  }
  func.func @transform_12(%arg0: i32) -> (i32, i32) {
    %c0_i32 = arith.constant 0 : i32
    %c0_i32_0 = arith.constant 0 : i32
    %c0_i32_1 = arith.constant 0 : i32
    return %c0_i32, %c0_i32_0 : i32, i32
  }
  func.func @transform_13(%arg0: i32) -> (i32, i32) {
    %c0_i32 = arith.constant 0 : i32
    %c0_i32_0 = arith.constant 0 : i32
    return %arg0, %c0_i32 : i32, i32
  }
}

module attributes {stable_mosaic.version = 11 : i64} {
  func.func @_plain_local_kernel(%arg0: i32, %arg1: memref<32x32xf32, #tpu.memory_space<vmem>>, %arg2: memref<32x1xf32, #tpu.memory_space<vmem>>, %arg3: memref<32x32xbf16, #tpu.memory_space<vmem>>, %arg4: memref<1x32xf32, #tpu.memory_space<vmem>>, %arg5: memref<3x32xf32, #tpu.memory_space<vmem>>, %arg6: memref<1x32xf32, #tpu.memory_space<vmem>>, %arg7: memref<32x32xf32, #tpu.memory_space<vmem>>, %arg8: memref<1x32xf32, #tpu.memory_space<vmem>>, %arg9: memref<1x32xf32, #tpu.memory_space<vmem>>, %arg10: memref<1x32xf32, #tpu.memory_space<vmem>>, %arg11: memref<1x32xf32, #tpu.memory_space<vmem>>, %arg12: memref<32x32xf32, #tpu.memory_space<vmem>>, %arg13: memref<48x32xf32, #tpu.memory_space<vmem>>) attributes {dimension_semantics = [#tpu.dimension_semantics<parallel>], iteration_bounds = array<i64: 2>, scalar_prefetch = 0 : i64, scratch_operands = 1 : i64, tpu.core_type = #tpu.core_type<tc>, window_params = [{transform_indices = @transform_0, window_bounds = array<i64: 32, 32>}, {transform_indices = @transform_1, window_bounds = array<i64: 32, 1>}, {pipeline_mode = #tpu.pipeline_mode<synchronous>, transform_indices = @transform_2, window_bounds = array<i64: 32, 32>}, {pipeline_mode = #tpu.pipeline_mode<synchronous>, transform_indices = @transform_3, window_bounds = array<i64: 1, 32>}, {pipeline_mode = #tpu.pipeline_mode<synchronous>, transform_indices = @transform_4, window_bounds = array<i64: 3, 32>}, {pipeline_mode = #tpu.pipeline_mode<synchronous>, transform_indices = @transform_5, window_bounds = array<i64: 1, 32>}, {pipeline_mode = #tpu.pipeline_mode<synchronous>, transform_indices = @transform_6, window_bounds = array<i64: 32, 32>}, {pipeline_mode = #tpu.pipeline_mode<synchronous>, transform_indices = @transform_7, window_bounds = array<i64: 1, 32>}, {pipeline_mode = #tpu.pipeline_mode<synchronous>, transform_indices = @transform_8, window_bounds = array<i64: 1, 32>}, {pipeline_mode = #tpu.pipeline_mode<synchronous>, transform_indices = @transform_9, window_bounds = array<i64: 1, 32>}, {pipeline_mode = #tpu.pipeline_mode<synchronous>, transform_indices = @transform_10, window_bounds = array<i64: 1, 32>}, {transform_indices = @transform_11, window_bounds = array<i64: 32, 32>}]} {
    %c0 = arith.constant 0 : index
    %c0_0 = arith.constant 0 : index
    %0 = vector.load %arg1[%c0, %c0_0] : memref<32x32xf32, #tpu.memory_space<vmem>>, vector<32x32xf32>
    %c0_1 = arith.constant 0 : index
    %c0_2 = arith.constant 0 : index
    %1 = vector.load %arg2[%c0_1, %c0_2] : memref<32x1xf32, #tpu.memory_space<vmem>>, vector<32x1xf32>
    %2 = vector.broadcast %1 : vector<32x1xf32> to vector<32x32xf32>
    %3 = arith.mulf %0, %2 : vector<32x32xf32>
    %4 = arith.truncf %3 : vector<32x32xf32> to vector<32x32xbf16>
    %c0_3 = arith.constant 0 : index
    %c0_4 = arith.constant 0 : index
    %5 = vector.load %arg3[%c0_3, %c0_4] : memref<32x32xbf16, #tpu.memory_space<vmem>>, vector<32x32xbf16>
    %cst = arith.constant dense<0.000000e+00> : vector<32x32xf32>
    %6 = tpu.matmul %4, %5, %cst {dimension_numbers = #tpu.dot_dimension_numbers<[1], [0], [0], [1], [0, 0, 1, 1], [], []>} : vector<32x32xbf16>, vector<32x32xbf16>, vector<32x32xf32> -> vector<32x32xf32>
    %c0_5 = arith.constant 0 : index
    %c0_6 = arith.constant 0 : index
    %7 = vector.load %arg4[%c0_5, %c0_6] : memref<1x32xf32, #tpu.memory_space<vmem>>, vector<1x32xf32>
    %8 = vector.broadcast %7 : vector<1x32xf32> to vector<32x32xf32>
    %9 = arith.addf %6, %8 : vector<32x32xf32>
    %c8 = arith.constant 8 : index
    %c0_7 = arith.constant 0 : index
    %10 = vector.load %arg13[%c8, %c0_7] : memref<48x32xf32, #tpu.memory_space<vmem>>, vector<32x32xf32>
    tpu.vector_store %arg13[%c8, %c0_7], %9 {strides = array<i32>} : memref<48x32xf32, #tpu.memory_space<vmem>>, vector<32x32xf32>,
    %c7 = arith.constant 7 : index
    %c0_8 = arith.constant 0 : index
    %11 = vector.load %arg13[%c7, %c0_8] : memref<48x32xf32, #tpu.memory_space<vmem>>, vector<32x32xf32>
    %c9 = arith.constant 9 : index
    %c0_9 = arith.constant 0 : index
    %12 = vector.load %arg13[%c9, %c0_9] : memref<48x32xf32, #tpu.memory_space<vmem>>, vector<32x32xf32>
    %13 = tpu.iota {dimensions = array<i32: 0>} : vector<32x1xi32>
    %c0_i32 = arith.constant 0 : i32
    %14 = vector.broadcast %c0_i32 : i32 to vector<32x1xi32>
    %15 = arith.cmpi eq, %13, %14 : vector<32x1xi32>
    %c15_i32 = arith.constant 15 : i32
    %16 = vector.broadcast %c15_i32 : i32 to vector<32x1xi32>
    %17 = arith.cmpi eq, %13, %16 : vector<32x1xi32>
    %c16_i32 = arith.constant 16 : i32
    %18 = vector.broadcast %c16_i32 : i32 to vector<32x1xi32>
    %19 = arith.cmpi eq, %13, %18 : vector<32x1xi32>
    %20 = arith.ori %15, %19 : vector<32x1xi1>
    %c31_i32 = arith.constant 31 : i32
    %21 = vector.broadcast %c31_i32 : i32 to vector<32x1xi32>
    %22 = arith.cmpi eq, %13, %21 : vector<32x1xi32>
    %23 = arith.ori %17, %22 : vector<32x1xi1>
    %cst_10 = arith.constant 0.000000e+00 : f32
    %24 = vector.shape_cast %20 : vector<32x1xi1> to vector<32x1xi1>
    %25 = vector.broadcast %24 : vector<32x1xi1> to vector<32x32xi1>
    %26 = vector.broadcast %cst_10 : f32 to vector<32x32xf32>
    %27 = arith.select %25, %26, %11 : vector<32x32xi1>, vector<32x32xf32>
    %c0_11 = arith.constant 0 : index
    %c0_12 = arith.constant 0 : index
    %28 = vector.load %arg5[%c0_11, %c0_12] : memref<3x32xf32, #tpu.memory_space<vmem>>, vector<1x32xf32>
    %29 = vector.broadcast %28 : vector<1x32xf32> to vector<32x32xf32>
    %30 = arith.mulf %27, %29 : vector<32x32xf32>
    %c1 = arith.constant 1 : index
    %c0_13 = arith.constant 0 : index
    %31 = vector.load %arg5[%c1, %c0_13] : memref<3x32xf32, #tpu.memory_space<vmem>>, vector<1x32xf32>
    %32 = vector.broadcast %31 : vector<1x32xf32> to vector<32x32xf32>
    %33 = arith.mulf %9, %32 : vector<32x32xf32>
    %34 = arith.addf %30, %33 : vector<32x32xf32>
    %cst_14 = arith.constant 0.000000e+00 : f32
    %35 = vector.shape_cast %23 : vector<32x1xi1> to vector<32x1xi1>
    %36 = vector.broadcast %35 : vector<32x1xi1> to vector<32x32xi1>
    %37 = vector.broadcast %cst_14 : f32 to vector<32x32xf32>
    %38 = arith.select %36, %37, %12 : vector<32x32xi1>, vector<32x32xf32>
    %c2 = arith.constant 2 : index
    %c0_15 = arith.constant 0 : index
    %39 = vector.load %arg5[%c2, %c0_15] : memref<3x32xf32, #tpu.memory_space<vmem>>, vector<1x32xf32>
    %40 = vector.broadcast %39 : vector<1x32xf32> to vector<32x32xf32>
    %41 = arith.mulf %38, %40 : vector<32x32xf32>
    %42 = arith.addf %34, %41 : vector<32x32xf32>
    %c0_16 = arith.constant 0 : index
    %c0_17 = arith.constant 0 : index
    %43 = vector.load %arg6[%c0_16, %c0_17] : memref<1x32xf32, #tpu.memory_space<vmem>>, vector<1x32xf32>
    %44 = vector.broadcast %43 : vector<1x32xf32> to vector<32x32xf32>
    %45 = arith.addf %42, %44 : vector<32x32xf32>
    %46 = tpu.iota {dimensions = array<i32: 0>} : vector<2x32xi32>
    %47 = tpu.iota {dimensions = array<i32: 1>} : vector<2x32xi32>
    %c16_i32_18 = arith.constant 16 : i32
    %48 = vector.broadcast %c16_i32_18 : i32 to vector<2x32xi32>
    %49 = arith.muli %46, %48 : vector<2x32xi32>
    %50 = arith.cmpi sge, %47, %49 : vector<2x32xi32>
    %c1_i32 = arith.constant 1 : i32
    %51 = vector.broadcast %c1_i32 : i32 to vector<2x32xi32>
    %52 = arith.addi %46, %51 : vector<2x32xi32>
    %c16_i32_19 = arith.constant 16 : i32
    %53 = vector.broadcast %c16_i32_19 : i32 to vector<2x32xi32>
    %54 = arith.muli %52, %53 : vector<2x32xi32>
    %55 = arith.cmpi slt, %47, %54 : vector<2x32xi32>
    %56 = arith.andi %50, %55 : vector<2x32xi1>
    %57 = arith.extui %56 : vector<2x32xi1> to vector<2x32xi32>
    %58 = arith.sitofp %57 : vector<2x32xi32> to vector<2x32xf32>
    %59 = tpu.iota {dimensions = array<i32: 0>} : vector<32x2xi32>
    %60 = tpu.iota {dimensions = array<i32: 1>} : vector<32x2xi32>
    %c16_i32_20 = arith.constant 16 : i32
    %61 = vector.broadcast %c16_i32_20 : i32 to vector<32x2xi32>
    %62 = arith.muli %60, %61 : vector<32x2xi32>
    %63 = arith.cmpi sge, %59, %62 : vector<32x2xi32>
    %c1_i32_21 = arith.constant 1 : i32
    %64 = vector.broadcast %c1_i32_21 : i32 to vector<32x2xi32>
    %65 = arith.addi %60, %64 : vector<32x2xi32>
    %c16_i32_22 = arith.constant 16 : i32
    %66 = vector.broadcast %c16_i32_22 : i32 to vector<32x2xi32>
    %67 = arith.muli %65, %66 : vector<32x2xi32>
    %68 = arith.cmpi slt, %59, %67 : vector<32x2xi32>
    %69 = arith.andi %63, %68 : vector<32x2xi1>
    %70 = arith.extui %69 : vector<32x2xi1> to vector<32x2xi32>
    %71 = arith.sitofp %70 : vector<32x2xi32> to vector<32x2xf32>
    %c0_23 = arith.constant 0 : index
    %c0_24 = arith.constant 0 : index
    %72 = vector.load %arg7[%c0_23, %c0_24] : memref<32x32xf32, #tpu.memory_space<vmem>>, vector<32x32xf32>
    %cst_25 = arith.constant dense<0.000000e+00> : vector<2x32xf32>
    %73 = tpu.matmul %58, %45, %cst_25 {dimension_numbers = #tpu.dot_dimension_numbers<[1], [0], [0], [1], [0, 0, 1, 1], [], []>} : vector<2x32xf32>, vector<32x32xf32>, vector<2x32xf32> -> vector<2x32xf32>
    %cst_26 = arith.constant dense<0.000000e+00> : vector<2x32xf32>
    %74 = tpu.matmul %73, %72, %cst_26 {dimension_numbers = #tpu.dot_dimension_numbers<[1], [0], [0], [1], [0, 0, 1, 1], [], []>} : vector<2x32xf32>, vector<32x32xf32>, vector<2x32xf32> -> vector<2x32xf32>
    %cst_27 = arith.constant 3.125000e-02 : f32
    %75 = vector.broadcast %cst_27 : f32 to vector<2x32xf32>
    %76 = arith.mulf %74, %75 : vector<2x32xf32>
    %cst_28 = arith.constant dense<0.000000e+00> : vector<32x32xf32>
    %77 = tpu.matmul %71, %76, %cst_28 {dimension_numbers = #tpu.dot_dimension_numbers<[1], [0], [0], [1], [0, 0, 1, 1], [], []>} : vector<32x2xf32>, vector<2x32xf32>, vector<32x32xf32> -> vector<32x32xf32>
    %78 = arith.subf %45, %77 : vector<32x32xf32>
    %79 = arith.mulf %78, %78 : vector<32x32xf32>
    %cst_29 = arith.constant dense<0.000000e+00> : vector<2x32xf32>
    %80 = tpu.matmul %58, %79, %cst_29 {dimension_numbers = #tpu.dot_dimension_numbers<[1], [0], [0], [1], [0, 0, 1, 1], [], []>} : vector<2x32xf32>, vector<32x32xf32>, vector<2x32xf32> -> vector<2x32xf32>
    %cst_30 = arith.constant dense<0.000000e+00> : vector<2x32xf32>
    %81 = tpu.matmul %80, %72, %cst_30 {dimension_numbers = #tpu.dot_dimension_numbers<[1], [0], [0], [1], [0, 0, 1, 1], [], []>} : vector<2x32xf32>, vector<32x32xf32>, vector<2x32xf32> -> vector<2x32xf32>
    %cst_31 = arith.constant 3.125000e-02 : f32
    %82 = vector.broadcast %cst_31 : f32 to vector<2x32xf32>
    %83 = arith.mulf %81, %82 : vector<2x32xf32>
    %cst_32 = arith.constant dense<0.000000e+00> : vector<32x32xf32>
    %84 = tpu.matmul %71, %83, %cst_32 {dimension_numbers = #tpu.dot_dimension_numbers<[1], [0], [0], [1], [0, 0, 1, 1], [], []>} : vector<32x2xf32>, vector<2x32xf32>, vector<32x32xf32> -> vector<32x32xf32>
    %cst_33 = arith.constant 9.99999974E-6 : f32
    %85 = vector.broadcast %cst_33 : f32 to vector<32x32xf32>
    %86 = arith.addf %84, %85 : vector<32x32xf32>
    %87 = math.rsqrt %86 : vector<32x32xf32>
    %88 = arith.mulf %78, %87 : vector<32x32xf32>
    %c0_34 = arith.constant 0 : index
    %c0_35 = arith.constant 0 : index
    %89 = vector.load %arg8[%c0_34, %c0_35] : memref<1x32xf32, #tpu.memory_space<vmem>>, vector<1x32xf32>
    %90 = vector.broadcast %89 : vector<1x32xf32> to vector<32x32xf32>
    %91 = arith.mulf %88, %90 : vector<32x32xf32>
    %c0_36 = arith.constant 0 : index
    %c0_37 = arith.constant 0 : index
    %92 = vector.load %arg9[%c0_36, %c0_37] : memref<1x32xf32, #tpu.memory_space<vmem>>, vector<1x32xf32>
    %93 = vector.broadcast %92 : vector<1x32xf32> to vector<32x32xf32>
    %94 = arith.addf %91, %93 : vector<32x32xf32>
    %cst_38 = arith.constant 0.000000e+00 : f32
    %95 = vector.broadcast %cst_38 : f32 to vector<32x32xf32>
    %96 = arith.maximumf %94, %95 : vector<32x32xf32>
    %97 = arith.addf %3, %96 : vector<32x32xf32>
    %cst_39 = arith.constant dense<0.000000e+00> : vector<32xf32>
    %98 = vector.multi_reduction <add>, %97, %cst_39 [1] : vector<32x32xf32> to vector<32xf32>
    %99 = vector.shape_cast %98 : vector<32xf32> to vector<32x1xf32>
    %cst_40 = arith.constant 3.200000e+01 : f32
    %100 = vector.broadcast %cst_40 : f32 to vector<32x1xf32>
    %101 = arith.divf %99, %100 : vector<32x1xf32>
    %102 = vector.broadcast %101 : vector<32x1xf32> to vector<32x32xf32>
    %103 = arith.subf %97, %102 : vector<32x32xf32>
    %104 = vector.broadcast %101 : vector<32x1xf32> to vector<32x32xf32>
    %105 = arith.subf %97, %104 : vector<32x32xf32>
    %106 = arith.mulf %103, %105 : vector<32x32xf32>
    %cst_41 = arith.constant dense<0.000000e+00> : vector<32xf32>
    %107 = vector.multi_reduction <add>, %106, %cst_41 [1] : vector<32x32xf32> to vector<32xf32>
    %108 = vector.shape_cast %107 : vector<32xf32> to vector<32x1xf32>
    %cst_42 = arith.constant 3.200000e+01 : f32
    %109 = vector.broadcast %cst_42 : f32 to vector<32x1xf32>
    %110 = arith.divf %108, %109 : vector<32x1xf32>
    %111 = vector.broadcast %101 : vector<32x1xf32> to vector<32x32xf32>
    %112 = arith.subf %97, %111 : vector<32x32xf32>
    %cst_43 = arith.constant 9.99999974E-6 : f32
    %113 = vector.broadcast %cst_43 : f32 to vector<32x1xf32>
    %114 = arith.addf %110, %113 : vector<32x1xf32>
    %115 = math.rsqrt %114 : vector<32x1xf32>
    %116 = vector.broadcast %115 : vector<32x1xf32> to vector<32x32xf32>
    %117 = arith.mulf %112, %116 : vector<32x32xf32>
    %c0_44 = arith.constant 0 : index
    %c0_45 = arith.constant 0 : index
    %118 = vector.load %arg10[%c0_44, %c0_45] : memref<1x32xf32, #tpu.memory_space<vmem>>, vector<1x32xf32>
    %119 = vector.broadcast %118 : vector<1x32xf32> to vector<32x32xf32>
    %120 = arith.mulf %117, %119 : vector<32x32xf32>
    %c0_46 = arith.constant 0 : index
    %c0_47 = arith.constant 0 : index
    %121 = vector.load %arg11[%c0_46, %c0_47] : memref<1x32xf32, #tpu.memory_space<vmem>>, vector<1x32xf32>
    %122 = vector.broadcast %121 : vector<1x32xf32> to vector<32x32xf32>
    %123 = arith.addf %120, %122 : vector<32x32xf32>
    %c0_48 = arith.constant 0 : index
    %c0_49 = arith.constant 0 : index
    %124 = vector.load %arg12[%c0_48, %c0_49] : memref<32x32xf32, #tpu.memory_space<vmem>>, vector<32x32xf32>
    tpu.vector_store %arg12[%c0_48, %c0_49], %123 {strides = array<i32>} : memref<32x32xf32, #tpu.memory_space<vmem>>, vector<32x32xf32>,
    return
  }
  func.func @transform_0(%arg0: i32) -> (i32, i32) {
    %c0_i32 = arith.constant 0 : i32
    %c0_i32_0 = arith.constant 0 : i32
    return %arg0, %c0_i32 : i32, i32
  }
  func.func @transform_1(%arg0: i32) -> (i32, i32) {
    %c0_i32 = arith.constant 0 : i32
    %c0_i32_0 = arith.constant 0 : i32
    return %arg0, %c0_i32 : i32, i32
  }
  func.func @transform_2(%arg0: i32) -> (i32, i32) {
    %c0_i32 = arith.constant 0 : i32
    %c0_i32_0 = arith.constant 0 : i32
    %c0_i32_1 = arith.constant 0 : i32
    return %c0_i32, %c0_i32_0 : i32, i32
  }
  func.func @transform_3(%arg0: i32) -> (i32, i32) {
    %c0_i32 = arith.constant 0 : i32
    %c0_i32_0 = arith.constant 0 : i32
    %c0_i32_1 = arith.constant 0 : i32
    return %c0_i32, %c0_i32_0 : i32, i32
  }
  func.func @transform_4(%arg0: i32) -> (i32, i32) {
    %c0_i32 = arith.constant 0 : i32
    %c0_i32_0 = arith.constant 0 : i32
    %c0_i32_1 = arith.constant 0 : i32
    return %c0_i32, %c0_i32_0 : i32, i32
  }
  func.func @transform_5(%arg0: i32) -> (i32, i32) {
    %c0_i32 = arith.constant 0 : i32
    %c0_i32_0 = arith.constant 0 : i32
    %c0_i32_1 = arith.constant 0 : i32
    return %c0_i32, %c0_i32_0 : i32, i32
  }
  func.func @transform_6(%arg0: i32) -> (i32, i32) {
    %c0_i32 = arith.constant 0 : i32
    %c0_i32_0 = arith.constant 0 : i32
    %c0_i32_1 = arith.constant 0 : i32
    return %c0_i32, %c0_i32_0 : i32, i32
  }
  func.func @transform_7(%arg0: i32) -> (i32, i32) {
    %c0_i32 = arith.constant 0 : i32
    %c0_i32_0 = arith.constant 0 : i32
    %c0_i32_1 = arith.constant 0 : i32
    return %c0_i32, %c0_i32_0 : i32, i32
  }
  func.func @transform_8(%arg0: i32) -> (i32, i32) {
    %c0_i32 = arith.constant 0 : i32
    %c0_i32_0 = arith.constant 0 : i32
    %c0_i32_1 = arith.constant 0 : i32
    return %c0_i32, %c0_i32_0 : i32, i32
  }
  func.func @transform_9(%arg0: i32) -> (i32, i32) {
    %c0_i32 = arith.constant 0 : i32
    %c0_i32_0 = arith.constant 0 : i32
    %c0_i32_1 = arith.constant 0 : i32
    return %c0_i32, %c0_i32_0 : i32, i32
  }
  func.func @transform_10(%arg0: i32) -> (i32, i32) {
    %c0_i32 = arith.constant 0 : i32
    %c0_i32_0 = arith.constant 0 : i32
    %c0_i32_1 = arith.constant 0 : i32
    return %c0_i32, %c0_i32_0 : i32, i32
  }
  func.func @transform_11(%arg0: i32) -> (i32, i32) {
    %c0_i32 = arith.constant 0 : i32
    %c0_i32_0 = arith.constant 0 : i32
    return %arg0, %c0_i32 : i32, i32
  }
}

module attributes {stable_mosaic.version = 11 : i64} {
  func.func @_mixed_kernel(%arg0: i32, %arg1: memref<32x32xf32, #tpu.memory_space<vmem>>, %arg2: memref<32x1xf32, #tpu.memory_space<vmem>>, %arg3: memref<4x16xf32, #tpu.memory_space<vmem>>, %arg4: memref<4x1xf32, #tpu.memory_space<vmem>>, %arg5: memref<16x32xbf16, #tpu.memory_space<vmem>>, %arg6: memref<1x32xf32, #tpu.memory_space<vmem>>, %arg7: memref<32x32xbf16, #tpu.memory_space<vmem>>, %arg8: memref<1x32xf32, #tpu.memory_space<vmem>>, %arg9: memref<8x32xf32, #tpu.memory_space<vmem>>, %arg10: memref<1x32xf32, #tpu.memory_space<vmem>>, %arg11: memref<32x32xbf16, #tpu.memory_space<vmem>>, %arg12: memref<32x32xbf16, #tpu.memory_space<vmem>>, %arg13: memref<1x32xf32, #tpu.memory_space<vmem>>, %arg14: memref<32x32xbf16, #tpu.memory_space<vmem>>, %arg15: memref<32x32xbf16, #tpu.memory_space<vmem>>, %arg16: memref<1x32xf32, #tpu.memory_space<vmem>>, %arg17: memref<32x64xbf16, #tpu.memory_space<vmem>>, %arg18: memref<1x64xf32, #tpu.memory_space<vmem>>, %arg19: memref<32x64xbf16, #tpu.memory_space<vmem>>, %arg20: memref<1x64xf32, #tpu.memory_space<vmem>>, %arg21: memref<4x64xf32, #tpu.memory_space<vmem>>, %arg22: memref<1x64xf32, #tpu.memory_space<vmem>>, %arg23: memref<1x64xf32, #tpu.memory_space<vmem>>, %arg24: memref<1x64xf32, #tpu.memory_space<vmem>>, %arg25: memref<1x64xf32, #tpu.memory_space<vmem>>, %arg26: memref<1x64xf32, #tpu.memory_space<vmem>>, %arg27: memref<64x32xbf16, #tpu.memory_space<vmem>>, %arg28: memref<1x32xf32, #tpu.memory_space<vmem>>, %arg29: memref<1x32xf32, #tpu.memory_space<vmem>>, %arg30: memref<1x32xf32, #tpu.memory_space<vmem>>, %arg31: memref<32x32xbf16, #tpu.memory_space<vmem>>, %arg32: memref<32x32xbf16, #tpu.memory_space<vmem>>, %arg33: memref<1x32xf32, #tpu.memory_space<vmem>>, %arg34: memref<4x4xf32, #tpu.memory_space<vmem>>, %arg35: memref<32x4xf32, #tpu.memory_space<vmem>>, %arg36: memref<1x32xf32, #tpu.memory_space<vmem>>, %arg37: memref<1x32xf32, #tpu.memory_space<vmem>>, %arg38: memref<32x32xf32, #tpu.memory_space<vmem>>, %arg39: memref<40x32xf32, #tpu.memory_space<vmem>>, %arg40: memref<4x32xf32, #tpu.memory_space<vmem>>, %arg41: memref<4x64xf32, #tpu.memory_space<vmem>>, %arg42: memref<4x64xf32, #tpu.memory_space<vmem>>) attributes {dimension_semantics = [#tpu.dimension_semantics<parallel>], iteration_bounds = array<i64: 2>, scalar_prefetch = 0 : i64, scratch_operands = 4 : i64, tpu.core_type = #tpu.core_type<tc>, window_params = [{transform_indices = @transform_0, window_bounds = array<i64: 32, 32>}, {transform_indices = @transform_1, window_bounds = array<i64: 32, 1>}, {pipeline_mode = #tpu.pipeline_mode<synchronous>, transform_indices = @transform_2, window_bounds = array<i64: 4, 16>}, {pipeline_mode = #tpu.pipeline_mode<synchronous>, transform_indices = @transform_3, window_bounds = array<i64: 4, 1>}, {pipeline_mode = #tpu.pipeline_mode<synchronous>, transform_indices = @transform_4, window_bounds = array<i64: 16, 32>}, {pipeline_mode = #tpu.pipeline_mode<synchronous>, transform_indices = @transform_5, window_bounds = array<i64: 1, 32>}, {pipeline_mode = #tpu.pipeline_mode<synchronous>, transform_indices = @transform_6, window_bounds = array<i64: 32, 32>}, {pipeline_mode = #tpu.pipeline_mode<synchronous>, transform_indices = @transform_7, window_bounds = array<i64: 1, 32>}, {pipeline_mode = #tpu.pipeline_mode<synchronous>, transform_indices = @transform_8, window_bounds = array<i64: 8, 32>}, {pipeline_mode = #tpu.pipeline_mode<synchronous>, transform_indices = @transform_9, window_bounds = array<i64: 1, 32>}, {pipeline_mode = #tpu.pipeline_mode<synchronous>, transform_indices = @transform_10, window_bounds = array<i64: 32, 32>}, {pipeline_mode = #tpu.pipeline_mode<synchronous>, transform_indices = @transform_11, window_bounds = array<i64: 32, 32>}, {pipeline_mode = #tpu.pipeline_mode<synchronous>, transform_indices = @transform_12, window_bounds = array<i64: 1, 32>}, {pipeline_mode = #tpu.pipeline_mode<synchronous>, transform_indices = @transform_13, window_bounds = array<i64: 32, 32>}, {pipeline_mode = #tpu.pipeline_mode<synchronous>, transform_indices = @transform_14, window_bounds = array<i64: 32, 32>}, {pipeline_mode = #tpu.pipeline_mode<synchronous>, transform_indices = @transform_15, window_bounds = array<i64: 1, 32>}, {pipeline_mode = #tpu.pipeline_mode<synchronous>, transform_indices = @transform_16, window_bounds = array<i64: 32, 64>}, {pipeline_mode = #tpu.pipeline_mode<synchronous>, transform_indices = @transform_17, window_bounds = array<i64: 1, 64>}, {pipeline_mode = #tpu.pipeline_mode<synchronous>, transform_indices = @transform_18, window_bounds = array<i64: 32, 64>}, {pipeline_mode = #tpu.pipeline_mode<synchronous>, transform_indices = @transform_19, window_bounds = array<i64: 1, 64>}, {pipeline_mode = #tpu.pipeline_mode<synchronous>, transform_indices = @transform_20, window_bounds = array<i64: 4, 64>}, {pipeline_mode = #tpu.pipeline_mode<synchronous>, transform_indices = @transform_21, window_bounds = array<i64: 1, 64>}, {pipeline_mode = #tpu.pipeline_mode<synchronous>, transform_indices = @transform_22, window_bounds = array<i64: 1, 64>}, {pipeline_mode = #tpu.pipeline_mode<synchronous>, transform_indices = @transform_23, window_bounds = array<i64: 1, 64>}, {pipeline_mode = #tpu.pipeline_mode<synchronous>, transform_indices = @transform_24, window_bounds = array<i64: 1, 64>}, {pipeline_mode = #tpu.pipeline_mode<synchronous>, transform_indices = @transform_25, window_bounds = array<i64: 1, 64>}, {pipeline_mode = #tpu.pipeline_mode<synchronous>, transform_indices = @transform_26, window_bounds = array<i64: 64, 32>}, {pipeline_mode = #tpu.pipeline_mode<synchronous>, transform_indices = @transform_27, window_bounds = array<i64: 1, 32>}, {pipeline_mode = #tpu.pipeline_mode<synchronous>, transform_indices = @transform_28, window_bounds = array<i64: 1, 32>}, {pipeline_mode = #tpu.pipeline_mode<synchronous>, transform_indices = @transform_29, window_bounds = array<i64: 1, 32>}, {pipeline_mode = #tpu.pipeline_mode<synchronous>, transform_indices = @transform_30, window_bounds = array<i64: 32, 32>}, {pipeline_mode = #tpu.pipeline_mode<synchronous>, transform_indices = @transform_31, window_bounds = array<i64: 32, 32>}, {pipeline_mode = #tpu.pipeline_mode<synchronous>, transform_indices = @transform_32, window_bounds = array<i64: 1, 32>}, {pipeline_mode = #tpu.pipeline_mode<synchronous>, transform_indices = @transform_33, window_bounds = array<i64: 4, 4>}, {pipeline_mode = #tpu.pipeline_mode<synchronous>, transform_indices = @transform_34, window_bounds = array<i64: 32, 4>}, {pipeline_mode = #tpu.pipeline_mode<synchronous>, transform_indices = @transform_35, window_bounds = array<i64: 1, 32>}, {pipeline_mode = #tpu.pipeline_mode<synchronous>, transform_indices = @transform_36, window_bounds = array<i64: 1, 32>}, {transform_indices = @transform_37, window_bounds = array<i64: 32, 32>}]} {
    %c0 = arith.constant 0 : index
    %c0_0 = arith.constant 0 : index
    %0 = vector.load %arg1[%c0, %c0_0] : memref<32x32xf32, #tpu.memory_space<vmem>>, vector<32x32xf32>
    %c0_1 = arith.constant 0 : index
    %c0_2 = arith.constant 0 : index
    %1 = vector.load %arg2[%c0_1, %c0_2] : memref<32x1xf32, #tpu.memory_space<vmem>>, vector<32x1xf32>
    %2 = vector.broadcast %1 : vector<32x1xf32> to vector<32x32xf32>
    %3 = arith.mulf %0, %2 : vector<32x32xf32>
    %c2_i32 = arith.constant 2 : i32
    %4 = arith.muli %arg0, %c2_i32 : i32
    %5 = arith.index_cast %4 : i32 to index
    %c0_3 = arith.constant 0 : index
    %6 = vector.load %arg3[%5, %c0_3] : memref<4x16xf32, #tpu.memory_space<vmem>>, vector<2x16xf32>
    %c2_i32_4 = arith.constant 2 : i32
    %7 = arith.muli %arg0, %c2_i32_4 : i32
    %8 = arith.index_cast %7 : i32 to index
    %c0_5 = arith.constant 0 : index
    %9 = vector.load %arg4[%8, %c0_5] : memref<4x1xf32, #tpu.memory_space<vmem>>, vector<2x1xf32>
    %10 = arith.truncf %6 : vector<2x16xf32> to vector<2x16xbf16>
    %c0_6 = arith.constant 0 : index
    %c0_7 = arith.constant 0 : index
    %11 = vector.load %arg5[%c0_6, %c0_7] : memref<16x32xbf16, #tpu.memory_space<vmem>>, vector<16x32xbf16>
    %cst = arith.constant dense<0.000000e+00> : vector<2x32xf32>
    %12 = tpu.matmul %10, %11, %cst {dimension_numbers = #tpu.dot_dimension_numbers<[1], [0], [0], [1], [0, 0, 1, 1], [], []>} : vector<2x16xbf16>, vector<16x32xbf16>, vector<2x32xf32> -> vector<2x32xf32>
    %c0_8 = arith.constant 0 : index
    %c0_9 = arith.constant 0 : index
    %13 = vector.load %arg6[%c0_8, %c0_9] : memref<1x32xf32, #tpu.memory_space<vmem>>, vector<1x32xf32>
    %14 = vector.broadcast %13 : vector<1x32xf32> to vector<2x32xf32>
    %15 = arith.addf %12, %14 : vector<2x32xf32>
    %16 = vector.broadcast %9 : vector<2x1xf32> to vector<2x32xf32>
    %17 = arith.mulf %15, %16 : vector<2x32xf32>
    %18 = arith.truncf %3 : vector<32x32xf32> to vector<32x32xbf16>
    %c0_10 = arith.constant 0 : index
    %c0_11 = arith.constant 0 : index
    %19 = vector.load %arg7[%c0_10, %c0_11] : memref<32x32xbf16, #tpu.memory_space<vmem>>, vector<32x32xbf16>
    %cst_12 = arith.constant dense<0.000000e+00> : vector<32x32xf32>
    %20 = tpu.matmul %18, %19, %cst_12 {dimension_numbers = #tpu.dot_dimension_numbers<[1], [0], [0], [1], [0, 0, 1, 1], [], []>} : vector<32x32xbf16>, vector<32x32xbf16>, vector<32x32xf32> -> vector<32x32xf32>
    %c0_13 = arith.constant 0 : index
    %c0_14 = arith.constant 0 : index
    %21 = vector.load %arg8[%c0_13, %c0_14] : memref<1x32xf32, #tpu.memory_space<vmem>>, vector<1x32xf32>
    %22 = vector.broadcast %21 : vector<1x32xf32> to vector<32x32xf32>
    %23 = arith.addf %20, %22 : vector<32x32xf32>
    %cst_15 = arith.constant 0.000000e+00 : f32
    %24 = vector.broadcast %cst_15 : f32 to vector<32x32xf32>
    %25 = arith.maximumf %23, %24 : vector<32x32xf32>
    %c0_16 = arith.constant 0 : index
    %c0_17 = arith.constant 0 : index
    %26 = vector.load %arg39[%c0_16, %c0_17] : memref<40x32xf32, #tpu.memory_space<vmem>>, vector<32x32xf32>
    tpu.vector_store %arg39[%c0_16, %c0_17], %25 {strides = array<i32>} : memref<40x32xf32, #tpu.memory_space<vmem>>, vector<32x32xf32>,
    %c0_18 = arith.constant 0 : index
    %c0_19 = arith.constant 0 : index
    %27 = vector.load %arg8[%c0_18, %c0_19] : memref<1x32xf32, #tpu.memory_space<vmem>>, vector<1x32xf32>
    %cst_20 = arith.constant 0.000000e+00 : f32
    %28 = vector.broadcast %cst_20 : f32 to vector<1x32xf32>
    %29 = arith.maximumf %27, %28 : vector<1x32xf32>
    %c0_21 = arith.constant 0 : index
    %c0_22 = arith.constant 0 : index
    %30 = vector.load %arg9[%c0_21, %c0_22] : memref<8x32xf32, #tpu.memory_space<vmem>>, vector<1x32xf32>
    %c1 = arith.constant 1 : index
    %c0_23 = arith.constant 0 : index
    %31 = vector.load %arg9[%c1, %c0_23] : memref<8x32xf32, #tpu.memory_space<vmem>>, vector<1x32xf32>
    %c2 = arith.constant 2 : index
    %c0_24 = arith.constant 0 : index
    %32 = vector.load %arg9[%c2, %c0_24] : memref<8x32xf32, #tpu.memory_space<vmem>>, vector<1x32xf32>
    %c3 = arith.constant 3 : index
    %c0_25 = arith.constant 0 : index
    %33 = vector.load %arg9[%c3, %c0_25] : memref<8x32xf32, #tpu.memory_space<vmem>>, vector<1x32xf32>
    %c4 = arith.constant 4 : index
    %c0_26 = arith.constant 0 : index
    %34 = vector.load %arg9[%c4, %c0_26] : memref<8x32xf32, #tpu.memory_space<vmem>>, vector<1x32xf32>
    %c5 = arith.constant 5 : index
    %c0_27 = arith.constant 0 : index
    %35 = vector.load %arg9[%c5, %c0_27] : memref<8x32xf32, #tpu.memory_space<vmem>>, vector<1x32xf32>
    %c6 = arith.constant 6 : index
    %c0_28 = arith.constant 0 : index
    %36 = vector.load %arg9[%c6, %c0_28] : memref<8x32xf32, #tpu.memory_space<vmem>>, vector<1x32xf32>
    %c7 = arith.constant 7 : index
    %c0_29 = arith.constant 0 : index
    %37 = vector.load %arg9[%c7, %c0_29] : memref<8x32xf32, #tpu.memory_space<vmem>>, vector<1x32xf32>
    %c0_30 = arith.constant 0 : index
    %c0_31 = arith.constant 0 : index
    %38 = vector.load %arg10[%c0_30, %c0_31] : memref<1x32xf32, #tpu.memory_space<vmem>>, vector<1x32xf32>
    %39 = tpu.iota {dimensions = array<i32: 0>} : vector<2x1xi32>
    %c1_i32 = arith.constant 1 : i32
    %40 = vector.broadcast %c1_i32 : i32 to vector<2x1xi32>
    %41 = arith.cmpi eq, %39, %40 : vector<2x1xi32>
    %cst_32 = arith.constant 0.000000e+00 : f32
    %42 = vector.broadcast %cst_32 : f32 to vector<2x32xf32>
    %43 = vector.broadcast %38 : vector<1x32xf32> to vector<2x32xf32>
    %44 = arith.addf %42, %43 : vector<2x32xf32>
    %c1_33 = arith.constant 1 : index
    %c0_34 = arith.constant 0 : index
    %45 = tpu.strided_load %arg39[%c1_33, %c0_34] {strides = array<i32: 8, 1>} : memref<40x32xf32, #tpu.memory_space<vmem>>, vector<2x32xf32>
    %46 = vector.broadcast %30 : vector<1x32xf32> to vector<2x32xf32>
    %47 = arith.mulf %46, %45 : vector<2x32xf32>
    %48 = arith.addf %44, %47 : vector<2x32xf32>
    %c2_35 = arith.constant 2 : index
    %c0_36 = arith.constant 0 : index
    %49 = tpu.strided_load %arg39[%c2_35, %c0_36] {strides = array<i32: 8, 1>} : memref<40x32xf32, #tpu.memory_space<vmem>>, vector<2x32xf32>
    %50 = vector.broadcast %31 : vector<1x32xf32> to vector<2x32xf32>
    %51 = arith.mulf %50, %49 : vector<2x32xf32>
    %52 = arith.addf %48, %51 : vector<2x32xf32>
    %c3_37 = arith.constant 3 : index
    %c0_38 = arith.constant 0 : index
    %53 = tpu.strided_load %arg39[%c3_37, %c0_38] {strides = array<i32: 8, 1>} : memref<40x32xf32, #tpu.memory_space<vmem>>, vector<2x32xf32>
    %54 = vector.broadcast %32 : vector<1x32xf32> to vector<2x32xf32>
    %55 = arith.mulf %54, %53 : vector<2x32xf32>
    %56 = arith.addf %52, %55 : vector<2x32xf32>
    %c4_39 = arith.constant 4 : index
    %c0_40 = arith.constant 0 : index
    %57 = tpu.strided_load %arg39[%c4_39, %c0_40] {strides = array<i32: 8, 1>} : memref<40x32xf32, #tpu.memory_space<vmem>>, vector<2x32xf32>
    %58 = vector.broadcast %33 : vector<1x32xf32> to vector<2x32xf32>
    %59 = arith.mulf %58, %57 : vector<2x32xf32>
    %60 = arith.addf %56, %59 : vector<2x32xf32>
    %c5_41 = arith.constant 5 : index
    %c0_42 = arith.constant 0 : index
    %61 = tpu.strided_load %arg39[%c5_41, %c0_42] {strides = array<i32: 8, 1>} : memref<40x32xf32, #tpu.memory_space<vmem>>, vector<2x32xf32>
    %62 = vector.broadcast %34 : vector<1x32xf32> to vector<2x32xf32>
    %63 = arith.mulf %62, %61 : vector<2x32xf32>
    %64 = arith.addf %60, %63 : vector<2x32xf32>
    %c6_43 = arith.constant 6 : index
    %c0_44 = arith.constant 0 : index
    %65 = tpu.strided_load %arg39[%c6_43, %c0_44] {strides = array<i32: 8, 1>} : memref<40x32xf32, #tpu.memory_space<vmem>>, vector<2x32xf32>
    %66 = vector.broadcast %35 : vector<1x32xf32> to vector<2x32xf32>
    %67 = arith.mulf %66, %65 : vector<2x32xf32>
    %68 = arith.addf %64, %67 : vector<2x32xf32>
    %c7_45 = arith.constant 7 : index
    %c0_46 = arith.constant 0 : index
    %69 = tpu.strided_load %arg39[%c7_45, %c0_46] {strides = array<i32: 8, 1>} : memref<40x32xf32, #tpu.memory_space<vmem>>, vector<2x32xf32>
    %70 = vector.broadcast %36 : vector<1x32xf32> to vector<2x32xf32>
    %71 = arith.mulf %70, %69 : vector<2x32xf32>
    %72 = arith.addf %68, %71 : vector<2x32xf32>
    %c8 = arith.constant 8 : index
    %c0_47 = arith.constant 0 : index
    %73 = tpu.strided_load %arg39[%c8, %c0_47] {strides = array<i32: 8, 1>} : memref<40x32xf32, #tpu.memory_space<vmem>>, vector<2x32xf32>
    %74 = vector.shape_cast %41 : vector<2x1xi1> to vector<2x1xi1>
    %75 = vector.broadcast %74 : vector<2x1xi1> to vector<2x32xi1>
    %76 = vector.shape_cast %29 : vector<1x32xf32> to vector<1x32xf32>
    %77 = vector.broadcast %76 : vector<1x32xf32> to vector<2x32xf32>
    %78 = arith.select %75, %77, %73 : vector<2x32xi1>, vector<2x32xf32>
    %79 = vector.broadcast %37 : vector<1x32xf32> to vector<2x32xf32>
    %80 = arith.mulf %79, %78 : vector<2x32xf32>
    %81 = arith.addf %72, %80 : vector<2x32xf32>
    %c0_48 = arith.constant 0 : index
    %c0_49 = arith.constant 0 : index
    %82 = vector.load %arg40[%c0_48, %c0_49] : memref<4x32xf32, #tpu.memory_space<vmem>>, vector<2x32xf32>
    tpu.vector_store %arg40[%c0_48, %c0_49], %81 {strides = array<i32>} : memref<4x32xf32, #tpu.memory_space<vmem>>, vector<2x32xf32>,
    %cst_50 = arith.constant 0.000000e+00 : f32
    %83 = vector.broadcast %cst_50 : f32 to vector<2x32xf32>
    %84 = vector.broadcast %38 : vector<1x32xf32> to vector<2x32xf32>
    %85 = arith.addf %83, %84 : vector<2x32xf32>
    %c17 = arith.constant 17 : index
    %c0_51 = arith.constant 0 : index
    %86 = tpu.strided_load %arg39[%c17, %c0_51] {strides = array<i32: 8, 1>} : memref<40x32xf32, #tpu.memory_space<vmem>>, vector<2x32xf32>
    %87 = vector.broadcast %30 : vector<1x32xf32> to vector<2x32xf32>
    %88 = arith.mulf %87, %86 : vector<2x32xf32>
    %89 = arith.addf %85, %88 : vector<2x32xf32>
    %c18 = arith.constant 18 : index
    %c0_52 = arith.constant 0 : index
    %90 = tpu.strided_load %arg39[%c18, %c0_52] {strides = array<i32: 8, 1>} : memref<40x32xf32, #tpu.memory_space<vmem>>, vector<2x32xf32>
    %91 = vector.broadcast %31 : vector<1x32xf32> to vector<2x32xf32>
    %92 = arith.mulf %91, %90 : vector<2x32xf32>
    %93 = arith.addf %89, %92 : vector<2x32xf32>
    %c19 = arith.constant 19 : index
    %c0_53 = arith.constant 0 : index
    %94 = tpu.strided_load %arg39[%c19, %c0_53] {strides = array<i32: 8, 1>} : memref<40x32xf32, #tpu.memory_space<vmem>>, vector<2x32xf32>
    %95 = vector.broadcast %32 : vector<1x32xf32> to vector<2x32xf32>
    %96 = arith.mulf %95, %94 : vector<2x32xf32>
    %97 = arith.addf %93, %96 : vector<2x32xf32>
    %c20 = arith.constant 20 : index
    %c0_54 = arith.constant 0 : index
    %98 = tpu.strided_load %arg39[%c20, %c0_54] {strides = array<i32: 8, 1>} : memref<40x32xf32, #tpu.memory_space<vmem>>, vector<2x32xf32>
    %99 = vector.broadcast %33 : vector<1x32xf32> to vector<2x32xf32>
    %100 = arith.mulf %99, %98 : vector<2x32xf32>
    %101 = arith.addf %97, %100 : vector<2x32xf32>
    %c21 = arith.constant 21 : index
    %c0_55 = arith.constant 0 : index
    %102 = tpu.strided_load %arg39[%c21, %c0_55] {strides = array<i32: 8, 1>} : memref<40x32xf32, #tpu.memory_space<vmem>>, vector<2x32xf32>
    %103 = vector.broadcast %34 : vector<1x32xf32> to vector<2x32xf32>
    %104 = arith.mulf %103, %102 : vector<2x32xf32>
    %105 = arith.addf %101, %104 : vector<2x32xf32>
    %c22 = arith.constant 22 : index
    %c0_56 = arith.constant 0 : index
    %106 = tpu.strided_load %arg39[%c22, %c0_56] {strides = array<i32: 8, 1>} : memref<40x32xf32, #tpu.memory_space<vmem>>, vector<2x32xf32>
    %107 = vector.broadcast %35 : vector<1x32xf32> to vector<2x32xf32>
    %108 = arith.mulf %107, %106 : vector<2x32xf32>
    %109 = arith.addf %105, %108 : vector<2x32xf32>
    %c23 = arith.constant 23 : index
    %c0_57 = arith.constant 0 : index
    %110 = tpu.strided_load %arg39[%c23, %c0_57] {strides = array<i32: 8, 1>} : memref<40x32xf32, #tpu.memory_space<vmem>>, vector<2x32xf32>
    %111 = vector.broadcast %36 : vector<1x32xf32> to vector<2x32xf32>
    %112 = arith.mulf %111, %110 : vector<2x32xf32>
    %113 = arith.addf %109, %112 : vector<2x32xf32>
    %c24 = arith.constant 24 : index
    %c0_58 = arith.constant 0 : index
    %114 = tpu.strided_load %arg39[%c24, %c0_58] {strides = array<i32: 8, 1>} : memref<40x32xf32, #tpu.memory_space<vmem>>, vector<2x32xf32>
    %115 = vector.shape_cast %41 : vector<2x1xi1> to vector<2x1xi1>
    %116 = vector.broadcast %115 : vector<2x1xi1> to vector<2x32xi1>
    %117 = vector.shape_cast %29 : vector<1x32xf32> to vector<1x32xf32>
    %118 = vector.broadcast %117 : vector<1x32xf32> to vector<2x32xf32>
    %119 = arith.select %116, %118, %114 : vector<2x32xi1>, vector<2x32xf32>
    %120 = vector.broadcast %37 : vector<1x32xf32> to vector<2x32xf32>
    %121 = arith.mulf %120, %119 : vector<2x32xf32>
    %122 = arith.addf %113, %121 : vector<2x32xf32>
    %c2_59 = arith.constant 2 : index
    %c0_60 = arith.constant 0 : index
    %123 = vector.load %arg40[%c2_59, %c0_60] : memref<4x32xf32, #tpu.memory_space<vmem>>, vector<2x32xf32>
    tpu.vector_store %arg40[%c2_59, %c0_60], %122 {strides = array<i32>} : memref<4x32xf32, #tpu.memory_space<vmem>>, vector<2x32xf32>,
    %c0_61 = arith.constant 0 : index
    %c0_62 = arith.constant 0 : index
    %124 = vector.load %arg40[%c0_61, %c0_62] : memref<4x32xf32, #tpu.memory_space<vmem>>, vector<4x32xf32>
    %125 = tpu.iota {dimensions = array<i32: 0>} : vector<4x2xi32>
    %126 = tpu.iota {dimensions = array<i32: 1>} : vector<4x2xi32>
    %c2_i32_63 = arith.constant 2 : i32
    %127 = vector.broadcast %c2_i32_63 : i32 to vector<4x2xi32>
    %128 = arith.muli %126, %127 : vector<4x2xi32>
    %129 = arith.cmpi sge, %125, %128 : vector<4x2xi32>
    %c1_i32_64 = arith.constant 1 : i32
    %130 = vector.broadcast %c1_i32_64 : i32 to vector<4x2xi32>
    %131 = arith.addi %126, %130 : vector<4x2xi32>
    %c2_i32_65 = arith.constant 2 : i32
    %132 = vector.broadcast %c2_i32_65 : i32 to vector<4x2xi32>
    %133 = arith.muli %131, %132 : vector<4x2xi32>
    %134 = arith.cmpi slt, %125, %133 : vector<4x2xi32>
    %135 = arith.andi %129, %134 : vector<4x2xi1>
    %136 = arith.extui %135 : vector<4x2xi1> to vector<4x2xi32>
    %137 = arith.sitofp %136 : vector<4x2xi32> to vector<4x2xf32>
    %cst_66 = arith.constant dense<0.000000e+00> : vector<4x32xf32>
    %138 = tpu.matmul %137, %17, %cst_66 {dimension_numbers = #tpu.dot_dimension_numbers<[1], [0], [0], [1], [0, 0, 1, 1], [], []>} : vector<4x2xf32>, vector<2x32xf32>, vector<4x32xf32> -> vector<4x32xf32>
    %139 = arith.truncf %124 : vector<4x32xf32> to vector<4x32xbf16>
    %c0_67 = arith.constant 0 : index
    %c0_68 = arith.constant 0 : index
    %140 = vector.load %arg11[%c0_67, %c0_68] : memref<32x32xbf16, #tpu.memory_space<vmem>>, vector<32x32xbf16>
    %cst_69 = arith.constant dense<0.000000e+00> : vector<4x32xf32>
    %141 = tpu.matmul %139, %140, %cst_69 {dimension_numbers = #tpu.dot_dimension_numbers<[1], [0], [0], [1], [0, 0, 1, 1], [], []>} : vector<4x32xbf16>, vector<32x32xbf16>, vector<4x32xf32> -> vector<4x32xf32>
    %142 = arith.truncf %138 : vector<4x32xf32> to vector<4x32xbf16>
    %c0_70 = arith.constant 0 : index
    %c0_71 = arith.constant 0 : index
    %143 = vector.load %arg12[%c0_70, %c0_71] : memref<32x32xbf16, #tpu.memory_space<vmem>>, vector<32x32xbf16>
    %cst_72 = arith.constant dense<0.000000e+00> : vector<4x32xf32>
    %144 = tpu.matmul %142, %143, %cst_72 {dimension_numbers = #tpu.dot_dimension_numbers<[1], [0], [0], [1], [0, 0, 1, 1], [], []>} : vector<4x32xbf16>, vector<32x32xbf16>, vector<4x32xf32> -> vector<4x32xf32>
    %145 = arith.addf %141, %144 : vector<4x32xf32>
    %c0_73 = arith.constant 0 : index
    %c0_74 = arith.constant 0 : index
    %146 = vector.load %arg13[%c0_73, %c0_74] : memref<1x32xf32, #tpu.memory_space<vmem>>, vector<1x32xf32>
    %147 = vector.broadcast %146 : vector<1x32xf32> to vector<4x32xf32>
    %148 = arith.addf %145, %147 : vector<4x32xf32>
    %149 = arith.negf %148 : vector<4x32xf32>
    %150 = math.exp %149 : vector<4x32xf32>
    %cst_75 = arith.constant 1.000000e+00 : f32
    %151 = vector.broadcast %cst_75 : f32 to vector<4x32xf32>
    %152 = arith.addf %151, %150 : vector<4x32xf32>
    %153 = arith.divf %151, %152 : vector<4x32xf32>
    %154 = arith.mulf %138, %153 : vector<4x32xf32>
    %c0_76 = arith.constant 0 : index
    %c0_77 = arith.constant 0 : index
    %155 = vector.load %arg14[%c0_76, %c0_77] : memref<32x32xbf16, #tpu.memory_space<vmem>>, vector<32x32xbf16>
    %cst_78 = arith.constant dense<0.000000e+00> : vector<4x32xf32>
    %156 = tpu.matmul %139, %155, %cst_78 {dimension_numbers = #tpu.dot_dimension_numbers<[1], [0], [0], [1], [0, 0, 1, 1], [], []>} : vector<4x32xbf16>, vector<32x32xbf16>, vector<4x32xf32> -> vector<4x32xf32>
    %157 = arith.truncf %154 : vector<4x32xf32> to vector<4x32xbf16>
    %c0_79 = arith.constant 0 : index
    %c0_80 = arith.constant 0 : index
    %158 = vector.load %arg15[%c0_79, %c0_80] : memref<32x32xbf16, #tpu.memory_space<vmem>>, vector<32x32xbf16>
    %cst_81 = arith.constant dense<0.000000e+00> : vector<4x32xf32>
    %159 = tpu.matmul %157, %158, %cst_81 {dimension_numbers = #tpu.dot_dimension_numbers<[1], [0], [0], [1], [0, 0, 1, 1], [], []>} : vector<4x32xbf16>, vector<32x32xbf16>, vector<4x32xf32> -> vector<4x32xf32>
    %160 = arith.addf %156, %159 : vector<4x32xf32>
    %c0_82 = arith.constant 0 : index
    %c0_83 = arith.constant 0 : index
    %161 = vector.load %arg16[%c0_82, %c0_83] : memref<1x32xf32, #tpu.memory_space<vmem>>, vector<1x32xf32>
    %162 = vector.broadcast %161 : vector<1x32xf32> to vector<4x32xf32>
    %163 = arith.addf %160, %162 : vector<4x32xf32>
    %164 = arith.truncf %163 : vector<4x32xf32> to vector<4x32xbf16>
    %c0_84 = arith.constant 0 : index
    %c0_85 = arith.constant 0 : index
    %165 = vector.load %arg17[%c0_84, %c0_85] : memref<32x64xbf16, #tpu.memory_space<vmem>>, vector<32x64xbf16>
    %cst_86 = arith.constant dense<0.000000e+00> : vector<4x64xf32>
    %166 = tpu.matmul %164, %165, %cst_86 {dimension_numbers = #tpu.dot_dimension_numbers<[1], [0], [0], [1], [0, 0, 1, 1], [], []>} : vector<4x32xbf16>, vector<32x64xbf16>, vector<4x64xf32> -> vector<4x64xf32>
    %c0_87 = arith.constant 0 : index
    %c0_88 = arith.constant 0 : index
    %167 = vector.load %arg18[%c0_87, %c0_88] : memref<1x64xf32, #tpu.memory_space<vmem>>, vector<1x64xf32>
    %168 = vector.broadcast %167 : vector<1x64xf32> to vector<4x64xf32>
    %169 = arith.addf %166, %168 : vector<4x64xf32>
    %c0_89 = arith.constant 0 : index
    %c0_90 = arith.constant 0 : index
    %170 = vector.load %arg19[%c0_89, %c0_90] : memref<32x64xbf16, #tpu.memory_space<vmem>>, vector<32x64xbf16>
    %cst_91 = arith.constant dense<0.000000e+00> : vector<4x64xf32>
    %171 = tpu.matmul %164, %170, %cst_91 {dimension_numbers = #tpu.dot_dimension_numbers<[1], [0], [0], [1], [0, 0, 1, 1], [], []>} : vector<4x32xbf16>, vector<32x64xbf16>, vector<4x64xf32> -> vector<4x64xf32>
    %c0_92 = arith.constant 0 : index
    %c0_93 = arith.constant 0 : index
    %172 = vector.load %arg20[%c0_92, %c0_93] : memref<1x64xf32, #tpu.memory_space<vmem>>, vector<1x64xf32>
    %173 = vector.broadcast %172 : vector<1x64xf32> to vector<4x64xf32>
    %174 = arith.addf %171, %173 : vector<4x64xf32>
    %c0_94 = arith.constant 0 : index
    %c0_95 = arith.constant 0 : index
    %175 = vector.load %arg41[%c0_94, %c0_95] : memref<4x64xf32, #tpu.memory_space<vmem>>, vector<4x64xf32>
    tpu.vector_store %arg41[%c0_94, %c0_95], %169 {strides = array<i32>} : memref<4x64xf32, #tpu.memory_space<vmem>>, vector<4x64xf32>,
    %c0_96 = arith.constant 0 : index
    %c0_97 = arith.constant 0 : index
    %176 = vector.load %arg21[%c0_96, %c0_97] : memref<4x64xf32, #tpu.memory_space<vmem>>, vector<1x64xf32>
    %c1_98 = arith.constant 1 : index
    %c0_99 = arith.constant 0 : index
    %177 = vector.load %arg21[%c1_98, %c0_99] : memref<4x64xf32, #tpu.memory_space<vmem>>, vector<1x64xf32>
    %c2_100 = arith.constant 2 : index
    %c0_101 = arith.constant 0 : index
    %178 = vector.load %arg21[%c2_100, %c0_101] : memref<4x64xf32, #tpu.memory_space<vmem>>, vector<1x64xf32>
    %c3_102 = arith.constant 3 : index
    %c0_103 = arith.constant 0 : index
    %179 = vector.load %arg21[%c3_102, %c0_103] : memref<4x64xf32, #tpu.memory_space<vmem>>, vector<1x64xf32>
    %c0_104 = arith.constant 0 : index
    %c0_105 = arith.constant 0 : index
    %180 = vector.load %arg22[%c0_104, %c0_105] : memref<1x64xf32, #tpu.memory_space<vmem>>, vector<1x64xf32>
    %c0_106 = arith.constant 0 : index
    %c0_107 = arith.constant 0 : index
    %181 = vector.load %arg23[%c0_106, %c0_107] : memref<1x64xf32, #tpu.memory_space<vmem>>, vector<1x64xf32>
    %c0_108 = arith.constant 0 : index
    %c0_109 = arith.constant 0 : index
    %182 = vector.load %arg24[%c0_108, %c0_109] : memref<1x64xf32, #tpu.memory_space<vmem>>, vector<1x64xf32>
    %c0_110 = arith.constant 0 : index
    %c0_111 = arith.constant 0 : index
    %183 = vector.load %arg25[%c0_110, %c0_111] : memref<1x64xf32, #tpu.memory_space<vmem>>, vector<1x64xf32>
    %c0_112 = arith.constant 0 : index
    %c0_113 = arith.constant 0 : index
    %184 = vector.load %arg26[%c0_112, %c0_113] : memref<1x64xf32, #tpu.memory_space<vmem>>, vector<1x64xf32>
    %cst_114 = arith.constant 0.000000e+00 : f32
    %185 = vector.broadcast %cst_114 : f32 to vector<2x64xf32>
    %cst_115 = arith.constant 0.000000e+00 : f32
    %186 = vector.broadcast %cst_115 : f32 to vector<2x64xf32>
    %187 = vector.broadcast %180 : vector<1x64xf32> to vector<2x64xf32>
    %188 = arith.addf %186, %187 : vector<2x64xf32>
    %c1_116 = arith.constant 1 : index
    %c0_117 = arith.constant 0 : index
    %189 = tpu.strided_load %arg41[%c1_116, %c0_117] {strides = array<i32: 2, 1>} : memref<4x64xf32, #tpu.memory_space<vmem>>, vector<2x64xf32>
    %190 = vector.broadcast %179 : vector<1x64xf32> to vector<2x64xf32>
    %191 = arith.mulf %190, %189 : vector<2x64xf32>
    %192 = arith.addf %188, %191 : vector<2x64xf32>
    %193 = arith.negf %192 : vector<2x64xf32>
    %194 = math.exp %193 : vector<2x64xf32>
    %cst_118 = arith.constant 1.000000e+00 : f32
    %195 = vector.broadcast %cst_118 : f32 to vector<2x64xf32>
    %196 = arith.addf %195, %194 : vector<2x64xf32>
    %197 = arith.divf %195, %196 : vector<2x64xf32>
    %198 = arith.mulf %192, %197 : vector<2x64xf32>
    %199 = vector.broadcast %181 : vector<1x64xf32> to vector<2x64xf32>
    %200 = arith.mulf %199, %185 : vector<2x64xf32>
    %201 = vector.broadcast %182 : vector<1x64xf32> to vector<2x64xf32>
    %202 = arith.mulf %201, %198 : vector<2x64xf32>
    %203 = arith.addf %200, %202 : vector<2x64xf32>
    %cst_119 = arith.constant 0.000000e+00 : f32
    %204 = vector.broadcast %cst_119 : f32 to vector<2x64xf32>
    %205 = vector.broadcast %180 : vector<1x64xf32> to vector<2x64xf32>
    %206 = arith.addf %204, %205 : vector<2x64xf32>
    %c1_120 = arith.constant 1 : index
    %c0_121 = arith.constant 0 : index
    %207 = tpu.strided_load %arg41[%c1_120, %c0_121] {strides = array<i32: 2, 1>} : memref<4x64xf32, #tpu.memory_space<vmem>>, vector<2x64xf32>
    %208 = vector.broadcast %178 : vector<1x64xf32> to vector<2x64xf32>
    %209 = arith.mulf %208, %207 : vector<2x64xf32>
    %210 = arith.addf %206, %209 : vector<2x64xf32>
    %c0_122 = arith.constant 0 : index
    %c0_123 = arith.constant 0 : index
    %211 = tpu.strided_load %arg41[%c0_122, %c0_123] {strides = array<i32: 2, 1>} : memref<4x64xf32, #tpu.memory_space<vmem>>, vector<2x64xf32>
    %212 = vector.broadcast %179 : vector<1x64xf32> to vector<2x64xf32>
    %213 = arith.mulf %212, %211 : vector<2x64xf32>
    %214 = arith.addf %210, %213 : vector<2x64xf32>
    %215 = arith.negf %214 : vector<2x64xf32>
    %216 = math.exp %215 : vector<2x64xf32>
    %cst_124 = arith.constant 1.000000e+00 : f32
    %217 = vector.broadcast %cst_124 : f32 to vector<2x64xf32>
    %218 = arith.addf %217, %216 : vector<2x64xf32>
    %219 = arith.divf %217, %218 : vector<2x64xf32>
    %220 = arith.mulf %214, %219 : vector<2x64xf32>
    %221 = vector.broadcast %181 : vector<1x64xf32> to vector<2x64xf32>
    %222 = arith.mulf %221, %203 : vector<2x64xf32>
    %223 = vector.broadcast %182 : vector<1x64xf32> to vector<2x64xf32>
    %224 = arith.mulf %223, %220 : vector<2x64xf32>
    %225 = arith.addf %222, %224 : vector<2x64xf32>
    %cst_125 = arith.constant 0.000000e+00 : f32
    %226 = vector.broadcast %cst_125 : f32 to vector<2x64xf32>
    %227 = vector.broadcast %180 : vector<1x64xf32> to vector<2x64xf32>
    %228 = arith.addf %226, %227 : vector<2x64xf32>
    %c1_126 = arith.constant 1 : index
    %c0_127 = arith.constant 0 : index
    %229 = tpu.strided_load %arg41[%c1_126, %c0_127] {strides = array<i32: 2, 1>} : memref<4x64xf32, #tpu.memory_space<vmem>>, vector<2x64xf32>
    %230 = vector.broadcast %177 : vector<1x64xf32> to vector<2x64xf32>
    %231 = arith.mulf %230, %229 : vector<2x64xf32>
    %232 = arith.addf %228, %231 : vector<2x64xf32>
    %c0_128 = arith.constant 0 : index
    %c0_129 = arith.constant 0 : index
    %233 = tpu.strided_load %arg41[%c0_128, %c0_129] {strides = array<i32: 2, 1>} : memref<4x64xf32, #tpu.memory_space<vmem>>, vector<2x64xf32>
    %234 = vector.broadcast %178 : vector<1x64xf32> to vector<2x64xf32>
    %235 = arith.mulf %234, %233 : vector<2x64xf32>
    %236 = arith.addf %232, %235 : vector<2x64xf32>
    %c0_130 = arith.constant 0 : index
    %c0_131 = arith.constant 0 : index
    %237 = tpu.strided_load %arg41[%c0_130, %c0_131] {strides = array<i32: 2, 1>} : memref<4x64xf32, #tpu.memory_space<vmem>>, vector<2x64xf32>
    %238 = vector.broadcast %179 : vector<1x64xf32> to vector<2x64xf32>
    %239 = arith.mulf %238, %237 : vector<2x64xf32>
    %240 = arith.addf %236, %239 : vector<2x64xf32>
    %241 = arith.negf %240 : vector<2x64xf32>
    %242 = math.exp %241 : vector<2x64xf32>
    %cst_132 = arith.constant 1.000000e+00 : f32
    %243 = vector.broadcast %cst_132 : f32 to vector<2x64xf32>
    %244 = arith.addf %243, %242 : vector<2x64xf32>
    %245 = arith.divf %243, %244 : vector<2x64xf32>
    %246 = arith.mulf %240, %245 : vector<2x64xf32>
    %247 = vector.broadcast %181 : vector<1x64xf32> to vector<2x64xf32>
    %248 = arith.mulf %247, %225 : vector<2x64xf32>
    %249 = vector.broadcast %182 : vector<1x64xf32> to vector<2x64xf32>
    %250 = arith.mulf %249, %246 : vector<2x64xf32>
    %251 = arith.addf %248, %250 : vector<2x64xf32>
    %252 = vector.broadcast %183 : vector<1x64xf32> to vector<2x64xf32>
    %253 = arith.mulf %252, %251 : vector<2x64xf32>
    %254 = vector.broadcast %184 : vector<1x64xf32> to vector<2x64xf32>
    %255 = arith.mulf %254, %246 : vector<2x64xf32>
    %256 = arith.addf %253, %255 : vector<2x64xf32>
    %c0_133 = arith.constant 0 : index
    %c0_134 = arith.constant 0 : index
    %257 = vector.load %arg42[%c0_133, %c0_134] : memref<4x64xf32, #tpu.memory_space<vmem>>, vector<2x64xf32>
    tpu.vector_store %arg42[%c0_133, %c0_134], %256 {strides = array<i32>} : memref<4x64xf32, #tpu.memory_space<vmem>>, vector<2x64xf32>,
    %cst_135 = arith.constant 0.000000e+00 : f32
    %258 = vector.broadcast %cst_135 : f32 to vector<2x64xf32>
    %259 = vector.broadcast %180 : vector<1x64xf32> to vector<2x64xf32>
    %260 = arith.addf %258, %259 : vector<2x64xf32>
    %c1_136 = arith.constant 1 : index
    %c0_137 = arith.constant 0 : index
    %261 = tpu.strided_load %arg41[%c1_136, %c0_137] {strides = array<i32: 2, 1>} : memref<4x64xf32, #tpu.memory_space<vmem>>, vector<2x64xf32>
    %262 = vector.broadcast %176 : vector<1x64xf32> to vector<2x64xf32>
    %263 = arith.mulf %262, %261 : vector<2x64xf32>
    %264 = arith.addf %260, %263 : vector<2x64xf32>
    %c0_138 = arith.constant 0 : index
    %c0_139 = arith.constant 0 : index
    %265 = tpu.strided_load %arg41[%c0_138, %c0_139] {strides = array<i32: 2, 1>} : memref<4x64xf32, #tpu.memory_space<vmem>>, vector<2x64xf32>
    %266 = vector.broadcast %177 : vector<1x64xf32> to vector<2x64xf32>
    %267 = arith.mulf %266, %265 : vector<2x64xf32>
    %268 = arith.addf %264, %267 : vector<2x64xf32>
    %c0_140 = arith.constant 0 : index
    %c0_141 = arith.constant 0 : index
    %269 = tpu.strided_load %arg41[%c0_140, %c0_141] {strides = array<i32: 2, 1>} : memref<4x64xf32, #tpu.memory_space<vmem>>, vector<2x64xf32>
    %270 = vector.broadcast %178 : vector<1x64xf32> to vector<2x64xf32>
    %271 = arith.mulf %270, %269 : vector<2x64xf32>
    %272 = arith.addf %268, %271 : vector<2x64xf32>
    %c1_142 = arith.constant 1 : index
    %c0_143 = arith.constant 0 : index
    %273 = tpu.strided_load %arg41[%c1_142, %c0_143] {strides = array<i32: 2, 1>} : memref<4x64xf32, #tpu.memory_space<vmem>>, vector<2x64xf32>
    %274 = vector.broadcast %179 : vector<1x64xf32> to vector<2x64xf32>
    %275 = arith.mulf %274, %273 : vector<2x64xf32>
    %276 = arith.addf %272, %275 : vector<2x64xf32>
    %277 = arith.negf %276 : vector<2x64xf32>
    %278 = math.exp %277 : vector<2x64xf32>
    %cst_144 = arith.constant 1.000000e+00 : f32
    %279 = vector.broadcast %cst_144 : f32 to vector<2x64xf32>
    %280 = arith.addf %279, %278 : vector<2x64xf32>
    %281 = arith.divf %279, %280 : vector<2x64xf32>
    %282 = arith.mulf %276, %281 : vector<2x64xf32>
    %283 = vector.broadcast %181 : vector<1x64xf32> to vector<2x64xf32>
    %284 = arith.mulf %283, %251 : vector<2x64xf32>
    %285 = vector.broadcast %182 : vector<1x64xf32> to vector<2x64xf32>
    %286 = arith.mulf %285, %282 : vector<2x64xf32>
    %287 = arith.addf %284, %286 : vector<2x64xf32>
    %288 = vector.broadcast %183 : vector<1x64xf32> to vector<2x64xf32>
    %289 = arith.mulf %288, %287 : vector<2x64xf32>
    %290 = vector.broadcast %184 : vector<1x64xf32> to vector<2x64xf32>
    %291 = arith.mulf %290, %282 : vector<2x64xf32>
    %292 = arith.addf %289, %291 : vector<2x64xf32>
    %c2_145 = arith.constant 2 : index
    %c0_146 = arith.constant 0 : index
    %293 = vector.load %arg42[%c2_145, %c0_146] : memref<4x64xf32, #tpu.memory_space<vmem>>, vector<2x64xf32>
    tpu.vector_store %arg42[%c2_145, %c0_146], %292 {strides = array<i32>} : memref<4x64xf32, #tpu.memory_space<vmem>>, vector<2x64xf32>,
    %c0_147 = arith.constant 0 : index
    %c0_148 = arith.constant 0 : index
    %294 = vector.load %arg34[%c0_147, %c0_148] : memref<4x4xf32, #tpu.memory_space<vmem>>, vector<4x4xf32>
    %c0_149 = arith.constant 0 : index
    %c0_150 = arith.constant 0 : index
    %295 = vector.load %arg42[%c0_149, %c0_150] : memref<4x64xf32, #tpu.memory_space<vmem>>, vector<4x64xf32>
    %cst_151 = arith.constant dense<0.000000e+00> : vector<4x64xf32>
    %296 = tpu.matmul %294, %295, %cst_151 {dimension_numbers = #tpu.dot_dimension_numbers<[1], [0], [0], [1], [0, 0, 1, 1], [], []>} : vector<4x4xf32>, vector<4x64xf32>, vector<4x64xf32> -> vector<4x64xf32>
    %297 = arith.negf %174 : vector<4x64xf32>
    %298 = math.exp %297 : vector<4x64xf32>
    %cst_152 = arith.constant 1.000000e+00 : f32
    %299 = vector.broadcast %cst_152 : f32 to vector<4x64xf32>
    %300 = arith.addf %299, %298 : vector<4x64xf32>
    %301 = arith.divf %299, %300 : vector<4x64xf32>
    %302 = arith.mulf %174, %301 : vector<4x64xf32>
    %303 = arith.mulf %296, %302 : vector<4x64xf32>
    %304 = arith.truncf %303 : vector<4x64xf32> to vector<4x64xbf16>
    %c0_153 = arith.constant 0 : index
    %c0_154 = arith.constant 0 : index
    %305 = vector.load %arg27[%c0_153, %c0_154] : memref<64x32xbf16, #tpu.memory_space<vmem>>, vector<64x32xbf16>
    %cst_155 = arith.constant dense<0.000000e+00> : vector<4x32xf32>
    %306 = tpu.matmul %304, %305, %cst_155 {dimension_numbers = #tpu.dot_dimension_numbers<[1], [0], [0], [1], [0, 0, 1, 1], [], []>} : vector<4x64xbf16>, vector<64x32xbf16>, vector<4x32xf32> -> vector<4x32xf32>
    %c0_156 = arith.constant 0 : index
    %c0_157 = arith.constant 0 : index
    %307 = vector.load %arg28[%c0_156, %c0_157] : memref<1x32xf32, #tpu.memory_space<vmem>>, vector<1x32xf32>
    %308 = vector.broadcast %307 : vector<1x32xf32> to vector<4x32xf32>
    %309 = arith.addf %306, %308 : vector<4x32xf32>
    %310 = arith.addf %163, %309 : vector<4x32xf32>
    %cst_158 = arith.constant dense<0.000000e+00> : vector<4xf32>
    %311 = vector.multi_reduction <add>, %310, %cst_158 [1] : vector<4x32xf32> to vector<4xf32>
    %312 = vector.shape_cast %311 : vector<4xf32> to vector<4x1xf32>
    %cst_159 = arith.constant 3.200000e+01 : f32
    %313 = vector.broadcast %cst_159 : f32 to vector<4x1xf32>
    %314 = arith.divf %312, %313 : vector<4x1xf32>
    %315 = vector.broadcast %314 : vector<4x1xf32> to vector<4x32xf32>
    %316 = arith.subf %310, %315 : vector<4x32xf32>
    %317 = vector.broadcast %314 : vector<4x1xf32> to vector<4x32xf32>
    %318 = arith.subf %310, %317 : vector<4x32xf32>
    %319 = arith.mulf %316, %318 : vector<4x32xf32>
    %cst_160 = arith.constant dense<0.000000e+00> : vector<4xf32>
    %320 = vector.multi_reduction <add>, %319, %cst_160 [1] : vector<4x32xf32> to vector<4xf32>
    %321 = vector.shape_cast %320 : vector<4xf32> to vector<4x1xf32>
    %cst_161 = arith.constant 3.200000e+01 : f32
    %322 = vector.broadcast %cst_161 : f32 to vector<4x1xf32>
    %323 = arith.divf %321, %322 : vector<4x1xf32>
    %324 = vector.broadcast %314 : vector<4x1xf32> to vector<4x32xf32>
    %325 = arith.subf %310, %324 : vector<4x32xf32>
    %cst_162 = arith.constant 9.99999974E-6 : f32
    %326 = vector.broadcast %cst_162 : f32 to vector<4x1xf32>
    %327 = arith.addf %323, %326 : vector<4x1xf32>
    %328 = math.rsqrt %327 : vector<4x1xf32>
    %329 = vector.broadcast %328 : vector<4x1xf32> to vector<4x32xf32>
    %330 = arith.mulf %325, %329 : vector<4x32xf32>
    %c0_163 = arith.constant 0 : index
    %c0_164 = arith.constant 0 : index
    %331 = vector.load %arg29[%c0_163, %c0_164] : memref<1x32xf32, #tpu.memory_space<vmem>>, vector<1x32xf32>
    %332 = vector.broadcast %331 : vector<1x32xf32> to vector<4x32xf32>
    %333 = arith.mulf %330, %332 : vector<4x32xf32>
    %c0_165 = arith.constant 0 : index
    %c0_166 = arith.constant 0 : index
    %334 = vector.load %arg30[%c0_165, %c0_166] : memref<1x32xf32, #tpu.memory_space<vmem>>, vector<1x32xf32>
    %335 = vector.broadcast %334 : vector<1x32xf32> to vector<4x32xf32>
    %336 = arith.addf %333, %335 : vector<4x32xf32>
    %337 = arith.truncf %336 : vector<4x32xf32> to vector<4x32xbf16>
    %c0_167 = arith.constant 0 : index
    %c0_168 = arith.constant 0 : index
    %338 = vector.load %arg32[%c0_167, %c0_168] : memref<32x32xbf16, #tpu.memory_space<vmem>>, vector<32x32xbf16>
    %cst_169 = arith.constant dense<0.000000e+00> : vector<4x32xf32>
    %339 = tpu.matmul %337, %338, %cst_169 {dimension_numbers = #tpu.dot_dimension_numbers<[1], [0], [0], [1], [0, 0, 1, 1], [], []>} : vector<4x32xbf16>, vector<32x32xbf16>, vector<4x32xf32> -> vector<4x32xf32>
    %c0_170 = arith.constant 0 : index
    %c0_171 = arith.constant 0 : index
    %340 = vector.load %arg33[%c0_170, %c0_171] : memref<1x32xf32, #tpu.memory_space<vmem>>, vector<1x32xf32>
    %341 = vector.broadcast %340 : vector<1x32xf32> to vector<4x32xf32>
    %342 = arith.addf %339, %341 : vector<4x32xf32>
    %c0_172 = arith.constant 0 : index
    %c0_173 = arith.constant 0 : index
    %343 = vector.load %arg35[%c0_172, %c0_173] : memref<32x4xf32, #tpu.memory_space<vmem>>, vector<32x4xf32>
    %cst_174 = arith.constant dense<0.000000e+00> : vector<32x32xf32>
    %344 = tpu.matmul %343, %342, %cst_174 {dimension_numbers = #tpu.dot_dimension_numbers<[1], [0], [0], [1], [0, 0, 1, 1], [], []>} : vector<32x4xf32>, vector<4x32xf32>, vector<32x32xf32> -> vector<32x32xf32>
    %345 = arith.truncf %3 : vector<32x32xf32> to vector<32x32xbf16>
    %c0_175 = arith.constant 0 : index
    %c0_176 = arith.constant 0 : index
    %346 = vector.load %arg31[%c0_175, %c0_176] : memref<32x32xbf16, #tpu.memory_space<vmem>>, vector<32x32xbf16>
    %cst_177 = arith.constant dense<0.000000e+00> : vector<32x32xf32>
    %347 = tpu.matmul %345, %346, %cst_177 {dimension_numbers = #tpu.dot_dimension_numbers<[1], [0], [0], [1], [0, 0, 1, 1], [], []>} : vector<32x32xbf16>, vector<32x32xbf16>, vector<32x32xf32> -> vector<32x32xf32>
    %348 = tpu.iota {dimensions = array<i32: 0>} : vector<32x1xi32>
    %c0_i32 = arith.constant 0 : i32
    %349 = vector.broadcast %c0_i32 : i32 to vector<32x1xi32>
    %350 = arith.cmpi eq, %348, %349 : vector<32x1xi32>
    %c16_i32 = arith.constant 16 : i32
    %351 = vector.broadcast %c16_i32 : i32 to vector<32x1xi32>
    %352 = arith.cmpi eq, %348, %351 : vector<32x1xi32>
    %353 = arith.ori %350, %352 : vector<32x1xi1>
    %354 = arith.addf %347, %344 : vector<32x32xf32>
    %355 = vector.shape_cast %353 : vector<32x1xi1> to vector<32x1xi1>
    %356 = vector.broadcast %355 : vector<32x1xi1> to vector<32x32xi1>
    %357 = arith.select %356, %3, %354 : vector<32x32xi1>, vector<32x32xf32>
    %cst_178 = arith.constant dense<0.000000e+00> : vector<32xf32>
    %358 = vector.multi_reduction <add>, %357, %cst_178 [1] : vector<32x32xf32> to vector<32xf32>
    %359 = vector.shape_cast %358 : vector<32xf32> to vector<32x1xf32>
    %cst_179 = arith.constant 3.200000e+01 : f32
    %360 = vector.broadcast %cst_179 : f32 to vector<32x1xf32>
    %361 = arith.divf %359, %360 : vector<32x1xf32>
    %362 = vector.broadcast %361 : vector<32x1xf32> to vector<32x32xf32>
    %363 = arith.subf %357, %362 : vector<32x32xf32>
    %364 = vector.broadcast %361 : vector<32x1xf32> to vector<32x32xf32>
    %365 = arith.subf %357, %364 : vector<32x32xf32>
    %366 = arith.mulf %363, %365 : vector<32x32xf32>
    %cst_180 = arith.constant dense<0.000000e+00> : vector<32xf32>
    %367 = vector.multi_reduction <add>, %366, %cst_180 [1] : vector<32x32xf32> to vector<32xf32>
    %368 = vector.shape_cast %367 : vector<32xf32> to vector<32x1xf32>
    %cst_181 = arith.constant 3.200000e+01 : f32
    %369 = vector.broadcast %cst_181 : f32 to vector<32x1xf32>
    %370 = arith.divf %368, %369 : vector<32x1xf32>
    %371 = vector.broadcast %361 : vector<32x1xf32> to vector<32x32xf32>
    %372 = arith.subf %357, %371 : vector<32x32xf32>
    %cst_182 = arith.constant 9.99999974E-6 : f32
    %373 = vector.broadcast %cst_182 : f32 to vector<32x1xf32>
    %374 = arith.addf %370, %373 : vector<32x1xf32>
    %375 = math.rsqrt %374 : vector<32x1xf32>
    %376 = vector.broadcast %375 : vector<32x1xf32> to vector<32x32xf32>
    %377 = arith.mulf %372, %376 : vector<32x32xf32>
    %c0_183 = arith.constant 0 : index
    %c0_184 = arith.constant 0 : index
    %378 = vector.load %arg36[%c0_183, %c0_184] : memref<1x32xf32, #tpu.memory_space<vmem>>, vector<1x32xf32>
    %379 = vector.broadcast %378 : vector<1x32xf32> to vector<32x32xf32>
    %380 = arith.mulf %377, %379 : vector<32x32xf32>
    %c0_185 = arith.constant 0 : index
    %c0_186 = arith.constant 0 : index
    %381 = vector.load %arg37[%c0_185, %c0_186] : memref<1x32xf32, #tpu.memory_space<vmem>>, vector<1x32xf32>
    %382 = vector.broadcast %381 : vector<1x32xf32> to vector<32x32xf32>
    %383 = arith.addf %380, %382 : vector<32x32xf32>
    %c0_187 = arith.constant 0 : index
    %c0_188 = arith.constant 0 : index
    %384 = vector.load %arg38[%c0_187, %c0_188] : memref<32x32xf32, #tpu.memory_space<vmem>>, vector<32x32xf32>
    tpu.vector_store %arg38[%c0_187, %c0_188], %383 {strides = array<i32>} : memref<32x32xf32, #tpu.memory_space<vmem>>, vector<32x32xf32>,
    return
  }
  func.func @transform_0(%arg0: i32) -> (i32, i32) {
    %c0_i32 = arith.constant 0 : i32
    %c0_i32_0 = arith.constant 0 : i32
    return %arg0, %c0_i32 : i32, i32
  }
  func.func @transform_1(%arg0: i32) -> (i32, i32) {
    %c0_i32 = arith.constant 0 : i32
    %c0_i32_0 = arith.constant 0 : i32
    return %arg0, %c0_i32 : i32, i32
  }
  func.func @transform_2(%arg0: i32) -> (i32, i32) {
    %c0_i32 = arith.constant 0 : i32
    %c0_i32_0 = arith.constant 0 : i32
    %c0_i32_1 = arith.constant 0 : i32
    return %c0_i32, %c0_i32_0 : i32, i32
  }
  func.func @transform_3(%arg0: i32) -> (i32, i32) {
    %c0_i32 = arith.constant 0 : i32
    %c0_i32_0 = arith.constant 0 : i32
    %c0_i32_1 = arith.constant 0 : i32
    return %c0_i32, %c0_i32_0 : i32, i32
  }
  func.func @transform_4(%arg0: i32) -> (i32, i32) {
    %c0_i32 = arith.constant 0 : i32
    %c0_i32_0 = arith.constant 0 : i32
    %c0_i32_1 = arith.constant 0 : i32
    return %c0_i32, %c0_i32_0 : i32, i32
  }
  func.func @transform_5(%arg0: i32) -> (i32, i32) {
    %c0_i32 = arith.constant 0 : i32
    %c0_i32_0 = arith.constant 0 : i32
    %c0_i32_1 = arith.constant 0 : i32
    return %c0_i32, %c0_i32_0 : i32, i32
  }
  func.func @transform_6(%arg0: i32) -> (i32, i32) {
    %c0_i32 = arith.constant 0 : i32
    %c0_i32_0 = arith.constant 0 : i32
    %c0_i32_1 = arith.constant 0 : i32
    return %c0_i32, %c0_i32_0 : i32, i32
  }
  func.func @transform_7(%arg0: i32) -> (i32, i32) {
    %c0_i32 = arith.constant 0 : i32
    %c0_i32_0 = arith.constant 0 : i32
    %c0_i32_1 = arith.constant 0 : i32
    return %c0_i32, %c0_i32_0 : i32, i32
  }
  func.func @transform_8(%arg0: i32) -> (i32, i32) {
    %c0_i32 = arith.constant 0 : i32
    %c0_i32_0 = arith.constant 0 : i32
    %c0_i32_1 = arith.constant 0 : i32
    return %c0_i32, %c0_i32_0 : i32, i32
  }
  func.func @transform_9(%arg0: i32) -> (i32, i32) {
    %c0_i32 = arith.constant 0 : i32
    %c0_i32_0 = arith.constant 0 : i32
    %c0_i32_1 = arith.constant 0 : i32
    return %c0_i32, %c0_i32_0 : i32, i32
  }
  func.func @transform_10(%arg0: i32) -> (i32, i32) {
    %c0_i32 = arith.constant 0 : i32
    %c0_i32_0 = arith.constant 0 : i32
    %c0_i32_1 = arith.constant 0 : i32
    return %c0_i32, %c0_i32_0 : i32, i32
  }
  func.func @transform_11(%arg0: i32) -> (i32, i32) {
    %c0_i32 = arith.constant 0 : i32
    %c0_i32_0 = arith.constant 0 : i32
    %c0_i32_1 = arith.constant 0 : i32
    return %c0_i32, %c0_i32_0 : i32, i32
  }
  func.func @transform_12(%arg0: i32) -> (i32, i32) {
    %c0_i32 = arith.constant 0 : i32
    %c0_i32_0 = arith.constant 0 : i32
    %c0_i32_1 = arith.constant 0 : i32
    return %c0_i32, %c0_i32_0 : i32, i32
  }
  func.func @transform_13(%arg0: i32) -> (i32, i32) {
    %c0_i32 = arith.constant 0 : i32
    %c0_i32_0 = arith.constant 0 : i32
    %c0_i32_1 = arith.constant 0 : i32
    return %c0_i32, %c0_i32_0 : i32, i32
  }
  func.func @transform_14(%arg0: i32) -> (i32, i32) {
    %c0_i32 = arith.constant 0 : i32
    %c0_i32_0 = arith.constant 0 : i32
    %c0_i32_1 = arith.constant 0 : i32
    return %c0_i32, %c0_i32_0 : i32, i32
  }
  func.func @transform_15(%arg0: i32) -> (i32, i32) {
    %c0_i32 = arith.constant 0 : i32
    %c0_i32_0 = arith.constant 0 : i32
    %c0_i32_1 = arith.constant 0 : i32
    return %c0_i32, %c0_i32_0 : i32, i32
  }
  func.func @transform_16(%arg0: i32) -> (i32, i32) {
    %c0_i32 = arith.constant 0 : i32
    %c0_i32_0 = arith.constant 0 : i32
    %c0_i32_1 = arith.constant 0 : i32
    return %c0_i32, %c0_i32_0 : i32, i32
  }
  func.func @transform_17(%arg0: i32) -> (i32, i32) {
    %c0_i32 = arith.constant 0 : i32
    %c0_i32_0 = arith.constant 0 : i32
    %c0_i32_1 = arith.constant 0 : i32
    return %c0_i32, %c0_i32_0 : i32, i32
  }
  func.func @transform_18(%arg0: i32) -> (i32, i32) {
    %c0_i32 = arith.constant 0 : i32
    %c0_i32_0 = arith.constant 0 : i32
    %c0_i32_1 = arith.constant 0 : i32
    return %c0_i32, %c0_i32_0 : i32, i32
  }
  func.func @transform_19(%arg0: i32) -> (i32, i32) {
    %c0_i32 = arith.constant 0 : i32
    %c0_i32_0 = arith.constant 0 : i32
    %c0_i32_1 = arith.constant 0 : i32
    return %c0_i32, %c0_i32_0 : i32, i32
  }
  func.func @transform_20(%arg0: i32) -> (i32, i32) {
    %c0_i32 = arith.constant 0 : i32
    %c0_i32_0 = arith.constant 0 : i32
    %c0_i32_1 = arith.constant 0 : i32
    return %c0_i32, %c0_i32_0 : i32, i32
  }
  func.func @transform_21(%arg0: i32) -> (i32, i32) {
    %c0_i32 = arith.constant 0 : i32
    %c0_i32_0 = arith.constant 0 : i32
    %c0_i32_1 = arith.constant 0 : i32
    return %c0_i32, %c0_i32_0 : i32, i32
  }
  func.func @transform_22(%arg0: i32) -> (i32, i32) {
    %c0_i32 = arith.constant 0 : i32
    %c0_i32_0 = arith.constant 0 : i32
    %c0_i32_1 = arith.constant 0 : i32
    return %c0_i32, %c0_i32_0 : i32, i32
  }
  func.func @transform_23(%arg0: i32) -> (i32, i32) {
    %c0_i32 = arith.constant 0 : i32
    %c0_i32_0 = arith.constant 0 : i32
    %c0_i32_1 = arith.constant 0 : i32
    return %c0_i32, %c0_i32_0 : i32, i32
  }
  func.func @transform_24(%arg0: i32) -> (i32, i32) {
    %c0_i32 = arith.constant 0 : i32
    %c0_i32_0 = arith.constant 0 : i32
    %c0_i32_1 = arith.constant 0 : i32
    return %c0_i32, %c0_i32_0 : i32, i32
  }
  func.func @transform_25(%arg0: i32) -> (i32, i32) {
    %c0_i32 = arith.constant 0 : i32
    %c0_i32_0 = arith.constant 0 : i32
    %c0_i32_1 = arith.constant 0 : i32
    return %c0_i32, %c0_i32_0 : i32, i32
  }
  func.func @transform_26(%arg0: i32) -> (i32, i32) {
    %c0_i32 = arith.constant 0 : i32
    %c0_i32_0 = arith.constant 0 : i32
    %c0_i32_1 = arith.constant 0 : i32
    return %c0_i32, %c0_i32_0 : i32, i32
  }
  func.func @transform_27(%arg0: i32) -> (i32, i32) {
    %c0_i32 = arith.constant 0 : i32
    %c0_i32_0 = arith.constant 0 : i32
    %c0_i32_1 = arith.constant 0 : i32
    return %c0_i32, %c0_i32_0 : i32, i32
  }
  func.func @transform_28(%arg0: i32) -> (i32, i32) {
    %c0_i32 = arith.constant 0 : i32
    %c0_i32_0 = arith.constant 0 : i32
    %c0_i32_1 = arith.constant 0 : i32
    return %c0_i32, %c0_i32_0 : i32, i32
  }
  func.func @transform_29(%arg0: i32) -> (i32, i32) {
    %c0_i32 = arith.constant 0 : i32
    %c0_i32_0 = arith.constant 0 : i32
    %c0_i32_1 = arith.constant 0 : i32
    return %c0_i32, %c0_i32_0 : i32, i32
  }
  func.func @transform_30(%arg0: i32) -> (i32, i32) {
    %c0_i32 = arith.constant 0 : i32
    %c0_i32_0 = arith.constant 0 : i32
    %c0_i32_1 = arith.constant 0 : i32
    return %c0_i32, %c0_i32_0 : i32, i32
  }
  func.func @transform_31(%arg0: i32) -> (i32, i32) {
    %c0_i32 = arith.constant 0 : i32
    %c0_i32_0 = arith.constant 0 : i32
    %c0_i32_1 = arith.constant 0 : i32
    return %c0_i32, %c0_i32_0 : i32, i32
  }
  func.func @transform_32(%arg0: i32) -> (i32, i32) {
    %c0_i32 = arith.constant 0 : i32
    %c0_i32_0 = arith.constant 0 : i32
    %c0_i32_1 = arith.constant 0 : i32
    return %c0_i32, %c0_i32_0 : i32, i32
  }
  func.func @transform_33(%arg0: i32) -> (i32, i32) {
    %c0_i32 = arith.constant 0 : i32
    %c0_i32_0 = arith.constant 0 : i32
    %c0_i32_1 = arith.constant 0 : i32
    return %c0_i32, %c0_i32_0 : i32, i32
  }
  func.func @transform_34(%arg0: i32) -> (i32, i32) {
    %c0_i32 = arith.constant 0 : i32
    %c0_i32_0 = arith.constant 0 : i32
    %c0_i32_1 = arith.constant 0 : i32
    return %c0_i32, %c0_i32_0 : i32, i32
  }
  func.func @transform_35(%arg0: i32) -> (i32, i32) {
    %c0_i32 = arith.constant 0 : i32
    %c0_i32_0 = arith.constant 0 : i32
    %c0_i32_1 = arith.constant 0 : i32
    return %c0_i32, %c0_i32_0 : i32, i32
  }
  func.func @transform_36(%arg0: i32) -> (i32, i32) {
    %c0_i32 = arith.constant 0 : i32
    %c0_i32_0 = arith.constant 0 : i32
    %c0_i32_1 = arith.constant 0 : i32
    return %c0_i32, %c0_i32_0 : i32, i32
  }
  func.func @transform_37(%arg0: i32) -> (i32, i32) {
    %c0_i32 = arith.constant 0 : i32
    %c0_i32_0 = arith.constant 0 : i32
    return %arg0, %c0_i32 : i32, i32
  }
}

</mosaic_0001>

<llo_original>
// kernel: stage_block.3
$region0: #{stage_block.3}
  #allocation0 [shape = 'u32[]', space=smem, size = 0x4, offset = 0x4, fixed_abs, tag = 'smem constant byte address 0x4 - core index']
  #allocation1 [shape = 'u32[144,128]{1,0:T(1,128)}', space=vmem, size = 0x12000, scoped, tag = 'internal scratch']
  #allocation2 [shape = 'f32[48,32]{1,0:T(8,128)}', space=vmem, size = 0x6000, scoped, tag = 'scratch operand']
  %s0 = inlined_call_operand.vmem [shape: f32[64,16], index: 0, kind: input, shape index: {}]
  %s1 = inlined_call_operand.vmem [shape: f32[64,1], index: 1, kind: input, shape index: {}]
  %s2 = inlined_call_operand.vmem [shape: bf16[16,32], index: 2, kind: input, shape index: {}]
  %s3 = inlined_call_operand.vmem [shape: f32[1,32], index: 3, kind: input, shape index: {}]
  %s4 = inlined_call_operand.vmem [shape: bf16[32,32], index: 4, kind: input, shape index: {}]
  %s5 = inlined_call_operand.vmem [shape: f32[1,32], index: 5, kind: input, shape index: {}]
  %s6 = inlined_call_operand.vmem [shape: f32[3,32], index: 6, kind: input, shape index: {}]
  %s7 = inlined_call_operand.vmem [shape: f32[1,32], index: 7, kind: input, shape index: {}]
  %s8 = inlined_call_operand.vmem [shape: f32[32,32], index: 8, kind: input, shape index: {}]
  %s9 = inlined_call_operand.vmem [shape: f32[1,32], index: 9, kind: input, shape index: {}]
  %s10 = inlined_call_operand.vmem [shape: f32[1,32], index: 10, kind: input, shape index: {}]
  %s11 = inlined_call_operand.vmem [shape: f32[1,32], index: 11, kind: input, shape index: {}]
  %s12 = inlined_call_operand.vmem [shape: f32[1,32], index: 12, kind: input, shape index: {}]
  %s13 = inlined_call_operand.vmem [shape: f32[64,32], index: 13, kind: output, shape index: {}]
  %s14 = sld [smem:[#allocation0]]
  $region85: #{stage_block.3} parent=0
    _
  %s16 = ssub.s32 1, %s14
  %s17 = scalar_select 0, %s16, %s14
  loop: start=0, step=1, limit=4
  $region2: #{stage_block.3} parent=0 // loop_pre_header
    _
  $region3: #{stage_block.3} parent=0 // loop_header
    %s19 = sphi 0, %s23
    %p20 = scmp.ge.s32.totalorder %s19, 4
    %s29 = sphi 0, %s31
    %s32 = sphi 0, %s29
    %s33 = sphi 0, %s32
    %s49 = sphi 0, %s33
    %s55 = sphi 0, %s57
    %s58 = sphi 0, %s55
    %s59 = sphi 0, %s58
    %s75 = sphi 0, %s59
    %s79 = sphi 0, %s79
    %s81 = sphi 0, %s79
    %s82 = sphi 0, %s81
    %s96 = sphi 0, %s82
    %s100 = sphi 0, %s100
    %s102 = sphi 0, %s100
    %s103 = sphi 0, %s102
    %s117 = sphi 0, %s103
    %s121 = sphi 0, %s121
    %s123 = sphi 0, %s121
    %s124 = sphi 0, %s123
    %s138 = sphi 0, %s124
    %s142 = sphi 0, %s142
    %s144 = sphi 0, %s142
    %s145 = sphi 0, %s144
    %s159 = sphi 0, %s145
    %s163 = sphi 0, %s163
    %s165 = sphi 0, %s163
    %s166 = sphi 0, %s165
    %s180 = sphi 0, %s166
    %s184 = sphi 0, %s184
    %s186 = sphi 0, %s184
    %s187 = sphi 0, %s186
    %s201 = sphi 0, %s187
    %s205 = sphi 0, %s205
    %s207 = sphi 0, %s205
    %s208 = sphi 0, %s207
    %s222 = sphi 0, %s208
    %s226 = sphi 0, %s226
    %s228 = sphi 0, %s226
    %s229 = sphi 0, %s228
    %s243 = sphi 0, %s229
    %s247 = sphi 0, %s247
    %s249 = sphi 0, %s247
    %s250 = sphi 0, %s249
    %s264 = sphi 0, %s250
    %s268 = sphi 0, %s268
    %s270 = sphi 0, %s268
    %s271 = sphi 0, %s270
    %s285 = sphi 0, %s271
    %s289 = sphi 0, %s289
    %s291 = sphi 0, %s289
    %s292 = sphi 0, %s291
    %s306 = sphi 0, %s292
    %s312 = sphi 0, %s314
    %s315 = sphi 0, %s312
    %s316 = sphi 0, %s315
    %s332 = sphi 0, %s316
  $region4: #{stage_block.3} parent=0 // loop_header_branch
    %22 = sbr.rel (%p20) target = $region8
  $region5: #{stage_block.3} parent=0 // loop_body
    %s24 = ssub.s32 %s19, 1
    %s25 = ssub.s32 %s19, 2
    %s26 = sadd.s32 %s19, 1
    %s27 = ssub.s32 %s19, %s26
    %p28 = scmp.eq.s32.totalorder %s27, 0
    %s30 = sadd.s32 %s29, 1
    %s31 = scalar_select %p28, %s29, %s30
    %p34 = pneg %p28
    %p35 = scmp.eq.s32.totalorder %s19, 1
    %p36 = por %p34, %p35
    %p37 = scmp.ne.s32.totalorder %s29, %s32
    %p38 = scmp.eq.s32.totalorder %s19, 0
    %p39 = por %p37, %p38
    %p40 = scmp.ne.s32.totalorder %s29, %s32
    %p41 = scmp.eq.s32.totalorder %s24, 1
    %p42 = por %p40, %p41
    %p43 = scmp.ne.s32.totalorder %s32, %s33
    %p44 = scmp.eq.s32.totalorder %s24, 0
    %p45 = por %p43, %p44
    %p46 = scmp.ne.s32.totalorder %s32, %s33
    %p47 = scmp.eq.s32.totalorder %s25, 1
    %p48 = por %p46, %p47
    %p50 = scmp.ne.s32.totalorder %s33, %s49
    %p51 = scmp.eq.s32.totalorder %s25, 0
    %p52 = por %p50, %p51
    %s53 = ssub.s32 %s19, %s26
    %p54 = scmp.eq.s32.totalorder %s53, 0
    %s56 = sadd.s32 %s55, 1
    %s57 = scalar_select %p54, %s55, %s56
    %p60 = pneg %p54
    %p61 = scmp.eq.s32.totalorder %s19, 1
    %p62 = por %p60, %p61
    %p63 = scmp.ne.s32.totalorder %s55, %s58
    %p64 = scmp.eq.s32.totalorder %s19, 0
    %p65 = por %p63, %p64
    %p66 = scmp.ne.s32.totalorder %s55, %s58
    %p67 = scmp.eq.s32.totalorder %s24, 1
    %p68 = por %p66, %p67
    %p69 = scmp.ne.s32.totalorder %s58, %s59
    %p70 = scmp.eq.s32.totalorder %s24, 0
    %p71 = por %p69, %p70
    %p72 = scmp.ne.s32.totalorder %s58, %s59
    %p73 = scmp.eq.s32.totalorder %s25, 1
    %p74 = por %p72, %p73
    %p76 = scmp.ne.s32.totalorder %s59, %s75
    %p77 = scmp.eq.s32.totalorder %s25, 0
    %p78 = por %p76, %p77
    %s80 = sadd.s32 %s79, 1
    %p83 = scmp.eq.s32.totalorder %s19, 1
    %p84 = scmp.ne.s32.totalorder %s79, %s81
    %p85 = scmp.eq.s32.totalorder %s19, 0
    %p86 = por %p84, %p85
    %p87 = scmp.ne.s32.totalorder %s79, %s81
    %p88 = scmp.eq.s32.totalorder %s24, 1
    %p89 = por %p87, %p88
    %p90 = scmp.ne.s32.totalorder %s81, %s82
    %p91 = scmp.eq.s32.totalorder %s24, 0
    %p92 = por %p90, %p91
    %p93 = scmp.ne.s32.totalorder %s81, %s82
    %p94 = scmp.eq.s32.totalorder %s25, 1
    %p95 = por %p93, %p94
    %p97 = scmp.ne.s32.totalorder %s82, %s96
    %p98 = scmp.eq.s32.totalorder %s25, 0
    %p99 = por %p97, %p98
    %s101 = sadd.s32 %s100, 1
    %p104 = scmp.eq.s32.totalorder %s19, 1
    %p105 = scmp.ne.s32.totalorder %s100, %s102
    %p106 = scmp.eq.s32.totalorder %s19, 0
    %p107 = por %p105, %p106
    %p108 = scmp.ne.s32.totalorder %s100, %s102
    %p109 = scmp.eq.s32.totalorder %s24, 1
    %p110 = por %p108, %p109
    %p111 = scmp.ne.s32.totalorder %s102, %s103
    %p112 = scmp.eq.s32.totalorder %s24, 0
    %p113 = por %p111, %p112
    %p114 = scmp.ne.s32.totalorder %s102, %s103
    %p115 = scmp.eq.s32.totalorder %s25, 1
    %p116 = por %p114, %p115
    %p118 = scmp.ne.s32.totalorder %s103, %s117
    %p119 = scmp.eq.s32.totalorder %s25, 0
    %p120 = por %p118, %p119
    %s122 = sadd.s32 %s121, 1
    %p125 = scmp.eq.s32.totalorder %s19, 1
    %p126 = scmp.ne.s32.totalorder %s121, %s123
    %p127 = scmp.eq.s32.totalorder %s19, 0
    %p128 = por %p126, %p127
    %p129 = scmp.ne.s32.totalorder %s121, %s123
    %p130 = scmp.eq.s32.totalorder %s24, 1
    %p131 = por %p129, %p130
    %p132 = scmp.ne.s32.totalorder %s123, %s124
    %p133 = scmp.eq.s32.totalorder %s24, 0
    %p134 = por %p132, %p133
    %p135 = scmp.ne.s32.totalorder %s123, %s124
    %p136 = scmp.eq.s32.totalorder %s25, 1
    %p137 = por %p135, %p136
    %p139 = scmp.ne.s32.totalorder %s124, %s138
    %p140 = scmp.eq.s32.totalorder %s25, 0
    %p141 = por %p139, %p140
    %s143 = sadd.s32 %s142, 1
    %p146 = scmp.eq.s32.totalorder %s19, 1
    %p147 = scmp.ne.s32.totalorder %s142, %s144
    %p148 = scmp.eq.s32.totalorder %s19, 0
    %p149 = por %p147, %p148
    %p150 = scmp.ne.s32.totalorder %s142, %s144
    %p151 = scmp.eq.s32.totalorder %s24, 1
    %p152 = por %p150, %p151
    %p153 = scmp.ne.s32.totalorder %s144, %s145
    %p154 = scmp.eq.s32.totalorder %s24, 0
    %p155 = por %p153, %p154
    %p156 = scmp.ne.s32.totalorder %s144, %s145
    %p157 = scmp.eq.s32.totalorder %s25, 1
    %p158 = por %p156, %p157
    %p160 = scmp.ne.s32.totalorder %s145, %s159
    %p161 = scmp.eq.s32.totalorder %s25, 0
    %p162 = por %p160, %p161
    %s164 = sadd.s32 %s163, 1
    %p167 = scmp.eq.s32.totalorder %s19, 1
    %p168 = scmp.ne.s32.totalorder %s163, %s165
    %p169 = scmp.eq.s32.totalorder %s19, 0
    %p170 = por %p168, %p169
    %p171 = scmp.ne.s32.totalorder %s163, %s165
    %p172 = scmp.eq.s32.totalorder %s24, 1
    %p173 = por %p171, %p172
    %p174 = scmp.ne.s32.totalorder %s165, %s166
    %p175 = scmp.eq.s32.totalorder %s24, 0
    %p176 = por %p174, %p175
    %p177 = scmp.ne.s32.totalorder %s165, %s166
    %p178 = scmp.eq.s32.totalorder %s25, 1
    %p179 = por %p177, %p178
    %p181 = scmp.ne.s32.totalorder %s166, %s180
    %p182 = scmp.eq.s32.totalorder %s25, 0
    %p183 = por %p181, %p182
    %s185 = sadd.s32 %s184, 1
    %p188 = scmp.eq.s32.totalorder %s19, 1
    %p189 = scmp.ne.s32.totalorder %s184, %s186
    %p190 = scmp.eq.s32.totalorder %s19, 0
    %p191 = por %p189, %p190
    %p192 = scmp.ne.s32.totalorder %s184, %s186
    %p193 = scmp.eq.s32.totalorder %s24, 1
    %p194 = por %p192, %p193
    %p195 = scmp.ne.s32.totalorder %s186, %s187
    %p196 = scmp.eq.s32.totalorder %s24, 0
    %p197 = por %p195, %p196
    %p198 = scmp.ne.s32.totalorder %s186, %s187
    %p199 = scmp.eq.s32.totalorder %s25, 1
    %p200 = por %p198, %p199
    %p202 = scmp.ne.s32.totalorder %s187, %s201
    %p203 = scmp.eq.s32.totalorder %s25, 0
    %p204 = por %p202, %p203
    %s206 = sadd.s32 %s205, 1
    %p209 = scmp.eq.s32.totalorder %s19, 1
    %p210 = scmp.ne.s32.totalorder %s205, %s207
    %p211 = scmp.eq.s32.totalorder %s19, 0
    %p212 = por %p210, %p211
    %p213 = scmp.ne.s32.totalorder %s205, %s207
    %p214 = scmp.eq.s32.totalorder %s24, 1
    %p215 = por %p213, %p214
    %p216 = scmp.ne.s32.totalorder %s207, %s208
    %p217 = scmp.eq.s32.totalorder %s24, 0
    %p218 = por %p216, %p217
    %p219 = scmp.ne.s32.totalorder %s207, %s208
    %p220 = scmp.eq.s32.totalorder %s25, 1
    %p221 = por %p219, %p220
    %p223 = scmp.ne.s32.totalorder %s208, %s222
    %p224 = scmp.eq.s32.totalorder %s25, 0
    %p225 = por %p223, %p224
    %s227 = sadd.s32 %s226, 1
    %p230 = scmp.eq.s32.totalorder %s19, 1
    %p231 = scmp.ne.s32.totalorder %s226, %s228
    %p232 = scmp.eq.s32.totalorder %s19, 0
    %p233 = por %p231, %p232
    %p234 = scmp.ne.s32.totalorder %s226, %s228
    %p235 = scmp.eq.s32.totalorder %s24, 1
    %p236 = por %p234, %p235
    %p237 = scmp.ne.s32.totalorder %s228, %s229
    %p238 = scmp.eq.s32.totalorder %s24, 0
    %p239 = por %p237, %p238
    %p240 = scmp.ne.s32.totalorder %s228, %s229
    %p241 = scmp.eq.s32.totalorder %s25, 1
    %p242 = por %p240, %p241
    %p244 = scmp.ne.s32.totalorder %s229, %s243
    %p245 = scmp.eq.s32.totalorder %s25, 0
    %p246 = por %p244, %p245
    %s248 = sadd.s32 %s247, 1
    %p251 = scmp.eq.s32.totalorder %s19, 1
    %p252 = scmp.ne.s32.totalorder %s247, %s249
    %p253 = scmp.eq.s32.totalorder %s19, 0
    %p254 = por %p252, %p253
    %p255 = scmp.ne.s32.totalorder %s247, %s249
    %p256 = scmp.eq.s32.totalorder %s24, 1
    %p257 = por %p255, %p256
    %p258 = scmp.ne.s32.totalorder %s249, %s250
    %p259 = scmp.eq.s32.totalorder %s24, 0
    %p260 = por %p258, %p259
    %p261 = scmp.ne.s32.totalorder %s249, %s250
    %p262 = scmp.eq.s32.totalorder %s25, 1
    %p263 = por %p261, %p262
    %p265 = scmp.ne.s32.totalorder %s250, %s264
    %p266 = scmp.eq.s32.totalorder %s25, 0
    %p267 = por %p265, %p266
    %s269 = sadd.s32 %s268, 1
    %p272 = scmp.eq.s32.totalorder %s19, 1
    %p273 = scmp.ne.s32.totalorder %s268, %s270
    %p274 = scmp.eq.s32.totalorder %s19, 0
    %p275 = por %p273, %p274
    %p276 = scmp.ne.s32.totalorder %s268, %s270
    %p277 = scmp.eq.s32.totalorder %s24, 1
    %p278 = por %p276, %p277
    %p279 = scmp.ne.s32.totalorder %s270, %s271
    %p280 = scmp.eq.s32.totalorder %s24, 0
    %p281 = por %p279, %p280
    %p282 = scmp.ne.s32.totalorder %s270, %s271
    %p283 = scmp.eq.s32.totalorder %s25, 1
    %p284 = por %p282, %p283
    %p286 = scmp.ne.s32.totalorder %s271, %s285
    %p287 = scmp.eq.s32.totalorder %s25, 0
    %p288 = por %p286, %p287
    %s290 = sadd.s32 %s289, 1
    %p293 = scmp.eq.s32.totalorder %s19, 1
    %p294 = scmp.ne.s32.totalorder %s289, %s291
    %p295 = scmp.eq.s32.totalorder %s19, 0
    %p296 = por %p294, %p295
    %p297 = scmp.ne.s32.totalorder %s289, %s291
    %p298 = scmp.eq.s32.totalorder %s24, 1
    %p299 = por %p297, %p298
    %p300 = scmp.ne.s32.totalorder %s291, %s292
    %p301 = scmp.eq.s32.totalorder %s24, 0
    %p302 = por %p300, %p301
    %p303 = scmp.ne.s32.totalorder %s291, %s292
    %p304 = scmp.eq.s32.totalorder %s25, 1
    %p305 = por %p303, %p304
    %p307 = scmp.ne.s32.totalorder %s292, %s306
    %p308 = scmp.eq.s32.totalorder %s25, 0
    %p309 = por %p307, %p308
    %s310 = ssub.s32 %s19, %s26
    %p311 = scmp.eq.s32.totalorder %s310, 0
    %s313 = sadd.s32 %s312, 1
    %s314 = scalar_select %p311, %s312, %s313
    %p317 = pneg %p311
    %p318 = scmp.eq.s32.totalorder %s19, 1
    %p319 = por %p317, %p318
    %p320 = scmp.ne.s32.totalorder %s312, %s315
    %p321 = scmp.eq.s32.totalorder %s19, 0
    %p322 = por %p320, %p321
    %p323 = scmp.ne.s32.totalorder %s312, %s315
    %p324 = scmp.eq.s32.totalorder %s24, 1
    %p325 = por %p323, %p324
    %p326 = scmp.ne.s32.totalorder %s315, %s316
    %p327 = scmp.eq.s32.totalorder %s24, 0
    %p328 = por %p326, %p327
    %p329 = scmp.ne.s32.totalorder %s315, %s316
    %p330 = scmp.eq.s32.totalorder %s25, 1
    %p331 = por %p329, %p330
    %p333 = scmp.ne.s32.totalorder %s316, %s332
    %p334 = scmp.eq.s32.totalorder %s25, 0
    %p335 = por %p333, %p334
    %p336 = scmp.le.s32.totalorder 1, %s19
    %p337 = scmp.lt.s32.totalorder %s19, 3
    %p338 = pnand %p336, %p337
    %p339 = pneg %p338
    // Predicated region
    $region9: #{stage_block.3} parent=5 // pred_check
      _
    $region10: #{stage_block.3} parent=5 // pred_check_branch
      %341 = sbr.rel (%p338) target = $region12
    $region11: #{stage_block.3} parent=5 // pred_region
      %s342 = ssub.s32 %s19, 1
      // Predicated region
      $region13: #{stage_block.3} parent=11 // pred_check
        %p343 = pneg %p92
      $region14: #{stage_block.3} parent=11 // pred_check_branch
        %345 = sbr.rel (%p343) target = $region16
      $region15: #{stage_block.3} parent=11 // pred_region
        _
      $region16: #{stage_block.3} parent=11 // pred_fallthru
        _
      // Predicated region
      $region17: #{stage_block.3} parent=11 // pred_check
        %p346 = pneg %p113
      $region18: #{stage_block.3} parent=11 // pred_check_branch
        %348 = sbr.rel (%p346) target = $region20
      $region19: #{stage_block.3} parent=11 // pred_region
        _
      $region20: #{stage_block.3} parent=11 // pred_fallthru
        _
      // Predicated region
      $region21: #{stage_block.3} parent=11 // pred_check
        %p349 = pneg %p134
      $region22: #{stage_block.3} parent=11 // pred_check_branch
        %351 = sbr.rel (%p349) target = $region24
      $region23: #{stage_block.3} parent=11 // pred_region
        _
      $region24: #{stage_block.3} parent=11 // pred_fallthru
        _
      // Predicated region
      $region25: #{stage_block.3} parent=11 // pred_check
        %p352 = pneg %p155
      $region26: #{stage_block.3} parent=11 // pred_check_branch
        %354 = sbr.rel (%p352) target = $region28
      $region27: #{stage_block.3} parent=11 // pred_region
        _
      $region28: #{stage_block.3} parent=11 // pred_fallthru
        _
      // Predicated region
      $region29: #{stage_block.3} parent=11 // pred_check
        %p355 = pneg %p176
      $region30: #{stage_block.3} parent=11 // pred_check_branch
        %357 = sbr.rel (%p355) target = $region32
      $region31: #{stage_block.3} parent=11 // pred_region
        _
      $region32: #{stage_block.3} parent=11 // pred_fallthru
        _
      // Predicated region
      $region33: #{stage_block.3} parent=11 // pred_check
        %p358 = pneg %p197
      $region34: #{stage_block.3} parent=11 // pred_check_branch
        %360 = sbr.rel (%p358) target = $region36
      $region35: #{stage_block.3} parent=11 // pred_region
        _
      $region36: #{stage_block.3} parent=11 // pred_fallthru
        _
      // Predicated region
      $region37: #{stage_block.3} parent=11 // pred_check
        %p361 = pneg %p218
      $region38: #{stage_block.3} parent=11 // pred_check_branch
        %363 = sbr.rel (%p361) target = $region40
      $region39: #{stage_block.3} parent=11 // pred_region
        _
      $region40: #{stage_block.3} parent=11 // pred_fallthru
        _
      // Predicated region
      $region41: #{stage_block.3} parent=11 // pred_check
        %p364 = pneg %p239
      $region42: #{stage_block.3} parent=11 // pred_check_branch
        %366 = sbr.rel (%p364) target = $region44
      $region43: #{stage_block.3} parent=11 // pred_region
        _
      $region44: #{stage_block.3} parent=11 // pred_fallthru
        _
      // Predicated region
      $region45: #{stage_block.3} parent=11 // pred_check
        %p367 = pneg %p260
      $region46: #{stage_block.3} parent=11 // pred_check_branch
        %369 = sbr.rel (%p367) target = $region48
      $region47: #{stage_block.3} parent=11 // pred_region
        _
      $region48: #{stage_block.3} parent=11 // pred_fallthru
        _
      // Predicated region
      $region49: #{stage_block.3} parent=11 // pred_check
        %p370 = pneg %p281
      $region50: #{stage_block.3} parent=11 // pred_check_branch
        %372 = sbr.rel (%p370) target = $region52
      $region51: #{stage_block.3} parent=11 // pred_region
        _
      $region52: #{stage_block.3} parent=11 // pred_fallthru
        _
      // Predicated region
      $region53: #{stage_block.3} parent=11 // pred_check
        %p373 = pneg %p302
      $region54: #{stage_block.3} parent=11 // pred_check_branch
        %375 = sbr.rel (%p373) target = $region56
      $region55: #{stage_block.3} parent=11 // pred_region
        _
      $region56: #{stage_block.3} parent=11 // pred_fallthru
        _
    $region12: #{stage_block.3} parent=5 // pred_fallthru
      _
    %p376 = scmp.lt.s32.totalorder %s19, 2
    // Predicated region
    $region57: #{stage_block.3} parent=5 // pred_check
      %p377 = pneg %p376
    $region58: #{stage_block.3} parent=5 // pred_check_branch
      %379 = sbr.rel (%p377) target = $region60
    $region59: #{stage_block.3} parent=5 // pred_region
      // Predicated region
      $region61: #{stage_block.3} parent=59 // pred_check
        %p380 = pneg %p39
      $region62: #{stage_block.3} parent=59 // pred_check_branch
        %382 = sbr.rel (%p380) target = $region64
      $region63: #{stage_block.3} parent=59 // pred_region
        %s383 = smul.u32 4, %s19
        %p384 = scmp.lt.s32.totalorder %s383, 7
        %s385 = scalar_select %p384, %s383, 7
        %s386 = smul.addr %s385, 8
        %s387 = scalar_lea.vmem %s0, %s386
        %s388 = smul.u32 4, %s19
      $region64: #{stage_block.3} parent=59 // pred_fallthru
        _
      // Predicated region
      $region65: #{stage_block.3} parent=59 // pred_check
        %p389 = pneg %p65
      $region66: #{stage_block.3} parent=59 // pred_check_branch
        %391 = sbr.rel (%p389) target = $region68
      $region67: #{stage_block.3} parent=59 // pred_region
        %s392 = smul.u32 4, %s19
        %p393 = scmp.lt.s32.totalorder %s392, 7
        %s394 = scalar_select %p393, %s392, 7
        %s395 = smul.addr %s394, 8
        %s396 = scalar_lea.vmem %s1, %s395
        %s397 = smul.u32 4, %s19
      $region68: #{stage_block.3} parent=59 // pred_fallthru
        _
    $region60: #{stage_block.3} parent=5 // pred_fallthru
      _
    %p398 = scmp.le.s32.totalorder 1, %s19
    %p399 = scmp.lt.s32.totalorder %s19, 3
    %p400 = pnand %p398, %p399
    %p401 = pneg %p400
    // Predicated region
    $region69: #{stage_block.3} parent=5 // pred_check
      _
    $region70: #{stage_block.3} parent=5 // pred_check_branch
      %403 = sbr.rel (%p400) target = $region72
    $region71: #{stage_block.3} parent=5 // pred_region
      %s404 = ssub.s32 %s19, 1
      %s405 = smul.u32 4, %s24
      %p406 = scmp.lt.s32.totalorder %s405, 7
      %s407 = scalar_select %p406, %s405, 7
      %s408 = smul.addr %s407, 8
      %s409 = scalar_lea.vmem %s0, %s408
      %p410 = pneg %p45
      %p411 = pneg %p42
      %s412 = smul.u32 4, %s24
      %p413 = scmp.lt.s32.totalorder %s412, 7
      %s414 = scalar_select %p413, %s412, 7
      %s415 = smul.addr %s414, 8
      %s416 = scalar_lea.vmem %s1, %s415
      %p417 = pneg %p71
      %p418 = pneg %p68
      %p419 = pneg %p92
      %p420 = pneg %p89
      %p421 = pneg %p113
      %p422 = pneg %p110
      %p423 = pneg %p134
      %p424 = pneg %p131
      %p425 = pneg %p155
      %p426 = pneg %p152
      %p427 = pneg %p176
      %p428 = pneg %p173
      %p429 = pneg %p197
      %p430 = pneg %p194
      %p431 = pneg %p218
      %p432 = pneg %p215
      %p433 = pneg %p239
      %p434 = pneg %p236
      %p435 = pneg %p260
      %p436 = pneg %p257
      %p437 = pneg %p281
      %p438 = pneg %p278
      %p439 = pneg %p302
      %p440 = pneg %p299
      %p441 = pneg %p328
      %p442 = pneg %p325
      %s443 = smul.u32 4, %s24
      %p444 = scmp.lt.s32.totalorder %s443, 7
      %s445 = scalar_select %p444, %s443, 7
      %s446 = smul.addr %s445, 8
      %s447 = scalar_lea.vmem %s13, %s446
      %s448 = smul.u32 4, %s24
      %p449 = scmp.lt.s32.totalorder %s448, 7
      %s450 = scalar_select %p449, %s448, 7
      %s451 = smul.addr %s450, 8
      %s452 = scalar_lea.vmem %s0, %s451
      %s453 = smul.u32 4, %s24
      %s454 = smul.u32 4, %s24
      %p455 = scmp.lt.s32.totalorder %s454, 7
      %s456 = scalar_select %p455, %s454, 7
      %s457 = smul.addr %s456, 8
      %s458 = scalar_lea.vmem %s1, %s457
      %s459 = smul.u32 4, %s24
      %s460 = smul.u32 4, %s24
      %p461 = scmp.lt.s32.totalorder %s460, 7
      %s462 = scalar_select %p461, %s460, 7
      %s463 = smul.addr %s462, 8
      %s464 = scalar_lea.vmem %s13, %s463
      %s465 = smul.u32 4, %s24
      %v467 = vld [vmem:[%s452] sm:$0xff]
      %v468 = vld [vmem:[%s452 + $0x8] sm:$0xff]
      %v469 = vld [vmem:[%s452 + $0x10] sm:$0xff]
      %v470 = vld [vmem:[%s452 + $0x18] sm:$0xff]
      %v471 = vpack.c.bf16 %v468, %v467
      %v472 = vpack.c.bf16 %v470, %v469
      %v473 = vld [vmem:[%s2] sm:$0xf]
      %v474 = vld [vmem:[%s2 + $0x4] sm:$0xf]
      %v475 = vld [vmem:[%s3] sm:$0x1]
      %v477 = vlaneseq
      %v478 = vshrl.u32 %v477, 7
      %v479 = vsub.s32 0, %v478
      %v480 = vrot.slane %v475, %v479
      %v484 = vunpack.c.l.b16 %v473
      %v485 = vunpack.c.l.b16 %v474
      %v486 = vpack.c.b16 %v485, %v484
      %vm488 = vcmask 130048
      %v490 = vsel %vm488, %v471, 0
      %v493 = vsel %vm488, %v472, 0
      %495 = vmatprep.subr.bf16.mxu0 0
      %496 = vmatpush1.bf16.msra.mxu0 0
      %497 = vmatprep.subr.bf16.mxu0 0
      %498 = vmatpush1.bf16.msra.mxu0 0
      %499 = vmatprep.subr.bf16.mxu0 0
      %500 = vmatpush1.bf16.msra.mxu0 0
      %501 = vmatprep.subr.bf16.mxu0 0
      %502 = vmatpush1.bf16.msra.mxu0 0
      %503 = vmatprep.subr.bf16.mxu0 0
      %504 = vmatpush1.bf16.msra.mxu0 0
      %505 = vmatprep.subr.bf16.mxu0 0
      %506 = vmatpush1.bf16.msra.mxu0 0
      %507 = vmatprep.subr.bf16.mxu0 0
      %508 = vmatpush1.bf16.msra.mxu0 0
      %509 = vmatprep.subr.bf16.mxu0 0
      %510 = vmatpush1.bf16.msra.mxu0 %v486
      %511 = vmatprep.subr.bf16.mxu0 0
      %512 = vmatpush2.bf16.msra.mxu0 0
      %513 = vmatprep.subr.bf16.mxu0 0
      %514 = vmatpush2.bf16.msra.mxu0 0
      %515 = vmatprep.subr.bf16.mxu0 0
      %516 = vmatpush2.bf16.msra.mxu0 0
      %517 = vmatprep.subr.bf16.mxu0 0
      %518 = vmatpush2.bf16.msra.mxu0 0
      %519 = vmatprep.subr.bf16.mxu0 0
      %520 = vmatpush2.bf16.msra.mxu0 0
      %521 = vmatprep.subr.bf16.mxu0 0
      %522 = vmatpush2.bf16.msra.mxu0 0
      %523 = vmatprep.subr.bf16.mxu0 0
      %524 = vmatpush2.bf16.msra.mxu0 0
      %525 = vmatprep.subr.bf16.mxu0 0
      %526 = vmatpush2.bf16.msra.mxu0 0
      %527 = vmatprep.mubr.bf16.mxu0 0
      %528 = vmatmul.mubr.bf16.gmra.mxu0 %v490
      %v529 = vpop.f32.mrf.mxu0
      %v530 = vadd.f32 %v480, %v529
      %v531 = vpop.f32.mrf.mxu0
      %v532 = vpop.f32.mrf.mxu0
      %v533 = vadd.f32 %v480, %v532
      %v534 = vpop.f32.mrf.mxu0
      %535 = vmatprep.mubr.bf16.mxu0 0
      %536 = vmatmul.mubr.bf16.gmra.mxu0 %v493
      %v537 = vpop.f32.mrf.mxu0
      %v538 = vadd.f32 %v480, %v537
      %v539 = vpop.f32.mrf.mxu0
      %v540 = vpop.f32.mrf.mxu0
      %v541 = vadd.f32 %v480, %v540
      %v542 = vpop.f32.mrf.mxu0
      %543 = vdwg.mxu0
      %v544 = vld [vmem:[%s458] sm:$0xff]
      %v545 = vld [vmem:[%s458 + $0x8] sm:$0xff]
      %v546 = vld [vmem:[%s458 + $0x10] sm:$0xff]
      %v547 = vld [vmem:[%s458 + $0x18] sm:$0xff]
      %549 = vset.pattern.permute.xlu0 0
      %550 = vperm.xlu0 %549, %v544
      %v551 = vpop.permute.xlu0 %550
      %554 = vset.pattern.permute.xlu0 0
      %555 = vperm.xlu0 %554, %v545
      %v556 = vpop.permute.xlu0 %555
      %559 = vset.pattern.permute.xlu0 0
      %560 = vperm.xlu0 %559, %v546
      %v561 = vpop.permute.xlu0 %560
      %564 = vset.pattern.permute.xlu0 0
      %565 = vperm.xlu0 %564, %v547
      %v566 = vpop.permute.xlu0 %565
      %v568 = vmul.f32 %v530, %v551
      %v569 = vmul.f32 %v533, %v556
      %v570 = vmul.f32 %v538, %v561
      %v571 = vmul.f32 %v541, %v566
      %v572 = vpack.c.bf16 %v569, %v568
      %v573 = vpack.c.bf16 %v571, %v570
      %v574 = vld [vmem:[%s4] sm:$0xf]
      %v575 = vld [vmem:[%s4 + $0x4] sm:$0xf]
      %v576 = vld [vmem:[%s4 + $0x8] sm:$0xf]
      %v577 = vld [vmem:[%s4 + $0xc] sm:$0xf]
      %v578 = vld [vmem:[%s5] sm:$0x1]
      %v580 = vlaneseq
      %v581 = vshrl.u32 %v580, 7
      %v582 = vsub.s32 0, %v581
      %v583 = vrot.slane %v578, %v582
      %v589 = vunpack.c.l.b16 %v574
      %v590 = vunpack.c.l.b16 %v575
      %v591 = vunpack.c.l.b16 %v576
      %v592 = vunpack.c.l.b16 %v577
      %v593 = vpack.c.b16 %v590, %v589
      %v594 = vpack.c.b16 %v592, %v591
      %vm597 = vcmask 261120
      %v599 = vsel %vm597, %v572, 0
      %v602 = vsel %vm597, %v573, 0
      %604 = vmatprep.subr.bf16.mxu0 0
      %605 = vmatpush1.bf16.msra.mxu0 0
      %606 = vmatprep.subr.bf16.mxu0 0
      %607 = vmatpush1.bf16.msra.mxu0 0
      %608 = vmatprep.subr.bf16.mxu0 0
      %609 = vmatpush1.bf16.msra.mxu0 0
      %610 = vmatprep.subr.bf16.mxu0 0
      %611 = vmatpush1.bf16.msra.mxu0 0
      %612 = vmatprep.subr.bf16.mxu0 0
      %613 = vmatpush1.bf16.msra.mxu0 0
      %614 = vmatprep.subr.bf16.mxu0 0
      %615 = vmatpush1.bf16.msra.mxu0 0
      %616 = vmatprep.subr.bf16.mxu0 0
      %617 = vmatpush1.bf16.msra.mxu0 %v594
      %618 = vmatprep.subr.bf16.mxu0 0
      %619 = vmatpush1.bf16.msra.mxu0 %v593
      %620 = vmatprep.subr.bf16.mxu0 0
      %621 = vmatpush2.bf16.msra.mxu0 0
      %622 = vmatprep.subr.bf16.mxu0 0
      %623 = vmatpush2.bf16.msra.mxu0 0
      %624 = vmatprep.subr.bf16.mxu0 0
      %625 = vmatpush2.bf16.msra.mxu0 0
      %626 = vmatprep.subr.bf16.mxu0 0
      %627 = vmatpush2.bf16.msra.mxu0 0
      %628 = vmatprep.subr.bf16.mxu0 0
      %629 = vmatpush2.bf16.msra.mxu0 0
      %630 = vmatprep.subr.bf16.mxu0 0
      %631 = vmatpush2.bf16.msra.mxu0 0
      %632 = vmatprep.subr.bf16.mxu0 0
      %633 = vmatpush2.bf16.msra.mxu0 0
      %634 = vmatprep.subr.bf16.mxu0 0
      %635 = vmatpush2.bf16.msra.mxu0 0
      %636 = vmatprep.mubr.bf16.mxu0 0
      %637 = vmatmul.mubr.bf16.gmra.mxu0 %v599
      %v638 = vpop.f32.mrf.mxu0
      %v639 = vadd.f32 %v583, %v638
      %v640 = vpop.f32.mrf.mxu0
      %v641 = vpop.f32.mrf.mxu0
      %v642 = vadd.f32 %v583, %v641
      %v643 = vpop.f32.mrf.mxu0
      %644 = vmatprep.mubr.bf16.mxu0 0
      %645 = vmatmul.mubr.bf16.gmra.mxu0 %v602
      %v646 = vpop.f32.mrf.mxu0
      %v647 = vadd.f32 %v583, %v646
      %v648 = vpop.f32.mrf.mxu0
      %v649 = vpop.f32.mrf.mxu0
      %v650 = vadd.f32 %v583, %v649
      %v651 = vpop.f32.mrf.mxu0
      %652 = vdwg.mxu0
      %653 = vst.msk [vmem:[#allocation2 + $0x8] sm:$0xff] %vm597, %v639
      %654 = vst.msk [vmem:[#allocation2 + $0x10] sm:$0xff] %vm597, %v642
      %655 = vst.msk [vmem:[#allocation2 + $0x18] sm:$0xff] %vm597, %v647
      %656 = vst.msk [vmem:[#allocation2 + $0x20] sm:$0xff] %vm597, %v650
      %v657 = vld [vmem:[#allocation2 + $0x7] sm:$0xff]
      %v658 = vld [vmem:[#allocation2 + $0xf] sm:$0xff]
      %v659 = vld [vmem:[#allocation2 + $0x17] sm:$0xff]
      %v660 = vld [vmem:[#allocation2 + $0x1f] sm:$0xff]
      %v661 = vld [vmem:[#allocation2 + $0x9] sm:$0xff]
      %v662 = vld [vmem:[#allocation2 + $0x11] sm:$0xff]
      %v663 = vld [vmem:[#allocation2 + $0x19] sm:$0xff]
      %v664 = vld [vmem:[#allocation2 + $0x21] sm:$0xff]
      %v665 = vlaneseq
      %v666 = vshrl.u32 %v665, 7
      %v667 = vadd.s32 %v666, 8
      %v668 = vadd.s32 %v666, 16
      %v669 = vadd.s32 %v666, 24
      %vm670 = vcmp.eq.s32.totalorder %v666, 0
      %vm671 = vcmp.eq.s32.totalorder %v667, 0
      %vm672 = vcmp.eq.s32.totalorder %v668, 0
      %vm673 = vcmp.eq.s32.totalorder %v669, 0
      %vm674 = vcmp.eq.s32.totalorder %v666, 15
      %vm675 = vcmp.eq.s32.totalorder %v667, 15
      %vm676 = vcmp.eq.s32.totalorder %v668, 15
      %vm677 = vcmp.eq.s32.totalorder %v669, 15
      %vm678 = vcmp.eq.s32.totalorder %v666, 16
      %vm679 = vcmp.eq.s32.totalorder %v667, 16
      %vm680 = vcmp.eq.s32.totalorder %v668, 16
      %vm681 = vcmp.eq.s32.totalorder %v669, 16
      %vm682 = vmor %vm670, %vm678
      %vm683 = vmor %vm671, %vm679
      %vm684 = vmor %vm672, %vm680
      %vm685 = vmor %vm673, %vm681
      %vm686 = vcmp.eq.s32.totalorder %v666, 31
      %vm687 = vcmp.eq.s32.totalorder %v667, 31
      %vm688 = vcmp.eq.s32.totalorder %v668, 31
      %vm689 = vcmp.eq.s32.totalorder %v669, 31
      %vm690 = vmor %vm674, %vm686
      %vm691 = vmor %vm675, %vm687
      %vm692 = vmor %vm676, %vm688
      %vm693 = vmor %vm677, %vm689
      %v694 = vsel %vm682, 1, 0
      %v695 = vsel %vm683, 1, 0
      %v696 = vsel %vm684, 1, 0
      %v697 = vsel %vm685, 1, 0
      %vm698 = vcmp.eq.s32.totalorder %v694, 1
      %vm699 = vcmp.eq.s32.totalorder %v695, 1
      %vm700 = vcmp.eq.s32.totalorder %v696, 1
      %vm701 = vcmp.eq.s32.totalorder %v697, 1
      %v702 = vsel %vm698, 0.0, %v657
      %v703 = vsel %vm699, 0.0, %v658
      %v704 = vsel %vm700, 0.0, %v659
      %v705 = vsel %vm701, 0.0, %v660
      %v706 = vld [vmem:[%s6] sm:$0x1]
      %v707 = vlaneseq
      %v708 = vshrl.u32 %v707, 7
      %v709 = vsub.s32 0, %v708
      %v710 = vrot.slane %v706, %v709
      %v711 = vmul.f32 %v702, %v710
      %v712 = vmul.f32 %v703, %v710
      %v713 = vmul.f32 %v704, %v710
      %v714 = vmul.f32 %v705, %v710
      %v715 = vld [vmem:[%s6 + $0x1] sm:$0x1]
      %v716 = vlaneseq
      %v717 = vshrl.u32 %v716, 7
      %v718 = vsub.s32 0, %v717
      %v719 = vrot.slane %v715, %v718
      %v720 = vmul.f32 %v639, %v719
      %v721 = vmul.f32 %v642, %v719
      %v722 = vmul.f32 %v647, %v719
      %v723 = vmul.f32 %v650, %v719
      %v724 = vadd.f32 %v711, %v720
      %v725 = vadd.f32 %v712, %v721
      %v726 = vadd.f32 %v713, %v722
      %v727 = vadd.f32 %v714, %v723
      %v728 = vsel %vm690, 1, 0
      %v729 = vsel %vm691, 1, 0
      %v730 = vsel %vm692, 1, 0
      %v731 = vsel %vm693, 1, 0
      %vm732 = vcmp.eq.s32.totalorder %v728, 1
      %vm733 = vcmp.eq.s32.totalorder %v729, 1
      %vm734 = vcmp.eq.s32.totalorder %v730, 1
      %vm735 = vcmp.eq.s32.totalorder %v731, 1
      %v736 = vsel %vm732, 0.0, %v661
      %v737 = vsel %vm733, 0.0, %v662
      %v738 = vsel %vm734, 0.0, %v663
      %v739 = vsel %vm735, 0.0, %v664
      %v740 = vld [vmem:[%s6 + $0x2] sm:$0x1]
      %v741 = vlaneseq
      %v742 = vshrl.u32 %v741, 7
      %v743 = vsub.s32 0, %v742
      %v744 = vrot.slane %v740, %v743
      %v745 = vmul.f32 %v736, %v744
      %v746 = vmul.f32 %v737, %v744
      %v747 = vmul.f32 %v738, %v744
      %v748 = vmul.f32 %v739, %v744
      %v749 = vadd.f32 %v724, %v745
      %v750 = vadd.f32 %v725, %v746
      %v751 = vadd.f32 %v726, %v747
      %v752 = vadd.f32 %v727, %v748
      %v753 = vld [vmem:[%s7] sm:$0x1]
      %v755 = vlaneseq
      %v756 = vshrl.u32 %v755, 7
      %v757 = vsub.s32 0, %v756
      %v758 = vrot.slane %v753, %v757
      %v760 = vadd.f32 %v749, %v758
      %v761 = vadd.f32 %v750, %v758
      %v762 = vadd.f32 %v751, %v758
      %v763 = vadd.f32 %v752, %v758
      %v764 = vlaneseq
      %v765 = vand.u32 %v764, 127
      %v766 = vmul.u32 %v666, 16
      %vm767 = vcmp.ge.s32.totalorder %v765, %v766
      %v768 = vadd.s32 %v666, 1
      %v769 = vmul.u32 %v768, 16
      %vm770 = vcmp.lt.s32.totalorder %v765, %v769
      %vm771 = vmand %vm767, %vm770
      %v772 = vsel %vm771, 1, 0
      %v773 = vcvt.s32.f32 %v772
      %v774 = vmul.u32 %v765, 16
      %vm775 = vcmp.ge.s32.totalorder %v666, %v774
      %vm776 = vcmp.ge.s32.totalorder %v667, %v774
      %vm777 = vcmp.ge.s32.totalorder %v668, %v774
      %vm778 = vcmp.ge.s32.totalorder %v669, %v774
      %v779 = vadd.s32 %v765, 1
      %v780 = vmul.u32 %v779, 16
      %vm781 = vcmp.lt.s32.totalorder %v666, %v780
      %vm782 = vcmp.lt.s32.totalorder %v667, %v780
      %vm783 = vcmp.lt.s32.totalorder %v668, %v780
      %vm784 = vcmp.lt.s32.totalorder %v669, %v780
      %vm785 = vmand %vm775, %vm781
      %vm786 = vmand %vm776, %vm782
      %vm787 = vmand %vm777, %vm783
      %vm788 = vmand %vm778, %vm784
      %v789 = vsel %vm785, 1, 0
      %v790 = vsel %vm786, 1, 0
      %v791 = vsel %vm787, 1, 0
      %v792 = vsel %vm788, 1, 0
      %v793 = vcvt.s32.f32 %v789
      %v794 = vcvt.s32.f32 %v790
      %v795 = vcvt.s32.f32 %v791
      %v796 = vcvt.s32.f32 %v792
      %v797 = vld [vmem:[%s8] sm:$0xff]
      %v798 = vld [vmem:[%s8 + $0x8] sm:$0xff]
      %v799 = vld [vmem:[%s8 + $0x10] sm:$0xff]
      %v800 = vld [vmem:[%s8 + $0x18] sm:$0xff]
      %v802 = vsel %vm597, %v773, 0
      %804 = vmatprep.subr.mxu0 0.0
      %805 = vmatpush1.msra.mxu0 0.0
      %806 = vmatprep.subr.mxu0 0.0
      %807 = vmatpush1.msra.mxu0 0.0
      %808 = vmatprep.subr.mxu0 0.0
      %809 = vmatpush1.msra.mxu0 0.0
      %810 = vmatprep.subr.mxu0 0.0
      %811 = vmatpush1.msra.mxu0 0.0
      %812 = vmatprep.subr.mxu0 0.0
      %813 = vmatpush1.msra.mxu0 0.0
      %814 = vmatprep.subr.mxu0 0.0
      %815 = vmatpush1.msra.mxu0 0.0
      %816 = vmatprep.subr.mxu0 0.0
      %817 = vmatpush1.msra.mxu0 0.0
      %818 = vmatprep.subr.mxu0 0.0
      %819 = vmatpush1.msra.mxu0 0.0
      %820 = vmatprep.subr.mxu0 0.0
      %821 = vmatpush1.msra.mxu0 0.0
      %822 = vmatprep.subr.mxu0 0.0
      %823 = vmatpush1.msra.mxu0 0.0
      %824 = vmatprep.subr.mxu0 0.0
      %825 = vmatpush1.msra.mxu0 0.0
      %826 = vmatprep.subr.mxu0 0.0
      %827 = vmatpush1.msra.mxu0 0.0
      %828 = vmatprep.subr.mxu0 0.0
      %829 = vmatpush1.msra.mxu0 %v763
      %830 = vmatprep.subr.mxu0 0.0
      %831 = vmatpush1.msra.mxu0 %v762
      %832 = vmatprep.subr.mxu0 0.0
      %833 = vmatpush1.msra.mxu0 %v761
      %834 = vmatprep.subr.mxu0 0.0
      %835 = vmatpush1.msra.mxu0 %v760
      %836 = vmatprep.subr.mxu0 0.0
      %837 = vmatpush2.msra.mxu0 0.0
      %838 = vmatprep.subr.mxu0 0.0
      %839 = vmatpush2.msra.mxu0 0.0
      %840 = vmatprep.subr.mxu0 0.0
      %841 = vmatpush2.msra.mxu0 0.0
      %842 = vmatprep.subr.mxu0 0.0
      %843 = vmatpush2.msra.mxu0 0.0
      %844 = vmatprep.subr.mxu0 0.0
      %845 = vmatpush2.msra.mxu0 0.0
      %846 = vmatprep.subr.mxu0 0.0
      %847 = vmatpush2.msra.mxu0 0.0
      %848 = vmatprep.subr.mxu0 0.0
      %849 = vmatpush2.msra.mxu0 0.0
      %850 = vmatprep.subr.mxu0 0.0
      %851 = vmatpush2.msra.mxu0 0.0
      %852 = vmatprep.subr.mxu0 0.0
      %853 = vmatpush2.msra.mxu0 0.0
      %854 = vmatprep.subr.mxu0 0.0
      %855 = vmatpush2.msra.mxu0 0.0
      %856 = vmatprep.subr.mxu0 0.0
      %857 = vmatpush2.msra.mxu0 0.0
      %858 = vmatprep.subr.mxu0 0.0
      %859 = vmatpush2.msra.mxu0 0.0
      %860 = vmatprep.subr.mxu0 0.0
      %861 = vmatpush2.msra.mxu0 0.0
      %862 = vmatprep.subr.mxu0 0.0
      %863 = vmatpush2.msra.mxu0 0.0
      %864 = vmatprep.subr.mxu0 0.0
      %865 = vmatpush2.msra.mxu0 0.0
      %866 = vmatprep.subr.mxu0 0.0
      %867 = vmatpush2.msra.mxu0 0.0
      %868 = vmatprep.mubr.f32.mxu0 0.0
      %869 = vmatmul.mubr.f32.gmra.mxu0 %v802
      %v870 = vpop.f32.mrf.mxu0
      %v871 = vadd.f32 0.0, %v870
      %v872 = vpop.f32.mrf.mxu0
      %873 = vdwg.mxu0
      %v875 = vsel %vm597, %v871, 0
      %877 = vmatprep.subr.mxu0 0.0
      %878 = vmatpush1.msra.mxu0 0.0
      %879 = vmatprep.subr.mxu0 0.0
      %880 = vmatpush1.msra.mxu0 0.0
      %881 = vmatprep.subr.mxu0 0.0
      %882 = vmatpush1.msra.mxu0 0.0
      %883 = vmatprep.subr.mxu0 0.0
      %884 = vmatpush1.msra.mxu0 0.0
      %885 = vmatprep.subr.mxu0 0.0
      %886 = vmatpush1.msra.mxu0 0.0
      %887 = vmatprep.subr.mxu0 0.0
      %888 = vmatpush1.msra.mxu0 0.0
      %889 = vmatprep.subr.mxu0 0.0
      %890 = vmatpush1.msra.mxu0 0.0
      %891 = vmatprep.subr.mxu0 0.0
      %892 = vmatpush1.msra.mxu0 0.0
      %893 = vmatprep.subr.mxu0 0.0
      %894 = vmatpush1.msra.mxu0 0.0
      %895 = vmatprep.subr.mxu0 0.0
      %896 = vmatpush1.msra.mxu0 0.0
      %897 = vmatprep.subr.mxu0 0.0
      %898 = vmatpush1.msra.mxu0 0.0
      %899 = vmatprep.subr.mxu0 0.0
      %900 = vmatpush1.msra.mxu0 0.0
      %901 = vmatprep.subr.mxu0 0.0
      %902 = vmatpush1.msra.mxu0 %v800
      %903 = vmatprep.subr.mxu0 0.0
      %904 = vmatpush1.msra.mxu0 %v799
      %905 = vmatprep.subr.mxu0 0.0
      %906 = vmatpush1.msra.mxu0 %v798
      %907 = vmatprep.subr.mxu0 0.0
      %908 = vmatpush1.msra.mxu0 %v797
      %909 = vmatprep.subr.mxu0 0.0
      %910 = vmatpush2.msra.mxu0 0.0
      %911 = vmatprep.subr.mxu0 0.0
      %912 = vmatpush2.msra.mxu0 0.0
      %913 = vmatprep.subr.mxu0 0.0
      %914 = vmatpush2.msra.mxu0 0.0
      %915 = vmatprep.subr.mxu0 0.0
      %916 = vmatpush2.msra.mxu0 0.0
      %917 = vmatprep.subr.mxu0 0.0
      %918 = vmatpush2.msra.mxu0 0.0
      %919 = vmatprep.subr.mxu0 0.0
      %920 = vmatpush2.msra.mxu0 0.0
      %921 = vmatprep.subr.mxu0 0.0
      %922 = vmatpush2.msra.mxu0 0.0
      %923 = vmatprep.subr.mxu0 0.0
      %924 = vmatpush2.msra.mxu0 0.0
      %925 = vmatprep.subr.mxu0 0.0
      %926 = vmatpush2.msra.mxu0 0.0
      %927 = vmatprep.subr.mxu0 0.0
      %928 = vmatpush2.msra.mxu0 0.0
      %929 = vmatprep.subr.mxu0 0.0
      %930 = vmatpush2.msra.mxu0 0.0
      %931 = vmatprep.subr.mxu0 0.0
      %932 = vmatpush2.msra.mxu0 0.0
      %933 = vmatprep.subr.mxu0 0.0
      %934 = vmatpush2.msra.mxu0 0.0
      %935 = vmatprep.subr.mxu0 0.0
      %936 = vmatpush2.msra.mxu0 0.0
      %937 = vmatprep.subr.mxu0 0.0
      %938 = vmatpush2.msra.mxu0 0.0
      %939 = vmatprep.subr.mxu0 0.0
      %940 = vmatpush2.msra.mxu0 0.0
      %941 = vmatprep.mubr.f32.mxu0 0.0
      %942 = vmatmul.mubr.f32.gmra.mxu0 %v875
      %v943 = vpop.f32.mrf.mxu0
      %v944 = vadd.f32 0.0, %v943
      %v945 = vpop.f32.mrf.mxu0
      %946 = vdwg.mxu0
      %v947 = vmul.f32 %v944, 0.03125
      %vm948 = vcmask 15360
      %v950 = vsel %vm948, %v793, 0
      %v953 = vsel %vm948, %v794, 0
      %v956 = vsel %vm948, %v795, 0
      %v959 = vsel %vm948, %v796, 0
      %vm961 = vcmask 1041408
      %v963 = vsel %vm961, %v947, 0
      %965 = vmatprep.subr.mxu0 0.0
      %966 = vmatpush1.msra.mxu0 0.0
      %967 = vmatprep.subr.mxu0 0.0
      %968 = vmatpush1.msra.mxu0 0.0
      %969 = vmatprep.subr.mxu0 0.0
      %970 = vmatpush1.msra.mxu0 0.0
      %971 = vmatprep.subr.mxu0 0.0
      %972 = vmatpush1.msra.mxu0 0.0
      %973 = vmatprep.subr.mxu0 0.0
      %974 = vmatpush1.msra.mxu0 0.0
      %975 = vmatprep.subr.mxu0 0.0
      %976 = vmatpush1.msra.mxu0 0.0
      %977 = vmatprep.subr.mxu0 0.0
      %978 = vmatpush1.msra.mxu0 0.0
      %979 = vmatprep.subr.mxu0 0.0
      %980 = vmatpush1.msra.mxu0 0.0
      %981 = vmatprep.subr.mxu0 0.0
      %982 = vmatpush1.msra.mxu0 0.0
      %983 = vmatprep.subr.mxu0 0.0
      %984 = vmatpush1.msra.mxu0 0.0
      %985 = vmatprep.subr.mxu0 0.0
      %986 = vmatpush1.msra.mxu0 0.0
      %987 = vmatprep.subr.mxu0 0.0
      %988 = vmatpush1.msra.mxu0 0.0
      %989 = vmatprep.subr.mxu0 0.0
      %990 = vmatpush1.msra.mxu0 0.0
      %991 = vmatprep.subr.mxu0 0.0
      %992 = vmatpush1.msra.mxu0 0.0
      %993 = vmatprep.subr.mxu0 0.0
      %994 = vmatpush1.msra.mxu0 0.0
      %995 = vmatprep.subr.mxu0 0.0
      %996 = vmatpush1.msra.mxu0 %v963
      %997 = vmatprep.subr.mxu0 0.0
      %998 = vmatpush2.msra.mxu0 0.0
      %999 = vmatprep.subr.mxu0 0.0
      %1000 = vmatpush2.msra.mxu0 0.0
      %1001 = vmatprep.subr.mxu0 0.0
      %1002 = vmatpush2.msra.mxu0 0.0
      %1003 = vmatprep.subr.mxu0 0.0
      %1004 = vmatpush2.msra.mxu0 0.0
      %1005 = vmatprep.subr.mxu0 0.0
      %1006 = vmatpush2.msra.mxu0 0.0
      %1007 = vmatprep.subr.mxu0 0.0
      %1008 = vmatpush2.msra.mxu0 0.0
      %1009 = vmatprep.subr.mxu0 0.0
      %1010 = vmatpush2.msra.mxu0 0.0
      %1011 = vmatprep.subr.mxu0 0.0
      %1012 = vmatpush2.msra.mxu0 0.0
      %1013 = vmatprep.subr.mxu0 0.0
      %1014 = vmatpush2.msra.mxu0 0.0
      %1015 = vmatprep.subr.mxu0 0.0
      %1016 = vmatpush2.msra.mxu0 0.0
      %1017 = vmatprep.subr.mxu0 0.0
      %1018 = vmatpush2.msra.mxu0 0.0
      %1019 = vmatprep.subr.mxu0 0.0
      %1020 = vmatpush2.msra.mxu0 0.0
      %1021 = vmatprep.subr.mxu0 0.0
      %1022 = vmatpush2.msra.mxu0 0.0
      %1023 = vmatprep.subr.mxu0 0.0
      %1024 = vmatpush2.msra.mxu0 0.0
      %1025 = vmatprep.subr.mxu0 0.0
      %1026 = vmatpush2.msra.mxu0 0.0
      %1027 = vmatprep.subr.mxu0 0.0
      %1028 = vmatpush2.msra.mxu0 0.0
      %1029 = vmatprep.mubr.f32.mxu0 0.0
      %1030 = vmatmul.mubr.f32.gmra.mxu0 %v950
      %v1031 = vpop.f32.mrf.mxu0
      %v1032 = vadd.f32 0.0, %v1031
      %v1033 = vpop.f32.mrf.mxu0
      %1034 = vmatprep.mubr.f32.mxu0 0.0
      %1035 = vmatmul.mubr.f32.gmra.mxu0 %v953
      %v1036 = vpop.f32.mrf.mxu0
      %v1037 = vadd.f32 0.0, %v1036
      %v1038 = vpop.f32.mrf.mxu0
      %1039 = vmatprep.mubr.f32.mxu0 0.0
      %1040 = vmatmul.mubr.f32.gmra.mxu0 %v956
      %v1041 = vpop.f32.mrf.mxu0
      %v1042 = vadd.f32 0.0, %v1041
      %v1043 = vpop.f32.mrf.mxu0
      %1044 = vmatprep.mubr.f32.mxu0 0.0
      %1045 = vmatmul.mubr.f32.gmra.mxu0 %v959
      %v1046 = vpop.f32.mrf.mxu0
      %v1047 = vadd.f32 0.0, %v1046
      %v1048 = vpop.f32.mrf.mxu0
      %1049 = vdwg.mxu0
      %v1050 = vsub.f32 %v760, %v1032
      %v1051 = vsub.f32 %v761, %v1037
      %v1052 = vsub.f32 %v762, %v1042
      %v1053 = vsub.f32 %v763, %v1047
      %v1054 = vmul.f32 %v1050, %v1050
      %v1055 = vmul.f32 %v1051, %v1051
      %v1056 = vmul.f32 %v1052, %v1052
      %v1057 = vmul.f32 %v1053, %v1053
      %1058 = vmatprep.subr.mxu0 0.0
      %1059 = vmatpush1.msra.mxu0 0.0
      %1060 = vmatprep.subr.mxu0 0.0
      %1061 = vmatpush1.msra.mxu0 0.0
      %1062 = vmatprep.subr.mxu0 0.0
      %1063 = vmatpush1.msra.mxu0 0.0
      %1064 = vmatprep.subr.mxu0 0.0
      %1065 = vmatpush1.msra.mxu0 0.0
      %1066 = vmatprep.subr.mxu0 0.0
      %1067 = vmatpush1.msra.mxu0 0.0
      %1068 = vmatprep.subr.mxu0 0.0
      %1069 = vmatpush1.msra.mxu0 0.0
      %1070 = vmatprep.subr.mxu0 0.0
      %1071 = vmatpush1.msra.mxu0 0.0
      %1072 = vmatprep.subr.mxu0 0.0
      %1073 = vmatpush1.msra.mxu0 0.0
      %1074 = vmatprep.subr.mxu0 0.0
      %1075 = vmatpush1.msra.mxu0 0.0
      %1076 = vmatprep.subr.mxu0 0.0
      %1077 = vmatpush1.msra.mxu0 0.0
      %1078 = vmatprep.subr.mxu0 0.0
      %1079 = vmatpush1.msra.mxu0 0.0
      %1080 = vmatprep.subr.mxu0 0.0
      %1081 = vmatpush1.msra.mxu0 0.0
      %1082 = vmatprep.subr.mxu0 0.0
      %1083 = vmatpush1.msra.mxu0 %v1057
      %1084 = vmatprep.subr.mxu0 0.0
      %1085 = vmatpush1.msra.mxu0 %v1056
      %1086 = vmatprep.subr.mxu0 0.0
      %1087 = vmatpush1.msra.mxu0 %v1055
      %1088 = vmatprep.subr.mxu0 0.0
      %1089 = vmatpush1.msra.mxu0 %v1054
      %1090 = vmatprep.subr.mxu0 0.0
      %1091 = vmatpush2.msra.mxu0 0.0
      %1092 = vmatprep.subr.mxu0 0.0
      %1093 = vmatpush2.msra.mxu0 0.0
      %1094 = vmatprep.subr.mxu0 0.0
      %1095 = vmatpush2.msra.mxu0 0.0
      %1096 = vmatprep.subr.mxu0 0.0
      %1097 = vmatpush2.msra.mxu0 0.0
      %1098 = vmatprep.subr.mxu0 0.0
      %1099 = vmatpush2.msra.mxu0 0.0
      %1100 = vmatprep.subr.mxu0 0.0
      %1101 = vmatpush2.msra.mxu0 0.0
      %1102 = vmatprep.subr.mxu0 0.0
      %1103 = vmatpush2.msra.mxu0 0.0
      %1104 = vmatprep.subr.mxu0 0.0
      %1105 = vmatpush2.msra.mxu0 0.0
      %1106 = vmatprep.subr.mxu0 0.0
      %1107 = vmatpush2.msra.mxu0 0.0
      %1108 = vmatprep.subr.mxu0 0.0
      %1109 = vmatpush2.msra.mxu0 0.0
      %1110 = vmatprep.subr.mxu0 0.0
      %1111 = vmatpush2.msra.mxu0 0.0
      %1112 = vmatprep.subr.mxu0 0.0
      %1113 = vmatpush2.msra.mxu0 0.0
      %1114 = vmatprep.subr.mxu0 0.0
      %1115 = vmatpush2.msra.mxu0 0.0
      %1116 = vmatprep.subr.mxu0 0.0
      %1117 = vmatpush2.msra.mxu0 0.0
      %1118 = vmatprep.subr.mxu0 0.0
      %1119 = vmatpush2.msra.mxu0 0.0
      %1120 = vmatprep.subr.mxu0 0.0
      %1121 = vmatpush2.msra.mxu0 0.0
      %1122 = vmatprep.mubr.f32.mxu0 0.0
      %1123 = vmatmul.mubr.f32.gmra.mxu0 %v802
      %v1124 = vpop.f32.mrf.mxu0
      %v1125 = vadd.f32 0.0, %v1124
      %v1126 = vpop.f32.mrf.mxu0
      %1127 = vdwg.mxu0
      %v1129 = vsel %vm597, %v1125, 0
      %1131 = vmatprep.subr.mxu0 0.0
      %1132 = vmatpush1.msra.mxu0 0.0
      %1133 = vmatprep.subr.mxu0 0.0
      %1134 = vmatpush1.msra.mxu0 0.0
      %1135 = vmatprep.subr.mxu0 0.0
      %1136 = vmatpush1.msra.mxu0 0.0
      %1137 = vmatprep.subr.mxu0 0.0
      %1138 = vmatpush1.msra.mxu0 0.0
      %1139 = vmatprep.subr.mxu0 0.0
      %1140 = vmatpush1.msra.mxu0 0.0
      %1141 = vmatprep.subr.mxu0 0.0
      %1142 = vmatpush1.msra.mxu0 0.0
      %1143 = vmatprep.subr.mxu0 0.0
      %1144 = vmatpush1.msra.mxu0 0.0
      %1145 = vmatprep.subr.mxu0 0.0
      %1146 = vmatpush1.msra.mxu0 0.0
      %1147 = vmatprep.subr.mxu0 0.0
      %1148 = vmatpush1.msra.mxu0 0.0
      %1149 = vmatprep.subr.mxu0 0.0
      %1150 = vmatpush1.msra.mxu0 0.0
      %1151 = vmatprep.subr.mxu0 0.0
      %1152 = vmatpush1.msra.mxu0 0.0
      %1153 = vmatprep.subr.mxu0 0.0
      %1154 = vmatpush1.msra.mxu0 0.0
      %1155 = vmatprep.subr.mxu0 0.0
      %1156 = vmatpush1.msra.mxu0 %v800
      %1157 = vmatprep.subr.mxu0 0.0
      %1158 = vmatpush1.msra.mxu0 %v799
      %1159 = vmatprep.subr.mxu0 0.0
      %1160 = vmatpush1.msra.mxu0 %v798
      %1161 = vmatprep.subr.mxu0 0.0
      %1162 = vmatpush1.msra.mxu0 %v797
      %1163 = vmatprep.subr.mxu0 0.0
      %1164 = vmatpush2.msra.mxu0 0.0
      %1165 = vmatprep.subr.mxu0 0.0
      %1166 = vmatpush2.msra.mxu0 0.0
      %1167 = vmatprep.subr.mxu0 0.0
      %1168 = vmatpush2.msra.mxu0 0.0
      %1169 = vmatprep.subr.mxu0 0.0
      %1170 = vmatpush2.msra.mxu0 0.0
      %1171 = vmatprep.subr.mxu0 0.0
      %1172 = vmatpush2.msra.mxu0 0.0
      %1173 = vmatprep.subr.mxu0 0.0
      %1174 = vmatpush2.msra.mxu0 0.0
      %1175 = vmatprep.subr.mxu0 0.0
      %1176 = vmatpush2.msra.mxu0 0.0
      %1177 = vmatprep.subr.mxu0 0.0
      %1178 = vmatpush2.msra.mxu0 0.0
      %1179 = vmatprep.subr.mxu0 0.0
      %1180 = vmatpush2.msra.mxu0 0.0
      %1181 = vmatprep.subr.mxu0 0.0
      %1182 = vmatpush2.msra.mxu0 0.0
      %1183 = vmatprep.subr.mxu0 0.0
      %1184 = vmatpush2.msra.mxu0 0.0
      %1185 = vmatprep.subr.mxu0 0.0
      %1186 = vmatpush2.msra.mxu0 0.0
      %1187 = vmatprep.subr.mxu0 0.0
      %1188 = vmatpush2.msra.mxu0 0.0
      %1189 = vmatprep.subr.mxu0 0.0
      %1190 = vmatpush2.msra.mxu0 0.0
      %1191 = vmatprep.subr.mxu0 0.0
      %1192 = vmatpush2.msra.mxu0 0.0
      %1193 = vmatprep.subr.mxu0 0.0
      %1194 = vmatpush2.msra.mxu0 0.0
      %1195 = vmatprep.mubr.f32.mxu0 0.0
      %1196 = vmatmul.mubr.f32.gmra.mxu0 %v1129
      %v1197 = vpop.f32.mrf.mxu0
      %v1198 = vadd.f32 0.0, %v1197
      %v1199 = vpop.f32.mrf.mxu0
      %1200 = vdwg.mxu0
      %v1201 = vmul.f32 %v1198, 0.03125
      %v1203 = vsel %vm961, %v1201, 0
      %1205 = vmatprep.subr.mxu0 0.0
      %1206 = vmatpush1.msra.mxu0 0.0
      %1207 = vmatprep.subr.mxu0 0.0
      %1208 = vmatpush1.msra.mxu0 0.0
      %1209 = vmatprep.subr.mxu0 0.0
      %1210 = vmatpush1.msra.mxu0 0.0
      %1211 = vmatprep.subr.mxu0 0.0
      %1212 = vmatpush1.msra.mxu0 0.0
      %1213 = vmatprep.subr.mxu0 0.0
      %1214 = vmatpush1.msra.mxu0 0.0
      %1215 = vmatprep.subr.mxu0 0.0
      %1216 = vmatpush1.msra.mxu0 0.0
      %1217 = vmatprep.subr.mxu0 0.0
      %1218 = vmatpush1.msra.mxu0 0.0
      %1219 = vmatprep.subr.mxu0 0.0
      %1220 = vmatpush1.msra.mxu0 0.0
      %1221 = vmatprep.subr.mxu0 0.0
      %1222 = vmatpush1.msra.mxu0 0.0
      %1223 = vmatprep.subr.mxu0 0.0
      %1224 = vmatpush1.msra.mxu0 0.0
      %1225 = vmatprep.subr.mxu0 0.0
      %1226 = vmatpush1.msra.mxu0 0.0
      %1227 = vmatprep.subr.mxu0 0.0
      %1228 = vmatpush1.msra.mxu0 0.0
      %1229 = vmatprep.subr.mxu0 0.0
      %1230 = vmatpush1.msra.mxu0 0.0
      %1231 = vmatprep.subr.mxu0 0.0
      %1232 = vmatpush1.msra.mxu0 0.0
      %1233 = vmatprep.subr.mxu0 0.0
      %1234 = vmatpush1.msra.mxu0 0.0
      %1235 = vmatprep.subr.mxu0 0.0
      %1236 = vmatpush1.msra.mxu0 %v1203
      %1237 = vmatprep.subr.mxu0 0.0
      %1238 = vmatpush2.msra.mxu0 0.0
      %1239 = vmatprep.subr.mxu0 0.0
      %1240 = vmatpush2.msra.mxu0 0.0
      %1241 = vmatprep.subr.mxu0 0.0
      %1242 = vmatpush2.msra.mxu0 0.0
      %1243 = vmatprep.subr.mxu0 0.0
      %1244 = vmatpush2.msra.mxu0 0.0
      %1245 = vmatprep.subr.mxu0 0.0
      %1246 = vmatpush2.msra.mxu0 0.0
      %1247 = vmatprep.subr.mxu0 0.0
      %1248 = vmatpush2.msra.mxu0 0.0
      %1249 = vmatprep.subr.mxu0 0.0
      %1250 = vmatpush2.msra.mxu0 0.0
      %1251 = vmatprep.subr.mxu0 0.0
      %1252 = vmatpush2.msra.mxu0 0.0
      %1253 = vmatprep.subr.mxu0 0.0
      %1254 = vmatpush2.msra.mxu0 0.0
      %1255 = vmatprep.subr.mxu0 0.0
      %1256 = vmatpush2.msra.mxu0 0.0
      %1257 = vmatprep.subr.mxu0 0.0
      %1258 = vmatpush2.msra.mxu0 0.0
      %1259 = vmatprep.subr.mxu0 0.0
      %1260 = vmatpush2.msra.mxu0 0.0
      %1261 = vmatprep.subr.mxu0 0.0
      %1262 = vmatpush2.msra.mxu0 0.0
      %1263 = vmatprep.subr.mxu0 0.0
      %1264 = vmatpush2.msra.mxu0 0.0
      %1265 = vmatprep.subr.mxu0 0.0
      %1266 = vmatpush2.msra.mxu0 0.0
      %1267 = vmatprep.subr.mxu0 0.0
      %1268 = vmatpush2.msra.mxu0 0.0
      %1269 = vmatprep.mubr.f32.mxu0 0.0
      %1270 = vmatmul.mubr.f32.gmra.mxu0 %v950
      %v1271 = vpop.f32.mrf.mxu0
      %v1272 = vadd.f32 1e-05, %v1271
      %v1273 = vpop.f32.mrf.mxu0
      %1274 = vmatprep.mubr.f32.mxu0 0.0
      %1275 = vmatmul.mubr.f32.gmra.mxu0 %v953
      %v1276 = vpop.f32.mrf.mxu0
      %v1277 = vadd.f32 1e-05, %v1276
      %v1278 = vpop.f32.mrf.mxu0
      %1279 = vmatprep.mubr.f32.mxu0 0.0
      %1280 = vmatmul.mubr.f32.gmra.mxu0 %v956
      %v1281 = vpop.f32.mrf.mxu0
      %v1282 = vadd.f32 1e-05, %v1281
      %v1283 = vpop.f32.mrf.mxu0
      %1284 = vmatprep.mubr.f32.mxu0 0.0
      %1285 = vmatmul.mubr.f32.gmra.mxu0 %v959
      %v1286 = vpop.f32.mrf.mxu0
      %v1287 = vadd.f32 1e-05, %v1286
      %v1288 = vpop.f32.mrf.mxu0
      %1289 = vdwg.mxu0
      %v1290 = vrsqrt.pop %v1272
      %v1291 = vrsqrt.pop %v1277
      %v1292 = vrsqrt.pop %v1282
      %v1293 = vrsqrt.pop %v1287
      %v1294 = vmul.f32 %v1050, %v1290
      %v1295 = vmul.f32 %v1051, %v1291
      %v1296 = vmul.f32 %v1052, %v1292
      %v1297 = vmul.f32 %v1053, %v1293
      %v1298 = vld [vmem:[%s9] sm:$0x1]
      %v1300 = vlaneseq
      %v1301 = vshrl.u32 %v1300, 7
      %v1302 = vsub.s32 0, %v1301
      %v1303 = vrot.slane %v1298, %v1302
      %v1305 = vmul.f32 %v1294, %v1303
      %v1306 = vmul.f32 %v1295, %v1303
      %v1307 = vmul.f32 %v1296, %v1303
      %v1308 = vmul.f32 %v1297, %v1303
      %v1309 = vld [vmem:[%s10] sm:$0x1]
      %v1311 = vlaneseq
      %v1312 = vshrl.u32 %v1311, 7
      %v1313 = vsub.s32 0, %v1312
      %v1314 = vrot.slane %v1309, %v1313
      %v1316 = vadd.f32 %v1305, %v1314
      %v1317 = vadd.f32 %v1306, %v1314
      %v1318 = vadd.f32 %v1307, %v1314
      %v1319 = vadd.f32 %v1308, %v1314
      %v1320 = vmax.f32 %v1316, 0.0
      %v1321 = vmax.f32 %v1317, 0.0
      %v1322 = vmax.f32 %v1318, 0.0
      %v1323 = vmax.f32 %v1319, 0.0
      %v1324 = vadd.f32 %v568, %v1320
      %v1325 = vadd.f32 %v569, %v1321
      %v1326 = vadd.f32 %v570, %v1322
      %v1327 = vadd.f32 %v571, %v1323
      %v1328 = vsel %vm597, %v1324, 0.0
      %1329 = vadd.xlane.f32.xlu0 %v1328
      %v1330 = vpop.xlane.xlu0 %1329
      %v1331 = vsel %vm597, %v1325, 0.0
      %1332 = vadd.xlane.f32.xlu0 %v1331
      %v1333 = vpop.xlane.xlu0 %1332
      %v1334 = vsel %vm597, %v1326, 0.0
      %1335 = vadd.xlane.f32.xlu0 %v1334
      %v1336 = vpop.xlane.xlu0 %1335
      %v1337 = vsel %vm597, %v1327, 0.0
      %1338 = vadd.xlane.f32.xlu0 %v1337
      %v1339 = vpop.xlane.xlu0 %1338
      %v1340 = vrcp.pop 32.0
      %v1341 = vmul.f32 %v1330, %v1340
      %v1342 = vmul.f32 %v1333, %v1340
      %v1343 = vmul.f32 %v1336, %v1340
      %v1344 = vmul.f32 %v1339, %v1340
      %v1345 = vsub.f32 %v1324, %v1341
      %v1346 = vsub.f32 %v1325, %v1342
      %v1347 = vsub.f32 %v1326, %v1343
      %v1348 = vsub.f32 %v1327, %v1344
      %v1349 = vmul.f32 %v1345, %v1345
      %v1350 = vmul.f32 %v1346, %v1346
      %v1351 = vmul.f32 %v1347, %v1347
      %v1352 = vmul.f32 %v1348, %v1348
      %v1353 = vsel %vm597, %v1349, 0.0
      %1354 = vadd.xlane.f32.xlu0 %v1353
      %v1355 = vpop.xlane.xlu0 %1354
      %v1356 = vsel %vm597, %v1350, 0.0
      %1357 = vadd.xlane.f32.xlu0 %v1356
      %v1358 = vpop.xlane.xlu0 %1357
      %v1359 = vsel %vm597, %v1351, 0.0
      %1360 = vadd.xlane.f32.xlu0 %v1359
      %v1361 = vpop.xlane.xlu0 %1360
      %v1362 = vsel %vm597, %v1352, 0.0
      %1363 = vadd.xlane.f32.xlu0 %v1362
      %v1364 = vpop.xlane.xlu0 %1363
      %v1365 = vmul.f32 %v1355, %v1340
      %v1366 = vmul.f32 %v1358, %v1340
      %v1367 = vmul.f32 %v1361, %v1340
      %v1368 = vmul.f32 %v1364, %v1340
      %v1369 = vadd.f32 %v1365, 1e-05
      %v1370 = vadd.f32 %v1366, 1e-05
      %v1371 = vadd.f32 %v1367, 1e-05
      %v1372 = vadd.f32 %v1368, 1e-05
      %v1373 = vrsqrt.pop %v1369
      %v1374 = vrsqrt.pop %v1370
      %v1375 = vrsqrt.pop %v1371
      %v1376 = vrsqrt.pop %v1372
      %v1377 = vmul.f32 %v1345, %v1373
      %v1378 = vmul.f32 %v1346, %v1374
      %v1379 = vmul.f32 %v1347, %v1375
      %v1380 = vmul.f32 %v1348, %v1376
      %v1381 = vld [vmem:[%s11] sm:$0x1]
      %v1383 = vlaneseq
      %v1384 = vshrl.u32 %v1383, 7
      %v1385 = vsub.s32 0, %v1384
      %v1386 = vrot.slane %v1381, %v1385
      %v1388 = vmul.f32 %v1377, %v1386
      %v1389 = vmul.f32 %v1378, %v1386
      %v1390 = vmul.f32 %v1379, %v1386
      %v1391 = vmul.f32 %v1380, %v1386
      %v1392 = vld [vmem:[%s12] sm:$0x1]
      %v1394 = vlaneseq
      %v1395 = vshrl.u32 %v1394, 7
      %v1396 = vsub.s32 0, %v1395
      %v1397 = vrot.slane %v1392, %v1396
      %v1399 = vadd.f32 %v1388, %v1397
      %v1400 = vadd.f32 %v1389, %v1397
      %v1401 = vadd.f32 %v1390, %v1397
      %v1402 = vadd.f32 %v1391, %v1397
      %1403 = vst.msk [vmem:[%s464] sm:$0xff] %vm597, %v1399
      %1404 = vst.msk [vmem:[%s464 + $0x8] sm:$0xff] %vm597, %v1400
      %1405 = vst.msk [vmem:[%s464 + $0x10] sm:$0xff] %vm597, %v1401
      %1406 = vst.msk [vmem:[%s464 + $0x18] sm:$0xff] %vm597, %v1402
      %s1407 = smul.u32 4, %s24
      %p1408 = scmp.lt.s32.totalorder %s1407, 7
      %s1409 = scalar_select %p1408, %s1407, 7
      %s1410 = smul.addr %s1409, 8
      %s1411 = scalar_lea.vmem %s13, %s1410
      // Predicated region
      $region73: #{stage_block.3} parent=71 // pred_check
        %p1412 = pneg %p325
      $region74: #{stage_block.3} parent=71 // pred_check_branch
        %1414 = sbr.rel (%p1412) target = $region76
      $region75: #{stage_block.3} parent=71 // pred_region
        %s1415 = smul.u32 4, %s24
      $region76: #{stage_block.3} parent=71 // pred_fallthru
        _
    $region72: #{stage_block.3} parent=5 // pred_fallthru
      _
    %p1416 = scmp.le.s32.totalorder 2, %s19
    // Predicated region
    $region77: #{stage_block.3} parent=5 // pred_check
      %p1417 = pneg %p1416
    $region78: #{stage_block.3} parent=5 // pred_check_branch
      %1419 = sbr.rel (%p1417) target = $region80
    $region79: #{stage_block.3} parent=5 // pred_region
      %s1420 = ssub.s32 %s19, 2
      // Predicated region
      $region81: #{stage_block.3} parent=79 // pred_check
        %p1421 = pneg %p331
      $region82: #{stage_block.3} parent=79 // pred_check_branch
        %1423 = sbr.rel (%p1421) target = $region84
      $region83: #{stage_block.3} parent=79 // pred_region
        %s1424 = smul.u32 4, %s25
        %p1425 = scmp.lt.s32.totalorder %s1424, 7
        %s1426 = scalar_select %p1425, %s1424, 7
        %s1427 = smul.addr %s1426, 8
        %s1428 = scalar_lea.vmem %s13, %s1427
      $region84: #{stage_block.3} parent=79 // pred_fallthru
        _
    $region80: #{stage_block.3} parent=5 // pred_fallthru
      _
  $region6: #{stage_block.3} parent=0 // loop_footer
    %s23 = sadd.s32 1, %s19
  $region7: #{stage_block.3} parent=0 // loop_footer_branch
    %18 = sbr.rel target = $region3
  $region8: #{stage_block.3} parent=0 // loop_exit
    _

// kernel: stage_block.5
$region0: #{stage_block.5}
  #allocation0 [shape = 'u32[]', space=smem, size = 0x4, offset = 0x4, fixed_abs, tag = 'smem constant byte address 0x4 - core index']
  #allocation1 [shape = 'u32[144,128]{1,0:T(1,128)}', space=vmem, size = 0x12000, scoped, tag = 'internal scratch']
  #allocation2 [shape = 'f32[48,32]{1,0:T(8,128)}', space=vmem, size = 0x6000, scoped, tag = 'scratch operand']
  %s0 = inlined_call_operand.vmem [shape: f32[64,32], index: 0, kind: input, shape index: {}]
  %s1 = inlined_call_operand.vmem [shape: f32[64,1], index: 1, kind: input, shape index: {}]
  %s2 = inlined_call_operand.vmem [shape: bf16[32,32], index: 2, kind: input, shape index: {}]
  %s3 = inlined_call_operand.vmem [shape: f32[1,32], index: 3, kind: input, shape index: {}]
  %s4 = inlined_call_operand.vmem [shape: f32[3,32], index: 4, kind: input, shape index: {}]
  %s5 = inlined_call_operand.vmem [shape: f32[1,32], index: 5, kind: input, shape index: {}]
  %s6 = inlined_call_operand.vmem [shape: f32[32,32], index: 6, kind: input, shape index: {}]
  %s7 = inlined_call_operand.vmem [shape: f32[1,32], index: 7, kind: input, shape index: {}]
  %s8 = inlined_call_operand.vmem [shape: f32[1,32], index: 8, kind: input, shape index: {}]
  %s9 = inlined_call_operand.vmem [shape: f32[1,32], index: 9, kind: input, shape index: {}]
  %s10 = inlined_call_operand.vmem [shape: f32[1,32], index: 10, kind: input, shape index: {}]
  %s11 = inlined_call_operand.hbm [shape: f32[64,32], index: 11, kind: output, shape index: {}]
  %s12 = sld [smem:[#allocation0]]
  $region77: #{stage_block.5} parent=0
    _
  %s14 = ssub.s32 1, %s12
  %s15 = scalar_select 0, %s14, %s12
  $region1: #{stage_block.5} parent=0
    #allocation3 [shape = 'u8[32768]{0}', space=vmem, size = 0x8000, scoped, tag = 'output window, operand 0']
    #allocation4 [shape = 's32[2]{0}', space=sflag, size = 0x8, scoped, tag = 'scoped memory for stage_block.5']
    %16 = vsyncpa [#allocation4], 0
    %s17 = scalar_lea.sflag [#allocation4], 1
    %18 = vsyncpa %s17, 0
    loop: start=0, step=1, limit=4
    $region2: #{stage_block.5} parent=1 // loop_pre_header
      _
    $region3: #{stage_block.5} parent=1 // loop_header
      %s20 = sphi 0, %s24
      %p21 = scmp.ge.s32.totalorder %s20, 4
      %s30 = sphi 0, %s32
      %s33 = sphi 0, %s30
      %s34 = sphi 0, %s33
      %s50 = sphi 0, %s34
      %s56 = sphi 0, %s58
      %s59 = sphi 0, %s56
      %s60 = sphi 0, %s59
      %s76 = sphi 0, %s60
      %s80 = sphi 0, %s80
      %s82 = sphi 0, %s80
      %s83 = sphi 0, %s82
      %s97 = sphi 0, %s83
      %s101 = sphi 0, %s101
      %s103 = sphi 0, %s101
      %s104 = sphi 0, %s103
      %s118 = sphi 0, %s104
      %s122 = sphi 0, %s122
      %s124 = sphi 0, %s122
      %s125 = sphi 0, %s124
      %s139 = sphi 0, %s125
      %s143 = sphi 0, %s143
      %s145 = sphi 0, %s143
      %s146 = sphi 0, %s145
      %s160 = sphi 0, %s146
      %s164 = sphi 0, %s164
      %s166 = sphi 0, %s164
      %s167 = sphi 0, %s166
      %s181 = sphi 0, %s167
      %s185 = sphi 0, %s185
      %s187 = sphi 0, %s185
      %s188 = sphi 0, %s187
      %s202 = sphi 0, %s188
      %s206 = sphi 0, %s206
      %s208 = sphi 0, %s206
      %s209 = sphi 0, %s208
      %s223 = sphi 0, %s209
      %s227 = sphi 0, %s227
      %s229 = sphi 0, %s227
      %s230 = sphi 0, %s229
      %s244 = sphi 0, %s230
      %s248 = sphi 0, %s248
      %s250 = sphi 0, %s248
      %s251 = sphi 0, %s250
      %s265 = sphi 0, %s251
      %s271 = sphi 0, %s273
      %s274 = sphi 0, %s271
      %s275 = sphi 0, %s274
      %s291 = sphi 0, %s275
    $region4: #{stage_block.5} parent=1 // loop_header_branch
      %23 = sbr.rel (%p21) target = $region8
    $region5: #{stage_block.5} parent=1 // loop_body
      %s25 = ssub.s32 %s20, 1
      %s26 = ssub.s32 %s20, 2
      %s27 = sadd.s32 %s20, 1
      %s28 = ssub.s32 %s20, %s27
      %p29 = scmp.eq.s32.totalorder %s28, 0
      %s31 = sadd.s32 %s30, 1
      %s32 = scalar_select %p29, %s30, %s31
      %p35 = pneg %p29
      %p36 = scmp.eq.s32.totalorder %s20, 1
      %p37 = por %p35, %p36
      %p38 = scmp.ne.s32.totalorder %s30, %s33
      %p39 = scmp.eq.s32.totalorder %s20, 0
      %p40 = por %p38, %p39
      %p41 = scmp.ne.s32.totalorder %s30, %s33
      %p42 = scmp.eq.s32.totalorder %s25, 1
      %p43 = por %p41, %p42
      %p44 = scmp.ne.s32.totalorder %s33, %s34
      %p45 = scmp.eq.s32.totalorder %s25, 0
      %p46 = por %p44, %p45
      %p47 = scmp.ne.s32.totalorder %s33, %s34
      %p48 = scmp.eq.s32.totalorder %s26, 1
      %p49 = por %p47, %p48
      %p51 = scmp.ne.s32.totalorder %s34, %s50
      %p52 = scmp.eq.s32.totalorder %s26, 0
      %p53 = por %p51, %p52
      %s54 = ssub.s32 %s20, %s27
      %p55 = scmp.eq.s32.totalorder %s54, 0
      %s57 = sadd.s32 %s56, 1
      %s58 = scalar_select %p55, %s56, %s57
      %p61 = pneg %p55
      %p62 = scmp.eq.s32.totalorder %s20, 1
      %p63 = por %p61, %p62
      %p64 = scmp.ne.s32.totalorder %s56, %s59
      %p65 = scmp.eq.s32.totalorder %s20, 0
      %p66 = por %p64, %p65
      %p67 = scmp.ne.s32.totalorder %s56, %s59
      %p68 = scmp.eq.s32.totalorder %s25, 1
      %p69 = por %p67, %p68
      %p70 = scmp.ne.s32.totalorder %s59, %s60
      %p71 = scmp.eq.s32.totalorder %s25, 0
      %p72 = por %p70, %p71
      %p73 = scmp.ne.s32.totalorder %s59, %s60
      %p74 = scmp.eq.s32.totalorder %s26, 1
      %p75 = por %p73, %p74
      %p77 = scmp.ne.s32.totalorder %s60, %s76
      %p78 = scmp.eq.s32.totalorder %s26, 0
      %p79 = por %p77, %p78
      %s81 = sadd.s32 %s80, 1
      %p84 = scmp.eq.s32.totalorder %s20, 1
      %p85 = scmp.ne.s32.totalorder %s80, %s82
      %p86 = scmp.eq.s32.totalorder %s20, 0
      %p87 = por %p85, %p86
      %p88 = scmp.ne.s32.totalorder %s80, %s82
      %p89 = scmp.eq.s32.totalorder %s25, 1
      %p90 = por %p88, %p89
      %p91 = scmp.ne.s32.totalorder %s82, %s83
      %p92 = scmp.eq.s32.totalorder %s25, 0
      %p93 = por %p91, %p92
      %p94 = scmp.ne.s32.totalorder %s82, %s83
      %p95 = scmp.eq.s32.totalorder %s26, 1
      %p96 = por %p94, %p95
      %p98 = scmp.ne.s32.totalorder %s83, %s97
      %p99 = scmp.eq.s32.totalorder %s26, 0
      %p100 = por %p98, %p99
      %s102 = sadd.s32 %s101, 1
      %p105 = scmp.eq.s32.totalorder %s20, 1
      %p106 = scmp.ne.s32.totalorder %s101, %s103
      %p107 = scmp.eq.s32.totalorder %s20, 0
      %p108 = por %p106, %p107
      %p109 = scmp.ne.s32.totalorder %s101, %s103
      %p110 = scmp.eq.s32.totalorder %s25, 1
      %p111 = por %p109, %p110
      %p112 = scmp.ne.s32.totalorder %s103, %s104
      %p113 = scmp.eq.s32.totalorder %s25, 0
      %p114 = por %p112, %p113
      %p115 = scmp.ne.s32.totalorder %s103, %s104
      %p116 = scmp.eq.s32.totalorder %s26, 1
      %p117 = por %p115, %p116
      %p119 = scmp.ne.s32.totalorder %s104, %s118
      %p120 = scmp.eq.s32.totalorder %s26, 0
      %p121 = por %p119, %p120
      %s123 = sadd.s32 %s122, 1
      %p126 = scmp.eq.s32.totalorder %s20, 1
      %p127 = scmp.ne.s32.totalorder %s122, %s124
      %p128 = scmp.eq.s32.totalorder %s20, 0
      %p129 = por %p127, %p128
      %p130 = scmp.ne.s32.totalorder %s122, %s124
      %p131 = scmp.eq.s32.totalorder %s25, 1
      %p132 = por %p130, %p131
      %p133 = scmp.ne.s32.totalorder %s124, %s125
      %p134 = scmp.eq.s32.totalorder %s25, 0
      %p135 = por %p133, %p134
      %p136 = scmp.ne.s32.totalorder %s124, %s125
      %p137 = scmp.eq.s32.totalorder %s26, 1
      %p138 = por %p136, %p137
      %p140 = scmp.ne.s32.totalorder %s125, %s139
      %p141 = scmp.eq.s32.totalorder %s26, 0
      %p142 = por %p140, %p141
      %s144 = sadd.s32 %s143, 1
      %p147 = scmp.eq.s32.totalorder %s20, 1
      %p148 = scmp.ne.s32.totalorder %s143, %s145
      %p149 = scmp.eq.s32.totalorder %s20, 0
      %p150 = por %p148, %p149
      %p151 = scmp.ne.s32.totalorder %s143, %s145
      %p152 = scmp.eq.s32.totalorder %s25, 1
      %p153 = por %p151, %p152
      %p154 = scmp.ne.s32.totalorder %s145, %s146
      %p155 = scmp.eq.s32.totalorder %s25, 0
      %p156 = por %p154, %p155
      %p157 = scmp.ne.s32.totalorder %s145, %s146
      %p158 = scmp.eq.s32.totalorder %s26, 1
      %p159 = por %p157, %p158
      %p161 = scmp.ne.s32.totalorder %s146, %s160
      %p162 = scmp.eq.s32.totalorder %s26, 0
      %p163 = por %p161, %p162
      %s165 = sadd.s32 %s164, 1
      %p168 = scmp.eq.s32.totalorder %s20, 1
      %p169 = scmp.ne.s32.totalorder %s164, %s166
      %p170 = scmp.eq.s32.totalorder %s20, 0
      %p171 = por %p169, %p170
      %p172 = scmp.ne.s32.totalorder %s164, %s166
      %p173 = scmp.eq.s32.totalorder %s25, 1
      %p174 = por %p172, %p173
      %p175 = scmp.ne.s32.totalorder %s166, %s167
      %p176 = scmp.eq.s32.totalorder %s25, 0
      %p177 = por %p175, %p176
      %p178 = scmp.ne.s32.totalorder %s166, %s167
      %p179 = scmp.eq.s32.totalorder %s26, 1
      %p180 = por %p178, %p179
      %p182 = scmp.ne.s32.totalorder %s167, %s181
      %p183 = scmp.eq.s32.totalorder %s26, 0
      %p184 = por %p182, %p183
      %s186 = sadd.s32 %s185, 1
      %p189 = scmp.eq.s32.totalorder %s20, 1
      %p190 = scmp.ne.s32.totalorder %s185, %s187
      %p191 = scmp.eq.s32.totalorder %s20, 0
      %p192 = por %p190, %p191
      %p193 = scmp.ne.s32.totalorder %s185, %s187
      %p194 = scmp.eq.s32.totalorder %s25, 1
      %p195 = por %p193, %p194
      %p196 = scmp.ne.s32.totalorder %s187, %s188
      %p197 = scmp.eq.s32.totalorder %s25, 0
      %p198 = por %p196, %p197
      %p199 = scmp.ne.s32.totalorder %s187, %s188
      %p200 = scmp.eq.s32.totalorder %s26, 1
      %p201 = por %p199, %p200
      %p203 = scmp.ne.s32.totalorder %s188, %s202
      %p204 = scmp.eq.s32.totalorder %s26, 0
      %p205 = por %p203, %p204
      %s207 = sadd.s32 %s206, 1
      %p210 = scmp.eq.s32.totalorder %s20, 1
      %p211 = scmp.ne.s32.totalorder %s206, %s208
      %p212 = scmp.eq.s32.totalorder %s20, 0
      %p213 = por %p211, %p212
      %p214 = scmp.ne.s32.totalorder %s206, %s208
      %p215 = scmp.eq.s32.totalorder %s25, 1
      %p216 = por %p214, %p215
      %p217 = scmp.ne.s32.totalorder %s208, %s209
      %p218 = scmp.eq.s32.totalorder %s25, 0
      %p219 = por %p217, %p218
      %p220 = scmp.ne.s32.totalorder %s208, %s209
      %p221 = scmp.eq.s32.totalorder %s26, 1
      %p222 = por %p220, %p221
      %p224 = scmp.ne.s32.totalorder %s209, %s223
      %p225 = scmp.eq.s32.totalorder %s26, 0
      %p226 = por %p224, %p225
      %s228 = sadd.s32 %s227, 1
      %p231 = scmp.eq.s32.totalorder %s20, 1
      %p232 = scmp.ne.s32.totalorder %s227, %s229
      %p233 = scmp.eq.s32.totalorder %s20, 0
      %p234 = por %p232, %p233
      %p235 = scmp.ne.s32.totalorder %s227, %s229
      %p236 = scmp.eq.s32.totalorder %s25, 1
      %p237 = por %p235, %p236
      %p238 = scmp.ne.s32.totalorder %s229, %s230
      %p239 = scmp.eq.s32.totalorder %s25, 0
      %p240 = por %p238, %p239
      %p241 = scmp.ne.s32.totalorder %s229, %s230
      %p242 = scmp.eq.s32.totalorder %s26, 1
      %p243 = por %p241, %p242
      %p245 = scmp.ne.s32.totalorder %s230, %s244
      %p246 = scmp.eq.s32.totalorder %s26, 0
      %p247 = por %p245, %p246
      %s249 = sadd.s32 %s248, 1
      %p252 = scmp.eq.s32.totalorder %s20, 1
      %p253 = scmp.ne.s32.totalorder %s248, %s250
      %p254 = scmp.eq.s32.totalorder %s20, 0
      %p255 = por %p253, %p254
      %p256 = scmp.ne.s32.totalorder %s248, %s250
      %p257 = scmp.eq.s32.totalorder %s25, 1
      %p258 = por %p256, %p257
      %p259 = scmp.ne.s32.totalorder %s250, %s251
      %p260 = scmp.eq.s32.totalorder %s25, 0
      %p261 = por %p259, %p260
      %p262 = scmp.ne.s32.totalorder %s250, %s251
      %p263 = scmp.eq.s32.totalorder %s26, 1
      %p264 = por %p262, %p263
      %p266 = scmp.ne.s32.totalorder %s251, %s265
      %p267 = scmp.eq.s32.totalorder %s26, 0
      %p268 = por %p266, %p267
      %s269 = ssub.s32 %s20, %s27
      %p270 = scmp.eq.s32.totalorder %s269, 0
      %s272 = sadd.s32 %s271, 1
      %s273 = scalar_select %p270, %s271, %s272
      %p276 = pneg %p270
      %p277 = scmp.eq.s32.totalorder %s20, 1
      %p278 = por %p276, %p277
      %p279 = scmp.ne.s32.totalorder %s271, %s274
      %p280 = scmp.eq.s32.totalorder %s20, 0
      %p281 = por %p279, %p280
      %p282 = scmp.ne.s32.totalorder %s271, %s274
      %p283 = scmp.eq.s32.totalorder %s25, 1
      %p284 = por %p282, %p283
      %p285 = scmp.ne.s32.totalorder %s274, %s275
      %p286 = scmp.eq.s32.totalorder %s25, 0
      %p287 = por %p285, %p286
      %p288 = scmp.ne.s32.totalorder %s274, %s275
      %p289 = scmp.eq.s32.totalorder %s26, 1
      %p290 = por %p288, %p289
      %p292 = scmp.ne.s32.totalorder %s275, %s291
      %p293 = scmp.eq.s32.totalorder %s26, 0
      %p294 = por %p292, %p293
      %p295 = scmp.le.s32.totalorder 1, %s20
      %p296 = scmp.lt.s32.totalorder %s20, 3
      %p297 = pnand %p295, %p296
      %p298 = pneg %p297
      // Predicated region
      $region9: #{stage_block.5} parent=5 // pred_check
        _
      $region10: #{stage_block.5} parent=5 // pred_check_branch
        %300 = sbr.rel (%p297) target = $region12
      $region11: #{stage_block.5} parent=5 // pred_region
        %s301 = ssub.s32 %s20, 1
        // Predicated region
        $region13: #{stage_block.5} parent=11 // pred_check
          %p302 = pneg %p93
        $region14: #{stage_block.5} parent=11 // pred_check_branch
          %304 = sbr.rel (%p302) target = $region16
        $region15: #{stage_block.5} parent=11 // pred_region
          _
        $region16: #{stage_block.5} parent=11 // pred_fallthru
          _
        // Predicated region
        $region17: #{stage_block.5} parent=11 // pred_check
          %p305 = pneg %p114
        $region18: #{stage_block.5} parent=11 // pred_check_branch
          %307 = sbr.rel (%p305) target = $region20
        $region19: #{stage_block.5} parent=11 // pred_region
          _
        $region20: #{stage_block.5} parent=11 // pred_fallthru
          _
        // Predicated region
        $region21: #{stage_block.5} parent=11 // pred_check
          %p308 = pneg %p135
        $region22: #{stage_block.5} parent=11 // pred_check_branch
          %310 = sbr.rel (%p308) target = $region24
        $region23: #{stage_block.5} parent=11 // pred_region
          _
        $region24: #{stage_block.5} parent=11 // pred_fallthru
          _
        // Predicated region
        $region25: #{stage_block.5} parent=11 // pred_check
          %p311 = pneg %p156
        $region26: #{stage_block.5} parent=11 // pred_check_branch
          %313 = sbr.rel (%p311) target = $region28
        $region27: #{stage_block.5} parent=11 // pred_region
          _
        $region28: #{stage_block.5} parent=11 // pred_fallthru
          _
        // Predicated region
        $region29: #{stage_block.5} parent=11 // pred_check
          %p314 = pneg %p177
        $region30: #{stage_block.5} parent=11 // pred_check_branch
          %316 = sbr.rel (%p314) target = $region32
        $region31: #{stage_block.5} parent=11 // pred_region
          _
        $region32: #{stage_block.5} parent=11 // pred_fallthru
          _
        // Predicated region
        $region33: #{stage_block.5} parent=11 // pred_check
          %p317 = pneg %p198
        $region34: #{stage_block.5} parent=11 // pred_check_branch
          %319 = sbr.rel (%p317) target = $region36
        $region35: #{stage_block.5} parent=11 // pred_region
          _
        $region36: #{stage_block.5} parent=11 // pred_fallthru
          _
        // Predicated region
        $region37: #{stage_block.5} parent=11 // pred_check
          %p320 = pneg %p219
        $region38: #{stage_block.5} parent=11 // pred_check_branch
          %322 = sbr.rel (%p320) target = $region40
        $region39: #{stage_block.5} parent=11 // pred_region
          _
        $region40: #{stage_block.5} parent=11 // pred_fallthru
          _
        // Predicated region
        $region41: #{stage_block.5} parent=11 // pred_check
          %p323 = pneg %p240
        $region42: #{stage_block.5} parent=11 // pred_check_branch
          %325 = sbr.rel (%p323) target = $region44
        $region43: #{stage_block.5} parent=11 // pred_region
          _
        $region44: #{stage_block.5} parent=11 // pred_fallthru
          _
        // Predicated region
        $region45: #{stage_block.5} parent=11 // pred_check
          %p326 = pneg %p261
        $region46: #{stage_block.5} parent=11 // pred_check_branch
          %328 = sbr.rel (%p326) target = $region48
        $region47: #{stage_block.5} parent=11 // pred_region
          _
        $region48: #{stage_block.5} parent=11 // pred_fallthru
          _
      $region12: #{stage_block.5} parent=5 // pred_fallthru
        _
      %p329 = scmp.lt.s32.totalorder %s20, 2
      // Predicated region
      $region49: #{stage_block.5} parent=5 // pred_check
        %p330 = pneg %p329
      $region50: #{stage_block.5} parent=5 // pred_check_branch
        %332 = sbr.rel (%p330) target = $region52
      $region51: #{stage_block.5} parent=5 // pred_region
        // Predicated region
        $region53: #{stage_block.5} parent=51 // pred_check
          %p333 = pneg %p40
        $region54: #{stage_block.5} parent=51 // pred_check_branch
          %335 = sbr.rel (%p333) target = $region56
        $region55: #{stage_block.5} parent=51 // pred_region
          %s336 = smul.u32 4, %s20
          %p337 = scmp.lt.s32.totalorder %s336, 7
          %s338 = scalar_select %p337, %s336, 7
          %s339 = smul.addr %s338, 8
          %s340 = scalar_lea.vmem %s0, %s339
          %s341 = smul.u32 4, %s20
        $region56: #{stage_block.5} parent=51 // pred_fallthru
          _
        // Predicated region
        $region57: #{stage_block.5} parent=51 // pred_check
          %p342 = pneg %p66
        $region58: #{stage_block.5} parent=51 // pred_check_branch
          %344 = sbr.rel (%p342) target = $region60
        $region59: #{stage_block.5} parent=51 // pred_region
          %s345 = smul.u32 4, %s20
          %p346 = scmp.lt.s32.totalorder %s345, 7
          %s347 = scalar_select %p346, %s345, 7
          %s348 = smul.addr %s347, 8
          %s349 = scalar_lea.vmem %s1, %s348
          %s350 = smul.u32 4, %s20
        $region60: #{stage_block.5} parent=51 // pred_fallthru
          _
      $region52: #{stage_block.5} parent=5 // pred_fallthru
        _
      %p351 = scmp.le.s32.totalorder 1, %s20
      %p352 = scmp.lt.s32.totalorder %s20, 3
      %p353 = pnand %p351, %p352
      %p354 = pneg %p353
      // Predicated region
      $region61: #{stage_block.5} parent=5 // pred_check
        _
      $region62: #{stage_block.5} parent=5 // pred_check_branch
        %356 = sbr.rel (%p353) target = $region64
      $region63: #{stage_block.5} parent=5 // pred_region
        %s357 = ssub.s32 %s20, 1
        %s358 = smul.u32 4, %s25
        %p359 = scmp.lt.s32.totalorder %s358, 7
        %s360 = scalar_select %p359, %s358, 7
        %s361 = smul.addr %s360, 8
        %s362 = scalar_lea.vmem %s0, %s361
        %p363 = pneg %p46
        %p364 = pneg %p43
        %s365 = smul.u32 4, %s25
        %p366 = scmp.lt.s32.totalorder %s365, 7
        %s367 = scalar_select %p366, %s365, 7
        %s368 = smul.addr %s367, 8
        %s369 = scalar_lea.vmem %s1, %s368
        %p370 = pneg %p72
        %p371 = pneg %p69
        %p372 = pneg %p93
        %p373 = pneg %p90
        %p374 = pneg %p114
        %p375 = pneg %p111
        %p376 = pneg %p135
        %p377 = pneg %p132
        %p378 = pneg %p156
        %p379 = pneg %p153
        %p380 = pneg %p177
        %p381 = pneg %p174
        %p382 = pneg %p198
        %p383 = pneg %p195
        %p384 = pneg %p219
        %p385 = pneg %p216
        %p386 = pneg %p240
        %p387 = pneg %p237
        %p388 = pneg %p261
        %p389 = pneg %p258
        %p390 = pneg %p287
        %p391 = pneg %p284
        %s392 = sand.u32 %s274, 1
        %s393 = scalar_lea.sflag [#allocation4], %s392
        %s394 = sand.u32 %s274, 1
        %s395 = smul.addr %s394, 32
        %s396 = scalar_lea.vmem [#allocation3], %s395
        %s397 = smul.u32 4, %s25
        %p398 = scmp.lt.s32.totalorder %s397, 7
        %s399 = scalar_select %p398, %s397, 7
        %s400 = smul.addr %s399, 8
        %s401 = scalar_lea.vmem %s0, %s400
        %s402 = smul.u32 4, %s25
        %s403 = smul.u32 4, %s25
        %p404 = scmp.lt.s32.totalorder %s403, 7
        %s405 = scalar_select %p404, %s403, 7
        %s406 = smul.addr %s405, 8
        %s407 = scalar_lea.vmem %s1, %s406
        %s408 = smul.u32 4, %s25
        %s409 = smul.u32 4, %s25
        %v411 = vld [vmem:[%s401] sm:$0xff]
        %v412 = vld [vmem:[%s401 + $0x8] sm:$0xff]
        %v413 = vld [vmem:[%s401 + $0x10] sm:$0xff]
        %v414 = vld [vmem:[%s401 + $0x18] sm:$0xff]
        %v415 = vld [vmem:[%s407] sm:$0xff]
        %v416 = vld [vmem:[%s407 + $0x8] sm:$0xff]
        %v417 = vld [vmem:[%s407 + $0x10] sm:$0xff]
        %v418 = vld [vmem:[%s407 + $0x18] sm:$0xff]
        %420 = vset.pattern.permute.xlu0 0
        %421 = vperm.xlu0 %420, %v415
        %v422 = vpop.permute.xlu0 %421
        %425 = vset.pattern.permute.xlu0 0
        %426 = vperm.xlu0 %425, %v416
        %v427 = vpop.permute.xlu0 %426
        %430 = vset.pattern.permute.xlu0 0
        %431 = vperm.xlu0 %430, %v417
        %v432 = vpop.permute.xlu0 %431
        %435 = vset.pattern.permute.xlu0 0
        %436 = vperm.xlu0 %435, %v418
        %v437 = vpop.permute.xlu0 %436
        %v439 = vmul.f32 %v411, %v422
        %v440 = vmul.f32 %v412, %v427
        %v441 = vmul.f32 %v413, %v432
        %v442 = vmul.f32 %v414, %v437
        %v443 = vpack.c.bf16 %v440, %v439
        %v444 = vpack.c.bf16 %v442, %v441
        %v445 = vld [vmem:[%s2] sm:$0xf]
        %v446 = vld [vmem:[%s2 + $0x4] sm:$0xf]
        %v447 = vld [vmem:[%s2 + $0x8] sm:$0xf]
        %v448 = vld [vmem:[%s2 + $0xc] sm:$0xf]
        %v449 = vld [vmem:[%s3] sm:$0x1]
        %v451 = vlaneseq
        %v452 = vshrl.u32 %v451, 7
        %v453 = vsub.s32 0, %v452
        %v454 = vrot.slane %v449, %v453
        %v460 = vunpack.c.l.b16 %v445
        %v461 = vunpack.c.l.b16 %v446
        %v462 = vunpack.c.l.b16 %v447
        %v463 = vunpack.c.l.b16 %v448
        %v464 = vpack.c.b16 %v461, %v460
        %v465 = vpack.c.b16 %v463, %v462
        %vm468 = vcmask 261120
        %v470 = vsel %vm468, %v443, 0
        %v473 = vsel %vm468, %v444, 0
        %475 = vmatprep.subr.bf16.mxu0 0
        %476 = vmatpush1.bf16.msra.mxu0 0
        %477 = vmatprep.subr.bf16.mxu0 0
        %478 = vmatpush1.bf16.msra.mxu0 0
        %479 = vmatprep.subr.bf16.mxu0 0
        %480 = vmatpush1.bf16.msra.mxu0 0
        %481 = vmatprep.subr.bf16.mxu0 0
        %482 = vmatpush1.bf16.msra.mxu0 0
        %483 = vmatprep.subr.bf16.mxu0 0
        %484 = vmatpush1.bf16.msra.mxu0 0
        %485 = vmatprep.subr.bf16.mxu0 0
        %486 = vmatpush1.bf16.msra.mxu0 0
        %487 = vmatprep.subr.bf16.mxu0 0
        %488 = vmatpush1.bf16.msra.mxu0 %v465
        %489 = vmatprep.subr.bf16.mxu0 0
        %490 = vmatpush1.bf16.msra.mxu0 %v464
        %491 = vmatprep.subr.bf16.mxu0 0
        %492 = vmatpush2.bf16.msra.mxu0 0
        %493 = vmatprep.subr.bf16.mxu0 0
        %494 = vmatpush2.bf16.msra.mxu0 0
        %495 = vmatprep.subr.bf16.mxu0 0
        %496 = vmatpush2.bf16.msra.mxu0 0
        %497 = vmatprep.subr.bf16.mxu0 0
        %498 = vmatpush2.bf16.msra.mxu0 0
        %499 = vmatprep.subr.bf16.mxu0 0
        %500 = vmatpush2.bf16.msra.mxu0 0
        %501 = vmatprep.subr.bf16.mxu0 0
        %502 = vmatpush2.bf16.msra.mxu0 0
        %503 = vmatprep.subr.bf16.mxu0 0
        %504 = vmatpush2.bf16.msra.mxu0 0
        %505 = vmatprep.subr.bf16.mxu0 0
        %506 = vmatpush2.bf16.msra.mxu0 0
        %507 = vmatprep.mubr.bf16.mxu0 0
        %508 = vmatmul.mubr.bf16.gmra.mxu0 %v470
        %v509 = vpop.f32.mrf.mxu0
        %v510 = vadd.f32 %v454, %v509
        %v511 = vpop.f32.mrf.mxu0
        %v512 = vpop.f32.mrf.mxu0
        %v513 = vadd.f32 %v454, %v512
        %v514 = vpop.f32.mrf.mxu0
        %515 = vmatprep.mubr.bf16.mxu0 0
        %516 = vmatmul.mubr.bf16.gmra.mxu0 %v473
        %v517 = vpop.f32.mrf.mxu0
        %v518 = vadd.f32 %v454, %v517
        %v519 = vpop.f32.mrf.mxu0
        %v520 = vpop.f32.mrf.mxu0
        %v521 = vadd.f32 %v454, %v520
        %v522 = vpop.f32.mrf.mxu0
        %523 = vdwg.mxu0
        %524 = vst.msk [vmem:[#allocation2 + $0x8] sm:$0xff] %vm468, %v510
        %525 = vst.msk [vmem:[#allocation2 + $0x10] sm:$0xff] %vm468, %v513
        %526 = vst.msk [vmem:[#allocation2 + $0x18] sm:$0xff] %vm468, %v518
        %527 = vst.msk [vmem:[#allocation2 + $0x20] sm:$0xff] %vm468, %v521
        %v528 = vld [vmem:[#allocation2 + $0x7] sm:$0xff]
        %v529 = vld [vmem:[#allocation2 + $0xf] sm:$0xff]
        %v530 = vld [vmem:[#allocation2 + $0x17] sm:$0xff]
        %v531 = vld [vmem:[#allocation2 + $0x1f] sm:$0xff]
        %v532 = vld [vmem:[#allocation2 + $0x9] sm:$0xff]
        %v533 = vld [vmem:[#allocation2 + $0x11] sm:$0xff]
        %v534 = vld [vmem:[#allocation2 + $0x19] sm:$0xff]
        %v535 = vld [vmem:[#allocation2 + $0x21] sm:$0xff]
        %v536 = vlaneseq
        %v537 = vshrl.u32 %v536, 7
        %v538 = vadd.s32 %v537, 8
        %v539 = vadd.s32 %v537, 16
        %v540 = vadd.s32 %v537, 24
        %vm541 = vcmp.eq.s32.totalorder %v537, 0
        %vm542 = vcmp.eq.s32.totalorder %v538, 0
        %vm543 = vcmp.eq.s32.totalorder %v539, 0
        %vm544 = vcmp.eq.s32.totalorder %v540, 0
        %vm545 = vcmp.eq.s32.totalorder %v537, 15
        %vm546 = vcmp.eq.s32.totalorder %v538, 15
        %vm547 = vcmp.eq.s32.totalorder %v539, 15
        %vm548 = vcmp.eq.s32.totalorder %v540, 15
        %vm549 = vcmp.eq.s32.totalorder %v537, 16
        %vm550 = vcmp.eq.s32.totalorder %v538, 16
        %vm551 = vcmp.eq.s32.totalorder %v539, 16
        %vm552 = vcmp.eq.s32.totalorder %v540, 16
        %vm553 = vmor %vm541, %vm549
        %vm554 = vmor %vm542, %vm550
        %vm555 = vmor %vm543, %vm551
        %vm556 = vmor %vm544, %vm552
        %vm557 = vcmp.eq.s32.totalorder %v537, 31
        %vm558 = vcmp.eq.s32.totalorder %v538, 31
        %vm559 = vcmp.eq.s32.totalorder %v539, 31
        %vm560 = vcmp.eq.s32.totalorder %v540, 31
        %vm561 = vmor %vm545, %vm557
        %vm562 = vmor %vm546, %vm558
        %vm563 = vmor %vm547, %vm559
        %vm564 = vmor %vm548, %vm560
        %v565 = vsel %vm553, 1, 0
        %v566 = vsel %vm554, 1, 0
        %v567 = vsel %vm555, 1, 0
        %v568 = vsel %vm556, 1, 0
        %vm569 = vcmp.eq.s32.totalorder %v565, 1
        %vm570 = vcmp.eq.s32.totalorder %v566, 1
        %vm571 = vcmp.eq.s32.totalorder %v567, 1
        %vm572 = vcmp.eq.s32.totalorder %v568, 1
        %v573 = vsel %vm569, 0.0, %v528
        %v574 = vsel %vm570, 0.0, %v529
        %v575 = vsel %vm571, 0.0, %v530
        %v576 = vsel %vm572, 0.0, %v531
        %v577 = vld [vmem:[%s4] sm:$0x1]
        %v578 = vlaneseq
        %v579 = vshrl.u32 %v578, 7
        %v580 = vsub.s32 0, %v579
        %v581 = vrot.slane %v577, %v580
        %v582 = vmul.f32 %v573, %v581
        %v583 = vmul.f32 %v574, %v581
        %v584 = vmul.f32 %v575, %v581
        %v585 = vmul.f32 %v576, %v581
        %v586 = vld [vmem:[%s4 + $0x1] sm:$0x1]
        %v587 = vlaneseq
        %v588 = vshrl.u32 %v587, 7
        %v589 = vsub.s32 0, %v588
        %v590 = vrot.slane %v586, %v589
        %v591 = vmul.f32 %v510, %v590
        %v592 = vmul.f32 %v513, %v590
        %v593 = vmul.f32 %v518, %v590
        %v594 = vmul.f32 %v521, %v590
        %v595 = vadd.f32 %v582, %v591
        %v596 = vadd.f32 %v583, %v592
        %v597 = vadd.f32 %v584, %v593
        %v598 = vadd.f32 %v585, %v594
        %v599 = vsel %vm561, 1, 0
        %v600 = vsel %vm562, 1, 0
        %v601 = vsel %vm563, 1, 0
        %v602 = vsel %vm564, 1, 0
        %vm603 = vcmp.eq.s32.totalorder %v599, 1
        %vm604 = vcmp.eq.s32.totalorder %v600, 1
        %vm605 = vcmp.eq.s32.totalorder %v601, 1
        %vm606 = vcmp.eq.s32.totalorder %v602, 1
        %v607 = vsel %vm603, 0.0, %v532
        %v608 = vsel %vm604, 0.0, %v533
        %v609 = vsel %vm605, 0.0, %v534
        %v610 = vsel %vm606, 0.0, %v535
        %v611 = vld [vmem:[%s4 + $0x2] sm:$0x1]
        %v612 = vlaneseq
        %v613 = vshrl.u32 %v612, 7
        %v614 = vsub.s32 0, %v613
        %v615 = vrot.slane %v611, %v614
        %v616 = vmul.f32 %v607, %v615
        %v617 = vmul.f32 %v608, %v615
        %v618 = vmul.f32 %v609, %v615
        %v619 = vmul.f32 %v610, %v615
        %v620 = vadd.f32 %v595, %v616
        %v621 = vadd.f32 %v596, %v617
        %v622 = vadd.f32 %v597, %v618
        %v623 = vadd.f32 %v598, %v619
        %v624 = vld [vmem:[%s5] sm:$0x1]
        %v626 = vlaneseq
        %v627 = vshrl.u32 %v626, 7
        %v628 = vsub.s32 0, %v627
        %v629 = vrot.slane %v624, %v628
        %v631 = vadd.f32 %v620, %v629
        %v632 = vadd.f32 %v621, %v629
        %v633 = vadd.f32 %v622, %v629
        %v634 = vadd.f32 %v623, %v629
        %v635 = vlaneseq
        %v636 = vand.u32 %v635, 127
        %v637 = vmul.u32 %v537, 16
        %vm638 = vcmp.ge.s32.totalorder %v636, %v637
        %v639 = vadd.s32 %v537, 1
        %v640 = vmul.u32 %v639, 16
        %vm641 = vcmp.lt.s32.totalorder %v636, %v640
        %vm642 = vmand %vm638, %vm641
        %v643 = vsel %vm642, 1, 0
        %v644 = vcvt.s32.f32 %v643
        %v645 = vmul.u32 %v636, 16
        %vm646 = vcmp.ge.s32.totalorder %v537, %v645
        %vm647 = vcmp.ge.s32.totalorder %v538, %v645
        %vm648 = vcmp.ge.s32.totalorder %v539, %v645
        %vm649 = vcmp.ge.s32.totalorder %v540, %v645
        %v650 = vadd.s32 %v636, 1
        %v651 = vmul.u32 %v650, 16
        %vm652 = vcmp.lt.s32.totalorder %v537, %v651
        %vm653 = vcmp.lt.s32.totalorder %v538, %v651
        %vm654 = vcmp.lt.s32.totalorder %v539, %v651
        %vm655 = vcmp.lt.s32.totalorder %v540, %v651
        %vm656 = vmand %vm646, %vm652
        %vm657 = vmand %vm647, %vm653
        %vm658 = vmand %vm648, %vm654
        %vm659 = vmand %vm649, %vm655
        %v660 = vsel %vm656, 1, 0
        %v661 = vsel %vm657, 1, 0
        %v662 = vsel %vm658, 1, 0
        %v663 = vsel %vm659, 1, 0
        %v664 = vcvt.s32.f32 %v660
        %v665 = vcvt.s32.f32 %v661
        %v666 = vcvt.s32.f32 %v662
        %v667 = vcvt.s32.f32 %v663
        %v668 = vld [vmem:[%s6] sm:$0xff]
        %v669 = vld [vmem:[%s6 + $0x8] sm:$0xff]
        %v670 = vld [vmem:[%s6 + $0x10] sm:$0xff]
        %v671 = vld [vmem:[%s6 + $0x18] sm:$0xff]
        %v673 = vsel %vm468, %v644, 0
        %675 = vmatprep.subr.mxu0 0.0
        %676 = vmatpush1.msra.mxu0 0.0
        %677 = vmatprep.subr.mxu0 0.0
        %678 = vmatpush1.msra.mxu0 0.0
        %679 = vmatprep.subr.mxu0 0.0
        %680 = vmatpush1.msra.mxu0 0.0
        %681 = vmatprep.subr.mxu0 0.0
        %682 = vmatpush1.msra.mxu0 0.0
        %683 = vmatprep.subr.mxu0 0.0
        %684 = vmatpush1.msra.mxu0 0.0
        %685 = vmatprep.subr.mxu0 0.0
        %686 = vmatpush1.msra.mxu0 0.0
        %687 = vmatprep.subr.mxu0 0.0
        %688 = vmatpush1.msra.mxu0 0.0
        %689 = vmatprep.subr.mxu0 0.0
        %690 = vmatpush1.msra.mxu0 0.0
        %691 = vmatprep.subr.mxu0 0.0
        %692 = vmatpush1.msra.mxu0 0.0
        %693 = vmatprep.subr.mxu0 0.0
        %694 = vmatpush1.msra.mxu0 0.0
        %695 = vmatprep.subr.mxu0 0.0
        %696 = vmatpush1.msra.mxu0 0.0
        %697 = vmatprep.subr.mxu0 0.0
        %698 = vmatpush1.msra.mxu0 0.0
        %699 = vmatprep.subr.mxu0 0.0
        %700 = vmatpush1.msra.mxu0 %v634
        %701 = vmatprep.subr.mxu0 0.0
        %702 = vmatpush1.msra.mxu0 %v633
        %703 = vmatprep.subr.mxu0 0.0
        %704 = vmatpush1.msra.mxu0 %v632
        %705 = vmatprep.subr.mxu0 0.0
        %706 = vmatpush1.msra.mxu0 %v631
        %707 = vmatprep.subr.mxu0 0.0
        %708 = vmatpush2.msra.mxu0 0.0
        %709 = vmatprep.subr.mxu0 0.0
        %710 = vmatpush2.msra.mxu0 0.0
        %711 = vmatprep.subr.mxu0 0.0
        %712 = vmatpush2.msra.mxu0 0.0
        %713 = vmatprep.subr.mxu0 0.0
        %714 = vmatpush2.msra.mxu0 0.0
        %715 = vmatprep.subr.mxu0 0.0
        %716 = vmatpush2.msra.mxu0 0.0
        %717 = vmatprep.subr.mxu0 0.0
        %718 = vmatpush2.msra.mxu0 0.0
        %719 = vmatprep.subr.mxu0 0.0
        %720 = vmatpush2.msra.mxu0 0.0
        %721 = vmatprep.subr.mxu0 0.0
        %722 = vmatpush2.msra.mxu0 0.0
        %723 = vmatprep.subr.mxu0 0.0
        %724 = vmatpush2.msra.mxu0 0.0
        %725 = vmatprep.subr.mxu0 0.0
        %726 = vmatpush2.msra.mxu0 0.0
        %727 = vmatprep.subr.mxu0 0.0
        %728 = vmatpush2.msra.mxu0 0.0
        %729 = vmatprep.subr.mxu0 0.0
        %730 = vmatpush2.msra.mxu0 0.0
        %731 = vmatprep.subr.mxu0 0.0
        %732 = vmatpush2.msra.mxu0 0.0
        %733 = vmatprep.subr.mxu0 0.0
        %734 = vmatpush2.msra.mxu0 0.0
        %735 = vmatprep.subr.mxu0 0.0
        %736 = vmatpush2.msra.mxu0 0.0
        %737 = vmatprep.subr.mxu0 0.0
        %738 = vmatpush2.msra.mxu0 0.0
        %739 = vmatprep.mubr.f32.mxu0 0.0
        %740 = vmatmul.mubr.f32.gmra.mxu0 %v673
        %v741 = vpop.f32.mrf.mxu0
        %v742 = vadd.f32 0.0, %v741
        %v743 = vpop.f32.mrf.mxu0
        %744 = vdwg.mxu0
        %v746 = vsel %vm468, %v742, 0
        %748 = vmatprep.subr.mxu0 0.0
        %749 = vmatpush1.msra.mxu0 0.0
        %750 = vmatprep.subr.mxu0 0.0
        %751 = vmatpush1.msra.mxu0 0.0
        %752 = vmatprep.subr.mxu0 0.0
        %753 = vmatpush1.msra.mxu0 0.0
        %754 = vmatprep.subr.mxu0 0.0
        %755 = vmatpush1.msra.mxu0 0.0
        %756 = vmatprep.subr.mxu0 0.0
        %757 = vmatpush1.msra.mxu0 0.0
        %758 = vmatprep.subr.mxu0 0.0
        %759 = vmatpush1.msra.mxu0 0.0
        %760 = vmatprep.subr.mxu0 0.0
        %761 = vmatpush1.msra.mxu0 0.0
        %762 = vmatprep.subr.mxu0 0.0
        %763 = vmatpush1.msra.mxu0 0.0
        %764 = vmatprep.subr.mxu0 0.0
        %765 = vmatpush1.msra.mxu0 0.0
        %766 = vmatprep.subr.mxu0 0.0
        %767 = vmatpush1.msra.mxu0 0.0
        %768 = vmatprep.subr.mxu0 0.0
        %769 = vmatpush1.msra.mxu0 0.0
        %770 = vmatprep.subr.mxu0 0.0
        %771 = vmatpush1.msra.mxu0 0.0
        %772 = vmatprep.subr.mxu0 0.0
        %773 = vmatpush1.msra.mxu0 %v671
        %774 = vmatprep.subr.mxu0 0.0
        %775 = vmatpush1.msra.mxu0 %v670
        %776 = vmatprep.subr.mxu0 0.0
        %777 = vmatpush1.msra.mxu0 %v669
        %778 = vmatprep.subr.mxu0 0.0
        %779 = vmatpush1.msra.mxu0 %v668
        %780 = vmatprep.subr.mxu0 0.0
        %781 = vmatpush2.msra.mxu0 0.0
        %782 = vmatprep.subr.mxu0 0.0
        %783 = vmatpush2.msra.mxu0 0.0
        %784 = vmatprep.subr.mxu0 0.0
        %785 = vmatpush2.msra.mxu0 0.0
        %786 = vmatprep.subr.mxu0 0.0
        %787 = vmatpush2.msra.mxu0 0.0
        %788 = vmatprep.subr.mxu0 0.0
        %789 = vmatpush2.msra.mxu0 0.0
        %790 = vmatprep.subr.mxu0 0.0
        %791 = vmatpush2.msra.mxu0 0.0
        %792 = vmatprep.subr.mxu0 0.0
        %793 = vmatpush2.msra.mxu0 0.0
        %794 = vmatprep.subr.mxu0 0.0
        %795 = vmatpush2.msra.mxu0 0.0
        %796 = vmatprep.subr.mxu0 0.0
        %797 = vmatpush2.msra.mxu0 0.0
        %798 = vmatprep.subr.mxu0 0.0
        %799 = vmatpush2.msra.mxu0 0.0
        %800 = vmatprep.subr.mxu0 0.0
        %801 = vmatpush2.msra.mxu0 0.0
        %802 = vmatprep.subr.mxu0 0.0
        %803 = vmatpush2.msra.mxu0 0.0
        %804 = vmatprep.subr.mxu0 0.0
        %805 = vmatpush2.msra.mxu0 0.0
        %806 = vmatprep.subr.mxu0 0.0
        %807 = vmatpush2.msra.mxu0 0.0
        %808 = vmatprep.subr.mxu0 0.0
        %809 = vmatpush2.msra.mxu0 0.0
        %810 = vmatprep.subr.mxu0 0.0
        %811 = vmatpush2.msra.mxu0 0.0
        %812 = vmatprep.mubr.f32.mxu0 0.0
        %813 = vmatmul.mubr.f32.gmra.mxu0 %v746
        %v814 = vpop.f32.mrf.mxu0
        %v815 = vadd.f32 0.0, %v814
        %v816 = vpop.f32.mrf.mxu0
        %817 = vdwg.mxu0
        %v818 = vmul.f32 %v815, 0.03125
        %vm819 = vcmask 15360
        %v821 = vsel %vm819, %v664, 0
        %v824 = vsel %vm819, %v665, 0
        %v827 = vsel %vm819, %v666, 0
        %v830 = vsel %vm819, %v667, 0
        %vm832 = vcmask 1041408
        %v834 = vsel %vm832, %v818, 0
        %836 = vmatprep.subr.mxu0 0.0
        %837 = vmatpush1.msra.mxu0 0.0
        %838 = vmatprep.subr.mxu0 0.0
        %839 = vmatpush1.msra.mxu0 0.0
        %840 = vmatprep.subr.mxu0 0.0
        %841 = vmatpush1.msra.mxu0 0.0
        %842 = vmatprep.subr.mxu0 0.0
        %843 = vmatpush1.msra.mxu0 0.0
        %844 = vmatprep.subr.mxu0 0.0
        %845 = vmatpush1.msra.mxu0 0.0
        %846 = vmatprep.subr.mxu0 0.0
        %847 = vmatpush1.msra.mxu0 0.0
        %848 = vmatprep.subr.mxu0 0.0
        %849 = vmatpush1.msra.mxu0 0.0
        %850 = vmatprep.subr.mxu0 0.0
        %851 = vmatpush1.msra.mxu0 0.0
        %852 = vmatprep.subr.mxu0 0.0
        %853 = vmatpush1.msra.mxu0 0.0
        %854 = vmatprep.subr.mxu0 0.0
        %855 = vmatpush1.msra.mxu0 0.0
        %856 = vmatprep.subr.mxu0 0.0
        %857 = vmatpush1.msra.mxu0 0.0
        %858 = vmatprep.subr.mxu0 0.0
        %859 = vmatpush1.msra.mxu0 0.0
        %860 = vmatprep.subr.mxu0 0.0
        %861 = vmatpush1.msra.mxu0 0.0
        %862 = vmatprep.subr.mxu0 0.0
        %863 = vmatpush1.msra.mxu0 0.0
        %864 = vmatprep.subr.mxu0 0.0
        %865 = vmatpush1.msra.mxu0 0.0
        %866 = vmatprep.subr.mxu0 0.0
        %867 = vmatpush1.msra.mxu0 %v834
        %868 = vmatprep.subr.mxu0 0.0
        %869 = vmatpush2.msra.mxu0 0.0
        %870 = vmatprep.subr.mxu0 0.0
        %871 = vmatpush2.msra.mxu0 0.0
        %872 = vmatprep.subr.mxu0 0.0
        %873 = vmatpush2.msra.mxu0 0.0
        %874 = vmatprep.subr.mxu0 0.0
        %875 = vmatpush2.msra.mxu0 0.0
        %876 = vmatprep.subr.mxu0 0.0
        %877 = vmatpush2.msra.mxu0 0.0
        %878 = vmatprep.subr.mxu0 0.0
        %879 = vmatpush2.msra.mxu0 0.0
        %880 = vmatprep.subr.mxu0 0.0
        %881 = vmatpush2.msra.mxu0 0.0
        %882 = vmatprep.subr.mxu0 0.0
        %883 = vmatpush2.msra.mxu0 0.0
        %884 = vmatprep.subr.mxu0 0.0
        %885 = vmatpush2.msra.mxu0 0.0
        %886 = vmatprep.subr.mxu0 0.0
        %887 = vmatpush2.msra.mxu0 0.0
        %888 = vmatprep.subr.mxu0 0.0
        %889 = vmatpush2.msra.mxu0 0.0
        %890 = vmatprep.subr.mxu0 0.0
        %891 = vmatpush2.msra.mxu0 0.0
        %892 = vmatprep.subr.mxu0 0.0
        %893 = vmatpush2.msra.mxu0 0.0
        %894 = vmatprep.subr.mxu0 0.0
        %895 = vmatpush2.msra.mxu0 0.0
        %896 = vmatprep.subr.mxu0 0.0
        %897 = vmatpush2.msra.mxu0 0.0
        %898 = vmatprep.subr.mxu0 0.0
        %899 = vmatpush2.msra.mxu0 0.0
        %900 = vmatprep.mubr.f32.mxu0 0.0
        %901 = vmatmul.mubr.f32.gmra.mxu0 %v821
        %v902 = vpop.f32.mrf.mxu0
        %v903 = vadd.f32 0.0, %v902
        %v904 = vpop.f32.mrf.mxu0
        %905 = vmatprep.mubr.f32.mxu0 0.0
        %906 = vmatmul.mubr.f32.gmra.mxu0 %v824
        %v907 = vpop.f32.mrf.mxu0
        %v908 = vadd.f32 0.0, %v907
        %v909 = vpop.f32.mrf.mxu0
        %910 = vmatprep.mubr.f32.mxu0 0.0
        %911 = vmatmul.mubr.f32.gmra.mxu0 %v827
        %v912 = vpop.f32.mrf.mxu0
        %v913 = vadd.f32 0.0, %v912
        %v914 = vpop.f32.mrf.mxu0
        %915 = vmatprep.mubr.f32.mxu0 0.0
        %916 = vmatmul.mubr.f32.gmra.mxu0 %v830
        %v917 = vpop.f32.mrf.mxu0
        %v918 = vadd.f32 0.0, %v917
        %v919 = vpop.f32.mrf.mxu0
        %920 = vdwg.mxu0
        %v921 = vsub.f32 %v631, %v903
        %v922 = vsub.f32 %v632, %v908
        %v923 = vsub.f32 %v633, %v913
        %v924 = vsub.f32 %v634, %v918
        %v925 = vmul.f32 %v921, %v921
        %v926 = vmul.f32 %v922, %v922
        %v927 = vmul.f32 %v923, %v923
        %v928 = vmul.f32 %v924, %v924
        %929 = vmatprep.subr.mxu0 0.0
        %930 = vmatpush1.msra.mxu0 0.0
        %931 = vmatprep.subr.mxu0 0.0
        %932 = vmatpush1.msra.mxu0 0.0
        %933 = vmatprep.subr.mxu0 0.0
        %934 = vmatpush1.msra.mxu0 0.0
        %935 = vmatprep.subr.mxu0 0.0
        %936 = vmatpush1.msra.mxu0 0.0
        %937 = vmatprep.subr.mxu0 0.0
        %938 = vmatpush1.msra.mxu0 0.0
        %939 = vmatprep.subr.mxu0 0.0
        %940 = vmatpush1.msra.mxu0 0.0
        %941 = vmatprep.subr.mxu0 0.0
        %942 = vmatpush1.msra.mxu0 0.0
        %943 = vmatprep.subr.mxu0 0.0
        %944 = vmatpush1.msra.mxu0 0.0
        %945 = vmatprep.subr.mxu0 0.0
        %946 = vmatpush1.msra.mxu0 0.0
        %947 = vmatprep.subr.mxu0 0.0
        %948 = vmatpush1.msra.mxu0 0.0
        %949 = vmatprep.subr.mxu0 0.0
        %950 = vmatpush1.msra.mxu0 0.0
        %951 = vmatprep.subr.mxu0 0.0
        %952 = vmatpush1.msra.mxu0 0.0
        %953 = vmatprep.subr.mxu0 0.0
        %954 = vmatpush1.msra.mxu0 %v928
        %955 = vmatprep.subr.mxu0 0.0
        %956 = vmatpush1.msra.mxu0 %v927
        %957 = vmatprep.subr.mxu0 0.0
        %958 = vmatpush1.msra.mxu0 %v926
        %959 = vmatprep.subr.mxu0 0.0
        %960 = vmatpush1.msra.mxu0 %v925
        %961 = vmatprep.subr.mxu0 0.0
        %962 = vmatpush2.msra.mxu0 0.0
        %963 = vmatprep.subr.mxu0 0.0
        %964 = vmatpush2.msra.mxu0 0.0
        %965 = vmatprep.subr.mxu0 0.0
        %966 = vmatpush2.msra.mxu0 0.0
        %967 = vmatprep.subr.mxu0 0.0
        %968 = vmatpush2.msra.mxu0 0.0
        %969 = vmatprep.subr.mxu0 0.0
        %970 = vmatpush2.msra.mxu0 0.0
        %971 = vmatprep.subr.mxu0 0.0
        %972 = vmatpush2.msra.mxu0 0.0
        %973 = vmatprep.subr.mxu0 0.0
        %974 = vmatpush2.msra.mxu0 0.0
        %975 = vmatprep.subr.mxu0 0.0
        %976 = vmatpush2.msra.mxu0 0.0
        %977 = vmatprep.subr.mxu0 0.0
        %978 = vmatpush2.msra.mxu0 0.0
        %979 = vmatprep.subr.mxu0 0.0
        %980 = vmatpush2.msra.mxu0 0.0
        %981 = vmatprep.subr.mxu0 0.0
        %982 = vmatpush2.msra.mxu0 0.0
        %983 = vmatprep.subr.mxu0 0.0
        %984 = vmatpush2.msra.mxu0 0.0
        %985 = vmatprep.subr.mxu0 0.0
        %986 = vmatpush2.msra.mxu0 0.0
        %987 = vmatprep.subr.mxu0 0.0
        %988 = vmatpush2.msra.mxu0 0.0
        %989 = vmatprep.subr.mxu0 0.0
        %990 = vmatpush2.msra.mxu0 0.0
        %991 = vmatprep.subr.mxu0 0.0
        %992 = vmatpush2.msra.mxu0 0.0
        %993 = vmatprep.mubr.f32.mxu0 0.0
        %994 = vmatmul.mubr.f32.gmra.mxu0 %v673
        %v995 = vpop.f32.mrf.mxu0
        %v996 = vadd.f32 0.0, %v995
        %v997 = vpop.f32.mrf.mxu0
        %998 = vdwg.mxu0
        %v1000 = vsel %vm468, %v996, 0
        %1002 = vmatprep.subr.mxu0 0.0
        %1003 = vmatpush1.msra.mxu0 0.0
        %1004 = vmatprep.subr.mxu0 0.0
        %1005 = vmatpush1.msra.mxu0 0.0
        %1006 = vmatprep.subr.mxu0 0.0
        %1007 = vmatpush1.msra.mxu0 0.0
        %1008 = vmatprep.subr.mxu0 0.0
        %1009 = vmatpush1.msra.mxu0 0.0
        %1010 = vmatprep.subr.mxu0 0.0
        %1011 = vmatpush1.msra.mxu0 0.0
        %1012 = vmatprep.subr.mxu0 0.0
        %1013 = vmatpush1.msra.mxu0 0.0
        %1014 = vmatprep.subr.mxu0 0.0
        %1015 = vmatpush1.msra.mxu0 0.0
        %1016 = vmatprep.subr.mxu0 0.0
        %1017 = vmatpush1.msra.mxu0 0.0
        %1018 = vmatprep.subr.mxu0 0.0
        %1019 = vmatpush1.msra.mxu0 0.0
        %1020 = vmatprep.subr.mxu0 0.0
        %1021 = vmatpush1.msra.mxu0 0.0
        %1022 = vmatprep.subr.mxu0 0.0
        %1023 = vmatpush1.msra.mxu0 0.0
        %1024 = vmatprep.subr.mxu0 0.0
        %1025 = vmatpush1.msra.mxu0 0.0
        %1026 = vmatprep.subr.mxu0 0.0
        %1027 = vmatpush1.msra.mxu0 %v671
        %1028 = vmatprep.subr.mxu0 0.0
        %1029 = vmatpush1.msra.mxu0 %v670
        %1030 = vmatprep.subr.mxu0 0.0
        %1031 = vmatpush1.msra.mxu0 %v669
        %1032 = vmatprep.subr.mxu0 0.0
        %1033 = vmatpush1.msra.mxu0 %v668
        %1034 = vmatprep.subr.mxu0 0.0
        %1035 = vmatpush2.msra.mxu0 0.0
        %1036 = vmatprep.subr.mxu0 0.0
        %1037 = vmatpush2.msra.mxu0 0.0
        %1038 = vmatprep.subr.mxu0 0.0
        %1039 = vmatpush2.msra.mxu0 0.0
        %1040 = vmatprep.subr.mxu0 0.0
        %1041 = vmatpush2.msra.mxu0 0.0
        %1042 = vmatprep.subr.mxu0 0.0
        %1043 = vmatpush2.msra.mxu0 0.0
        %1044 = vmatprep.subr.mxu0 0.0
        %1045 = vmatpush2.msra.mxu0 0.0
        %1046 = vmatprep.subr.mxu0 0.0
        %1047 = vmatpush2.msra.mxu0 0.0
        %1048 = vmatprep.subr.mxu0 0.0
        %1049 = vmatpush2.msra.mxu0 0.0
        %1050 = vmatprep.subr.mxu0 0.0
        %1051 = vmatpush2.msra.mxu0 0.0
        %1052 = vmatprep.subr.mxu0 0.0
        %1053 = vmatpush2.msra.mxu0 0.0
        %1054 = vmatprep.subr.mxu0 0.0
        %1055 = vmatpush2.msra.mxu0 0.0
        %1056 = vmatprep.subr.mxu0 0.0
        %1057 = vmatpush2.msra.mxu0 0.0
        %1058 = vmatprep.subr.mxu0 0.0
        %1059 = vmatpush2.msra.mxu0 0.0
        %1060 = vmatprep.subr.mxu0 0.0
        %1061 = vmatpush2.msra.mxu0 0.0
        %1062 = vmatprep.subr.mxu0 0.0
        %1063 = vmatpush2.msra.mxu0 0.0
        %1064 = vmatprep.subr.mxu0 0.0
        %1065 = vmatpush2.msra.mxu0 0.0
        %1066 = vmatprep.mubr.f32.mxu0 0.0
        %1067 = vmatmul.mubr.f32.gmra.mxu0 %v1000
        %v1068 = vpop.f32.mrf.mxu0
        %v1069 = vadd.f32 0.0, %v1068
        %v1070 = vpop.f32.mrf.mxu0
        %1071 = vdwg.mxu0
        %v1072 = vmul.f32 %v1069, 0.03125
        %v1074 = vsel %vm832, %v1072, 0
        %1076 = vmatprep.subr.mxu0 0.0
        %1077 = vmatpush1.msra.mxu0 0.0
        %1078 = vmatprep.subr.mxu0 0.0
        %1079 = vmatpush1.msra.mxu0 0.0
        %1080 = vmatprep.subr.mxu0 0.0
        %1081 = vmatpush1.msra.mxu0 0.0
        %1082 = vmatprep.subr.mxu0 0.0
        %1083 = vmatpush1.msra.mxu0 0.0
        %1084 = vmatprep.subr.mxu0 0.0
        %1085 = vmatpush1.msra.mxu0 0.0
        %1086 = vmatprep.subr.mxu0 0.0
        %1087 = vmatpush1.msra.mxu0 0.0
        %1088 = vmatprep.subr.mxu0 0.0
        %1089 = vmatpush1.msra.mxu0 0.0
        %1090 = vmatprep.subr.mxu0 0.0
        %1091 = vmatpush1.msra.mxu0 0.0
        %1092 = vmatprep.subr.mxu0 0.0
        %1093 = vmatpush1.msra.mxu0 0.0
        %1094 = vmatprep.subr.mxu0 0.0
        %1095 = vmatpush1.msra.mxu0 0.0
        %1096 = vmatprep.subr.mxu0 0.0
        %1097 = vmatpush1.msra.mxu0 0.0
        %1098 = vmatprep.subr.mxu0 0.0
        %1099 = vmatpush1.msra.mxu0 0.0
        %1100 = vmatprep.subr.mxu0 0.0
        %1101 = vmatpush1.msra.mxu0 0.0
        %1102 = vmatprep.subr.mxu0 0.0
        %1103 = vmatpush1.msra.mxu0 0.0
        %1104 = vmatprep.subr.mxu0 0.0
        %1105 = vmatpush1.msra.mxu0 0.0
        %1106 = vmatprep.subr.mxu0 0.0
        %1107 = vmatpush1.msra.mxu0 %v1074
        %1108 = vmatprep.subr.mxu0 0.0
        %1109 = vmatpush2.msra.mxu0 0.0
        %1110 = vmatprep.subr.mxu0 0.0
        %1111 = vmatpush2.msra.mxu0 0.0
        %1112 = vmatprep.subr.mxu0 0.0
        %1113 = vmatpush2.msra.mxu0 0.0
        %1114 = vmatprep.subr.mxu0 0.0
        %1115 = vmatpush2.msra.mxu0 0.0
        %1116 = vmatprep.subr.mxu0 0.0
        %1117 = vmatpush2.msra.mxu0 0.0
        %1118 = vmatprep.subr.mxu0 0.0
        %1119 = vmatpush2.msra.mxu0 0.0
        %1120 = vmatprep.subr.mxu0 0.0
        %1121 = vmatpush2.msra.mxu0 0.0
        %1122 = vmatprep.subr.mxu0 0.0
        %1123 = vmatpush2.msra.mxu0 0.0
        %1124 = vmatprep.subr.mxu0 0.0
        %1125 = vmatpush2.msra.mxu0 0.0
        %1126 = vmatprep.subr.mxu0 0.0
        %1127 = vmatpush2.msra.mxu0 0.0
        %1128 = vmatprep.subr.mxu0 0.0
        %1129 = vmatpush2.msra.mxu0 0.0
        %1130 = vmatprep.subr.mxu0 0.0
        %1131 = vmatpush2.msra.mxu0 0.0
        %1132 = vmatprep.subr.mxu0 0.0
        %1133 = vmatpush2.msra.mxu0 0.0
        %1134 = vmatprep.subr.mxu0 0.0
        %1135 = vmatpush2.msra.mxu0 0.0
        %1136 = vmatprep.subr.mxu0 0.0
        %1137 = vmatpush2.msra.mxu0 0.0
        %1138 = vmatprep.subr.mxu0 0.0
        %1139 = vmatpush2.msra.mxu0 0.0
        %1140 = vmatprep.mubr.f32.mxu0 0.0
        %1141 = vmatmul.mubr.f32.gmra.mxu0 %v821
        %v1142 = vpop.f32.mrf.mxu0
        %v1143 = vadd.f32 1e-05, %v1142
        %v1144 = vpop.f32.mrf.mxu0
        %1145 = vmatprep.mubr.f32.mxu0 0.0
        %1146 = vmatmul.mubr.f32.gmra.mxu0 %v824
        %v1147 = vpop.f32.mrf.mxu0
        %v1148 = vadd.f32 1e-05, %v1147
        %v1149 = vpop.f32.mrf.mxu0
        %1150 = vmatprep.mubr.f32.mxu0 0.0
        %1151 = vmatmul.mubr.f32.gmra.mxu0 %v827
        %v1152 = vpop.f32.mrf.mxu0
        %v1153 = vadd.f32 1e-05, %v1152
        %v1154 = vpop.f32.mrf.mxu0
        %1155 = vmatprep.mubr.f32.mxu0 0.0
        %1156 = vmatmul.mubr.f32.gmra.mxu0 %v830
        %v1157 = vpop.f32.mrf.mxu0
        %v1158 = vadd.f32 1e-05, %v1157
        %v1159 = vpop.f32.mrf.mxu0
        %1160 = vdwg.mxu0
        %v1161 = vrsqrt.pop %v1143
        %v1162 = vrsqrt.pop %v1148
        %v1163 = vrsqrt.pop %v1153
        %v1164 = vrsqrt.pop %v1158
        %v1165 = vmul.f32 %v921, %v1161
        %v1166 = vmul.f32 %v922, %v1162
        %v1167 = vmul.f32 %v923, %v1163
        %v1168 = vmul.f32 %v924, %v1164
        %v1169 = vld [vmem:[%s7] sm:$0x1]
        %v1171 = vlaneseq
        %v1172 = vshrl.u32 %v1171, 7
        %v1173 = vsub.s32 0, %v1172
        %v1174 = vrot.slane %v1169, %v1173
        %v1176 = vmul.f32 %v1165, %v1174
        %v1177 = vmul.f32 %v1166, %v1174
        %v1178 = vmul.f32 %v1167, %v1174
        %v1179 = vmul.f32 %v1168, %v1174
        %v1180 = vld [vmem:[%s8] sm:$0x1]
        %v1182 = vlaneseq
        %v1183 = vshrl.u32 %v1182, 7
        %v1184 = vsub.s32 0, %v1183
        %v1185 = vrot.slane %v1180, %v1184
        %v1187 = vadd.f32 %v1176, %v1185
        %v1188 = vadd.f32 %v1177, %v1185
        %v1189 = vadd.f32 %v1178, %v1185
        %v1190 = vadd.f32 %v1179, %v1185
        %v1191 = vmax.f32 %v1187, 0.0
        %v1192 = vmax.f32 %v1188, 0.0
        %v1193 = vmax.f32 %v1189, 0.0
        %v1194 = vmax.f32 %v1190, 0.0
        %v1195 = vadd.f32 %v439, %v1191
        %v1196 = vadd.f32 %v440, %v1192
        %v1197 = vadd.f32 %v441, %v1193
        %v1198 = vadd.f32 %v442, %v1194
        %v1199 = vsel %vm468, %v1195, 0.0
        %1200 = vadd.xlane.f32.xlu0 %v1199
        %v1201 = vpop.xlane.xlu0 %1200
        %v1202 = vsel %vm468, %v1196, 0.0
        %1203 = vadd.xlane.f32.xlu0 %v1202
        %v1204 = vpop.xlane.xlu0 %1203
        %v1205 = vsel %vm468, %v1197, 0.0
        %1206 = vadd.xlane.f32.xlu0 %v1205
        %v1207 = vpop.xlane.xlu0 %1206
        %v1208 = vsel %vm468, %v1198, 0.0
        %1209 = vadd.xlane.f32.xlu0 %v1208
        %v1210 = vpop.xlane.xlu0 %1209
        %v1211 = vrcp.pop 32.0
        %v1212 = vmul.f32 %v1201, %v1211
        %v1213 = vmul.f32 %v1204, %v1211
        %v1214 = vmul.f32 %v1207, %v1211
        %v1215 = vmul.f32 %v1210, %v1211
        %v1216 = vsub.f32 %v1195, %v1212
        %v1217 = vsub.f32 %v1196, %v1213
        %v1218 = vsub.f32 %v1197, %v1214
        %v1219 = vsub.f32 %v1198, %v1215
        %v1220 = vmul.f32 %v1216, %v1216
        %v1221 = vmul.f32 %v1217, %v1217
        %v1222 = vmul.f32 %v1218, %v1218
        %v1223 = vmul.f32 %v1219, %v1219
        %v1224 = vsel %vm468, %v1220, 0.0
        %1225 = vadd.xlane.f32.xlu0 %v1224
        %v1226 = vpop.xlane.xlu0 %1225
        %v1227 = vsel %vm468, %v1221, 0.0
        %1228 = vadd.xlane.f32.xlu0 %v1227
        %v1229 = vpop.xlane.xlu0 %1228
        %v1230 = vsel %vm468, %v1222, 0.0
        %1231 = vadd.xlane.f32.xlu0 %v1230
        %v1232 = vpop.xlane.xlu0 %1231
        %v1233 = vsel %vm468, %v1223, 0.0
        %1234 = vadd.xlane.f32.xlu0 %v1233
        %v1235 = vpop.xlane.xlu0 %1234
        %v1236 = vmul.f32 %v1226, %v1211
        %v1237 = vmul.f32 %v1229, %v1211
        %v1238 = vmul.f32 %v1232, %v1211
        %v1239 = vmul.f32 %v1235, %v1211
        %v1240 = vadd.f32 %v1236, 1e-05
        %v1241 = vadd.f32 %v1237, 1e-05
        %v1242 = vadd.f32 %v1238, 1e-05
        %v1243 = vadd.f32 %v1239, 1e-05
        %v1244 = vrsqrt.pop %v1240
        %v1245 = vrsqrt.pop %v1241
        %v1246 = vrsqrt.pop %v1242
        %v1247 = vrsqrt.pop %v1243
        %v1248 = vmul.f32 %v1216, %v1244
        %v1249 = vmul.f32 %v1217, %v1245
        %v1250 = vmul.f32 %v1218, %v1246
        %v1251 = vmul.f32 %v1219, %v1247
        %v1252 = vld [vmem:[%s9] sm:$0x1]
        %v1254 = vlaneseq
        %v1255 = vshrl.u32 %v1254, 7
        %v1256 = vsub.s32 0, %v1255
        %v1257 = vrot.slane %v1252, %v1256
        %v1259 = vmul.f32 %v1248, %v1257
        %v1260 = vmul.f32 %v1249, %v1257
        %v1261 = vmul.f32 %v1250, %v1257
        %v1262 = vmul.f32 %v1251, %v1257
        %v1263 = vld [vmem:[%s10] sm:$0x1]
        %v1265 = vlaneseq
        %v1266 = vshrl.u32 %v1265, 7
        %v1267 = vsub.s32 0, %v1266
        %v1268 = vrot.slane %v1263, %v1267
        %v1270 = vadd.f32 %v1259, %v1268
        %v1271 = vadd.f32 %v1260, %v1268
        %v1272 = vadd.f32 %v1261, %v1268
        %v1273 = vadd.f32 %v1262, %v1268
        %1274 = vst.msk [vmem:[%s396] sm:$0xff] %vm468, %v1270
        %1275 = vst.msk [vmem:[%s396 + $0x8] sm:$0xff] %vm468, %v1271
        %1276 = vst.msk [vmem:[%s396 + $0x10] sm:$0xff] %vm468, %v1272
        %1277 = vst.msk [vmem:[%s396 + $0x18] sm:$0xff] %vm468, %v1273
        %s1278 = sand.u32 %s274, 1
        %s1279 = scalar_lea.sflag [#allocation4], %s1278
        %s1280 = sand.u32 %s274, 1
        %s1281 = smul.addr %s1280, 32
        %s1282 = scalar_lea.vmem [#allocation3], %s1281
        // Predicated region
        $region65: #{stage_block.5} parent=63 // pred_check
          %p1283 = pneg %p284
        $region66: #{stage_block.5} parent=63 // pred_check_branch
          %1285 = sbr.rel (%p1283) target = $region68
        $region67: #{stage_block.5} parent=63 // pred_region
          %s1286 = smul.u32 4, %s25
          %s1288 = ssub.s32 512, 512
          %1289 = vsyncadd %s1279, %s1288
          %s1290 = smul.addr %s1286, 128
          %s1291 = scalar_lea.hbm %s11, %s1290
          %s1292 = sshll.u32 %s1282, 4
          %s1293 = int_to_ptr.vmem [resolvable:$true] %s1292
          %1298 = dma.vmem_to_hbm [thread:$0]  %s1293, 512, %s1291, %s1279, 128, 128, 8
        $region68: #{stage_block.5} parent=63 // pred_fallthru
          _
      $region64: #{stage_block.5} parent=5 // pred_fallthru
        _
      %p1299 = scmp.le.s32.totalorder 2, %s20
      // Predicated region
      $region69: #{stage_block.5} parent=5 // pred_check
        %p1300 = pneg %p1299
      $region70: #{stage_block.5} parent=5 // pred_check_branch
        %1302 = sbr.rel (%p1300) target = $region72
      $region71: #{stage_block.5} parent=5 // pred_region
        %s1303 = ssub.s32 %s20, 2
        // Predicated region
        $region73: #{stage_block.5} parent=71 // pred_check
          %p1304 = pneg %p290
        $region74: #{stage_block.5} parent=71 // pred_check_branch
          %1306 = sbr.rel (%p1304) target = $region76
        $region75: #{stage_block.5} parent=71 // pred_region
          %s1307 = sand.u32 %s275, 1
          %s1308 = scalar_lea.sflag [#allocation4], %s1307
          %s1309 = sand.u32 %s275, 1
          %s1310 = smul.addr %s1309, 32
          %s1311 = scalar_lea.vmem [#allocation3], %s1310
          %1312 = dma.done %s1308, 512
        $region76: #{stage_block.5} parent=71 // pred_fallthru
          _
      $region72: #{stage_block.5} parent=5 // pred_fallthru
        _
    $region6: #{stage_block.5} parent=1 // loop_footer
      %s24 = sadd.s32 1, %s20
    $region7: #{stage_block.5} parent=1 // loop_footer_branch
      %19 = sbr.rel target = $region3
    $region8: #{stage_block.5} parent=1 // loop_exit
      _
    %1313 = vsyncpa [#allocation4], 1
    %s1314 = scalar_lea.sflag [#allocation4], 1
    %1315 = vsyncpa %s1314, 1

// kernel: stage_block.4
$region0: #{stage_block.4}
  #allocation0 [shape = 'u32[]', space=smem, size = 0x4, offset = 0x4, fixed_abs, tag = 'smem constant byte address 0x4 - core index']
  #allocation1 [shape = 'u32[144,128]{1,0:T(1,128)}', space=vmem, size = 0x12000, scoped, tag = 'internal scratch']
  #allocation2 [shape = 'f32[40,32]{1,0:T(8,128)}', space=vmem, size = 0x5000, scoped, tag = 'scratch operand']
  #allocation3 [shape = 'f32[4,32]{1,0:T(4,128)}', space=vmem, size = 0x800, scoped, tag = 'scratch operand']
  #allocation4 [shape = 'f32[4,64]{1,0:T(4,128)}', space=vmem, size = 0x800, scoped, tag = 'scratch operand']
  #allocation5 [shape = 'f32[4,64]{1,0:T(4,128)}', space=vmem, size = 0x800, scoped, tag = 'scratch operand']
  %s0 = inlined_call_operand.smem [shape: u32[38], index: -1, kind: input, shape index: {}]
  %s1 = sld [smem:[%s0]]
  %s2 = scalar_lea.smem %s0, 1
  %s3 = sld [smem:[%s2]]
  %s4 = scalar_lea.smem %s0, 2
  %s5 = sld [smem:[%s4]]
  %s6 = scalar_lea.smem %s0, 3
  %s7 = sld [smem:[%s6]]
  %s8 = scalar_lea.smem %s0, 4
  %s9 = sld [smem:[%s8]]
  %s10 = scalar_lea.smem %s0, 5
  %s11 = sld [smem:[%s10]]
  %s12 = scalar_lea.smem %s0, 6
  %s13 = sld [smem:[%s12]]
  %s14 = scalar_lea.smem %s0, 7
  %s15 = sld [smem:[%s14]]
  %s16 = scalar_lea.smem %s0, 8
  %s17 = sld [smem:[%s16]]
  %s18 = scalar_lea.smem %s0, 9
  %s19 = sld [smem:[%s18]]
  %s20 = scalar_lea.smem %s0, 10
  %s21 = sld [smem:[%s20]]
  %s22 = scalar_lea.smem %s0, 11
  %s23 = sld [smem:[%s22]]
  %s24 = scalar_lea.smem %s0, 12
  %s25 = sld [smem:[%s24]]
  %s26 = scalar_lea.smem %s0, 13
  %s27 = sld [smem:[%s26]]
  %s28 = scalar_lea.smem %s0, 14
  %s29 = sld [smem:[%s28]]
  %s30 = scalar_lea.smem %s0, 15
  %s31 = sld [smem:[%s30]]
  %s32 = scalar_lea.smem %s0, 16
  %s33 = sld [smem:[%s32]]
  %s34 = scalar_lea.smem %s0, 17
  %s35 = sld [smem:[%s34]]
  %s36 = scalar_lea.smem %s0, 18
  %s37 = sld [smem:[%s36]]
  %s38 = scalar_lea.smem %s0, 19
  %s39 = sld [smem:[%s38]]
  %s40 = scalar_lea.smem %s0, 20
  %s41 = sld [smem:[%s40]]
  %s42 = scalar_lea.smem %s0, 21
  %s43 = sld [smem:[%s42]]
  %s44 = scalar_lea.smem %s0, 22
  %s45 = sld [smem:[%s44]]
  %s46 = scalar_lea.smem %s0, 23
  %s47 = sld [smem:[%s46]]
  %s48 = scalar_lea.smem %s0, 24
  %s49 = sld [smem:[%s48]]
  %s50 = scalar_lea.smem %s0, 25
  %s51 = sld [smem:[%s50]]
  %s52 = scalar_lea.smem %s0, 26
  %s53 = sld [smem:[%s52]]
  %s54 = scalar_lea.smem %s0, 27
  %s55 = sld [smem:[%s54]]
  %s56 = scalar_lea.smem %s0, 28
  %s57 = sld [smem:[%s56]]
  %s58 = scalar_lea.smem %s0, 29
  %s59 = sld [smem:[%s58]]
  %s60 = scalar_lea.smem %s0, 30
  %s61 = sld [smem:[%s60]]
  %s62 = scalar_lea.smem %s0, 31
  %s63 = sld [smem:[%s62]]
  %s64 = scalar_lea.smem %s0, 32
  %s65 = sld [smem:[%s64]]
  %s66 = scalar_lea.smem %s0, 33
  %s67 = sld [smem:[%s66]]
  %s68 = scalar_lea.smem %s0, 34
  %s69 = sld [smem:[%s68]]
  %s70 = scalar_lea.smem %s0, 35
  %s71 = sld [smem:[%s70]]
  %s72 = scalar_lea.smem %s0, 36
  %s73 = sld [smem:[%s72]]
  %s74 = scalar_lea.smem %s0, 37
  %s75 = sld [smem:[%s74]]
  %s76 = sld [smem:[#allocation0]]
  $region241: #{stage_block.4} parent=0
    _
  %s78 = ssub.s32 1, %s76
  %s79 = scalar_select 0, %s78, %s76
  $region1: #{stage_block.4} parent=0
    #allocation6 [shape = 'u8[512]{0}', space=vmem, size = 0x400, scoped, tag = 'input window, operand 12, single buffered']
    #allocation7 [shape = 's32[2]{0}', space=sflag, size = 0x8, scoped, tag = 'scoped memory for stage_block.4']
    #allocation8 [shape = 'u8[512]{0}', space=vmem, size = 0x400, scoped, tag = 'input window, operand 15, single buffered']
    #allocation9 [shape = 's32[1]{0}', space=sflag, size = 0x4, scoped, tag = 'scoped memory for stage_block.4']
    #allocation10 [shape = 'u8[512]{0}', space=vmem, size = 0x400, scoped, tag = 'input window, operand 17, single buffered']
    #allocation11 [shape = 'u8[512]{0}', space=vmem, size = 0x400, scoped, tag = 'input window, operand 19, single buffered']
    #allocation12 [shape = 's32[1]{0}', space=sflag, size = 0x4, scoped, tag = 'scoped memory for stage_block.4']
    #allocation13 [shape = 'u8[512]{0}', space=vmem, size = 0x400, scoped, tag = 'input window, operand 21, single buffered']
    #allocation14 [shape = 'u8[512]{0}', space=vmem, size = 0x400, scoped, tag = 'input window, operand 22, single buffered']
    #allocation15 [shape = 's32[1]{0}', space=sflag, size = 0x4, scoped, tag = 'scoped memory for stage_block.4']
    #allocation16 [shape = 'u8[512]{0}', space=vmem, size = 0x400, scoped, tag = 'input window, operand 23, single buffered']
    #allocation17 [shape = 'u8[512]{0}', space=vmem, size = 0x400, scoped, tag = 'input window, operand 24, single buffered']
    #allocation18 [shape = 's32[1]{0}', space=sflag, size = 0x4, scoped, tag = 'scoped memory for stage_block.4']
    #allocation19 [shape = 'u8[512]{0}', space=vmem, size = 0x400, scoped, tag = 'input window, operand 25, single buffered']
    #allocation20 [shape = 'u8[512]{0}', space=vmem, size = 0x400, scoped, tag = 'input window, operand 27, single buffered']
    #allocation21 [shape = 's32[1]{0}', space=sflag, size = 0x4, scoped, tag = 'scoped memory for stage_block.4']
    #allocation22 [shape = 'u8[512]{0}', space=vmem, size = 0x400, scoped, tag = 'input window, operand 28, single buffered']
    #allocation23 [shape = 'u8[512]{0}', space=vmem, size = 0x400, scoped, tag = 'input window, operand 29, single buffered']
    #allocation24 [shape = 's32[1]{0}', space=sflag, size = 0x4, scoped, tag = 'scoped memory for stage_block.4']
    #allocation25 [shape = 'u8[512]{0}', space=vmem, size = 0x400, scoped, tag = 'input window, operand 32, single buffered']
    #allocation26 [shape = 'u8[512]{0}', space=vmem, size = 0x400, scoped, tag = 'input window, operand 35, single buffered']
    #allocation27 [shape = 's32[1]{0}', space=sflag, size = 0x4, scoped, tag = 'scoped memory for stage_block.4']
    #allocation28 [shape = 'u8[512]{0}', space=vmem, size = 0x400, scoped, tag = 'input window, operand 36, single buffered']
    %80 = vsyncpa [#allocation7], 0
    %81 = vsyncpa [#allocation9], 0
    %82 = vsyncpa [#allocation12], 0
    %83 = vsyncpa [#allocation15], 0
    %84 = vsyncpa [#allocation18], 0
    %85 = vsyncpa [#allocation21], 0
    %86 = vsyncpa [#allocation24], 0
    %87 = vsyncpa [#allocation27], 0
    loop: start=0, step=1, limit=4
    $region2: #{stage_block.4} parent=1 // loop_pre_header
      _
    $region3: #{stage_block.4} parent=1 // loop_header
      %s89 = sphi 0, %s93
      %p90 = scmp.ge.s32.totalorder %s89, 4
      %s99 = sphi 0, %s101
      %s102 = sphi 0, %s99
      %s103 = sphi 0, %s102
      %s119 = sphi 0, %s103
      %s125 = sphi 0, %s127
      %s128 = sphi 0, %s125
      %s129 = sphi 0, %s128
      %s145 = sphi 0, %s129
      %s149 = sphi 0, %s149
      %s151 = sphi 0, %s149
      %s152 = sphi 0, %s151
      %s166 = sphi 0, %s152
      %s170 = sphi 0, %s170
      %s172 = sphi 0, %s170
      %s173 = sphi 0, %s172
      %s187 = sphi 0, %s173
      %s191 = sphi 0, %s191
      %s193 = sphi 0, %s191
      %s194 = sphi 0, %s193
      %s208 = sphi 0, %s194
      %s212 = sphi 0, %s212
      %s214 = sphi 0, %s212
      %s215 = sphi 0, %s214
      %s229 = sphi 0, %s215
      %s233 = sphi 0, %s233
      %s235 = sphi 0, %s233
      %s236 = sphi 0, %s235
      %s250 = sphi 0, %s236
      %s254 = sphi 0, %s254
      %s256 = sphi 0, %s254
      %s257 = sphi 0, %s256
      %s271 = sphi 0, %s257
      %s275 = sphi 0, %s275
      %s277 = sphi 0, %s275
      %s278 = sphi 0, %s277
      %s292 = sphi 0, %s278
      %s296 = sphi 0, %s296
      %s298 = sphi 0, %s296
      %s299 = sphi 0, %s298
      %s313 = sphi 0, %s299
      %s317 = sphi 0, %s317
      %s319 = sphi 0, %s317
      %s320 = sphi 0, %s319
      %s334 = sphi 0, %s320
      %s338 = sphi 0, %s338
      %s340 = sphi 0, %s338
      %s341 = sphi 0, %s340
      %s355 = sphi 0, %s341
      %s359 = sphi 0, %s359
      %s361 = sphi 0, %s359
      %s362 = sphi 0, %s361
      %s376 = sphi 0, %s362
      %s380 = sphi 0, %s380
      %s382 = sphi 0, %s380
      %s383 = sphi 0, %s382
      %s397 = sphi 0, %s383
      %s401 = sphi 0, %s401
      %s403 = sphi 0, %s401
      %s404 = sphi 0, %s403
      %s418 = sphi 0, %s404
      %s422 = sphi 0, %s422
      %s424 = sphi 0, %s422
      %s425 = sphi 0, %s424
      %s439 = sphi 0, %s425
      %s443 = sphi 0, %s443
      %s445 = sphi 0, %s443
      %s446 = sphi 0, %s445
      %s460 = sphi 0, %s446
      %s464 = sphi 0, %s464
      %s466 = sphi 0, %s464
      %s467 = sphi 0, %s466
      %s481 = sphi 0, %s467
      %s485 = sphi 0, %s485
      %s487 = sphi 0, %s485
      %s488 = sphi 0, %s487
      %s502 = sphi 0, %s488
      %s506 = sphi 0, %s506
      %s508 = sphi 0, %s506
      %s509 = sphi 0, %s508
      %s523 = sphi 0, %s509
      %s527 = sphi 0, %s527
      %s529 = sphi 0, %s527
      %s530 = sphi 0, %s529
      %s544 = sphi 0, %s530
      %s548 = sphi 0, %s548
      %s550 = sphi 0, %s548
      %s551 = sphi 0, %s550
      %s565 = sphi 0, %s551
      %s569 = sphi 0, %s569
      %s571 = sphi 0, %s569
      %s572 = sphi 0, %s571
      %s586 = sphi 0, %s572
      %s590 = sphi 0, %s590
      %s592 = sphi 0, %s590
      %s593 = sphi 0, %s592
      %s607 = sphi 0, %s593
      %s611 = sphi 0, %s611
      %s613 = sphi 0, %s611
      %s614 = sphi 0, %s613
      %s628 = sphi 0, %s614
      %s632 = sphi 0, %s632
      %s634 = sphi 0, %s632
      %s635 = sphi 0, %s634
      %s649 = sphi 0, %s635
      %s653 = sphi 0, %s653
      %s655 = sphi 0, %s653
      %s656 = sphi 0, %s655
      %s670 = sphi 0, %s656
      %s674 = sphi 0, %s674
      %s676 = sphi 0, %s674
      %s677 = sphi 0, %s676
      %s691 = sphi 0, %s677
      %s695 = sphi 0, %s695
      %s697 = sphi 0, %s695
      %s698 = sphi 0, %s697
      %s712 = sphi 0, %s698
      %s716 = sphi 0, %s716
      %s718 = sphi 0, %s716
      %s719 = sphi 0, %s718
      %s733 = sphi 0, %s719
      %s737 = sphi 0, %s737
      %s739 = sphi 0, %s737
      %s740 = sphi 0, %s739
      %s754 = sphi 0, %s740
      %s758 = sphi 0, %s758
      %s760 = sphi 0, %s758
      %s761 = sphi 0, %s760
      %s775 = sphi 0, %s761
      %s779 = sphi 0, %s779
      %s781 = sphi 0, %s779
      %s782 = sphi 0, %s781
      %s796 = sphi 0, %s782
      %s800 = sphi 0, %s800
      %s802 = sphi 0, %s800
      %s803 = sphi 0, %s802
      %s817 = sphi 0, %s803
      %s821 = sphi 0, %s821
      %s823 = sphi 0, %s821
      %s824 = sphi 0, %s823
      %s838 = sphi 0, %s824
      %s842 = sphi 0, %s842
      %s844 = sphi 0, %s842
      %s845 = sphi 0, %s844
      %s859 = sphi 0, %s845
      %s863 = sphi 0, %s863
      %s865 = sphi 0, %s863
      %s866 = sphi 0, %s865
      %s880 = sphi 0, %s866
      %s886 = sphi 0, %s888
      %s889 = sphi 0, %s886
      %s890 = sphi 0, %s889
      %s906 = sphi 0, %s890
    $region4: #{stage_block.4} parent=1 // loop_header_branch
      %92 = sbr.rel (%p90) target = $region8
    $region5: #{stage_block.4} parent=1 // loop_body
      %s94 = ssub.s32 %s89, 1
      %s95 = ssub.s32 %s89, 2
      %s96 = sadd.s32 %s89, 1
      %s97 = ssub.s32 %s89, %s96
      %p98 = scmp.eq.s32.totalorder %s97, 0
      %s100 = sadd.s32 %s99, 1
      %s101 = scalar_select %p98, %s99, %s100
      %p104 = pneg %p98
      %p105 = scmp.eq.s32.totalorder %s89, 1
      %p106 = por %p104, %p105
      %p107 = scmp.ne.s32.totalorder %s99, %s102
      %p108 = scmp.eq.s32.totalorder %s89, 0
      %p109 = por %p107, %p108
      %p110 = scmp.ne.s32.totalorder %s99, %s102
      %p111 = scmp.eq.s32.totalorder %s94, 1
      %p112 = por %p110, %p111
      %p113 = scmp.ne.s32.totalorder %s102, %s103
      %p114 = scmp.eq.s32.totalorder %s94, 0
      %p115 = por %p113, %p114
      %p116 = scmp.ne.s32.totalorder %s102, %s103
      %p117 = scmp.eq.s32.totalorder %s95, 1
      %p118 = por %p116, %p117
      %p120 = scmp.ne.s32.totalorder %s103, %s119
      %p121 = scmp.eq.s32.totalorder %s95, 0
      %p122 = por %p120, %p121
      %s123 = ssub.s32 %s89, %s96
      %p124 = scmp.eq.s32.totalorder %s123, 0
      %s126 = sadd.s32 %s125, 1
      %s127 = scalar_select %p124, %s125, %s126
      %p130 = pneg %p124
      %p131 = scmp.eq.s32.totalorder %s89, 1
      %p132 = por %p130, %p131
      %p133 = scmp.ne.s32.totalorder %s125, %s128
      %p134 = scmp.eq.s32.totalorder %s89, 0
      %p135 = por %p133, %p134
      %p136 = scmp.ne.s32.totalorder %s125, %s128
      %p137 = scmp.eq.s32.totalorder %s94, 1
      %p138 = por %p136, %p137
      %p139 = scmp.ne.s32.totalorder %s128, %s129
      %p140 = scmp.eq.s32.totalorder %s94, 0
      %p141 = por %p139, %p140
      %p142 = scmp.ne.s32.totalorder %s128, %s129
      %p143 = scmp.eq.s32.totalorder %s95, 1
      %p144 = por %p142, %p143
      %p146 = scmp.ne.s32.totalorder %s129, %s145
      %p147 = scmp.eq.s32.totalorder %s95, 0
      %p148 = por %p146, %p147
      %s150 = sadd.s32 %s149, 1
      %p153 = scmp.eq.s32.totalorder %s89, 1
      %p154 = scmp.ne.s32.totalorder %s149, %s151
      %p155 = scmp.eq.s32.totalorder %s89, 0
      %p156 = por %p154, %p155
      %p157 = scmp.ne.s32.totalorder %s149, %s151
      %p158 = scmp.eq.s32.totalorder %s94, 1
      %p159 = por %p157, %p158
      %p160 = scmp.ne.s32.totalorder %s151, %s152
      %p161 = scmp.eq.s32.totalorder %s94, 0
      %p162 = por %p160, %p161
      %p163 = scmp.ne.s32.totalorder %s151, %s152
      %p164 = scmp.eq.s32.totalorder %s95, 1
      %p165 = por %p163, %p164
      %p167 = scmp.ne.s32.totalorder %s152, %s166
      %p168 = scmp.eq.s32.totalorder %s95, 0
      %p169 = por %p167, %p168
      %s171 = sadd.s32 %s170, 1
      %p174 = scmp.eq.s32.totalorder %s89, 1
      %p175 = scmp.ne.s32.totalorder %s170, %s172
      %p176 = scmp.eq.s32.totalorder %s89, 0
      %p177 = por %p175, %p176
      %p178 = scmp.ne.s32.totalorder %s170, %s172
      %p179 = scmp.eq.s32.totalorder %s94, 1
      %p180 = por %p178, %p179
      %p181 = scmp.ne.s32.totalorder %s172, %s173
      %p182 = scmp.eq.s32.totalorder %s94, 0
      %p183 = por %p181, %p182
      %p184 = scmp.ne.s32.totalorder %s172, %s173
      %p185 = scmp.eq.s32.totalorder %s95, 1
      %p186 = por %p184, %p185
      %p188 = scmp.ne.s32.totalorder %s173, %s187
      %p189 = scmp.eq.s32.totalorder %s95, 0
      %p190 = por %p188, %p189
      %s192 = sadd.s32 %s191, 1
      %p195 = scmp.eq.s32.totalorder %s89, 1
      %p196 = scmp.ne.s32.totalorder %s191, %s193
      %p197 = scmp.eq.s32.totalorder %s89, 0
      %p198 = por %p196, %p197
      %p199 = scmp.ne.s32.totalorder %s191, %s193
      %p200 = scmp.eq.s32.totalorder %s94, 1
      %p201 = por %p199, %p200
      %p202 = scmp.ne.s32.totalorder %s193, %s194
      %p203 = scmp.eq.s32.totalorder %s94, 0
      %p204 = por %p202, %p203
      %p205 = scmp.ne.s32.totalorder %s193, %s194
      %p206 = scmp.eq.s32.totalorder %s95, 1
      %p207 = por %p205, %p206
      %p209 = scmp.ne.s32.totalorder %s194, %s208
      %p210 = scmp.eq.s32.totalorder %s95, 0
      %p211 = por %p209, %p210
      %s213 = sadd.s32 %s212, 1
      %p216 = scmp.eq.s32.totalorder %s89, 1
      %p217 = scmp.ne.s32.totalorder %s212, %s214
      %p218 = scmp.eq.s32.totalorder %s89, 0
      %p219 = por %p217, %p218
      %p220 = scmp.ne.s32.totalorder %s212, %s214
      %p221 = scmp.eq.s32.totalorder %s94, 1
      %p222 = por %p220, %p221
      %p223 = scmp.ne.s32.totalorder %s214, %s215
      %p224 = scmp.eq.s32.totalorder %s94, 0
      %p225 = por %p223, %p224
      %p226 = scmp.ne.s32.totalorder %s214, %s215
      %p227 = scmp.eq.s32.totalorder %s95, 1
      %p228 = por %p226, %p227
      %p230 = scmp.ne.s32.totalorder %s215, %s229
      %p231 = scmp.eq.s32.totalorder %s95, 0
      %p232 = por %p230, %p231
      %s234 = sadd.s32 %s233, 1
      %p237 = scmp.eq.s32.totalorder %s89, 1
      %p238 = scmp.ne.s32.totalorder %s233, %s235
      %p239 = scmp.eq.s32.totalorder %s89, 0
      %p240 = por %p238, %p239
      %p241 = scmp.ne.s32.totalorder %s233, %s235
      %p242 = scmp.eq.s32.totalorder %s94, 1
      %p243 = por %p241, %p242
      %p244 = scmp.ne.s32.totalorder %s235, %s236
      %p245 = scmp.eq.s32.totalorder %s94, 0
      %p246 = por %p244, %p245
      %p247 = scmp.ne.s32.totalorder %s235, %s236
      %p248 = scmp.eq.s32.totalorder %s95, 1
      %p249 = por %p247, %p248
      %p251 = scmp.ne.s32.totalorder %s236, %s250
      %p252 = scmp.eq.s32.totalorder %s95, 0
      %p253 = por %p251, %p252
      %s255 = sadd.s32 %s254, 1
      %p258 = scmp.eq.s32.totalorder %s89, 1
      %p259 = scmp.ne.s32.totalorder %s254, %s256
      %p260 = scmp.eq.s32.totalorder %s89, 0
      %p261 = por %p259, %p260
      %p262 = scmp.ne.s32.totalorder %s254, %s256
      %p263 = scmp.eq.s32.totalorder %s94, 1
      %p264 = por %p262, %p263
      %p265 = scmp.ne.s32.totalorder %s256, %s257
      %p266 = scmp.eq.s32.totalorder %s94, 0
      %p267 = por %p265, %p266
      %p268 = scmp.ne.s32.totalorder %s256, %s257
      %p269 = scmp.eq.s32.totalorder %s95, 1
      %p270 = por %p268, %p269
      %p272 = scmp.ne.s32.totalorder %s257, %s271
      %p273 = scmp.eq.s32.totalorder %s95, 0
      %p274 = por %p272, %p273
      %s276 = sadd.s32 %s275, 1
      %p279 = scmp.eq.s32.totalorder %s89, 1
      %p280 = scmp.ne.s32.totalorder %s275, %s277
      %p281 = scmp.eq.s32.totalorder %s89, 0
      %p282 = por %p280, %p281
      %p283 = scmp.ne.s32.totalorder %s275, %s277
      %p284 = scmp.eq.s32.totalorder %s94, 1
      %p285 = por %p283, %p284
      %p286 = scmp.ne.s32.totalorder %s277, %s278
      %p287 = scmp.eq.s32.totalorder %s94, 0
      %p288 = por %p286, %p287
      %p289 = scmp.ne.s32.totalorder %s277, %s278
      %p290 = scmp.eq.s32.totalorder %s95, 1
      %p291 = por %p289, %p290
      %p293 = scmp.ne.s32.totalorder %s278, %s292
      %p294 = scmp.eq.s32.totalorder %s95, 0
      %p295 = por %p293, %p294
      %s297 = sadd.s32 %s296, 1
      %p300 = scmp.eq.s32.totalorder %s89, 1
      %p301 = scmp.ne.s32.totalorder %s296, %s298
      %p302 = scmp.eq.s32.totalorder %s89, 0
      %p303 = por %p301, %p302
      %p304 = scmp.ne.s32.totalorder %s296, %s298
      %p305 = scmp.eq.s32.totalorder %s94, 1
      %p306 = por %p304, %p305
      %p307 = scmp.ne.s32.totalorder %s298, %s299
      %p308 = scmp.eq.s32.totalorder %s94, 0
      %p309 = por %p307, %p308
      %p310 = scmp.ne.s32.totalorder %s298, %s299
      %p311 = scmp.eq.s32.totalorder %s95, 1
      %p312 = por %p310, %p311
      %p314 = scmp.ne.s32.totalorder %s299, %s313
      %p315 = scmp.eq.s32.totalorder %s95, 0
      %p316 = por %p314, %p315
      %s318 = sadd.s32 %s317, 1
      %p321 = scmp.eq.s32.totalorder %s89, 1
      %p322 = scmp.ne.s32.totalorder %s317, %s319
      %p323 = scmp.eq.s32.totalorder %s89, 0
      %p324 = por %p322, %p323
      %p325 = scmp.ne.s32.totalorder %s317, %s319
      %p326 = scmp.eq.s32.totalorder %s94, 1
      %p327 = por %p325, %p326
      %p328 = scmp.ne.s32.totalorder %s319, %s320
      %p329 = scmp.eq.s32.totalorder %s94, 0
      %p330 = por %p328, %p329
      %p331 = scmp.ne.s32.totalorder %s319, %s320
      %p332 = scmp.eq.s32.totalorder %s95, 1
      %p333 = por %p331, %p332
      %p335 = scmp.ne.s32.totalorder %s320, %s334
      %p336 = scmp.eq.s32.totalorder %s95, 0
      %p337 = por %p335, %p336
      %s339 = sadd.s32 %s338, 1
      %p342 = scmp.eq.s32.totalorder %s89, 1
      %p343 = scmp.ne.s32.totalorder %s338, %s340
      %p344 = scmp.eq.s32.totalorder %s89, 0
      %p345 = por %p343, %p344
      %p346 = scmp.ne.s32.totalorder %s338, %s340
      %p347 = scmp.eq.s32.totalorder %s94, 1
      %p348 = por %p346, %p347
      %p349 = scmp.ne.s32.totalorder %s340, %s341
      %p350 = scmp.eq.s32.totalorder %s94, 0
      %p351 = por %p349, %p350
      %p352 = scmp.ne.s32.totalorder %s340, %s341
      %p353 = scmp.eq.s32.totalorder %s95, 1
      %p354 = por %p352, %p353
      %p356 = scmp.ne.s32.totalorder %s341, %s355
      %p357 = scmp.eq.s32.totalorder %s95, 0
      %p358 = por %p356, %p357
      %s360 = sadd.s32 %s359, 1
      %p363 = scmp.eq.s32.totalorder %s89, 1
      %p364 = scmp.ne.s32.totalorder %s359, %s361
      %p365 = scmp.eq.s32.totalorder %s89, 0
      %p366 = por %p364, %p365
      %p367 = scmp.ne.s32.totalorder %s359, %s361
      %p368 = scmp.eq.s32.totalorder %s94, 1
      %p369 = por %p367, %p368
      %p370 = scmp.ne.s32.totalorder %s361, %s362
      %p371 = scmp.eq.s32.totalorder %s94, 0
      %p372 = por %p370, %p371
      %p373 = scmp.ne.s32.totalorder %s361, %s362
      %p374 = scmp.eq.s32.totalorder %s95, 1
      %p375 = por %p373, %p374
      %p377 = scmp.ne.s32.totalorder %s362, %s376
      %p378 = scmp.eq.s32.totalorder %s95, 0
      %p379 = por %p377, %p378
      %s381 = sadd.s32 %s380, 1
      %p384 = scmp.eq.s32.totalorder %s89, 1
      %p385 = scmp.ne.s32.totalorder %s380, %s382
      %p386 = scmp.eq.s32.totalorder %s89, 0
      %p387 = por %p385, %p386
      %p388 = scmp.ne.s32.totalorder %s380, %s382
      %p389 = scmp.eq.s32.totalorder %s94, 1
      %p390 = por %p388, %p389
      %p391 = scmp.ne.s32.totalorder %s382, %s383
      %p392 = scmp.eq.s32.totalorder %s94, 0
      %p393 = por %p391, %p392
      %p394 = scmp.ne.s32.totalorder %s382, %s383
      %p395 = scmp.eq.s32.totalorder %s95, 1
      %p396 = por %p394, %p395
      %p398 = scmp.ne.s32.totalorder %s383, %s397
      %p399 = scmp.eq.s32.totalorder %s95, 0
      %p400 = por %p398, %p399
      %s402 = sadd.s32 %s401, 1
      %p405 = scmp.eq.s32.totalorder %s89, 1
      %p406 = scmp.ne.s32.totalorder %s401, %s403
      %p407 = scmp.eq.s32.totalorder %s89, 0
      %p408 = por %p406, %p407
      %p409 = scmp.ne.s32.totalorder %s401, %s403
      %p410 = scmp.eq.s32.totalorder %s94, 1
      %p411 = por %p409, %p410
      %p412 = scmp.ne.s32.totalorder %s403, %s404
      %p413 = scmp.eq.s32.totalorder %s94, 0
      %p414 = por %p412, %p413
      %p415 = scmp.ne.s32.totalorder %s403, %s404
      %p416 = scmp.eq.s32.totalorder %s95, 1
      %p417 = por %p415, %p416
      %p419 = scmp.ne.s32.totalorder %s404, %s418
      %p420 = scmp.eq.s32.totalorder %s95, 0
      %p421 = por %p419, %p420
      %s423 = sadd.s32 %s422, 1
      %p426 = scmp.eq.s32.totalorder %s89, 1
      %p427 = scmp.ne.s32.totalorder %s422, %s424
      %p428 = scmp.eq.s32.totalorder %s89, 0
      %p429 = por %p427, %p428
      %p430 = scmp.ne.s32.totalorder %s422, %s424
      %p431 = scmp.eq.s32.totalorder %s94, 1
      %p432 = por %p430, %p431
      %p433 = scmp.ne.s32.totalorder %s424, %s425
      %p434 = scmp.eq.s32.totalorder %s94, 0
      %p435 = por %p433, %p434
      %p436 = scmp.ne.s32.totalorder %s424, %s425
      %p437 = scmp.eq.s32.totalorder %s95, 1
      %p438 = por %p436, %p437
      %p440 = scmp.ne.s32.totalorder %s425, %s439
      %p441 = scmp.eq.s32.totalorder %s95, 0
      %p442 = por %p440, %p441
      %s444 = sadd.s32 %s443, 1
      %p447 = scmp.eq.s32.totalorder %s89, 1
      %p448 = scmp.ne.s32.totalorder %s443, %s445
      %p449 = scmp.eq.s32.totalorder %s89, 0
      %p450 = por %p448, %p449
      %p451 = scmp.ne.s32.totalorder %s443, %s445
      %p452 = scmp.eq.s32.totalorder %s94, 1
      %p453 = por %p451, %p452
      %p454 = scmp.ne.s32.totalorder %s445, %s446
      %p455 = scmp.eq.s32.totalorder %s94, 0
      %p456 = por %p454, %p455
      %p457 = scmp.ne.s32.totalorder %s445, %s446
      %p458 = scmp.eq.s32.totalorder %s95, 1
      %p459 = por %p457, %p458
      %p461 = scmp.ne.s32.totalorder %s446, %s460
      %p462 = scmp.eq.s32.totalorder %s95, 0
      %p463 = por %p461, %p462
      %s465 = sadd.s32 %s464, 1
      %p468 = scmp.eq.s32.totalorder %s89, 1
      %p469 = scmp.ne.s32.totalorder %s464, %s466
      %p470 = scmp.eq.s32.totalorder %s89, 0
      %p471 = por %p469, %p470
      %p472 = scmp.ne.s32.totalorder %s464, %s466
      %p473 = scmp.eq.s32.totalorder %s94, 1
      %p474 = por %p472, %p473
      %p475 = scmp.ne.s32.totalorder %s466, %s467
      %p476 = scmp.eq.s32.totalorder %s94, 0
      %p477 = por %p475, %p476
      %p478 = scmp.ne.s32.totalorder %s466, %s467
      %p479 = scmp.eq.s32.totalorder %s95, 1
      %p480 = por %p478, %p479
      %p482 = scmp.ne.s32.totalorder %s467, %s481
      %p483 = scmp.eq.s32.totalorder %s95, 0
      %p484 = por %p482, %p483
      %s486 = sadd.s32 %s485, 1
      %p489 = scmp.eq.s32.totalorder %s89, 1
      %p490 = scmp.ne.s32.totalorder %s485, %s487
      %p491 = scmp.eq.s32.totalorder %s89, 0
      %p492 = por %p490, %p491
      %p493 = scmp.ne.s32.totalorder %s485, %s487
      %p494 = scmp.eq.s32.totalorder %s94, 1
      %p495 = por %p493, %p494
      %p496 = scmp.ne.s32.totalorder %s487, %s488
      %p497 = scmp.eq.s32.totalorder %s94, 0
      %p498 = por %p496, %p497
      %p499 = scmp.ne.s32.totalorder %s487, %s488
      %p500 = scmp.eq.s32.totalorder %s95, 1
      %p501 = por %p499, %p500
      %p503 = scmp.ne.s32.totalorder %s488, %s502
      %p504 = scmp.eq.s32.totalorder %s95, 0
      %p505 = por %p503, %p504
      %s507 = sadd.s32 %s506, 1
      %p510 = scmp.eq.s32.totalorder %s89, 1
      %p511 = scmp.ne.s32.totalorder %s506, %s508
      %p512 = scmp.eq.s32.totalorder %s89, 0
      %p513 = por %p511, %p512
      %p514 = scmp.ne.s32.totalorder %s506, %s508
      %p515 = scmp.eq.s32.totalorder %s94, 1
      %p516 = por %p514, %p515
      %p517 = scmp.ne.s32.totalorder %s508, %s509
      %p518 = scmp.eq.s32.totalorder %s94, 0
      %p519 = por %p517, %p518
      %p520 = scmp.ne.s32.totalorder %s508, %s509
      %p521 = scmp.eq.s32.totalorder %s95, 1
      %p522 = por %p520, %p521
      %p524 = scmp.ne.s32.totalorder %s509, %s523
      %p525 = scmp.eq.s32.totalorder %s95, 0
      %p526 = por %p524, %p525
      %s528 = sadd.s32 %s527, 1
      %p531 = scmp.eq.s32.totalorder %s89, 1
      %p532 = scmp.ne.s32.totalorder %s527, %s529
      %p533 = scmp.eq.s32.totalorder %s89, 0
      %p534 = por %p532, %p533
      %p535 = scmp.ne.s32.totalorder %s527, %s529
      %p536 = scmp.eq.s32.totalorder %s94, 1
      %p537 = por %p535, %p536
      %p538 = scmp.ne.s32.totalorder %s529, %s530
      %p539 = scmp.eq.s32.totalorder %s94, 0
      %p540 = por %p538, %p539
      %p541 = scmp.ne.s32.totalorder %s529, %s530
      %p542 = scmp.eq.s32.totalorder %s95, 1
      %p543 = por %p541, %p542
      %p545 = scmp.ne.s32.totalorder %s530, %s544
      %p546 = scmp.eq.s32.totalorder %s95, 0
      %p547 = por %p545, %p546
      %s549 = sadd.s32 %s548, 1
      %p552 = scmp.eq.s32.totalorder %s89, 1
      %p553 = scmp.ne.s32.totalorder %s548, %s550
      %p554 = scmp.eq.s32.totalorder %s89, 0
      %p555 = por %p553, %p554
      %p556 = scmp.ne.s32.totalorder %s548, %s550
      %p557 = scmp.eq.s32.totalorder %s94, 1
      %p558 = por %p556, %p557
      %p559 = scmp.ne.s32.totalorder %s550, %s551
      %p560 = scmp.eq.s32.totalorder %s94, 0
      %p561 = por %p559, %p560
      %p562 = scmp.ne.s32.totalorder %s550, %s551
      %p563 = scmp.eq.s32.totalorder %s95, 1
      %p564 = por %p562, %p563
      %p566 = scmp.ne.s32.totalorder %s551, %s565
      %p567 = scmp.eq.s32.totalorder %s95, 0
      %p568 = por %p566, %p567
      %s570 = sadd.s32 %s569, 1
      %p573 = scmp.eq.s32.totalorder %s89, 1
      %p574 = scmp.ne.s32.totalorder %s569, %s571
      %p575 = scmp.eq.s32.totalorder %s89, 0
      %p576 = por %p574, %p575
      %p577 = scmp.ne.s32.totalorder %s569, %s571
      %p578 = scmp.eq.s32.totalorder %s94, 1
      %p579 = por %p577, %p578
      %p580 = scmp.ne.s32.totalorder %s571, %s572
      %p581 = scmp.eq.s32.totalorder %s94, 0
      %p582 = por %p580, %p581
      %p583 = scmp.ne.s32.totalorder %s571, %s572
      %p584 = scmp.eq.s32.totalorder %s95, 1
      %p585 = por %p583, %p584
      %p587 = scmp.ne.s32.totalorder %s572, %s586
      %p588 = scmp.eq.s32.totalorder %s95, 0
      %p589 = por %p587, %p588
      %s591 = sadd.s32 %s590, 1
      %p594 = scmp.eq.s32.totalorder %s89, 1
      %p595 = scmp.ne.s32.totalorder %s590, %s592
      %p596 = scmp.eq.s32.totalorder %s89, 0
      %p597 = por %p595, %p596
      %p598 = scmp.ne.s32.totalorder %s590, %s592
      %p599 = scmp.eq.s32.totalorder %s94, 1
      %p600 = por %p598, %p599
      %p601 = scmp.ne.s32.totalorder %s592, %s593
      %p602 = scmp.eq.s32.totalorder %s94, 0
      %p603 = por %p601, %p602
      %p604 = scmp.ne.s32.totalorder %s592, %s593
      %p605 = scmp.eq.s32.totalorder %s95, 1
      %p606 = por %p604, %p605
      %p608 = scmp.ne.s32.totalorder %s593, %s607
      %p609 = scmp.eq.s32.totalorder %s95, 0
      %p610 = por %p608, %p609
      %s612 = sadd.s32 %s611, 1
      %p615 = scmp.eq.s32.totalorder %s89, 1
      %p616 = scmp.ne.s32.totalorder %s611, %s613
      %p617 = scmp.eq.s32.totalorder %s89, 0
      %p618 = por %p616, %p617
      %p619 = scmp.ne.s32.totalorder %s611, %s613
      %p620 = scmp.eq.s32.totalorder %s94, 1
      %p621 = por %p619, %p620
      %p622 = scmp.ne.s32.totalorder %s613, %s614
      %p623 = scmp.eq.s32.totalorder %s94, 0
      %p624 = por %p622, %p623
      %p625 = scmp.ne.s32.totalorder %s613, %s614
      %p626 = scmp.eq.s32.totalorder %s95, 1
      %p627 = por %p625, %p626
      %p629 = scmp.ne.s32.totalorder %s614, %s628
      %p630 = scmp.eq.s32.totalorder %s95, 0
      %p631 = por %p629, %p630
      %s633 = sadd.s32 %s632, 1
      %p636 = scmp.eq.s32.totalorder %s89, 1
      %p637 = scmp.ne.s32.totalorder %s632, %s634
      %p638 = scmp.eq.s32.totalorder %s89, 0
      %p639 = por %p637, %p638
      %p640 = scmp.ne.s32.totalorder %s632, %s634
      %p641 = scmp.eq.s32.totalorder %s94, 1
      %p642 = por %p640, %p641
      %p643 = scmp.ne.s32.totalorder %s634, %s635
      %p644 = scmp.eq.s32.totalorder %s94, 0
      %p645 = por %p643, %p644
      %p646 = scmp.ne.s32.totalorder %s634, %s635
      %p647 = scmp.eq.s32.totalorder %s95, 1
      %p648 = por %p646, %p647
      %p650 = scmp.ne.s32.totalorder %s635, %s649
      %p651 = scmp.eq.s32.totalorder %s95, 0
      %p652 = por %p650, %p651
      %s654 = sadd.s32 %s653, 1
      %p657 = scmp.eq.s32.totalorder %s89, 1
      %p658 = scmp.ne.s32.totalorder %s653, %s655
      %p659 = scmp.eq.s32.totalorder %s89, 0
      %p660 = por %p658, %p659
      %p661 = scmp.ne.s32.totalorder %s653, %s655
      %p662 = scmp.eq.s32.totalorder %s94, 1
      %p663 = por %p661, %p662
      %p664 = scmp.ne.s32.totalorder %s655, %s656
      %p665 = scmp.eq.s32.totalorder %s94, 0
      %p666 = por %p664, %p665
      %p667 = scmp.ne.s32.totalorder %s655, %s656
      %p668 = scmp.eq.s32.totalorder %s95, 1
      %p669 = por %p667, %p668
      %p671 = scmp.ne.s32.totalorder %s656, %s670
      %p672 = scmp.eq.s32.totalorder %s95, 0
      %p673 = por %p671, %p672
      %s675 = sadd.s32 %s674, 1
      %p678 = scmp.eq.s32.totalorder %s89, 1
      %p679 = scmp.ne.s32.totalorder %s674, %s676
      %p680 = scmp.eq.s32.totalorder %s89, 0
      %p681 = por %p679, %p680
      %p682 = scmp.ne.s32.totalorder %s674, %s676
      %p683 = scmp.eq.s32.totalorder %s94, 1
      %p684 = por %p682, %p683
      %p685 = scmp.ne.s32.totalorder %s676, %s677
      %p686 = scmp.eq.s32.totalorder %s94, 0
      %p687 = por %p685, %p686
      %p688 = scmp.ne.s32.totalorder %s676, %s677
      %p689 = scmp.eq.s32.totalorder %s95, 1
      %p690 = por %p688, %p689
      %p692 = scmp.ne.s32.totalorder %s677, %s691
      %p693 = scmp.eq.s32.totalorder %s95, 0
      %p694 = por %p692, %p693
      %s696 = sadd.s32 %s695, 1
      %p699 = scmp.eq.s32.totalorder %s89, 1
      %p700 = scmp.ne.s32.totalorder %s695, %s697
      %p701 = scmp.eq.s32.totalorder %s89, 0
      %p702 = por %p700, %p701
      %p703 = scmp.ne.s32.totalorder %s695, %s697
      %p704 = scmp.eq.s32.totalorder %s94, 1
      %p705 = por %p703, %p704
      %p706 = scmp.ne.s32.totalorder %s697, %s698
      %p707 = scmp.eq.s32.totalorder %s94, 0
      %p708 = por %p706, %p707
      %p709 = scmp.ne.s32.totalorder %s697, %s698
      %p710 = scmp.eq.s32.totalorder %s95, 1
      %p711 = por %p709, %p710
      %p713 = scmp.ne.s32.totalorder %s698, %s712
      %p714 = scmp.eq.s32.totalorder %s95, 0
      %p715 = por %p713, %p714
      %s717 = sadd.s32 %s716, 1
      %p720 = scmp.eq.s32.totalorder %s89, 1
      %p721 = scmp.ne.s32.totalorder %s716, %s718
      %p722 = scmp.eq.s32.totalorder %s89, 0
      %p723 = por %p721, %p722
      %p724 = scmp.ne.s32.totalorder %s716, %s718
      %p725 = scmp.eq.s32.totalorder %s94, 1
      %p726 = por %p724, %p725
      %p727 = scmp.ne.s32.totalorder %s718, %s719
      %p728 = scmp.eq.s32.totalorder %s94, 0
      %p729 = por %p727, %p728
      %p730 = scmp.ne.s32.totalorder %s718, %s719
      %p731 = scmp.eq.s32.totalorder %s95, 1
      %p732 = por %p730, %p731
      %p734 = scmp.ne.s32.totalorder %s719, %s733
      %p735 = scmp.eq.s32.totalorder %s95, 0
      %p736 = por %p734, %p735
      %s738 = sadd.s32 %s737, 1
      %p741 = scmp.eq.s32.totalorder %s89, 1
      %p742 = scmp.ne.s32.totalorder %s737, %s739
      %p743 = scmp.eq.s32.totalorder %s89, 0
      %p744 = por %p742, %p743
      %p745 = scmp.ne.s32.totalorder %s737, %s739
      %p746 = scmp.eq.s32.totalorder %s94, 1
      %p747 = por %p745, %p746
      %p748 = scmp.ne.s32.totalorder %s739, %s740
      %p749 = scmp.eq.s32.totalorder %s94, 0
      %p750 = por %p748, %p749
      %p751 = scmp.ne.s32.totalorder %s739, %s740
      %p752 = scmp.eq.s32.totalorder %s95, 1
      %p753 = por %p751, %p752
      %p755 = scmp.ne.s32.totalorder %s740, %s754
      %p756 = scmp.eq.s32.totalorder %s95, 0
      %p757 = por %p755, %p756
      %s759 = sadd.s32 %s758, 1
      %p762 = scmp.eq.s32.totalorder %s89, 1
      %p763 = scmp.ne.s32.totalorder %s758, %s760
      %p764 = scmp.eq.s32.totalorder %s89, 0
      %p765 = por %p763, %p764
      %p766 = scmp.ne.s32.totalorder %s758, %s760
      %p767 = scmp.eq.s32.totalorder %s94, 1
      %p768 = por %p766, %p767
      %p769 = scmp.ne.s32.totalorder %s760, %s761
      %p770 = scmp.eq.s32.totalorder %s94, 0
      %p771 = por %p769, %p770
      %p772 = scmp.ne.s32.totalorder %s760, %s761
      %p773 = scmp.eq.s32.totalorder %s95, 1
      %p774 = por %p772, %p773
      %p776 = scmp.ne.s32.totalorder %s761, %s775
      %p777 = scmp.eq.s32.totalorder %s95, 0
      %p778 = por %p776, %p777
      %s780 = sadd.s32 %s779, 1
      %p783 = scmp.eq.s32.totalorder %s89, 1
      %p784 = scmp.ne.s32.totalorder %s779, %s781
      %p785 = scmp.eq.s32.totalorder %s89, 0
      %p786 = por %p784, %p785
      %p787 = scmp.ne.s32.totalorder %s779, %s781
      %p788 = scmp.eq.s32.totalorder %s94, 1
      %p789 = por %p787, %p788
      %p790 = scmp.ne.s32.totalorder %s781, %s782
      %p791 = scmp.eq.s32.totalorder %s94, 0
      %p792 = por %p790, %p791
      %p793 = scmp.ne.s32.totalorder %s781, %s782
      %p794 = scmp.eq.s32.totalorder %s95, 1
      %p795 = por %p793, %p794
      %p797 = scmp.ne.s32.totalorder %s782, %s796
      %p798 = scmp.eq.s32.totalorder %s95, 0
      %p799 = por %p797, %p798
      %s801 = sadd.s32 %s800, 1
      %p804 = scmp.eq.s32.totalorder %s89, 1
      %p805 = scmp.ne.s32.totalorder %s800, %s802
      %p806 = scmp.eq.s32.totalorder %s89, 0
      %p807 = por %p805, %p806
      %p808 = scmp.ne.s32.totalorder %s800, %s802
      %p809 = scmp.eq.s32.totalorder %s94, 1
      %p810 = por %p808, %p809
      %p811 = scmp.ne.s32.totalorder %s802, %s803
      %p812 = scmp.eq.s32.totalorder %s94, 0
      %p813 = por %p811, %p812
      %p814 = scmp.ne.s32.totalorder %s802, %s803
      %p815 = scmp.eq.s32.totalorder %s95, 1
      %p816 = por %p814, %p815
      %p818 = scmp.ne.s32.totalorder %s803, %s817
      %p819 = scmp.eq.s32.totalorder %s95, 0
      %p820 = por %p818, %p819
      %s822 = sadd.s32 %s821, 1
      %p825 = scmp.eq.s32.totalorder %s89, 1
      %p826 = scmp.ne.s32.totalorder %s821, %s823
      %p827 = scmp.eq.s32.totalorder %s89, 0
      %p828 = por %p826, %p827
      %p829 = scmp.ne.s32.totalorder %s821, %s823
      %p830 = scmp.eq.s32.totalorder %s94, 1
      %p831 = por %p829, %p830
      %p832 = scmp.ne.s32.totalorder %s823, %s824
      %p833 = scmp.eq.s32.totalorder %s94, 0
      %p834 = por %p832, %p833
      %p835 = scmp.ne.s32.totalorder %s823, %s824
      %p836 = scmp.eq.s32.totalorder %s95, 1
      %p837 = por %p835, %p836
      %p839 = scmp.ne.s32.totalorder %s824, %s838
      %p840 = scmp.eq.s32.totalorder %s95, 0
      %p841 = por %p839, %p840
      %s843 = sadd.s32 %s842, 1
      %p846 = scmp.eq.s32.totalorder %s89, 1
      %p847 = scmp.ne.s32.totalorder %s842, %s844
      %p848 = scmp.eq.s32.totalorder %s89, 0
      %p849 = por %p847, %p848
      %p850 = scmp.ne.s32.totalorder %s842, %s844
      %p851 = scmp.eq.s32.totalorder %s94, 1
      %p852 = por %p850, %p851
      %p853 = scmp.ne.s32.totalorder %s844, %s845
      %p854 = scmp.eq.s32.totalorder %s94, 0
      %p855 = por %p853, %p854
      %p856 = scmp.ne.s32.totalorder %s844, %s845
      %p857 = scmp.eq.s32.totalorder %s95, 1
      %p858 = por %p856, %p857
      %p860 = scmp.ne.s32.totalorder %s845, %s859
      %p861 = scmp.eq.s32.totalorder %s95, 0
      %p862 = por %p860, %p861
      %s864 = sadd.s32 %s863, 1
      %p867 = scmp.eq.s32.totalorder %s89, 1
      %p868 = scmp.ne.s32.totalorder %s863, %s865
      %p869 = scmp.eq.s32.totalorder %s89, 0
      %p870 = por %p868, %p869
      %p871 = scmp.ne.s32.totalorder %s863, %s865
      %p872 = scmp.eq.s32.totalorder %s94, 1
      %p873 = por %p871, %p872
      %p874 = scmp.ne.s32.totalorder %s865, %s866
      %p875 = scmp.eq.s32.totalorder %s94, 0
      %p876 = por %p874, %p875
      %p877 = scmp.ne.s32.totalorder %s865, %s866
      %p878 = scmp.eq.s32.totalorder %s95, 1
      %p879 = por %p877, %p878
      %p881 = scmp.ne.s32.totalorder %s866, %s880
      %p882 = scmp.eq.s32.totalorder %s95, 0
      %p883 = por %p881, %p882
      %s884 = ssub.s32 %s89, %s96
      %p885 = scmp.eq.s32.totalorder %s884, 0
      %s887 = sadd.s32 %s886, 1
      %s888 = scalar_select %p885, %s886, %s887
      %p891 = pneg %p885
      %p892 = scmp.eq.s32.totalorder %s89, 1
      %p893 = por %p891, %p892
      %p894 = scmp.ne.s32.totalorder %s886, %s889
      %p895 = scmp.eq.s32.totalorder %s89, 0
      %p896 = por %p894, %p895
      %p897 = scmp.ne.s32.totalorder %s886, %s889
      %p898 = scmp.eq.s32.totalorder %s94, 1
      %p899 = por %p897, %p898
      %p900 = scmp.ne.s32.totalorder %s889, %s890
      %p901 = scmp.eq.s32.totalorder %s94, 0
      %p902 = por %p900, %p901
      %p903 = scmp.ne.s32.totalorder %s889, %s890
      %p904 = scmp.eq.s32.totalorder %s95, 1
      %p905 = por %p903, %p904
      %p907 = scmp.ne.s32.totalorder %s890, %s906
      %p908 = scmp.eq.s32.totalorder %s95, 0
      %p909 = por %p907, %p908
      %p910 = scmp.le.s32.totalorder 1, %s89
      %p911 = scmp.lt.s32.totalorder %s89, 3
      %p912 = pnand %p910, %p911
      %p913 = pneg %p912
      // Predicated region
      $region9: #{stage_block.4} parent=5 // pred_check
        _
      $region10: #{stage_block.4} parent=5 // pred_check_branch
        %915 = sbr.rel (%p912) target = $region12
      $region11: #{stage_block.4} parent=5 // pred_region
        %s916 = ssub.s32 %s89, 1
        // Predicated region
        $region13: #{stage_block.4} parent=11 // pred_check
          %p917 = pneg %p162
        $region14: #{stage_block.4} parent=11 // pred_check_branch
          %919 = sbr.rel (%p917) target = $region16
        $region15: #{stage_block.4} parent=11 // pred_region
          _
        $region16: #{stage_block.4} parent=11 // pred_fallthru
          _
        // Predicated region
        $region17: #{stage_block.4} parent=11 // pred_check
          %p920 = pneg %p183
        $region18: #{stage_block.4} parent=11 // pred_check_branch
          %922 = sbr.rel (%p920) target = $region20
        $region19: #{stage_block.4} parent=11 // pred_region
          _
        $region20: #{stage_block.4} parent=11 // pred_fallthru
          _
        // Predicated region
        $region21: #{stage_block.4} parent=11 // pred_check
          %p923 = pneg %p204
        $region22: #{stage_block.4} parent=11 // pred_check_branch
          %925 = sbr.rel (%p923) target = $region24
        $region23: #{stage_block.4} parent=11 // pred_region
          _
        $region24: #{stage_block.4} parent=11 // pred_fallthru
          _
        // Predicated region
        $region25: #{stage_block.4} parent=11 // pred_check
          %p926 = pneg %p225
        $region26: #{stage_block.4} parent=11 // pred_check_branch
          %928 = sbr.rel (%p926) target = $region28
        $region27: #{stage_block.4} parent=11 // pred_region
          _
        $region28: #{stage_block.4} parent=11 // pred_fallthru
          _
        // Predicated region
        $region29: #{stage_block.4} parent=11 // pred_check
          %p929 = pneg %p246
        $region30: #{stage_block.4} parent=11 // pred_check_branch
          %931 = sbr.rel (%p929) target = $region32
        $region31: #{stage_block.4} parent=11 // pred_region
          _
        $region32: #{stage_block.4} parent=11 // pred_fallthru
          _
        // Predicated region
        $region33: #{stage_block.4} parent=11 // pred_check
          %p932 = pneg %p267
        $region34: #{stage_block.4} parent=11 // pred_check_branch
          %934 = sbr.rel (%p932) target = $region36
        $region35: #{stage_block.4} parent=11 // pred_region
          _
        $region36: #{stage_block.4} parent=11 // pred_fallthru
          _
        // Predicated region
        $region37: #{stage_block.4} parent=11 // pred_check
          %p935 = pneg %p288
        $region38: #{stage_block.4} parent=11 // pred_check_branch
          %937 = sbr.rel (%p935) target = $region40
        $region39: #{stage_block.4} parent=11 // pred_region
          _
        $region40: #{stage_block.4} parent=11 // pred_fallthru
          _
        // Predicated region
        $region41: #{stage_block.4} parent=11 // pred_check
          %p938 = pneg %p309
        $region42: #{stage_block.4} parent=11 // pred_check_branch
          %940 = sbr.rel (%p938) target = $region44
        $region43: #{stage_block.4} parent=11 // pred_region
          _
        $region44: #{stage_block.4} parent=11 // pred_fallthru
          _
        // Predicated region
        $region45: #{stage_block.4} parent=11 // pred_check
          %p941 = pneg %p330
        $region46: #{stage_block.4} parent=11 // pred_check_branch
          %943 = sbr.rel (%p941) target = $region48
        $region47: #{stage_block.4} parent=11 // pred_region
          _
        $region48: #{stage_block.4} parent=11 // pred_fallthru
          _
        // Predicated region
        $region49: #{stage_block.4} parent=11 // pred_check
          %p944 = pneg %p351
        $region50: #{stage_block.4} parent=11 // pred_check_branch
          %946 = sbr.rel (%p944) target = $region52
        $region51: #{stage_block.4} parent=11 // pred_region
          _
        $region52: #{stage_block.4} parent=11 // pred_fallthru
          _
        // Predicated region
        $region53: #{stage_block.4} parent=11 // pred_check
          %p947 = pneg %p372
        $region54: #{stage_block.4} parent=11 // pred_check_branch
          %949 = sbr.rel (%p947) target = $region56
        $region55: #{stage_block.4} parent=11 // pred_region
          %s951 = ssub.s32 16, 16
          %952 = vsyncadd [#allocation7], %s951
          %s954 = sshll.u32 [#allocation6], 4
          %s955 = int_to_ptr.vmem [resolvable:$true] %s954
          %957 = dma.hbm_to_vmem [thread:$0]  %s25, 16, %s955, [#allocation7]
        $region56: #{stage_block.4} parent=11 // pred_fallthru
          _
        // Predicated region
        $region57: #{stage_block.4} parent=11 // pred_check
          %p958 = pneg %p393
        $region58: #{stage_block.4} parent=11 // pred_check_branch
          %960 = sbr.rel (%p958) target = $region60
        $region59: #{stage_block.4} parent=11 // pred_region
          _
        $region60: #{stage_block.4} parent=11 // pred_fallthru
          _
        // Predicated region
        $region61: #{stage_block.4} parent=11 // pred_check
          %p961 = pneg %p414
        $region62: #{stage_block.4} parent=11 // pred_check_branch
          %963 = sbr.rel (%p961) target = $region64
        $region63: #{stage_block.4} parent=11 // pred_region
          _
        $region64: #{stage_block.4} parent=11 // pred_fallthru
          _
        // Predicated region
        $region65: #{stage_block.4} parent=11 // pred_check
          %p964 = pneg %p435
        $region66: #{stage_block.4} parent=11 // pred_check_branch
          %966 = sbr.rel (%p964) target = $region68
        $region67: #{stage_block.4} parent=11 // pred_region
          %s968 = ssub.s32 16, 16
          %969 = vsyncadd [#allocation9], %s968
          %s971 = sshll.u32 [#allocation8], 4
          %s972 = int_to_ptr.vmem [resolvable:$true] %s971
          %974 = dma.hbm_to_vmem [thread:$0]  %s31, 16, %s972, [#allocation9]
        $region68: #{stage_block.4} parent=11 // pred_fallthru
          _
        // Predicated region
        $region69: #{stage_block.4} parent=11 // pred_check
          %p975 = pneg %p456
        $region70: #{stage_block.4} parent=11 // pred_check_branch
          %977 = sbr.rel (%p975) target = $region72
        $region71: #{stage_block.4} parent=11 // pred_region
          _
        $region72: #{stage_block.4} parent=11 // pred_fallthru
          _
        // Predicated region
        $region73: #{stage_block.4} parent=11 // pred_check
          %p978 = pneg %p477
        $region74: #{stage_block.4} parent=11 // pred_check_branch
          %980 = sbr.rel (%p978) target = $region76
        $region75: #{stage_block.4} parent=11 // pred_region
          %s982 = ssub.s32 16, 16
          %983 = vsyncadd [#allocation9], %s982
          %s985 = sshll.u32 [#allocation10], 4
          %s986 = int_to_ptr.vmem [resolvable:$true] %s985
          %988 = dma.hbm_to_vmem [thread:$0]  %s35, 16, %s986, [#allocation9]
        $region76: #{stage_block.4} parent=11 // pred_fallthru
          _
        // Predicated region
        $region77: #{stage_block.4} parent=11 // pred_check
          %p989 = pneg %p498
        $region78: #{stage_block.4} parent=11 // pred_check_branch
          %991 = sbr.rel (%p989) target = $region80
        $region79: #{stage_block.4} parent=11 // pred_region
          _
        $region80: #{stage_block.4} parent=11 // pred_fallthru
          _
        // Predicated region
        $region81: #{stage_block.4} parent=11 // pred_check
          %p992 = pneg %p519
        $region82: #{stage_block.4} parent=11 // pred_check_branch
          %994 = sbr.rel (%p992) target = $region84
        $region83: #{stage_block.4} parent=11 // pred_region
          %s996 = ssub.s32 16, 16
          %997 = vsyncadd [#allocation12], %s996
          %s999 = sshll.u32 [#allocation11], 4
          %s1000 = int_to_ptr.vmem [resolvable:$true] %s999
          %1002 = dma.hbm_to_vmem [thread:$0]  %s39, 16, %s1000, [#allocation12]
        $region84: #{stage_block.4} parent=11 // pred_fallthru
          _
        // Predicated region
        $region85: #{stage_block.4} parent=11 // pred_check
          %p1003 = pneg %p540
        $region86: #{stage_block.4} parent=11 // pred_check_branch
          %1005 = sbr.rel (%p1003) target = $region88
        $region87: #{stage_block.4} parent=11 // pred_region
          _
        $region88: #{stage_block.4} parent=11 // pred_fallthru
          _
        // Predicated region
        $region89: #{stage_block.4} parent=11 // pred_check
          %p1006 = pneg %p561
        $region90: #{stage_block.4} parent=11 // pred_check_branch
          %1008 = sbr.rel (%p1006) target = $region92
        $region91: #{stage_block.4} parent=11 // pred_region
          %s1010 = ssub.s32 16, 16
          %1011 = vsyncadd [#allocation12], %s1010
          %s1013 = sshll.u32 [#allocation13], 4
          %s1014 = int_to_ptr.vmem [resolvable:$true] %s1013
          %1016 = dma.hbm_to_vmem [thread:$0]  %s43, 16, %s1014, [#allocation12]
        $region92: #{stage_block.4} parent=11 // pred_fallthru
          _
        // Predicated region
        $region93: #{stage_block.4} parent=11 // pred_check
          %p1017 = pneg %p582
        $region94: #{stage_block.4} parent=11 // pred_check_branch
          %1019 = sbr.rel (%p1017) target = $region96
        $region95: #{stage_block.4} parent=11 // pred_region
          %s1021 = ssub.s32 16, 16
          %1022 = vsyncadd [#allocation15], %s1021
          %s1024 = sshll.u32 [#allocation14], 4
          %s1025 = int_to_ptr.vmem [resolvable:$true] %s1024
          %1027 = dma.hbm_to_vmem [thread:$0]  %s45, 16, %s1025, [#allocation15]
        $region96: #{stage_block.4} parent=11 // pred_fallthru
          _
        // Predicated region
        $region97: #{stage_block.4} parent=11 // pred_check
          %p1028 = pneg %p603
        $region98: #{stage_block.4} parent=11 // pred_check_branch
          %1030 = sbr.rel (%p1028) target = $region100
        $region99: #{stage_block.4} parent=11 // pred_region
          %s1032 = ssub.s32 16, 16
          %1033 = vsyncadd [#allocation15], %s1032
          %s1035 = sshll.u32 [#allocation16], 4
          %s1036 = int_to_ptr.vmem [resolvable:$true] %s1035
          %1038 = dma.hbm_to_vmem [thread:$0]  %s47, 16, %s1036, [#allocation15]
        $region100: #{stage_block.4} parent=11 // pred_fallthru
          _
        // Predicated region
        $region101: #{stage_block.4} parent=11 // pred_check
          %p1039 = pneg %p624
        $region102: #{stage_block.4} parent=11 // pred_check_branch
          %1041 = sbr.rel (%p1039) target = $region104
        $region103: #{stage_block.4} parent=11 // pred_region
          %s1043 = ssub.s32 16, 16
          %1044 = vsyncadd [#allocation18], %s1043
          %s1046 = sshll.u32 [#allocation17], 4
          %s1047 = int_to_ptr.vmem [resolvable:$true] %s1046
          %1049 = dma.hbm_to_vmem [thread:$0]  %s49, 16, %s1047, [#allocation18]
        $region104: #{stage_block.4} parent=11 // pred_fallthru
          _
        // Predicated region
        $region105: #{stage_block.4} parent=11 // pred_check
          %p1050 = pneg %p645
        $region106: #{stage_block.4} parent=11 // pred_check_branch
          %1052 = sbr.rel (%p1050) target = $region108
        $region107: #{stage_block.4} parent=11 // pred_region
          %s1054 = ssub.s32 16, 16
          %1055 = vsyncadd [#allocation18], %s1054
          %s1057 = sshll.u32 [#allocation19], 4
          %s1058 = int_to_ptr.vmem [resolvable:$true] %s1057
          %1060 = dma.hbm_to_vmem [thread:$0]  %s51, 16, %s1058, [#allocation18]
        $region108: #{stage_block.4} parent=11 // pred_fallthru
          _
        // Predicated region
        $region109: #{stage_block.4} parent=11 // pred_check
          %p1061 = pneg %p666
        $region110: #{stage_block.4} parent=11 // pred_check_branch
          %1063 = sbr.rel (%p1061) target = $region112
        $region111: #{stage_block.4} parent=11 // pred_region
          _
        $region112: #{stage_block.4} parent=11 // pred_fallthru
          _
        // Predicated region
        $region113: #{stage_block.4} parent=11 // pred_check
          %p1064 = pneg %p687
        $region114: #{stage_block.4} parent=11 // pred_check_branch
          %1066 = sbr.rel (%p1064) target = $region116
        $region115: #{stage_block.4} parent=11 // pred_region
          %s1068 = ssub.s32 16, 16
          %1069 = vsyncadd [#allocation21], %s1068
          %s1071 = sshll.u32 [#allocation20], 4
          %s1072 = int_to_ptr.vmem [resolvable:$true] %s1071
          %1074 = dma.hbm_to_vmem [thread:$0]  %s55, 16, %s1072, [#allocation21]
        $region116: #{stage_block.4} parent=11 // pred_fallthru
          _
        // Predicated region
        $region117: #{stage_block.4} parent=11 // pred_check
          %p1075 = pneg %p708
        $region118: #{stage_block.4} parent=11 // pred_check_branch
          %1077 = sbr.rel (%p1075) target = $region120
        $region119: #{stage_block.4} parent=11 // pred_region
          %s1079 = ssub.s32 16, 16
          %1080 = vsyncadd [#allocation21], %s1079
          %s1082 = sshll.u32 [#allocation22], 4
          %s1083 = int_to_ptr.vmem [resolvable:$true] %s1082
          %1085 = dma.hbm_to_vmem [thread:$0]  %s57, 16, %s1083, [#allocation21]
        $region120: #{stage_block.4} parent=11 // pred_fallthru
          _
        // Predicated region
        $region121: #{stage_block.4} parent=11 // pred_check
          %p1086 = pneg %p729
        $region122: #{stage_block.4} parent=11 // pred_check_branch
          %1088 = sbr.rel (%p1086) target = $region124
        $region123: #{stage_block.4} parent=11 // pred_region
          %s1090 = ssub.s32 16, 16
          %1091 = vsyncadd [#allocation24], %s1090
          %s1093 = sshll.u32 [#allocation23], 4
          %s1094 = int_to_ptr.vmem [resolvable:$true] %s1093
          %1096 = dma.hbm_to_vmem [thread:$0]  %s59, 16, %s1094, [#allocation24]
        $region124: #{stage_block.4} parent=11 // pred_fallthru
          _
        // Predicated region
        $region125: #{stage_block.4} parent=11 // pred_check
          %p1097 = pneg %p750
        $region126: #{stage_block.4} parent=11 // pred_check_branch
          %1099 = sbr.rel (%p1097) target = $region128
        $region127: #{stage_block.4} parent=11 // pred_region
          _
        $region128: #{stage_block.4} parent=11 // pred_fallthru
          _
        // Predicated region
        $region129: #{stage_block.4} parent=11 // pred_check
          %p1100 = pneg %p771
        $region130: #{stage_block.4} parent=11 // pred_check_branch
          %1102 = sbr.rel (%p1100) target = $region132
        $region131: #{stage_block.4} parent=11 // pred_region
          _
        $region132: #{stage_block.4} parent=11 // pred_fallthru
          _
        // Predicated region
        $region133: #{stage_block.4} parent=11 // pred_check
          %p1103 = pneg %p792
        $region134: #{stage_block.4} parent=11 // pred_check_branch
          %1105 = sbr.rel (%p1103) target = $region136
        $region135: #{stage_block.4} parent=11 // pred_region
          %s1107 = ssub.s32 16, 16
          %1108 = vsyncadd [#allocation24], %s1107
          %s1110 = sshll.u32 [#allocation25], 4
          %s1111 = int_to_ptr.vmem [resolvable:$true] %s1110
          %1113 = dma.hbm_to_vmem [thread:$0]  %s65, 16, %s1111, [#allocation24]
        $region136: #{stage_block.4} parent=11 // pred_fallthru
          _
        // Predicated region
        $region137: #{stage_block.4} parent=11 // pred_check
          %p1114 = pneg %p813
        $region138: #{stage_block.4} parent=11 // pred_check_branch
          %1116 = sbr.rel (%p1114) target = $region140
        $region139: #{stage_block.4} parent=11 // pred_region
          _
        $region140: #{stage_block.4} parent=11 // pred_fallthru
          _
        // Predicated region
        $region141: #{stage_block.4} parent=11 // pred_check
          %p1117 = pneg %p834
        $region142: #{stage_block.4} parent=11 // pred_check_branch
          %1119 = sbr.rel (%p1117) target = $region144
        $region143: #{stage_block.4} parent=11 // pred_region
          _
        $region144: #{stage_block.4} parent=11 // pred_fallthru
          _
        // Predicated region
        $region145: #{stage_block.4} parent=11 // pred_check
          %p1120 = pneg %p855
        $region146: #{stage_block.4} parent=11 // pred_check_branch
          %1122 = sbr.rel (%p1120) target = $region148
        $region147: #{stage_block.4} parent=11 // pred_region
          %s1124 = ssub.s32 16, 16
          %1125 = vsyncadd [#allocation27], %s1124
          %s1127 = sshll.u32 [#allocation26], 4
          %s1128 = int_to_ptr.vmem [resolvable:$true] %s1127
          %1130 = dma.hbm_to_vmem [thread:$0]  %s71, 16, %s1128, [#allocation27]
        $region148: #{stage_block.4} parent=11 // pred_fallthru
          _
        // Predicated region
        $region149: #{stage_block.4} parent=11 // pred_check
          %p1131 = pneg %p876
        $region150: #{stage_block.4} parent=11 // pred_check_branch
          %1133 = sbr.rel (%p1131) target = $region152
        $region151: #{stage_block.4} parent=11 // pred_region
          %s1135 = ssub.s32 16, 16
          %1136 = vsyncadd [#allocation27], %s1135
          %s1138 = sshll.u32 [#allocation28], 4
          %s1139 = int_to_ptr.vmem [resolvable:$true] %s1138
          %1141 = dma.hbm_to_vmem [thread:$0]  %s73, 16, %s1139, [#allocation27]
        $region152: #{stage_block.4} parent=11 // pred_fallthru
          _
      $region12: #{stage_block.4} parent=5 // pred_fallthru
        _
      %p1142 = scmp.lt.s32.totalorder %s89, 2
      // Predicated region
      $region153: #{stage_block.4} parent=5 // pred_check
        %p1143 = pneg %p1142
      $region154: #{stage_block.4} parent=5 // pred_check_branch
        %1145 = sbr.rel (%p1143) target = $region156
      $region155: #{stage_block.4} parent=5 // pred_region
        // Predicated region
        $region157: #{stage_block.4} parent=155 // pred_check
          %p1146 = pneg %p109
        $region158: #{stage_block.4} parent=155 // pred_check_branch
          %1148 = sbr.rel (%p1146) target = $region160
        $region159: #{stage_block.4} parent=155 // pred_region
          %s1149 = smul.u32 4, %s89
          %p1150 = scmp.lt.s32.totalorder %s1149, 7
          %s1151 = scalar_select %p1150, %s1149, 7
          %s1152 = smul.addr %s1151, 8
          %s1153 = scalar_lea.vmem %s1, %s1152
          %s1154 = smul.u32 4, %s89
        $region160: #{stage_block.4} parent=155 // pred_fallthru
          _
        // Predicated region
        $region161: #{stage_block.4} parent=155 // pred_check
          %p1155 = pneg %p135
        $region162: #{stage_block.4} parent=155 // pred_check_branch
          %1157 = sbr.rel (%p1155) target = $region164
        $region163: #{stage_block.4} parent=155 // pred_region
          %s1158 = smul.u32 4, %s89
          %p1159 = scmp.lt.s32.totalorder %s1158, 7
          %s1160 = scalar_select %p1159, %s1158, 7
          %s1161 = smul.addr %s1160, 8
          %s1162 = scalar_lea.vmem %s3, %s1161
          %s1163 = smul.u32 4, %s89
        $region164: #{stage_block.4} parent=155 // pred_fallthru
          _
      $region156: #{stage_block.4} parent=5 // pred_fallthru
        _
      %p1164 = scmp.le.s32.totalorder 1, %s89
      %p1165 = scmp.lt.s32.totalorder %s89, 3
      %p1166 = pnand %p1164, %p1165
      %p1167 = pneg %p1166
      // Predicated region
      $region165: #{stage_block.4} parent=5 // pred_check
        _
      $region166: #{stage_block.4} parent=5 // pred_check_branch
        %1169 = sbr.rel (%p1166) target = $region168
      $region167: #{stage_block.4} parent=5 // pred_region
        %s1170 = ssub.s32 %s89, 1
        // Predicated region
        $region169: #{stage_block.4} parent=167 // pred_check
          %p1171 = pneg %p372
        $region170: #{stage_block.4} parent=167 // pred_check_branch
          %1173 = sbr.rel (%p1171) target = $region172
        $region171: #{stage_block.4} parent=167 // pred_region
          %1174 = dma.done [#allocation7], 16
        $region172: #{stage_block.4} parent=167 // pred_fallthru
          _
        // Predicated region
        $region173: #{stage_block.4} parent=167 // pred_check
          %p1175 = pneg %p435
        $region174: #{stage_block.4} parent=167 // pred_check_branch
          %1177 = sbr.rel (%p1175) target = $region176
        $region175: #{stage_block.4} parent=167 // pred_region
          %1178 = dma.done [#allocation9], 16
        $region176: #{stage_block.4} parent=167 // pred_fallthru
          _
        // Predicated region
        $region177: #{stage_block.4} parent=167 // pred_check
          %p1179 = pneg %p477
        $region178: #{stage_block.4} parent=167 // pred_check_branch
          %1181 = sbr.rel (%p1179) target = $region180
        $region179: #{stage_block.4} parent=167 // pred_region
          %1182 = dma.done [#allocation9], 16
        $region180: #{stage_block.4} parent=167 // pred_fallthru
          _
        // Predicated region
        $region181: #{stage_block.4} parent=167 // pred_check
          %p1183 = pneg %p519
        $region182: #{stage_block.4} parent=167 // pred_check_branch
          %1185 = sbr.rel (%p1183) target = $region184
        $region183: #{stage_block.4} parent=167 // pred_region
          %1186 = dma.done [#allocation12], 16
        $region184: #{stage_block.4} parent=167 // pred_fallthru
          _
        // Predicated region
        $region185: #{stage_block.4} parent=167 // pred_check
          %p1187 = pneg %p561
        $region186: #{stage_block.4} parent=167 // pred_check_branch
          %1189 = sbr.rel (%p1187) target = $region188
        $region187: #{stage_block.4} parent=167 // pred_region
          %1190 = dma.done [#allocation12], 16
        $region188: #{stage_block.4} parent=167 // pred_fallthru
          _
        // Predicated region
        $region189: #{stage_block.4} parent=167 // pred_check
          %p1191 = pneg %p582
        $region190: #{stage_block.4} parent=167 // pred_check_branch
          %1193 = sbr.rel (%p1191) target = $region192
        $region191: #{stage_block.4} parent=167 // pred_region
          %1194 = dma.done [#allocation15], 16
        $region192: #{stage_block.4} parent=167 // pred_fallthru
          _
        // Predicated region
        $region193: #{stage_block.4} parent=167 // pred_check
          %p1195 = pneg %p603
        $region194: #{stage_block.4} parent=167 // pred_check_branch
          %1197 = sbr.rel (%p1195) target = $region196
        $region195: #{stage_block.4} parent=167 // pred_region
          %1198 = dma.done [#allocation15], 16
        $region196: #{stage_block.4} parent=167 // pred_fallthru
          _
        // Predicated region
        $region197: #{stage_block.4} parent=167 // pred_check
          %p1199 = pneg %p624
        $region198: #{stage_block.4} parent=167 // pred_check_branch
          %1201 = sbr.rel (%p1199) target = $region200
        $region199: #{stage_block.4} parent=167 // pred_region
          %1202 = dma.done [#allocation18], 16
        $region200: #{stage_block.4} parent=167 // pred_fallthru
          _
        // Predicated region
        $region201: #{stage_block.4} parent=167 // pred_check
          %p1203 = pneg %p645
        $region202: #{stage_block.4} parent=167 // pred_check_branch
          %1205 = sbr.rel (%p1203) target = $region204
        $region203: #{stage_block.4} parent=167 // pred_region
          %1206 = dma.done [#allocation18], 16
        $region204: #{stage_block.4} parent=167 // pred_fallthru
          _
        // Predicated region
        $region205: #{stage_block.4} parent=167 // pred_check
          %p1207 = pneg %p687
        $region206: #{stage_block.4} parent=167 // pred_check_branch
          %1209 = sbr.rel (%p1207) target = $region208
        $region207: #{stage_block.4} parent=167 // pred_region
          %1210 = dma.done [#allocation21], 16
        $region208: #{stage_block.4} parent=167 // pred_fallthru
          _
        // Predicated region
        $region209: #{stage_block.4} parent=167 // pred_check
          %p1211 = pneg %p708
        $region210: #{stage_block.4} parent=167 // pred_check_branch
          %1213 = sbr.rel (%p1211) target = $region212
        $region211: #{stage_block.4} parent=167 // pred_region
          %1214 = dma.done [#allocation21], 16
        $region212: #{stage_block.4} parent=167 // pred_fallthru
          _
        // Predicated region
        $region213: #{stage_block.4} parent=167 // pred_check
          %p1215 = pneg %p729
        $region214: #{stage_block.4} parent=167 // pred_check_branch
          %1217 = sbr.rel (%p1215) target = $region216
        $region215: #{stage_block.4} parent=167 // pred_region
          %1218 = dma.done [#allocation24], 16
        $region216: #{stage_block.4} parent=167 // pred_fallthru
          _
        // Predicated region
        $region217: #{stage_block.4} parent=167 // pred_check
          %p1219 = pneg %p792
        $region218: #{stage_block.4} parent=167 // pred_check_branch
          %1221 = sbr.rel (%p1219) target = $region220
        $region219: #{stage_block.4} parent=167 // pred_region
          %1222 = dma.done [#allocation24], 16
        $region220: #{stage_block.4} parent=167 // pred_fallthru
          _
        // Predicated region
        $region221: #{stage_block.4} parent=167 // pred_check
          %p1223 = pneg %p855
        $region222: #{stage_block.4} parent=167 // pred_check_branch
          %1225 = sbr.rel (%p1223) target = $region224
        $region223: #{stage_block.4} parent=167 // pred_region
          %1226 = dma.done [#allocation27], 16
        $region224: #{stage_block.4} parent=167 // pred_fallthru
          _
        // Predicated region
        $region225: #{stage_block.4} parent=167 // pred_check
          %p1227 = pneg %p876
        $region226: #{stage_block.4} parent=167 // pred_check_branch
          %1229 = sbr.rel (%p1227) target = $region228
        $region227: #{stage_block.4} parent=167 // pred_region
          %1230 = dma.done [#allocation27], 16
        $region228: #{stage_block.4} parent=167 // pred_fallthru
          _
        %s1231 = smul.u32 4, %s94
        %p1232 = scmp.lt.s32.totalorder %s1231, 7
        %s1233 = scalar_select %p1232, %s1231, 7
        %s1234 = smul.addr %s1233, 8
        %s1235 = scalar_lea.vmem %s1, %s1234
        %p1236 = pneg %p115
        %p1237 = pneg %p112
        %s1238 = smul.u32 4, %s94
        %p1239 = scmp.lt.s32.totalorder %s1238, 7
        %s1240 = scalar_select %p1239, %s1238, 7
        %s1241 = smul.addr %s1240, 8
        %s1242 = scalar_lea.vmem %s3, %s1241
        %p1243 = pneg %p141
        %p1244 = pneg %p138
        %p1245 = pneg %p162
        %p1246 = pneg %p159
        %p1247 = pneg %p183
        %p1248 = pneg %p180
        %p1249 = pneg %p204
        %p1250 = pneg %p201
        %p1251 = pneg %p225
        %p1252 = pneg %p222
        %p1253 = pneg %p246
        %p1254 = pneg %p243
        %p1255 = pneg %p267
        %p1256 = pneg %p264
        %p1257 = pneg %p288
        %p1258 = pneg %p285
        %p1259 = pneg %p309
        %p1260 = pneg %p306
        %p1261 = pneg %p330
        %p1262 = pneg %p327
        %p1263 = pneg %p351
        %p1264 = pneg %p348
        %p1265 = pneg %p372
        %p1266 = pneg %p369
        %p1267 = pneg %p393
        %p1268 = pneg %p390
        %p1269 = pneg %p414
        %p1270 = pneg %p411
        %p1271 = pneg %p435
        %p1272 = pneg %p432
        %p1273 = pneg %p456
        %p1274 = pneg %p453
        %p1275 = pneg %p477
        %p1276 = pneg %p474
        %p1277 = pneg %p498
        %p1278 = pneg %p495
        %p1279 = pneg %p519
        %p1280 = pneg %p516
        %p1281 = pneg %p540
        %p1282 = pneg %p537
        %p1283 = pneg %p561
        %p1284 = pneg %p558
        %p1285 = pneg %p582
        %p1286 = pneg %p579
        %p1287 = pneg %p603
        %p1288 = pneg %p600
        %p1289 = pneg %p624
        %p1290 = pneg %p621
        %p1291 = pneg %p645
        %p1292 = pneg %p642
        %p1293 = pneg %p666
        %p1294 = pneg %p663
        %p1295 = pneg %p687
        %p1296 = pneg %p684
        %p1297 = pneg %p708
        %p1298 = pneg %p705
        %p1299 = pneg %p729
        %p1300 = pneg %p726
        %p1301 = pneg %p750
        %p1302 = pneg %p747
        %p1303 = pneg %p771
        %p1304 = pneg %p768
        %p1305 = pneg %p792
        %p1306 = pneg %p789
        %p1307 = pneg %p813
        %p1308 = pneg %p810
        %p1309 = pneg %p834
        %p1310 = pneg %p831
        %p1311 = pneg %p855
        %p1312 = pneg %p852
        %p1313 = pneg %p876
        %p1314 = pneg %p873
        %p1315 = pneg %p902
        %p1316 = pneg %p899
        %s1317 = smul.u32 4, %s94
        %p1318 = scmp.lt.s32.totalorder %s1317, 7
        %s1319 = scalar_select %p1318, %s1317, 7
        %s1320 = smul.addr %s1319, 8
        %s1321 = scalar_lea.vmem %s75, %s1320
        %s1322 = smul.u32 4, %s94
        %p1323 = scmp.lt.s32.totalorder %s1322, 7
        %s1324 = scalar_select %p1323, %s1322, 7
        %s1325 = smul.addr %s1324, 8
        %s1326 = scalar_lea.vmem %s1, %s1325
        %s1327 = smul.u32 4, %s94
        %s1328 = smul.u32 4, %s94
        %p1329 = scmp.lt.s32.totalorder %s1328, 7
        %s1330 = scalar_select %p1329, %s1328, 7
        %s1331 = smul.addr %s1330, 8
        %s1332 = scalar_lea.vmem %s3, %s1331
        %s1333 = smul.u32 4, %s94
        %s1334 = smul.u32 4, %s94
        %p1335 = scmp.lt.s32.totalorder %s1334, 7
        %s1336 = scalar_select %p1335, %s1334, 7
        %s1337 = smul.addr %s1336, 8
        %s1338 = scalar_lea.vmem %s75, %s1337
        %s1339 = smul.u32 4, %s94
        %v1341 = vld [vmem:[%s1326] sm:$0xff]
        %v1342 = vld [vmem:[%s1326 + $0x8] sm:$0xff]
        %v1343 = vld [vmem:[%s1326 + $0x10] sm:$0xff]
        %v1344 = vld [vmem:[%s1326 + $0x18] sm:$0xff]
        %v1345 = vld [vmem:[%s1332] sm:$0xff]
        %v1346 = vld [vmem:[%s1332 + $0x8] sm:$0xff]
        %v1347 = vld [vmem:[%s1332 + $0x10] sm:$0xff]
        %v1348 = vld [vmem:[%s1332 + $0x18] sm:$0xff]
        %1350 = vset.pattern.permute.xlu0 0
        %1351 = vperm.xlu0 %1350, %v1345
        %v1352 = vpop.permute.xlu0 %1351
        %1355 = vset.pattern.permute.xlu0 0
        %1356 = vperm.xlu0 %1355, %v1346
        %v1357 = vpop.permute.xlu0 %1356
        %1360 = vset.pattern.permute.xlu0 0
        %1361 = vperm.xlu0 %1360, %v1347
        %v1362 = vpop.permute.xlu0 %1361
        %1365 = vset.pattern.permute.xlu0 0
        %1366 = vperm.xlu0 %1365, %v1348
        %v1367 = vpop.permute.xlu0 %1366
        %v1369 = vmul.f32 %v1341, %v1352
        %v1370 = vmul.f32 %v1342, %v1357
        %v1371 = vmul.f32 %v1343, %v1362
        %v1372 = vmul.f32 %v1344, %v1367
        %s1373 = smul.u32 %s94, 2
        %s1374 = scalar_lea.vmem %s5, %s1373
        %v1375 = vld [vmem:[%s1374] sm:$0x3]
        %s1376 = scalar_lea.vmem %s7, %s1373
        %v1377 = vld [vmem:[%s1376] sm:$0x3]
        %v1378 = vpack.c.bf16 %v1375, %v1375
        %v1379 = vld [vmem:[%s9] sm:$0xf]
        %v1380 = vld [vmem:[%s9 + $0x4] sm:$0xf]
        %v1381 = vld [vmem:[%s11] sm:$0x1]
        %v1383 = vlaneseq
        %v1384 = vshrl.u32 %v1383, 7
        %v1385 = vsub.s32 0, %v1384
        %v1386 = vrot.slane %v1381, %v1385
        %v1390 = vunpack.c.l.b16 %v1379
        %v1391 = vunpack.c.l.b16 %v1380
        %v1392 = vpack.c.b16 %v1391, %v1390
        %vm1394 = vcmask 130048
        %v1396 = vsel %vm1394, %v1378, 0
        %1398 = vmatprep.subr.bf16.mxu0 0
        %1399 = vmatpush1.bf16.msra.mxu0 0
        %1400 = vmatprep.subr.bf16.mxu0 0
        %1401 = vmatpush1.bf16.msra.mxu0 0
        %1402 = vmatprep.subr.bf16.mxu0 0
        %1403 = vmatpush1.bf16.msra.mxu0 0
        %1404 = vmatprep.subr.bf16.mxu0 0
        %1405 = vmatpush1.bf16.msra.mxu0 0
        %1406 = vmatprep.subr.bf16.mxu0 0
        %1407 = vmatpush1.bf16.msra.mxu0 0
        %1408 = vmatprep.subr.bf16.mxu0 0
        %1409 = vmatpush1.bf16.msra.mxu0 0
        %1410 = vmatprep.subr.bf16.mxu0 0
        %1411 = vmatpush1.bf16.msra.mxu0 0
        %1412 = vmatprep.subr.bf16.mxu0 0
        %1413 = vmatpush1.bf16.msra.mxu0 %v1392
        %1414 = vmatprep.subr.bf16.mxu0 0
        %1415 = vmatpush2.bf16.msra.mxu0 0
        %1416 = vmatprep.subr.bf16.mxu0 0
        %1417 = vmatpush2.bf16.msra.mxu0 0
        %1418 = vmatprep.subr.bf16.mxu0 0
        %1419 = vmatpush2.bf16.msra.mxu0 0
        %1420 = vmatprep.subr.bf16.mxu0 0
        %1421 = vmatpush2.bf16.msra.mxu0 0
        %1422 = vmatprep.subr.bf16.mxu0 0
        %1423 = vmatpush2.bf16.msra.mxu0 0
        %1424 = vmatprep.subr.bf16.mxu0 0
        %1425 = vmatpush2.bf16.msra.mxu0 0
        %1426 = vmatprep.subr.bf16.mxu0 0
        %1427 = vmatpush2.bf16.msra.mxu0 0
        %1428 = vmatprep.subr.bf16.mxu0 0
        %1429 = vmatpush2.bf16.msra.mxu0 0
        %1430 = vmatprep.mubr.bf16.mxu0 0
        %1431 = vmatmul.mubr.bf16.gmra.mxu0 %v1396
        %v1432 = vpop.f32.mrf.mxu0
        %v1433 = vadd.f32 %v1386, %v1432
        %v1434 = vpop.f32.mrf.mxu0
        %v1435 = vpop.f32.mrf.mxu0
        %v1436 = vpop.f32.mrf.mxu0
        %1437 = vdwg.mxu0
        %1439 = vset.pattern.permute.xlu0 0
        %1440 = vperm.xlu0 %1439, %v1377
        %v1441 = vpop.permute.xlu0 %1440
        %v1443 = vmul.f32 %v1433, %v1441
        %v1444 = vpack.c.bf16 %v1370, %v1369
        %v1445 = vpack.c.bf16 %v1372, %v1371
        %v1446 = vld [vmem:[%s13] sm:$0xf]
        %v1447 = vld [vmem:[%s13 + $0x4] sm:$0xf]
        %v1448 = vld [vmem:[%s13 + $0x8] sm:$0xf]
        %v1449 = vld [vmem:[%s13 + $0xc] sm:$0xf]
        %v1450 = vld [vmem:[%s15] sm:$0x1]
        %v1452 = vlaneseq
        %v1453 = vshrl.u32 %v1452, 7
        %v1454 = vsub.s32 0, %v1453
        %v1455 = vrot.slane %v1450, %v1454
        %v1461 = vunpack.c.l.b16 %v1446
        %v1462 = vunpack.c.l.b16 %v1447
        %v1463 = vunpack.c.l.b16 %v1448
        %v1464 = vunpack.c.l.b16 %v1449
        %v1465 = vpack.c.b16 %v1462, %v1461
        %v1466 = vpack.c.b16 %v1464, %v1463
        %vm1469 = vcmask 261120
        %v1471 = vsel %vm1469, %v1444, 0
        %v1474 = vsel %vm1469, %v1445, 0
        %1476 = vmatprep.subr.bf16.mxu0 0
        %1477 = vmatpush1.bf16.msra.mxu0 0
        %1478 = vmatprep.subr.bf16.mxu0 0
        %1479 = vmatpush1.bf16.msra.mxu0 0
        %1480 = vmatprep.subr.bf16.mxu0 0
        %1481 = vmatpush1.bf16.msra.mxu0 0
        %1482 = vmatprep.subr.bf16.mxu0 0
        %1483 = vmatpush1.bf16.msra.mxu0 0
        %1484 = vmatprep.subr.bf16.mxu0 0
        %1485 = vmatpush1.bf16.msra.mxu0 0
        %1486 = vmatprep.subr.bf16.mxu0 0
        %1487 = vmatpush1.bf16.msra.mxu0 0
        %1488 = vmatprep.subr.bf16.mxu0 0
        %1489 = vmatpush1.bf16.msra.mxu0 %v1466
        %1490 = vmatprep.subr.bf16.mxu0 0
        %1491 = vmatpush1.bf16.msra.mxu0 %v1465
        %1492 = vmatprep.subr.bf16.mxu0 0
        %1493 = vmatpush2.bf16.msra.mxu0 0
        %1494 = vmatprep.subr.bf16.mxu0 0
        %1495 = vmatpush2.bf16.msra.mxu0 0
        %1496 = vmatprep.subr.bf16.mxu0 0
        %1497 = vmatpush2.bf16.msra.mxu0 0
        %1498 = vmatprep.subr.bf16.mxu0 0
        %1499 = vmatpush2.bf16.msra.mxu0 0
        %1500 = vmatprep.subr.bf16.mxu0 0
        %1501 = vmatpush2.bf16.msra.mxu0 0
        %1502 = vmatprep.subr.bf16.mxu0 0
        %1503 = vmatpush2.bf16.msra.mxu0 0
        %1504 = vmatprep.subr.bf16.mxu0 0
        %1505 = vmatpush2.bf16.msra.mxu0 0
        %1506 = vmatprep.subr.bf16.mxu0 0
        %1507 = vmatpush2.bf16.msra.mxu0 0
        %1508 = vmatprep.mubr.bf16.mxu0 0
        %1509 = vmatmul.mubr.bf16.gmra.mxu0 %v1471
        %v1510 = vpop.f32.mrf.mxu0
        %v1511 = vadd.f32 %v1455, %v1510
        %v1512 = vpop.f32.mrf.mxu0
        %v1513 = vpop.f32.mrf.mxu0
        %v1514 = vadd.f32 %v1455, %v1513
        %v1515 = vpop.f32.mrf.mxu0
        %1516 = vmatprep.mubr.bf16.mxu0 0
        %1517 = vmatmul.mubr.bf16.gmra.mxu0 %v1474
        %v1518 = vpop.f32.mrf.mxu0
        %v1519 = vadd.f32 %v1455, %v1518
        %v1520 = vpop.f32.mrf.mxu0
        %v1521 = vpop.f32.mrf.mxu0
        %v1522 = vadd.f32 %v1455, %v1521
        %v1523 = vpop.f32.mrf.mxu0
        %1524 = vdwg.mxu0
        %v1525 = vmax.f32 %v1511, 0.0
        %v1526 = vmax.f32 %v1514, 0.0
        %v1527 = vmax.f32 %v1519, 0.0
        %v1528 = vmax.f32 %v1522, 0.0
        %1529 = vst.msk [vmem:[#allocation2] sm:$0xff] %vm1469, %v1525
        %1530 = vst.msk [vmem:[#allocation2 + $0x8] sm:$0xff] %vm1469, %v1526
        %1531 = vst.msk [vmem:[#allocation2 + $0x10] sm:$0xff] %vm1469, %v1527
        %1532 = vst.msk [vmem:[#allocation2 + $0x18] sm:$0xff] %vm1469, %v1528
        %v1533 = vld [vmem:[%s15] sm:$0x1]
        %v1534 = vmax.f32 %v1533, 0.0
        %v1535 = vld [vmem:[%s17] sm:$0x1]
        %v1536 = vld [vmem:[%s17 + $0x1] sm:$0x1]
        %v1537 = vld [vmem:[%s17 + $0x2] sm:$0x1]
        %v1538 = vld [vmem:[%s17 + $0x3] sm:$0x1]
        %v1539 = vld [vmem:[%s17 + $0x4] sm:$0x1]
        %v1540 = vld [vmem:[%s17 + $0x5] sm:$0x1]
        %v1541 = vld [vmem:[%s17 + $0x6] sm:$0x1]
        %v1542 = vld [vmem:[%s17 + $0x7] sm:$0x1]
        %v1543 = vld [vmem:[%s19] sm:$0x1]
        %v1544 = vlaneseq
        %v1545 = vshrl.u32 %v1544, 7
        %vm1546 = vcmp.eq.s32.totalorder %v1545, 1
        %v1548 = vlaneseq
        %v1549 = vshrl.u32 %v1548, 7
        %v1550 = vsub.s32 0, %v1549
        %v1551 = vrot.slane %v1543, %v1550
        %v1553 = vadd.f32 %v1551, 0.0
        %s1554 = scalar_lea.vmem [#allocation2], 1
        %v1555 = vld [vmem:[%s1554] ss:$8 sm:$0x3]
        %v1556 = vlaneseq
        %v1557 = vshrl.u32 %v1556, 7
        %v1558 = vsub.s32 0, %v1557
        %v1559 = vrot.slane %v1535, %v1558
        %v1560 = vmul.f32 %v1559, %v1555
        %v1561 = vadd.f32 %v1553, %v1560
        %s1562 = scalar_lea.vmem [#allocation2], 2
        %v1563 = vld [vmem:[%s1562] ss:$8 sm:$0x3]
        %v1564 = vlaneseq
        %v1565 = vshrl.u32 %v1564, 7
        %v1566 = vsub.s32 0, %v1565
        %v1567 = vrot.slane %v1536, %v1566
        %v1568 = vmul.f32 %v1567, %v1563
        %v1569 = vadd.f32 %v1561, %v1568
        %s1570 = scalar_lea.vmem [#allocation2], 3
        %v1571 = vld [vmem:[%s1570] ss:$8 sm:$0x3]
        %v1572 = vlaneseq
        %v1573 = vshrl.u32 %v1572, 7
        %v1574 = vsub.s32 0, %v1573
        %v1575 = vrot.slane %v1537, %v1574
        %v1576 = vmul.f32 %v1575, %v1571
        %v1577 = vadd.f32 %v1569, %v1576
        %s1578 = scalar_lea.vmem [#allocation2], 4
        %v1579 = vld [vmem:[%s1578] ss:$8 sm:$0x3]
        %v1580 = vlaneseq
        %v1581 = vshrl.u32 %v1580, 7
        %v1582 = vsub.s32 0, %v1581
        %v1583 = vrot.slane %v1538, %v1582
        %v1584 = vmul.f32 %v1583, %v1579
        %v1585 = vadd.f32 %v1577, %v1584
        %s1586 = scalar_lea.vmem [#allocation2], 5
        %v1587 = vld [vmem:[%s1586] ss:$8 sm:$0x3]
        %v1588 = vlaneseq
        %v1589 = vshrl.u32 %v1588, 7
        %v1590 = vsub.s32 0, %v1589
        %v1591 = vrot.slane %v1539, %v1590
        %v1592 = vmul.f32 %v1591, %v1587
        %v1593 = vadd.f32 %v1585, %v1592
        %s1594 = scalar_lea.vmem [#allocation2], 6
        %v1595 = vld [vmem:[%s1594] ss:$8 sm:$0x3]
        %v1596 = vlaneseq
        %v1597 = vshrl.u32 %v1596, 7
        %v1598 = vsub.s32 0, %v1597
        %v1599 = vrot.slane %v1540, %v1598
        %v1600 = vmul.f32 %v1599, %v1595
        %v1601 = vadd.f32 %v1593, %v1600
        %s1602 = scalar_lea.vmem [#allocation2], 7
        %v1603 = vld [vmem:[%s1602] ss:$8 sm:$0x3]
        %v1604 = vlaneseq
        %v1605 = vshrl.u32 %v1604, 7
        %v1606 = vsub.s32 0, %v1605
        %v1607 = vrot.slane %v1541, %v1606
        %v1608 = vmul.f32 %v1607, %v1603
        %v1609 = vadd.f32 %v1601, %v1608
        %s1610 = scalar_lea.vmem [#allocation2], 8
        %v1611 = vld [vmem:[%s1610] ss:$8 sm:$0x3]
        %v1612 = vsel %vm1546, 1, 0
        %vm1613 = vcmp.eq.s32.totalorder %v1612, 1
        %v1615 = vlaneseq
        %v1616 = vshrl.u32 %v1615, 7
        %v1617 = vsub.s32 0, %v1616
        %v1618 = vrot.slane %v1534, %v1617
        %v1620 = vsel %vm1613, %v1618, %v1611
        %v1621 = vlaneseq
        %v1622 = vshrl.u32 %v1621, 7
        %v1623 = vsub.s32 0, %v1622
        %v1624 = vrot.slane %v1542, %v1623
        %v1625 = vmul.f32 %v1624, %v1620
        %v1626 = vadd.f32 %v1609, %v1625
        %vm1627 = vcmask 254976
        %1628 = vst.msk [vmem:[#allocation3] sm:$0x3] %vm1627, %v1626
        %s1629 = scalar_lea.vmem [#allocation2], 17
        %v1630 = vld [vmem:[%s1629] ss:$8 sm:$0x3]
        %v1631 = vmul.f32 %v1559, %v1630
        %v1632 = vadd.f32 %v1553, %v1631
        %s1633 = scalar_lea.vmem [#allocation2], 18
        %v1634 = vld [vmem:[%s1633] ss:$8 sm:$0x3]
        %v1635 = vmul.f32 %v1567, %v1634
        %v1636 = vadd.f32 %v1632, %v1635
        %s1637 = scalar_lea.vmem [#allocation2], 19
        %v1638 = vld [vmem:[%s1637] ss:$8 sm:$0x3]
        %v1639 = vmul.f32 %v1575, %v1638
        %v1640 = vadd.f32 %v1636, %v1639
        %s1641 = scalar_lea.vmem [#allocation2], 20
        %v1642 = vld [vmem:[%s1641] ss:$8 sm:$0x3]
        %v1643 = vmul.f32 %v1583, %v1642
        %v1644 = vadd.f32 %v1640, %v1643
        %s1645 = scalar_lea.vmem [#allocation2], 21
        %v1646 = vld [vmem:[%s1645] ss:$8 sm:$0x3]
        %v1647 = vmul.f32 %v1591, %v1646
        %v1648 = vadd.f32 %v1644, %v1647
        %s1649 = scalar_lea.vmem [#allocation2], 22
        %v1650 = vld [vmem:[%s1649] ss:$8 sm:$0x3]
        %v1651 = vmul.f32 %v1599, %v1650
        %v1652 = vadd.f32 %v1648, %v1651
        %s1653 = scalar_lea.vmem [#allocation2], 23
        %v1654 = vld [vmem:[%s1653] ss:$8 sm:$0x3]
        %v1655 = vmul.f32 %v1607, %v1654
        %v1656 = vadd.f32 %v1652, %v1655
        %s1657 = scalar_lea.vmem [#allocation2], 24
        %v1658 = vld [vmem:[%s1657] ss:$8 sm:$0x3]
        %v1659 = vsel %vm1613, %v1618, %v1658
        %v1660 = vmul.f32 %v1624, %v1659
        %v1661 = vadd.f32 %v1656, %v1660
        %1662 = vst.msk [vmem:[#allocation3 + $0x2] sm:$0x3] %vm1627, %v1661
        %v1663 = vld [vmem:[#allocation3] sm:$0xf]
        %v1664 = vlaneseq
        %v1665 = vand.u32 %v1664, 127
        %v1666 = vmul.u32 %v1665, 2
        %vm1667 = vcmp.ge.s32.totalorder %v1545, %v1666
        %v1668 = vadd.s32 %v1665, 1
        %v1669 = vmul.u32 %v1668, 2
        %vm1670 = vcmp.lt.s32.totalorder %v1545, %v1669
        %vm1671 = vmand %vm1667, %vm1670
        %v1672 = vsel %vm1671, 1, 0
        %v1673 = vcvt.s32.f32 %v1672
        %vm1674 = vcmask 15360
        %v1676 = vsel %vm1674, %v1673, 0
        %vm1678 = vcmask 1041408
        %v1680 = vsel %vm1678, %v1443, 0
        %1682 = vmatprep.subr.mxu0 0.0
        %1683 = vmatpush1.msra.mxu0 0.0
        %1684 = vmatprep.subr.mxu0 0.0
        %1685 = vmatpush1.msra.mxu0 0.0
        %1686 = vmatprep.subr.mxu0 0.0
        %1687 = vmatpush1.msra.mxu0 0.0
        %1688 = vmatprep.subr.mxu0 0.0
        %1689 = vmatpush1.msra.mxu0 0.0
        %1690 = vmatprep.subr.mxu0 0.0
        %1691 = vmatpush1.msra.mxu0 0.0
        %1692 = vmatprep.subr.mxu0 0.0
        %1693 = vmatpush1.msra.mxu0 0.0
        %1694 = vmatprep.subr.mxu0 0.0
        %1695 = vmatpush1.msra.mxu0 0.0
        %1696 = vmatprep.subr.mxu0 0.0
        %1697 = vmatpush1.msra.mxu0 0.0
        %1698 = vmatprep.subr.mxu0 0.0
        %1699 = vmatpush1.msra.mxu0 0.0
        %1700 = vmatprep.subr.mxu0 0.0
        %1701 = vmatpush1.msra.mxu0 0.0
        %1702 = vmatprep.subr.mxu0 0.0
        %1703 = vmatpush1.msra.mxu0 0.0
        %1704 = vmatprep.subr.mxu0 0.0
        %1705 = vmatpush1.msra.mxu0 0.0
        %1706 = vmatprep.subr.mxu0 0.0
        %1707 = vmatpush1.msra.mxu0 0.0
        %1708 = vmatprep.subr.mxu0 0.0
        %1709 = vmatpush1.msra.mxu0 0.0
        %1710 = vmatprep.subr.mxu0 0.0
        %1711 = vmatpush1.msra.mxu0 0.0
        %1712 = vmatprep.subr.mxu0 0.0
        %1713 = vmatpush1.msra.mxu0 %v1680
        %1714 = vmatprep.subr.mxu0 0.0
        %1715 = vmatpush2.msra.mxu0 0.0
        %1716 = vmatprep.subr.mxu0 0.0
        %1717 = vmatpush2.msra.mxu0 0.0
        %1718 = vmatprep.subr.mxu0 0.0
        %1719 = vmatpush2.msra.mxu0 0.0
        %1720 = vmatprep.subr.mxu0 0.0
        %1721 = vmatpush2.msra.mxu0 0.0
        %1722 = vmatprep.subr.mxu0 0.0
        %1723 = vmatpush2.msra.mxu0 0.0
        %1724 = vmatprep.subr.mxu0 0.0
        %1725 = vmatpush2.msra.mxu0 0.0
        %1726 = vmatprep.subr.mxu0 0.0
        %1727 = vmatpush2.msra.mxu0 0.0
        %1728 = vmatprep.subr.mxu0 0.0
        %1729 = vmatpush2.msra.mxu0 0.0
        %1730 = vmatprep.subr.mxu0 0.0
        %1731 = vmatpush2.msra.mxu0 0.0
        %1732 = vmatprep.subr.mxu0 0.0
        %1733 = vmatpush2.msra.mxu0 0.0
        %1734 = vmatprep.subr.mxu0 0.0
        %1735 = vmatpush2.msra.mxu0 0.0
        %1736 = vmatprep.subr.mxu0 0.0
        %1737 = vmatpush2.msra.mxu0 0.0
        %1738 = vmatprep.subr.mxu0 0.0
        %1739 = vmatpush2.msra.mxu0 0.0
        %1740 = vmatprep.subr.mxu0 0.0
        %1741 = vmatpush2.msra.mxu0 0.0
        %1742 = vmatprep.subr.mxu0 0.0
        %1743 = vmatpush2.msra.mxu0 0.0
        %1744 = vmatprep.subr.mxu0 0.0
        %1745 = vmatpush2.msra.mxu0 0.0
        %1746 = vmatprep.mubr.f32.mxu0 0.0
        %1747 = vmatmul.mubr.f32.gmra.mxu0 %v1676
        %v1748 = vpop.f32.mrf.mxu0
        %v1749 = vadd.f32 0.0, %v1748
        %v1750 = vpop.f32.mrf.mxu0
        %1751 = vdwg.mxu0
        %v1752 = vpack.c.bf16 %v1663, %v1663
        %v1753 = vld [vmem:[%s21] sm:$0xf]
        %v1754 = vld [vmem:[%s21 + $0x4] sm:$0xf]
        %v1755 = vld [vmem:[%s21 + $0x8] sm:$0xf]
        %v1756 = vld [vmem:[%s21 + $0xc] sm:$0xf]
        %v1757 = vpack.c.bf16 %v1749, %v1749
        %v1758 = vld [vmem:[%s23] sm:$0xf]
        %v1759 = vld [vmem:[%s23 + $0x4] sm:$0xf]
        %v1760 = vld [vmem:[%s23 + $0x8] sm:$0xf]
        %v1761 = vld [vmem:[%s23 + $0xc] sm:$0xf]
        %v1766 = vunpack.c.l.b16 %v1758
        %v1767 = vunpack.c.l.b16 %v1759
        %v1768 = vunpack.c.l.b16 %v1760
        %v1769 = vunpack.c.l.b16 %v1761
        %v1770 = vpack.c.b16 %v1767, %v1766
        %v1771 = vpack.c.b16 %v1769, %v1768
        %v1775 = vsel %vm1469, %v1757, 0
        %1777 = vmatprep.subr.bf16.mxu0 0
        %1778 = vmatpush1.bf16.msra.mxu0 0
        %1779 = vmatprep.subr.bf16.mxu0 0
        %1780 = vmatpush1.bf16.msra.mxu0 0
        %1781 = vmatprep.subr.bf16.mxu0 0
        %1782 = vmatpush1.bf16.msra.mxu0 0
        %1783 = vmatprep.subr.bf16.mxu0 0
        %1784 = vmatpush1.bf16.msra.mxu0 0
        %1785 = vmatprep.subr.bf16.mxu0 0
        %1786 = vmatpush1.bf16.msra.mxu0 0
        %1787 = vmatprep.subr.bf16.mxu0 0
        %1788 = vmatpush1.bf16.msra.mxu0 0
        %1789 = vmatprep.subr.bf16.mxu0 0
        %1790 = vmatpush1.bf16.msra.mxu0 %v1771
        %1791 = vmatprep.subr.bf16.mxu0 0
        %1792 = vmatpush1.bf16.msra.mxu0 %v1770
        %1793 = vmatprep.subr.bf16.mxu0 0
        %1794 = vmatpush2.bf16.msra.mxu0 0
        %1795 = vmatprep.subr.bf16.mxu0 0
        %1796 = vmatpush2.bf16.msra.mxu0 0
        %1797 = vmatprep.subr.bf16.mxu0 0
        %1798 = vmatpush2.bf16.msra.mxu0 0
        %1799 = vmatprep.subr.bf16.mxu0 0
        %1800 = vmatpush2.bf16.msra.mxu0 0
        %1801 = vmatprep.subr.bf16.mxu0 0
        %1802 = vmatpush2.bf16.msra.mxu0 0
        %1803 = vmatprep.subr.bf16.mxu0 0
        %1804 = vmatpush2.bf16.msra.mxu0 0
        %1805 = vmatprep.subr.bf16.mxu0 0
        %1806 = vmatpush2.bf16.msra.mxu0 0
        %1807 = vmatprep.subr.bf16.mxu0 0
        %1808 = vmatpush2.bf16.msra.mxu0 0
        %1809 = vmatprep.mubr.bf16.mxu0 0
        %1810 = vmatmul.mubr.bf16.gmra.mxu0 %v1775
        %v1811 = vpop.f32.mrf.mxu0
        %v1812 = vadd.f32 0.0, %v1811
        %v1813 = vpop.f32.mrf.mxu0
        %v1814 = vpop.f32.mrf.mxu0
        %v1815 = vpop.f32.mrf.mxu0
        %1816 = vdwg.mxu0
        %v1821 = vunpack.c.l.b16 %v1753
        %v1822 = vunpack.c.l.b16 %v1754
        %v1823 = vunpack.c.l.b16 %v1755
        %v1824 = vunpack.c.l.b16 %v1756
        %v1825 = vpack.c.b16 %v1822, %v1821
        %v1826 = vpack.c.b16 %v1824, %v1823
        %v1830 = vsel %vm1469, %v1752, 0
        %1832 = vmatprep.subr.bf16.mxu0 0
        %1833 = vmatpush1.bf16.msra.mxu0 0
        %1834 = vmatprep.subr.bf16.mxu0 0
        %1835 = vmatpush1.bf16.msra.mxu0 0
        %1836 = vmatprep.subr.bf16.mxu0 0
        %1837 = vmatpush1.bf16.msra.mxu0 0
        %1838 = vmatprep.subr.bf16.mxu0 0
        %1839 = vmatpush1.bf16.msra.mxu0 0
        %1840 = vmatprep.subr.bf16.mxu0 0
        %1841 = vmatpush1.bf16.msra.mxu0 0
        %1842 = vmatprep.subr.bf16.mxu0 0
        %1843 = vmatpush1.bf16.msra.mxu0 0
        %1844 = vmatprep.subr.bf16.mxu0 0
        %1845 = vmatpush1.bf16.msra.mxu0 %v1826
        %1846 = vmatprep.subr.bf16.mxu0 0
        %1847 = vmatpush1.bf16.msra.mxu0 %v1825
        %1848 = vmatprep.subr.bf16.mxu0 0
        %1849 = vmatpush2.bf16.msra.mxu0 0
        %1850 = vmatprep.subr.bf16.mxu0 0
        %1851 = vmatpush2.bf16.msra.mxu0 0
        %1852 = vmatprep.subr.bf16.mxu0 0
        %1853 = vmatpush2.bf16.msra.mxu0 0
        %1854 = vmatprep.subr.bf16.mxu0 0
        %1855 = vmatpush2.bf16.msra.mxu0 0
        %1856 = vmatprep.subr.bf16.mxu0 0
        %1857 = vmatpush2.bf16.msra.mxu0 0
        %1858 = vmatprep.subr.bf16.mxu0 0
        %1859 = vmatpush2.bf16.msra.mxu0 0
        %1860 = vmatprep.subr.bf16.mxu0 0
        %1861 = vmatpush2.bf16.msra.mxu0 0
        %1862 = vmatprep.subr.bf16.mxu0 0
        %1863 = vmatpush2.bf16.msra.mxu0 0
        %1864 = vmatprep.mubr.bf16.mxu0 0
        %1865 = vmatmul.mubr.bf16.gmra.mxu0 %v1830
        %v1866 = vpop.f32.mrf.mxu0
        %v1867 = vadd.f32 %v1812, %v1866
        %v1868 = vpop.f32.mrf.mxu0
        %v1869 = vpop.f32.mrf.mxu0
        %v1870 = vpop.f32.mrf.mxu0
        %1871 = vdwg.mxu0
        %v1872 = vld [vmem:[#allocation6] sm:$0x1]
        %v1874 = vlaneseq
        %v1875 = vshrl.u32 %v1874, 7
        %v1876 = vsub.s32 0, %v1875
        %v1877 = vrot.slane %v1872, %v1876
        %v1879 = vadd.f32 %v1867, %v1877
        %v1880 = vxor.u32 %v1879, 2147483648
        %v1881 = vmul.f32 %v1880, 1.442695
        %v1882 = vpow.pop %v1881
        %v1883 = vadd.f32 %v1882, 1.0
        %v1884 = vrcp.pop %v1883
        %v1885 = vmul.f32 1.0, %v1884
        %v1886 = vmul.f32 %v1749, %v1885
        %v1887 = vld [vmem:[%s27] sm:$0xf]
        %v1888 = vld [vmem:[%s27 + $0x4] sm:$0xf]
        %v1889 = vld [vmem:[%s27 + $0x8] sm:$0xf]
        %v1890 = vld [vmem:[%s27 + $0xc] sm:$0xf]
        %v1891 = vpack.c.bf16 %v1886, %v1886
        %v1892 = vld [vmem:[%s29] sm:$0xf]
        %v1893 = vld [vmem:[%s29 + $0x4] sm:$0xf]
        %v1894 = vld [vmem:[%s29 + $0x8] sm:$0xf]
        %v1895 = vld [vmem:[%s29 + $0xc] sm:$0xf]
        %v1900 = vunpack.c.l.b16 %v1892
        %v1901 = vunpack.c.l.b16 %v1893
        %v1902 = vunpack.c.l.b16 %v1894
        %v1903 = vunpack.c.l.b16 %v1895
        %v1904 = vpack.c.b16 %v1901, %v1900
        %v1905 = vpack.c.b16 %v1903, %v1902
        %v1909 = vsel %vm1469, %v1891, 0
        %1911 = vmatprep.subr.bf16.mxu0 0
        %1912 = vmatpush1.bf16.msra.mxu0 0
        %1913 = vmatprep.subr.bf16.mxu0 0
        %1914 = vmatpush1.bf16.msra.mxu0 0
        %1915 = vmatprep.subr.bf16.mxu0 0
        %1916 = vmatpush1.bf16.msra.mxu0 0
        %1917 = vmatprep.subr.bf16.mxu0 0
        %1918 = vmatpush1.bf16.msra.mxu0 0
        %1919 = vmatprep.subr.bf16.mxu0 0
        %1920 = vmatpush1.bf16.msra.mxu0 0
        %1921 = vmatprep.subr.bf16.mxu0 0
        %1922 = vmatpush1.bf16.msra.mxu0 0
        %1923 = vmatprep.subr.bf16.mxu0 0
        %1924 = vmatpush1.bf16.msra.mxu0 %v1905
        %1925 = vmatprep.subr.bf16.mxu0 0
        %1926 = vmatpush1.bf16.msra.mxu0 %v1904
        %1927 = vmatprep.subr.bf16.mxu0 0
        %1928 = vmatpush2.bf16.msra.mxu0 0
        %1929 = vmatprep.subr.bf16.mxu0 0
        %1930 = vmatpush2.bf16.msra.mxu0 0
        %1931 = vmatprep.subr.bf16.mxu0 0
        %1932 = vmatpush2.bf16.msra.mxu0 0
        %1933 = vmatprep.subr.bf16.mxu0 0
        %1934 = vmatpush2.bf16.msra.mxu0 0
        %1935 = vmatprep.subr.bf16.mxu0 0
        %1936 = vmatpush2.bf16.msra.mxu0 0
        %1937 = vmatprep.subr.bf16.mxu0 0
        %1938 = vmatpush2.bf16.msra.mxu0 0
        %1939 = vmatprep.subr.bf16.mxu0 0
        %1940 = vmatpush2.bf16.msra.mxu0 0
        %1941 = vmatprep.subr.bf16.mxu0 0
        %1942 = vmatpush2.bf16.msra.mxu0 0
        %1943 = vmatprep.mubr.bf16.mxu0 0
        %1944 = vmatmul.mubr.bf16.gmra.mxu0 %v1909
        %v1945 = vpop.f32.mrf.mxu0
        %v1946 = vadd.f32 0.0, %v1945
        %v1947 = vpop.f32.mrf.mxu0
        %v1948 = vpop.f32.mrf.mxu0
        %v1949 = vpop.f32.mrf.mxu0
        %1950 = vdwg.mxu0
        %v1955 = vunpack.c.l.b16 %v1887
        %v1956 = vunpack.c.l.b16 %v1888
        %v1957 = vunpack.c.l.b16 %v1889
        %v1958 = vunpack.c.l.b16 %v1890
        %v1959 = vpack.c.b16 %v1956, %v1955
        %v1960 = vpack.c.b16 %v1958, %v1957
        %1963 = vmatprep.subr.bf16.mxu0 0
        %1964 = vmatpush1.bf16.msra.mxu0 0
        %1965 = vmatprep.subr.bf16.mxu0 0
        %1966 = vmatpush1.bf16.msra.mxu0 0
        %1967 = vmatprep.subr.bf16.mxu0 0
        %1968 = vmatpush1.bf16.msra.mxu0 0
        %1969 = vmatprep.subr.bf16.mxu0 0
        %1970 = vmatpush1.bf16.msra.mxu0 0
        %1971 = vmatprep.subr.bf16.mxu0 0
        %1972 = vmatpush1.bf16.msra.mxu0 0
        %1973 = vmatprep.subr.bf16.mxu0 0
        %1974 = vmatpush1.bf16.msra.mxu0 0
        %1975 = vmatprep.subr.bf16.mxu0 0
        %1976 = vmatpush1.bf16.msra.mxu0 %v1960
        %1977 = vmatprep.subr.bf16.mxu0 0
        %1978 = vmatpush1.bf16.msra.mxu0 %v1959
        %1979 = vmatprep.subr.bf16.mxu0 0
        %1980 = vmatpush2.bf16.msra.mxu0 0
        %1981 = vmatprep.subr.bf16.mxu0 0
        %1982 = vmatpush2.bf16.msra.mxu0 0
        %1983 = vmatprep.subr.bf16.mxu0 0
        %1984 = vmatpush2.bf16.msra.mxu0 0
        %1985 = vmatprep.subr.bf16.mxu0 0
        %1986 = vmatpush2.bf16.msra.mxu0 0
        %1987 = vmatprep.subr.bf16.mxu0 0
        %1988 = vmatpush2.bf16.msra.mxu0 0
        %1989 = vmatprep.subr.bf16.mxu0 0
        %1990 = vmatpush2.bf16.msra.mxu0 0
        %1991 = vmatprep.subr.bf16.mxu0 0
        %1992 = vmatpush2.bf16.msra.mxu0 0
        %1993 = vmatprep.subr.bf16.mxu0 0
        %1994 = vmatpush2.bf16.msra.mxu0 0
        %1995 = vmatprep.mubr.bf16.mxu0 0
        %1996 = vmatmul.mubr.bf16.gmra.mxu0 %v1830
        %v1997 = vpop.f32.mrf.mxu0
        %v1998 = vadd.f32 %v1946, %v1997
        %v1999 = vpop.f32.mrf.mxu0
        %v2000 = vpop.f32.mrf.mxu0
        %v2001 = vpop.f32.mrf.mxu0
        %2002 = vdwg.mxu0
        %v2003 = vld [vmem:[#allocation8] sm:$0x1]
        %v2005 = vlaneseq
        %v2006 = vshrl.u32 %v2005, 7
        %v2007 = vsub.s32 0, %v2006
        %v2008 = vrot.slane %v2003, %v2007
        %v2010 = vadd.f32 %v1998, %v2008
        %v2011 = vpack.c.bf16 %v2010, %v2010
        %v2012 = vld [vmem:[%s33] sm:$0xf]
        %v2013 = vld [vmem:[%s33 + $0x4] sm:$0xf]
        %v2014 = vld [vmem:[%s33 + $0x8] sm:$0xf]
        %v2015 = vld [vmem:[%s33 + $0xc] sm:$0xf]
        %v2016 = vld [vmem:[#allocation10] sm:$0x1]
        %v2018 = vlaneseq
        %v2019 = vshrl.u32 %v2018, 7
        %v2020 = vsub.s32 0, %v2019
        %v2021 = vrot.slane %v2016, %v2020
        %v2027 = vunpack.c.l.b16 %v2012
        %v2028 = vunpack.c.l.b16 %v2013
        %v2029 = vunpack.c.l.b16 %v2014
        %v2030 = vunpack.c.l.b16 %v2015
        %v2031 = vpack.c.b16 %v2028, %v2027
        %v2032 = vpack.c.b16 %v2030, %v2029
        %v2036 = vsel %vm1469, %v2011, 0
        %2038 = vmatprep.subr.bf16.mxu0 0
        %2039 = vmatpush1.bf16.msra.mxu0 0
        %2040 = vmatprep.subr.bf16.mxu0 0
        %2041 = vmatpush1.bf16.msra.mxu0 0
        %2042 = vmatprep.subr.bf16.mxu0 0
        %2043 = vmatpush1.bf16.msra.mxu0 0
        %2044 = vmatprep.subr.bf16.mxu0 0
        %2045 = vmatpush1.bf16.msra.mxu0 0
        %2046 = vmatprep.subr.bf16.mxu0 0
        %2047 = vmatpush1.bf16.msra.mxu0 0
        %2048 = vmatprep.subr.bf16.mxu0 0
        %2049 = vmatpush1.bf16.msra.mxu0 0
        %2050 = vmatprep.subr.bf16.mxu0 0
        %2051 = vmatpush1.bf16.msra.mxu0 %v2032
        %2052 = vmatprep.subr.bf16.mxu0 0
        %2053 = vmatpush1.bf16.msra.mxu0 %v2031
        %2054 = vmatprep.subr.bf16.mxu0 0
        %2055 = vmatpush2.bf16.msra.mxu0 0
        %2056 = vmatprep.subr.bf16.mxu0 0
        %2057 = vmatpush2.bf16.msra.mxu0 0
        %2058 = vmatprep.subr.bf16.mxu0 0
        %2059 = vmatpush2.bf16.msra.mxu0 0
        %2060 = vmatprep.subr.bf16.mxu0 0
        %2061 = vmatpush2.bf16.msra.mxu0 0
        %2062 = vmatprep.subr.bf16.mxu0 0
        %2063 = vmatpush2.bf16.msra.mxu0 0
        %2064 = vmatprep.subr.bf16.mxu0 0
        %2065 = vmatpush2.bf16.msra.mxu0 0
        %2066 = vmatprep.subr.bf16.mxu0 0
        %2067 = vmatpush2.bf16.msra.mxu0 0
        %2068 = vmatprep.subr.bf16.mxu0 0
        %2069 = vmatpush2.bf16.msra.mxu0 0
        %2070 = vmatprep.mubr.bf16.mxu0 0
        %2071 = vmatmul.mubr.bf16.gmra.mxu0 %v2036
        %v2072 = vpop.f32.mrf.mxu0
        %v2073 = vadd.f32 %v2021, %v2072
        %v2074 = vpop.f32.mrf.mxu0
        %v2075 = vpop.f32.mrf.mxu0
        %v2076 = vpop.f32.mrf.mxu0
        %2077 = vdwg.mxu0
        %v2078 = vld [vmem:[%s37] sm:$0xf]
        %v2079 = vld [vmem:[%s37 + $0x4] sm:$0xf]
        %v2080 = vld [vmem:[%s37 + $0x8] sm:$0xf]
        %v2081 = vld [vmem:[%s37 + $0xc] sm:$0xf]
        %v2082 = vld [vmem:[#allocation11] sm:$0x1]
        %v2084 = vlaneseq
        %v2085 = vshrl.u32 %v2084, 7
        %v2086 = vsub.s32 0, %v2085
        %v2087 = vrot.slane %v2082, %v2086
        %v2093 = vunpack.c.l.b16 %v2078
        %v2094 = vunpack.c.l.b16 %v2079
        %v2095 = vunpack.c.l.b16 %v2080
        %v2096 = vunpack.c.l.b16 %v2081
        %v2097 = vpack.c.b16 %v2094, %v2093
        %v2098 = vpack.c.b16 %v2096, %v2095
        %2101 = vmatprep.subr.bf16.mxu0 0
        %2102 = vmatpush1.bf16.msra.mxu0 0
        %2103 = vmatprep.subr.bf16.mxu0 0
        %2104 = vmatpush1.bf16.msra.mxu0 0
        %2105 = vmatprep.subr.bf16.mxu0 0
        %2106 = vmatpush1.bf16.msra.mxu0 0
        %2107 = vmatprep.subr.bf16.mxu0 0
        %2108 = vmatpush1.bf16.msra.mxu0 0
        %2109 = vmatprep.subr.bf16.mxu0 0
        %2110 = vmatpush1.bf16.msra.mxu0 0
        %2111 = vmatprep.subr.bf16.mxu0 0
        %2112 = vmatpush1.bf16.msra.mxu0 0
        %2113 = vmatprep.subr.bf16.mxu0 0
        %2114 = vmatpush1.bf16.msra.mxu0 %v2098
        %2115 = vmatprep.subr.bf16.mxu0 0
        %2116 = vmatpush1.bf16.msra.mxu0 %v2097
        %2117 = vmatprep.subr.bf16.mxu0 0
        %2118 = vmatpush2.bf16.msra.mxu0 0
        %2119 = vmatprep.subr.bf16.mxu0 0
        %2120 = vmatpush2.bf16.msra.mxu0 0
        %2121 = vmatprep.subr.bf16.mxu0 0
        %2122 = vmatpush2.bf16.msra.mxu0 0
        %2123 = vmatprep.subr.bf16.mxu0 0
        %2124 = vmatpush2.bf16.msra.mxu0 0
        %2125 = vmatprep.subr.bf16.mxu0 0
        %2126 = vmatpush2.bf16.msra.mxu0 0
        %2127 = vmatprep.subr.bf16.mxu0 0
        %2128 = vmatpush2.bf16.msra.mxu0 0
        %2129 = vmatprep.subr.bf16.mxu0 0
        %2130 = vmatpush2.bf16.msra.mxu0 0
        %2131 = vmatprep.subr.bf16.mxu0 0
        %2132 = vmatpush2.bf16.msra.mxu0 0
        %2133 = vmatprep.mubr.bf16.mxu0 0
        %2134 = vmatmul.mubr.bf16.gmra.mxu0 %v2036
        %v2135 = vpop.f32.mrf.mxu0
        %v2136 = vadd.f32 %v2087, %v2135
        %v2137 = vpop.f32.mrf.mxu0
        %v2138 = vpop.f32.mrf.mxu0
        %v2139 = vpop.f32.mrf.mxu0
        %2140 = vdwg.mxu0
        %vm2141 = vcmask 519168
        %2142 = vst.msk [vmem:[#allocation4] sm:$0xf] %vm2141, %v2073
        %v2143 = vld [vmem:[%s41] sm:$0x1]
        %v2144 = vld [vmem:[%s41 + $0x1] sm:$0x1]
        %v2145 = vld [vmem:[%s41 + $0x2] sm:$0x1]
        %v2146 = vld [vmem:[%s41 + $0x3] sm:$0x1]
        %v2147 = vld [vmem:[#allocation13] sm:$0x1]
        %v2148 = vld [vmem:[#allocation14] sm:$0x1]
        %v2149 = vld [vmem:[#allocation16] sm:$0x1]
        %v2150 = vld [vmem:[#allocation17] sm:$0x1]
        %v2151 = vld [vmem:[#allocation19] sm:$0x1]
        %v2153 = vlaneseq
        %v2154 = vshrl.u32 %v2153, 7
        %v2155 = vsub.s32 0, %v2154
        %v2156 = vrot.slane %v2147, %v2155
        %v2158 = vadd.f32 %v2156, 0.0
        %s2159 = scalar_lea.vmem [#allocation4], 1
        %v2160 = vld [vmem:[%s2159] ss:$2 sm:$0x3]
        %v2161 = vlaneseq
        %v2162 = vshrl.u32 %v2161, 7
        %v2163 = vsub.s32 0, %v2162
        %v2164 = vrot.slane %v2146, %v2163
        %v2165 = vmul.f32 %v2164, %v2160
        %v2166 = vadd.f32 %v2158, %v2165
        %v2167 = vxor.u32 %v2166, 2147483648
        %v2168 = vmul.f32 %v2167, 1.442695
        %v2169 = vpow.pop %v2168
        %v2170 = vadd.f32 %v2169, 1.0
        %v2171 = vrcp.pop %v2170
        %v2172 = vmul.f32 1.0, %v2171
        %v2173 = vmul.f32 %v2166, %v2172
        %v2175 = vlaneseq
        %v2176 = vshrl.u32 %v2175, 7
        %v2177 = vsub.s32 0, %v2176
        %v2178 = vrot.slane %v2148, %v2177
        %v2180 = vmul.f32 %v2178, 0.0
        %v2182 = vlaneseq
        %v2183 = vshrl.u32 %v2182, 7
        %v2184 = vsub.s32 0, %v2183
        %v2185 = vrot.slane %v2149, %v2184
        %v2187 = vmul.f32 %v2185, %v2173
        %v2188 = vadd.f32 %v2180, %v2187
        %v2189 = vlaneseq
        %v2190 = vshrl.u32 %v2189, 7
        %v2191 = vsub.s32 0, %v2190
        %v2192 = vrot.slane %v2145, %v2191
        %v2193 = vmul.f32 %v2192, %v2160
        %v2194 = vadd.f32 %v2158, %v2193
        %v2195 = vld [vmem:[#allocation4] ss:$2 sm:$0x3]
        %v2196 = vmul.f32 %v2164, %v2195
        %v2197 = vadd.f32 %v2194, %v2196
        %v2198 = vxor.u32 %v2197, 2147483648
        %v2199 = vmul.f32 %v2198, 1.442695
        %v2200 = vpow.pop %v2199
        %v2201 = vadd.f32 %v2200, 1.0
        %v2202 = vrcp.pop %v2201
        %v2203 = vmul.f32 1.0, %v2202
        %v2204 = vmul.f32 %v2197, %v2203
        %v2205 = vmul.f32 %v2178, %v2188
        %v2206 = vmul.f32 %v2185, %v2204
        %v2207 = vadd.f32 %v2205, %v2206
        %v2208 = vlaneseq
        %v2209 = vshrl.u32 %v2208, 7
        %v2210 = vsub.s32 0, %v2209
        %v2211 = vrot.slane %v2144, %v2210
        %v2212 = vmul.f32 %v2211, %v2160
        %v2213 = vadd.f32 %v2158, %v2212
        %v2214 = vmul.f32 %v2192, %v2195
        %v2215 = vadd.f32 %v2213, %v2214
        %v2216 = vadd.f32 %v2215, %v2196
        %v2217 = vxor.u32 %v2216, 2147483648
        %v2218 = vmul.f32 %v2217, 1.442695
        %v2219 = vpow.pop %v2218
        %v2220 = vadd.f32 %v2219, 1.0
        %v2221 = vrcp.pop %v2220
        %v2222 = vmul.f32 1.0, %v2221
        %v2223 = vmul.f32 %v2216, %v2222
        %v2224 = vmul.f32 %v2178, %v2207
        %v2225 = vmul.f32 %v2185, %v2223
        %v2226 = vadd.f32 %v2224, %v2225
        %v2228 = vlaneseq
        %v2229 = vshrl.u32 %v2228, 7
        %v2230 = vsub.s32 0, %v2229
        %v2231 = vrot.slane %v2150, %v2230
        %v2233 = vmul.f32 %v2231, %v2226
        %v2235 = vlaneseq
        %v2236 = vshrl.u32 %v2235, 7
        %v2237 = vsub.s32 0, %v2236
        %v2238 = vrot.slane %v2151, %v2237
        %v2240 = vmul.f32 %v2238, %v2223
        %v2241 = vadd.f32 %v2233, %v2240
        %vm2242 = vcmask 517120
        %2243 = vst.msk [vmem:[#allocation5] sm:$0x3] %vm2242, %v2241
        %v2244 = vld [vmem:[%s2159] ss:$2 sm:$0x3]
        %v2245 = vlaneseq
        %v2246 = vshrl.u32 %v2245, 7
        %v2247 = vsub.s32 0, %v2246
        %v2248 = vrot.slane %v2143, %v2247
        %v2249 = vmul.f32 %v2248, %v2244
        %v2250 = vadd.f32 %v2158, %v2249
        %v2251 = vld [vmem:[#allocation4] ss:$2 sm:$0x3]
        %v2252 = vmul.f32 %v2211, %v2251
        %v2253 = vadd.f32 %v2250, %v2252
        %v2254 = vmul.f32 %v2192, %v2251
        %v2255 = vadd.f32 %v2253, %v2254
        %v2256 = vmul.f32 %v2164, %v2244
        %v2257 = vadd.f32 %v2255, %v2256
        %v2258 = vxor.u32 %v2257, 2147483648
        %v2259 = vmul.f32 %v2258, 1.442695
        %v2260 = vpow.pop %v2259
        %v2261 = vadd.f32 %v2260, 1.0
        %v2262 = vrcp.pop %v2261
        %v2263 = vmul.f32 1.0, %v2262
        %v2264 = vmul.f32 %v2257, %v2263
        %v2265 = vmul.f32 %v2178, %v2226
        %v2266 = vmul.f32 %v2185, %v2264
        %v2267 = vadd.f32 %v2265, %v2266
        %v2268 = vmul.f32 %v2231, %v2267
        %v2269 = vmul.f32 %v2238, %v2264
        %v2270 = vadd.f32 %v2268, %v2269
        %2271 = vst.msk [vmem:[#allocation5 + $0x2] sm:$0x3] %vm2242, %v2270
        %v2272 = vld [vmem:[%s67] sm:$0xf]
        %v2273 = vld [vmem:[#allocation5] sm:$0xf]
        %vm2274 = vcmask 31744
        %v2276 = vsel %vm2274, %v2272, 0
        %vm2278 = vcmask 1043456
        %v2280 = vsel %vm2278, %v2273, 0
        %2282 = vmatprep.subr.mxu0 0.0
        %2283 = vmatpush1.msra.mxu0 0.0
        %2284 = vmatprep.subr.mxu0 0.0
        %2285 = vmatpush1.msra.mxu0 0.0
        %2286 = vmatprep.subr.mxu0 0.0
        %2287 = vmatpush1.msra.mxu0 0.0
        %2288 = vmatprep.subr.mxu0 0.0
        %2289 = vmatpush1.msra.mxu0 0.0
        %2290 = vmatprep.subr.mxu0 0.0
        %2291 = vmatpush1.msra.mxu0 0.0
        %2292 = vmatprep.subr.mxu0 0.0
        %2293 = vmatpush1.msra.mxu0 0.0
        %2294 = vmatprep.subr.mxu0 0.0
        %2295 = vmatpush1.msra.mxu0 0.0
        %2296 = vmatprep.subr.mxu0 0.0
        %2297 = vmatpush1.msra.mxu0 0.0
        %2298 = vmatprep.subr.mxu0 0.0
        %2299 = vmatpush1.msra.mxu0 0.0
        %2300 = vmatprep.subr.mxu0 0.0
        %2301 = vmatpush1.msra.mxu0 0.0
        %2302 = vmatprep.subr.mxu0 0.0
        %2303 = vmatpush1.msra.mxu0 0.0
        %2304 = vmatprep.subr.mxu0 0.0
        %2305 = vmatpush1.msra.mxu0 0.0
        %2306 = vmatprep.subr.mxu0 0.0
        %2307 = vmatpush1.msra.mxu0 0.0
        %2308 = vmatprep.subr.mxu0 0.0
        %2309 = vmatpush1.msra.mxu0 0.0
        %2310 = vmatprep.subr.mxu0 0.0
        %2311 = vmatpush1.msra.mxu0 0.0
        %2312 = vmatprep.subr.mxu0 0.0
        %2313 = vmatpush1.msra.mxu0 %v2280
        %2314 = vmatprep.subr.mxu0 0.0
        %2315 = vmatpush2.msra.mxu0 0.0
        %2316 = vmatprep.subr.mxu0 0.0
        %2317 = vmatpush2.msra.mxu0 0.0
        %2318 = vmatprep.subr.mxu0 0.0
        %2319 = vmatpush2.msra.mxu0 0.0
        %2320 = vmatprep.subr.mxu0 0.0
        %2321 = vmatpush2.msra.mxu0 0.0
        %2322 = vmatprep.subr.mxu0 0.0
        %2323 = vmatpush2.msra.mxu0 0.0
        %2324 = vmatprep.subr.mxu0 0.0
        %2325 = vmatpush2.msra.mxu0 0.0
        %2326 = vmatprep.subr.mxu0 0.0
        %2327 = vmatpush2.msra.mxu0 0.0
        %2328 = vmatprep.subr.mxu0 0.0
        %2329 = vmatpush2.msra.mxu0 0.0
        %2330 = vmatprep.subr.mxu0 0.0
        %2331 = vmatpush2.msra.mxu0 0.0
        %2332 = vmatprep.subr.mxu0 0.0
        %2333 = vmatpush2.msra.mxu0 0.0
        %2334 = vmatprep.subr.mxu0 0.0
        %2335 = vmatpush2.msra.mxu0 0.0
        %2336 = vmatprep.subr.mxu0 0.0
        %2337 = vmatpush2.msra.mxu0 0.0
        %2338 = vmatprep.subr.mxu0 0.0
        %2339 = vmatpush2.msra.mxu0 0.0
        %2340 = vmatprep.subr.mxu0 0.0
        %2341 = vmatpush2.msra.mxu0 0.0
        %2342 = vmatprep.subr.mxu0 0.0
        %2343 = vmatpush2.msra.mxu0 0.0
        %2344 = vmatprep.subr.mxu0 0.0
        %2345 = vmatpush2.msra.mxu0 0.0
        %2346 = vmatprep.mubr.f32.mxu0 0.0
        %2347 = vmatmul.mubr.f32.gmra.mxu0 %v2276
        %v2348 = vpop.f32.mrf.mxu0
        %v2349 = vadd.f32 0.0, %v2348
        %v2350 = vpop.f32.mrf.mxu0
        %2351 = vdwg.mxu0
        %v2352 = vxor.u32 %v2136, 2147483648
        %v2353 = vmul.f32 %v2352, 1.442695
        %v2354 = vpow.pop %v2353
        %v2355 = vadd.f32 %v2354, 1.0
        %v2356 = vrcp.pop %v2355
        %v2357 = vmul.f32 1.0, %v2356
        %v2358 = vmul.f32 %v2136, %v2357
        %v2359 = vmul.f32 %v2349, %v2358
        %v2360 = vpack.c.bf16 %v2359, %v2359
        %v2361 = vld [vmem:[%s53] sm:$0xf]
        %v2362 = vld [vmem:[%s53 + $0x4] sm:$0xf]
        %v2363 = vld [vmem:[%s53 + $0x8] sm:$0xf]
        %v2364 = vld [vmem:[%s53 + $0xc] sm:$0xf]
        %v2365 = vld [vmem:[%s53 + $0x10] sm:$0xf]
        %v2366 = vld [vmem:[%s53 + $0x14] sm:$0xf]
        %v2367 = vld [vmem:[%s53 + $0x18] sm:$0xf]
        %v2368 = vld [vmem:[%s53 + $0x1c] sm:$0xf]
        %v2369 = vld [vmem:[#allocation20] sm:$0x1]
        %v2371 = vlaneseq
        %v2372 = vshrl.u32 %v2371, 7
        %v2373 = vsub.s32 0, %v2372
        %v2374 = vrot.slane %v2369, %v2373
        %v2384 = vunpack.c.l.b16 %v2361
        %v2385 = vunpack.c.l.b16 %v2362
        %v2386 = vunpack.c.l.b16 %v2363
        %v2387 = vunpack.c.l.b16 %v2364
        %v2388 = vunpack.c.l.b16 %v2365
        %v2389 = vunpack.c.l.b16 %v2366
        %v2390 = vunpack.c.l.b16 %v2367
        %v2391 = vunpack.c.l.b16 %v2368
        %v2392 = vpack.c.b16 %v2385, %v2384
        %v2393 = vpack.c.b16 %v2387, %v2386
        %v2394 = vpack.c.b16 %v2389, %v2388
        %v2395 = vpack.c.b16 %v2391, %v2390
        %vm2400 = vcmask 523264
        %v2402 = vsel %vm2400, %v2360, 0
        %2404 = vmatprep.subr.bf16.mxu0 0
        %2405 = vmatpush1.bf16.msra.mxu0 0
        %2406 = vmatprep.subr.bf16.mxu0 0
        %2407 = vmatpush1.bf16.msra.mxu0 0
        %2408 = vmatprep.subr.bf16.mxu0 0
        %2409 = vmatpush1.bf16.msra.mxu0 0
        %2410 = vmatprep.subr.bf16.mxu0 0
        %2411 = vmatpush1.bf16.msra.mxu0 0
        %2412 = vmatprep.subr.bf16.mxu0 0
        %2413 = vmatpush1.bf16.msra.mxu0 %v2395
        %2414 = vmatprep.subr.bf16.mxu0 0
        %2415 = vmatpush1.bf16.msra.mxu0 %v2394
        %2416 = vmatprep.subr.bf16.mxu0 0
        %2417 = vmatpush1.bf16.msra.mxu0 %v2393
        %2418 = vmatprep.subr.bf16.mxu0 0
        %2419 = vmatpush1.bf16.msra.mxu0 %v2392
        %2420 = vmatprep.subr.bf16.mxu0 0
        %2421 = vmatpush2.bf16.msra.mxu0 0
        %2422 = vmatprep.subr.bf16.mxu0 0
        %2423 = vmatpush2.bf16.msra.mxu0 0
        %2424 = vmatprep.subr.bf16.mxu0 0
        %2425 = vmatpush2.bf16.msra.mxu0 0
        %2426 = vmatprep.subr.bf16.mxu0 0
        %2427 = vmatpush2.bf16.msra.mxu0 0
        %2428 = vmatprep.subr.bf16.mxu0 0
        %2429 = vmatpush2.bf16.msra.mxu0 0
        %2430 = vmatprep.subr.bf16.mxu0 0
        %2431 = vmatpush2.bf16.msra.mxu0 0
        %2432 = vmatprep.subr.bf16.mxu0 0
        %2433 = vmatpush2.bf16.msra.mxu0 0
        %2434 = vmatprep.subr.bf16.mxu0 0
        %2435 = vmatpush2.bf16.msra.mxu0 0
        %2436 = vmatprep.mubr.bf16.mxu0 0
        %2437 = vmatmul.mubr.bf16.gmra.mxu0 %v2402
        %v2438 = vpop.f32.mrf.mxu0
        %v2439 = vadd.f32 %v2374, %v2438
        %v2440 = vpop.f32.mrf.mxu0
        %v2441 = vpop.f32.mrf.mxu0
        %v2442 = vpop.f32.mrf.mxu0
        %2443 = vdwg.mxu0
        %v2444 = vadd.f32 %v2010, %v2439
        %vm2445 = vcmask 257024
        %v2446 = vsel %vm2445, %v2444, 0.0
        %2447 = vadd.xlane.f32.xlu0 %v2446
        %v2448 = vpop.xlane.xlu0 %2447
        %v2449 = vrcp.pop 32.0
        %v2450 = vmul.f32 %v2448, %v2449
        %v2451 = vsub.f32 %v2444, %v2450
        %v2452 = vmul.f32 %v2451, %v2451
        %v2453 = vsel %vm2445, %v2452, 0.0
        %2454 = vadd.xlane.f32.xlu0 %v2453
        %v2455 = vpop.xlane.xlu0 %2454
        %v2456 = vmul.f32 %v2455, %v2449
        %v2457 = vadd.f32 %v2456, 1e-05
        %v2458 = vrsqrt.pop %v2457
        %v2459 = vmul.f32 %v2451, %v2458
        %v2460 = vld [vmem:[#allocation22] sm:$0x1]
        %v2462 = vlaneseq
        %v2463 = vshrl.u32 %v2462, 7
        %v2464 = vsub.s32 0, %v2463
        %v2465 = vrot.slane %v2460, %v2464
        %v2467 = vmul.f32 %v2459, %v2465
        %v2468 = vld [vmem:[#allocation23] sm:$0x1]
        %v2470 = vlaneseq
        %v2471 = vshrl.u32 %v2470, 7
        %v2472 = vsub.s32 0, %v2471
        %v2473 = vrot.slane %v2468, %v2472
        %v2475 = vadd.f32 %v2467, %v2473
        %v2476 = vpack.c.bf16 %v2475, %v2475
        %v2477 = vld [vmem:[%s63] sm:$0xf]
        %v2478 = vld [vmem:[%s63 + $0x4] sm:$0xf]
        %v2479 = vld [vmem:[%s63 + $0x8] sm:$0xf]
        %v2480 = vld [vmem:[%s63 + $0xc] sm:$0xf]
        %v2481 = vld [vmem:[#allocation25] sm:$0x1]
        %v2483 = vlaneseq
        %v2484 = vshrl.u32 %v2483, 7
        %v2485 = vsub.s32 0, %v2484
        %v2486 = vrot.slane %v2481, %v2485
        %v2492 = vunpack.c.l.b16 %v2477
        %v2493 = vunpack.c.l.b16 %v2478
        %v2494 = vunpack.c.l.b16 %v2479
        %v2495 = vunpack.c.l.b16 %v2480
        %v2496 = vpack.c.b16 %v2493, %v2492
        %v2497 = vpack.c.b16 %v2495, %v2494
        %v2501 = vsel %vm1469, %v2476, 0
        %2503 = vmatprep.subr.bf16.mxu0 0
        %2504 = vmatpush1.bf16.msra.mxu0 0
        %2505 = vmatprep.subr.bf16.mxu0 0
        %2506 = vmatpush1.bf16.msra.mxu0 0
        %2507 = vmatprep.subr.bf16.mxu0 0
        %2508 = vmatpush1.bf16.msra.mxu0 0
        %2509 = vmatprep.subr.bf16.mxu0 0
        %2510 = vmatpush1.bf16.msra.mxu0 0
        %2511 = vmatprep.subr.bf16.mxu0 0
        %2512 = vmatpush1.bf16.msra.mxu0 0
        %2513 = vmatprep.subr.bf16.mxu0 0
        %2514 = vmatpush1.bf16.msra.mxu0 0
        %2515 = vmatprep.subr.bf16.mxu0 0
        %2516 = vmatpush1.bf16.msra.mxu0 %v2497
        %2517 = vmatprep.subr.bf16.mxu0 0
        %2518 = vmatpush1.bf16.msra.mxu0 %v2496
        %2519 = vmatprep.subr.bf16.mxu0 0
        %2520 = vmatpush2.bf16.msra.mxu0 0
        %2521 = vmatprep.subr.bf16.mxu0 0
        %2522 = vmatpush2.bf16.msra.mxu0 0
        %2523 = vmatprep.subr.bf16.mxu0 0
        %2524 = vmatpush2.bf16.msra.mxu0 0
        %2525 = vmatprep.subr.bf16.mxu0 0
        %2526 = vmatpush2.bf16.msra.mxu0 0
        %2527 = vmatprep.subr.bf16.mxu0 0
        %2528 = vmatpush2.bf16.msra.mxu0 0
        %2529 = vmatprep.subr.bf16.mxu0 0
        %2530 = vmatpush2.bf16.msra.mxu0 0
        %2531 = vmatprep.subr.bf16.mxu0 0
        %2532 = vmatpush2.bf16.msra.mxu0 0
        %2533 = vmatprep.subr.bf16.mxu0 0
        %2534 = vmatpush2.bf16.msra.mxu0 0
        %2535 = vmatprep.mubr.bf16.mxu0 0
        %2536 = vmatmul.mubr.bf16.gmra.mxu0 %v2501
        %v2537 = vpop.f32.mrf.mxu0
        %v2538 = vadd.f32 %v2486, %v2537
        %v2539 = vpop.f32.mrf.mxu0
        %v2540 = vpop.f32.mrf.mxu0
        %v2541 = vpop.f32.mrf.mxu0
        %2542 = vdwg.mxu0
        %v2543 = vld [vmem:[%s69] sm:$0xff]
        %v2544 = vld [vmem:[%s69 + $0x8] sm:$0xff]
        %v2545 = vld [vmem:[%s69 + $0x10] sm:$0xff]
        %v2546 = vld [vmem:[%s69 + $0x18] sm:$0xff]
        %v2548 = vsel %vm2274, %v2543, 0
        %v2551 = vsel %vm2274, %v2544, 0
        %v2554 = vsel %vm2274, %v2545, 0
        %v2557 = vsel %vm2274, %v2546, 0
        %v2560 = vsel %vm2278, %v2538, 0
        %2562 = vmatprep.subr.mxu0 0.0
        %2563 = vmatpush1.msra.mxu0 0.0
        %2564 = vmatprep.subr.mxu0 0.0
        %2565 = vmatpush1.msra.mxu0 0.0
        %2566 = vmatprep.subr.mxu0 0.0
        %2567 = vmatpush1.msra.mxu0 0.0
        %2568 = vmatprep.subr.mxu0 0.0
        %2569 = vmatpush1.msra.mxu0 0.0
        %2570 = vmatprep.subr.mxu0 0.0
        %2571 = vmatpush1.msra.mxu0 0.0
        %2572 = vmatprep.subr.mxu0 0.0
        %2573 = vmatpush1.msra.mxu0 0.0
        %2574 = vmatprep.subr.mxu0 0.0
        %2575 = vmatpush1.msra.mxu0 0.0
        %2576 = vmatprep.subr.mxu0 0.0
        %2577 = vmatpush1.msra.mxu0 0.0
        %2578 = vmatprep.subr.mxu0 0.0
        %2579 = vmatpush1.msra.mxu0 0.0
        %2580 = vmatprep.subr.mxu0 0.0
        %2581 = vmatpush1.msra.mxu0 0.0
        %2582 = vmatprep.subr.mxu0 0.0
        %2583 = vmatpush1.msra.mxu0 0.0
        %2584 = vmatprep.subr.mxu0 0.0
        %2585 = vmatpush1.msra.mxu0 0.0
        %2586 = vmatprep.subr.mxu0 0.0
        %2587 = vmatpush1.msra.mxu0 0.0
        %2588 = vmatprep.subr.mxu0 0.0
        %2589 = vmatpush1.msra.mxu0 0.0
        %2590 = vmatprep.subr.mxu0 0.0
        %2591 = vmatpush1.msra.mxu0 0.0
        %2592 = vmatprep.subr.mxu0 0.0
        %2593 = vmatpush1.msra.mxu0 %v2560
        %2594 = vmatprep.subr.mxu0 0.0
        %2595 = vmatpush2.msra.mxu0 0.0
        %2596 = vmatprep.subr.mxu0 0.0
        %2597 = vmatpush2.msra.mxu0 0.0
        %2598 = vmatprep.subr.mxu0 0.0
        %2599 = vmatpush2.msra.mxu0 0.0
        %2600 = vmatprep.subr.mxu0 0.0
        %2601 = vmatpush2.msra.mxu0 0.0
        %2602 = vmatprep.subr.mxu0 0.0
        %2603 = vmatpush2.msra.mxu0 0.0
        %2604 = vmatprep.subr.mxu0 0.0
        %2605 = vmatpush2.msra.mxu0 0.0
        %2606 = vmatprep.subr.mxu0 0.0
        %2607 = vmatpush2.msra.mxu0 0.0
        %2608 = vmatprep.subr.mxu0 0.0
        %2609 = vmatpush2.msra.mxu0 0.0
        %2610 = vmatprep.subr.mxu0 0.0
        %2611 = vmatpush2.msra.mxu0 0.0
        %2612 = vmatprep.subr.mxu0 0.0
        %2613 = vmatpush2.msra.mxu0 0.0
        %2614 = vmatprep.subr.mxu0 0.0
        %2615 = vmatpush2.msra.mxu0 0.0
        %2616 = vmatprep.subr.mxu0 0.0
        %2617 = vmatpush2.msra.mxu0 0.0
        %2618 = vmatprep.subr.mxu0 0.0
        %2619 = vmatpush2.msra.mxu0 0.0
        %2620 = vmatprep.subr.mxu0 0.0
        %2621 = vmatpush2.msra.mxu0 0.0
        %2622 = vmatprep.subr.mxu0 0.0
        %2623 = vmatpush2.msra.mxu0 0.0
        %2624 = vmatprep.subr.mxu0 0.0
        %2625 = vmatpush2.msra.mxu0 0.0
        %2626 = vmatprep.mubr.f32.mxu0 0.0
        %2627 = vmatmul.mubr.f32.gmra.mxu0 %v2548
        %v2628 = vpop.f32.mrf.mxu0
        %v2629 = vadd.f32 0.0, %v2628
        %v2630 = vpop.f32.mrf.mxu0
        %2631 = vmatprep.mubr.f32.mxu0 0.0
        %2632 = vmatmul.mubr.f32.gmra.mxu0 %v2551
        %v2633 = vpop.f32.mrf.mxu0
        %v2634 = vadd.f32 0.0, %v2633
        %v2635 = vpop.f32.mrf.mxu0
        %2636 = vmatprep.mubr.f32.mxu0 0.0
        %2637 = vmatmul.mubr.f32.gmra.mxu0 %v2554
        %v2638 = vpop.f32.mrf.mxu0
        %v2639 = vadd.f32 0.0, %v2638
        %v2640 = vpop.f32.mrf.mxu0
        %2641 = vmatprep.mubr.f32.mxu0 0.0
        %2642 = vmatmul.mubr.f32.gmra.mxu0 %v2557
        %v2643 = vpop.f32.mrf.mxu0
        %v2644 = vadd.f32 0.0, %v2643
        %v2645 = vpop.f32.mrf.mxu0
        %2646 = vdwg.mxu0
        %v2647 = vld [vmem:[%s61] sm:$0xf]
        %v2648 = vld [vmem:[%s61 + $0x4] sm:$0xf]
        %v2649 = vld [vmem:[%s61 + $0x8] sm:$0xf]
        %v2650 = vld [vmem:[%s61 + $0xc] sm:$0xf]
        %v2651 = vadd.s32 %v1545, 8
        %v2652 = vadd.s32 %v1545, 16
        %v2653 = vadd.s32 %v1545, 24
        %vm2654 = vcmp.eq.s32.totalorder %v1545, 0
        %vm2655 = vcmp.eq.s32.totalorder %v2651, 0
        %vm2656 = vcmp.eq.s32.totalorder %v2652, 0
        %vm2657 = vcmp.eq.s32.totalorder %v2653, 0
        %vm2658 = vcmp.eq.s32.totalorder %v1545, 16
        %vm2659 = vcmp.eq.s32.totalorder %v2651, 16
        %vm2660 = vcmp.eq.s32.totalorder %v2652, 16
        %vm2661 = vcmp.eq.s32.totalorder %v2653, 16
        %vm2662 = vmor %vm2654, %vm2658
        %vm2663 = vmor %vm2655, %vm2659
        %vm2664 = vmor %vm2656, %vm2660
        %vm2665 = vmor %vm2657, %vm2661
        %v2670 = vunpack.c.l.b16 %v2647
        %v2671 = vunpack.c.l.b16 %v2648
        %v2672 = vunpack.c.l.b16 %v2649
        %v2673 = vunpack.c.l.b16 %v2650
        %v2674 = vpack.c.b16 %v2671, %v2670
        %v2675 = vpack.c.b16 %v2673, %v2672
        %2678 = vmatprep.subr.bf16.mxu0 0
        %2679 = vmatpush1.bf16.msra.mxu0 0
        %2680 = vmatprep.subr.bf16.mxu0 0
        %2681 = vmatpush1.bf16.msra.mxu0 0
        %2682 = vmatprep.subr.bf16.mxu0 0
        %2683 = vmatpush1.bf16.msra.mxu0 0
        %2684 = vmatprep.subr.bf16.mxu0 0
        %2685 = vmatpush1.bf16.msra.mxu0 0
        %2686 = vmatprep.subr.bf16.mxu0 0
        %2687 = vmatpush1.bf16.msra.mxu0 0
        %2688 = vmatprep.subr.bf16.mxu0 0
        %2689 = vmatpush1.bf16.msra.mxu0 0
        %2690 = vmatprep.subr.bf16.mxu0 0
        %2691 = vmatpush1.bf16.msra.mxu0 %v2675
        %2692 = vmatprep.subr.bf16.mxu0 0
        %2693 = vmatpush1.bf16.msra.mxu0 %v2674
        %2694 = vmatprep.subr.bf16.mxu0 0
        %2695 = vmatpush2.bf16.msra.mxu0 0
        %2696 = vmatprep.subr.bf16.mxu0 0
        %2697 = vmatpush2.bf16.msra.mxu0 0
        %2698 = vmatprep.subr.bf16.mxu0 0
        %2699 = vmatpush2.bf16.msra.mxu0 0
        %2700 = vmatprep.subr.bf16.mxu0 0
        %2701 = vmatpush2.bf16.msra.mxu0 0
        %2702 = vmatprep.subr.bf16.mxu0 0
        %2703 = vmatpush2.bf16.msra.mxu0 0
        %2704 = vmatprep.subr.bf16.mxu0 0
        %2705 = vmatpush2.bf16.msra.mxu0 0
        %2706 = vmatprep.subr.bf16.mxu0 0
        %2707 = vmatpush2.bf16.msra.mxu0 0
        %2708 = vmatprep.subr.bf16.mxu0 0
        %2709 = vmatpush2.bf16.msra.mxu0 0
        %2710 = vmatprep.mubr.bf16.mxu0 0
        %2711 = vmatmul.mubr.bf16.gmra.mxu0 %v1471
        %v2712 = vpop.f32.mrf.mxu0
        %v2713 = vadd.f32 %v2629, %v2712
        %v2714 = vpop.f32.mrf.mxu0
        %v2715 = vpop.f32.mrf.mxu0
        %v2716 = vadd.f32 %v2634, %v2715
        %v2717 = vpop.f32.mrf.mxu0
        %2718 = vmatprep.mubr.bf16.mxu0 0
        %2719 = vmatmul.mubr.bf16.gmra.mxu0 %v1474
        %v2720 = vpop.f32.mrf.mxu0
        %v2721 = vadd.f32 %v2639, %v2720
        %v2722 = vpop.f32.mrf.mxu0
        %v2723 = vpop.f32.mrf.mxu0
        %v2724 = vadd.f32 %v2644, %v2723
        %v2725 = vpop.f32.mrf.mxu0
        %2726 = vdwg.mxu0
        %v2727 = vsel %vm2662, 1, 0
        %v2728 = vsel %vm2663, 1, 0
        %v2729 = vsel %vm2664, 1, 0
        %v2730 = vsel %vm2665, 1, 0
        %vm2731 = vcmp.eq.s32.totalorder %v2727, 1
        %vm2732 = vcmp.eq.s32.totalorder %v2728, 1
        %vm2733 = vcmp.eq.s32.totalorder %v2729, 1
        %vm2734 = vcmp.eq.s32.totalorder %v2730, 1
        %v2735 = vsel %vm2731, %v1369, %v2713
        %v2736 = vsel %vm2732, %v1370, %v2716
        %v2737 = vsel %vm2733, %v1371, %v2721
        %v2738 = vsel %vm2734, %v1372, %v2724
        %v2739 = vsel %vm1469, %v2735, 0.0
        %2740 = vadd.xlane.f32.xlu0 %v2739
        %v2741 = vpop.xlane.xlu0 %2740
        %v2742 = vsel %vm1469, %v2736, 0.0
        %2743 = vadd.xlane.f32.xlu0 %v2742
        %v2744 = vpop.xlane.xlu0 %2743
        %v2745 = vsel %vm1469, %v2737, 0.0
        %2746 = vadd.xlane.f32.xlu0 %v2745
        %v2747 = vpop.xlane.xlu0 %2746
        %v2748 = vsel %vm1469, %v2738, 0.0
        %2749 = vadd.xlane.f32.xlu0 %v2748
        %v2750 = vpop.xlane.xlu0 %2749
        %v2751 = vmul.f32 %v2741, %v2449
        %v2752 = vmul.f32 %v2744, %v2449
        %v2753 = vmul.f32 %v2747, %v2449
        %v2754 = vmul.f32 %v2750, %v2449
        %v2755 = vsub.f32 %v2735, %v2751
        %v2756 = vsub.f32 %v2736, %v2752
        %v2757 = vsub.f32 %v2737, %v2753
        %v2758 = vsub.f32 %v2738, %v2754
        %v2759 = vmul.f32 %v2755, %v2755
        %v2760 = vmul.f32 %v2756, %v2756
        %v2761 = vmul.f32 %v2757, %v2757
        %v2762 = vmul.f32 %v2758, %v2758
        %v2763 = vsel %vm1469, %v2759, 0.0
        %2764 = vadd.xlane.f32.xlu0 %v2763
        %v2765 = vpop.xlane.xlu0 %2764
        %v2766 = vsel %vm1469, %v2760, 0.0
        %2767 = vadd.xlane.f32.xlu0 %v2766
        %v2768 = vpop.xlane.xlu0 %2767
        %v2769 = vsel %vm1469, %v2761, 0.0
        %2770 = vadd.xlane.f32.xlu0 %v2769
        %v2771 = vpop.xlane.xlu0 %2770
        %v2772 = vsel %vm1469, %v2762, 0.0
        %2773 = vadd.xlane.f32.xlu0 %v2772
        %v2774 = vpop.xlane.xlu0 %2773
        %v2775 = vmul.f32 %v2765, %v2449
        %v2776 = vmul.f32 %v2768, %v2449
        %v2777 = vmul.f32 %v2771, %v2449
        %v2778 = vmul.f32 %v2774, %v2449
        %v2779 = vadd.f32 %v2775, 1e-05
        %v2780 = vadd.f32 %v2776, 1e-05
        %v2781 = vadd.f32 %v2777, 1e-05
        %v2782 = vadd.f32 %v2778, 1e-05
        %v2783 = vrsqrt.pop %v2779
        %v2784 = vrsqrt.pop %v2780
        %v2785 = vrsqrt.pop %v2781
        %v2786 = vrsqrt.pop %v2782
        %v2787 = vmul.f32 %v2755, %v2783
        %v2788 = vmul.f32 %v2756, %v2784
        %v2789 = vmul.f32 %v2757, %v2785
        %v2790 = vmul.f32 %v2758, %v2786
        %v2791 = vld [vmem:[#allocation26] sm:$0x1]
        %v2793 = vlaneseq
        %v2794 = vshrl.u32 %v2793, 7
        %v2795 = vsub.s32 0, %v2794
        %v2796 = vrot.slane %v2791, %v2795
        %v2798 = vmul.f32 %v2787, %v2796
        %v2799 = vmul.f32 %v2788, %v2796
        %v2800 = vmul.f32 %v2789, %v2796
        %v2801 = vmul.f32 %v2790, %v2796
        %v2802 = vld [vmem:[#allocation28] sm:$0x1]
        %v2804 = vlaneseq
        %v2805 = vshrl.u32 %v2804, 7
        %v2806 = vsub.s32 0, %v2805
        %v2807 = vrot.slane %v2802, %v2806
        %v2809 = vadd.f32 %v2798, %v2807
        %v2810 = vadd.f32 %v2799, %v2807
        %v2811 = vadd.f32 %v2800, %v2807
        %v2812 = vadd.f32 %v2801, %v2807
        %2813 = vst.msk [vmem:[%s1338] sm:$0xff] %vm1469, %v2809
        %2814 = vst.msk [vmem:[%s1338 + $0x8] sm:$0xff] %vm1469, %v2810
        %2815 = vst.msk [vmem:[%s1338 + $0x10] sm:$0xff] %vm1469, %v2811
        %2816 = vst.msk [vmem:[%s1338 + $0x18] sm:$0xff] %vm1469, %v2812
        %s2817 = smul.u32 4, %s94
        %p2818 = scmp.lt.s32.totalorder %s2817, 7
        %s2819 = scalar_select %p2818, %s2817, 7
        %s2820 = smul.addr %s2819, 8
        %s2821 = scalar_lea.vmem %s75, %s2820
        // Predicated region
        $region229: #{stage_block.4} parent=167 // pred_check
          %p2822 = pneg %p899
        $region230: #{stage_block.4} parent=167 // pred_check_branch
          %2824 = sbr.rel (%p2822) target = $region232
        $region231: #{stage_block.4} parent=167 // pred_region
          %s2825 = smul.u32 4, %s94
        $region232: #{stage_block.4} parent=167 // pred_fallthru
          _
      $region168: #{stage_block.4} parent=5 // pred_fallthru
        _
      %p2826 = scmp.le.s32.totalorder 2, %s89
      // Predicated region
      $region233: #{stage_block.4} parent=5 // pred_check
        %p2827 = pneg %p2826
      $region234: #{stage_block.4} parent=5 // pred_check_branch
        %2829 = sbr.rel (%p2827) target = $region236
      $region235: #{stage_block.4} parent=5 // pred_region
        %s2830 = ssub.s32 %s89, 2
        // Predicated region
        $region237: #{stage_block.4} parent=235 // pred_check
          %p2831 = pneg %p905
        $region238: #{stage_block.4} parent=235 // pred_check_branch
          %2833 = sbr.rel (%p2831) target = $region240
        $region239: #{stage_block.4} parent=235 // pred_region
          %s2834 = smul.u32 4, %s95
          %p2835 = scmp.lt.s32.totalorder %s2834, 7
          %s2836 = scalar_select %p2835, %s2834, 7
          %s2837 = smul.addr %s2836, 8
          %s2838 = scalar_lea.vmem %s75, %s2837
        $region240: #{stage_block.4} parent=235 // pred_fallthru
          _
      $region236: #{stage_block.4} parent=5 // pred_fallthru
        _
    $region6: #{stage_block.4} parent=1 // loop_footer
      %s93 = sadd.s32 1, %s89
    $region7: #{stage_block.4} parent=1 // loop_footer_branch
      %88 = sbr.rel target = $region3
    $region8: #{stage_block.4} parent=1 // loop_exit
      _
    %2839 = vsyncpa [#allocation7], 1
    %s2840 = scalar_lea.sflag [#allocation7], 1
    %2841 = vsyncpa %s2840, 1
    %2842 = vsyncpa [#allocation9], 1
    %2843 = vsyncpa [#allocation12], 1
    %2844 = vsyncpa [#allocation15], 1
    %2845 = vsyncpa [#allocation18], 1
    %2846 = vsyncpa [#allocation21], 1
    %2847 = vsyncpa [#allocation24], 1
    %2848 = vsyncpa [#allocation27], 1

</llo_original>
